<compile_context>
chip_gen: v6e
topology: v6e:2x2x1
jax: 0.10.0
libtpu: 0.0.40
codegen_flags: <defaults>
</compile_context>

<pallas_src>
import math
import functools

import jax
import jax.numpy as jnp
from jax.experimental import pallas as pl
from jax.experimental.pallas import tpu as pltpu


# ------------------------------------------------------------------ kernel ---
def _sinekan_fused_kernel(x_ref, *refs, num_layers):
    # x_ref : (tm, in_dim) f32 row tile
    # refs  : [A_0, B_0, bias_0, A_1, B_1, bias_1, ..., o_ref]
    #   A_l, B_l : (d_{l-1}, d_l) f32   (full arrays, VMEM-resident)
    #   bias_l   : (1, d_l)       f32
    # o_ref : (tm, out_pad) f32  (out_pad = out_dim rounded up to 128 lanes)
    o_ref = refs[-1]
    h = x_ref[...]
    for l in range(num_layers):  # static unroll over layers (small, fixed)
        a_ref = refs[3 * l]
        b_ref = refs[3 * l + 1]
        bias_ref = refs[3 * l + 2]
        s = jnp.sin(h)
        c = jnp.cos(h)
        h = (jnp.dot(s, a_ref[...], preferred_element_type=jnp.float32)
             + jnp.dot(c, b_ref[...], preferred_element_type=jnp.float32)
             + bias_ref[...])
    o_ref[...] = h.astype(o_ref.dtype)


# ------------------------------------------------------- parameter building ---
_A, _K, _C = 0.9724108095811765, 0.9884401790754128, 0.999449553483052


def make_sinekan_layer_params(key, input_dim, output_dim, grid_size, is_first,
                              pad_out_to=None):
    """Deterministic re-implementation of SineKANLayer.__init__ plus the
    angle-addition repacking used by the fused kernel."""
    grid_norm = (jnp.arange(grid_size, dtype=jnp.float32) + 1.0).reshape(1, 1, grid_size)
    if is_first:
        base = jax.random.normal(key, (output_dim, input_dim, 1), jnp.float32) * 0.4
    else:
        base = jax.random.uniform(key, (output_dim, input_dim, 1), jnp.float32,
                                  minval=-1.0, maxval=1.0)
    coeffs = base / output_dim / grid_norm                       # (od, id, G)

    grid_phase = (jnp.arange(1, grid_size + 1, dtype=jnp.float32)
                  / (grid_size + 1)).reshape(1, grid_size)
    input_phase = jnp.linspace(0.0, math.pi, input_dim,
                               dtype=jnp.float32).reshape(input_dim, 1)
    phase = grid_phase + input_phase                             # (id, G)
    # NOTE: matches the PyTorch code exactly — the WHOLE phase matrix is
    # rescaled cumulatively each step (forward_step(phase, i, A, K, C)).
    for i in range(1, grid_size):
        phase = (_A * float(i) ** (-_K) + _C) * phase

    bias = jnp.ones((1, output_dim), jnp.float32) / output_dim

    # Angle-addition repack:
    #   sum_g sin(x_k + phase[k,g]) * coeff[j,k,g]
    #     = sin(x_k) * A[k,j] + cos(x_k) * B[k,j]
    a_mat = jnp.einsum("kg,jkg->kj", jnp.cos(phase), coeffs)     # (id, od)
    b_mat = jnp.einsum("kg,jkg->kj", jnp.sin(phase), coeffs)     # (id, od)
    bias_k = bias

    if pad_out_to is not None and pad_out_to > output_dim:
        pad = pad_out_to - output_dim
        a_mat = jnp.pad(a_mat, ((0, 0), (0, pad)))
        b_mat = jnp.pad(b_mat, ((0, 0), (0, pad)))
        bias_k = jnp.pad(bias_k, ((0, 0), (0, pad)))

    return dict(coeffs=coeffs, phase=phase, bias=bias,          # reference form
                a=a_mat, b=b_mat, bias_k=bias_k,                 # kernel form
                out_dim=output_dim)


def make_sinekan_params(key, in_dim, out_dim, hidden_list, grid_size=8):
    params = []
    lastv = in_dim
    dims = list(hidden_list) + [out_dim]
    for i, h in enumerate(dims):
        key, sub = jax.random.split(key)
        is_last = (i == len(dims) - 1)
        # Lane-dense final output: pad the last layer's output dim to 128.
        pad_out_to = ((h + 127) // 128) * 128 if is_last else None
        params.append(make_sinekan_layer_params(
            sub, lastv, h, grid_size, is_first=(i == 0), pad_out_to=pad_out_to))
        lastv = h
    return params


# -------------------------------------------------------------- full model ---
def sinekan_forward(x, params, *, tm=512):
    """Fused SineKAN forward: one pallas_call over row tiles for all layers."""
    lead_shape = x.shape[:-1]
    h = x.reshape(-1, x.shape[-1]).astype(jnp.float32)
    N, in_dim = h.shape
    num_layers = len(params)
    out_dim = params[-1]["out_dim"]
    out_pad = params[-1]["a"].shape[1]   # 128-lane-padded final width

    # Row tile: big for large N (sweepable), clamped (to a multiple of 8) for
    # small N.  Ragged tail handled by Pallas masked stores; no jnp.pad copy.
    tm_eff = min(tm, max(8, ((N + 7) // 8) * 8))
    grid = (pl.cdiv(N, tm_eff),)

    flat_params = []
    in_specs = [pl.BlockSpec((tm_eff, in_dim), lambda i: (i, 0))]
    for p in params:
        for name in ("a", "b", "bias_k"):
            arr = p[name]
            flat_params.append(arr)
            # Full-array, constant-index blocks: DMA'd once, VMEM-resident.
            in_specs.append(pl.BlockSpec(arr.shape, lambda i: (0, 0)))

    out = pl.pallas_call(
        functools.partial(_sinekan_fused_kernel, num_layers=num_layers),
        out_shape=jax.ShapeDtypeStruct((N, out_pad), jnp.float32),
        grid_spec=pltpu.PrefetchScalarGridSpec(
            num_scalar_prefetch=0,
            grid=grid,
            in_specs=in_specs,
            out_specs=pl.BlockSpec((tm_eff, out_pad), lambda i: (i, 0)),
        ),
        compiler_params=pltpu.CompilerParams(
            dimension_semantics=("parallel",)),
    )(h, *flat_params)

    return out[:, :out_dim].reshape(*lead_shape, out_dim)


def sinekan_forward_ref(x, params):
    """Pure-JAX reference mirroring the PyTorch forward exactly."""
    lead_shape = x.shape[:-1]
    h = x.reshape(-1, x.shape[-1]).astype(jnp.float32)
    for p in params:
        s = jnp.sin(h[:, :, None] + p["phase"][None, :, :])       # (N, id, G)
        h = jnp.einsum("ikl,jkl->ij", s, p["coeffs"]) + p["bias"]
    return h.reshape(*lead_shape, -1)


# --------------------------------------------------------------------- main ---
if __name__ == "__main__":
    key = jax.random.PRNGKey(0)
    in_dim, hidden_list, out_dim, grid_size = 16, [32, 32], 3, 8
    batch, seq = 2, 64                                            # N = 128 rows

    kx, kp = jax.random.split(key)
    x = jax.random.normal(kx, (batch, seq, in_dim), jnp.float32)
    params = make_sinekan_params(kp, in_dim, out_dim, hidden_list, grid_size)

    y = jax.block_until_ready(sinekan_forward(x, params))
    y_ref = jax.block_until_ready(sinekan_forward_ref(x, params))

    assert y.shape == (batch, seq, out_dim), y.shape
    assert jnp.allclose(y, y_ref, rtol=1e-3, atol=1e-3), \
        float(jnp.max(jnp.abs(y - y_ref)))
    print("KERNEL_OK")
</pallas_src>

<mosaic_0001>
module attributes {stable_mosaic.version = 11 : i64} {
  func.func @_sinekan_fused_kernel(%arg0: i32, %arg1: memref<128x16xf32, #tpu.memory_space<vmem>>, %arg2: memref<16x32xf32, #tpu.memory_space<vmem>>, %arg3: memref<16x32xf32, #tpu.memory_space<vmem>>, %arg4: memref<1x32xf32, #tpu.memory_space<vmem>>, %arg5: memref<32x32xf32, #tpu.memory_space<vmem>>, %arg6: memref<32x32xf32, #tpu.memory_space<vmem>>, %arg7: memref<1x32xf32, #tpu.memory_space<vmem>>, %arg8: memref<32x128xf32, #tpu.memory_space<vmem>>, %arg9: memref<32x128xf32, #tpu.memory_space<vmem>>, %arg10: memref<1x128xf32, #tpu.memory_space<vmem>>, %arg11: memref<128x128xf32, #tpu.memory_space<vmem>>) attributes {dimension_semantics = [#tpu.dimension_semantics<parallel>], iteration_bounds = array<i64: 1>, scalar_prefetch = 0 : i64, scratch_operands = 0 : i64, tpu.core_type = #tpu.core_type<tc>, window_params = [{transform_indices = @transform_0, window_bounds = array<i64: 128, 16>}, {pipeline_mode = #tpu.pipeline_mode<synchronous>, transform_indices = @transform_1, window_bounds = array<i64: 16, 32>}, {pipeline_mode = #tpu.pipeline_mode<synchronous>, transform_indices = @transform_2, window_bounds = array<i64: 16, 32>}, {pipeline_mode = #tpu.pipeline_mode<synchronous>, transform_indices = @transform_3, window_bounds = array<i64: 1, 32>}, {pipeline_mode = #tpu.pipeline_mode<synchronous>, transform_indices = @transform_4, window_bounds = array<i64: 32, 32>}, {pipeline_mode = #tpu.pipeline_mode<synchronous>, transform_indices = @transform_5, window_bounds = array<i64: 32, 32>}, {pipeline_mode = #tpu.pipeline_mode<synchronous>, transform_indices = @transform_6, window_bounds = array<i64: 1, 32>}, {pipeline_mode = #tpu.pipeline_mode<synchronous>, transform_indices = @transform_7, window_bounds = array<i64: 32, 128>}, {pipeline_mode = #tpu.pipeline_mode<synchronous>, transform_indices = @transform_8, window_bounds = array<i64: 32, 128>}, {pipeline_mode = #tpu.pipeline_mode<synchronous>, transform_indices = @transform_9, window_bounds = array<i64: 1, 128>}, {transform_indices = @transform_10, window_bounds = array<i64: 128, 128>}]} {
    %c0 = arith.constant 0 : index
    %c0_0 = arith.constant 0 : index
    %0 = vector.load %arg1[%c0, %c0_0] : memref<128x16xf32, #tpu.memory_space<vmem>>, vector<128x16xf32>
    %1 = math.sin %0 : vector<128x16xf32>
    %2 = math.cos %0 : vector<128x16xf32>
    %c0_1 = arith.constant 0 : index
    %c0_2 = arith.constant 0 : index
    %3 = vector.load %arg2[%c0_1, %c0_2] : memref<16x32xf32, #tpu.memory_space<vmem>>, vector<16x32xf32>
    %cst = arith.constant dense<0.000000e+00> : vector<128x32xf32>
    %4 = tpu.matmul %1, %3, %cst {dimension_numbers = #tpu.dot_dimension_numbers<[1], [0], [0], [1], [0, 0, 1, 1], [], []>} : vector<128x16xf32>, vector<16x32xf32>, vector<128x32xf32> -> vector<128x32xf32>
    %c0_3 = arith.constant 0 : index
    %c0_4 = arith.constant 0 : index
    %5 = vector.load %arg3[%c0_3, %c0_4] : memref<16x32xf32, #tpu.memory_space<vmem>>, vector<16x32xf32>
    %cst_5 = arith.constant dense<0.000000e+00> : vector<128x32xf32>
    %6 = tpu.matmul %2, %5, %cst_5 {dimension_numbers = #tpu.dot_dimension_numbers<[1], [0], [0], [1], [0, 0, 1, 1], [], []>} : vector<128x16xf32>, vector<16x32xf32>, vector<128x32xf32> -> vector<128x32xf32>
    %7 = arith.addf %4, %6 : vector<128x32xf32>
    %c0_6 = arith.constant 0 : index
    %c0_7 = arith.constant 0 : index
    %8 = vector.load %arg4[%c0_6, %c0_7] : memref<1x32xf32, #tpu.memory_space<vmem>>, vector<1x32xf32>
    %9 = vector.broadcast %8 : vector<1x32xf32> to vector<128x32xf32>
    %10 = arith.addf %7, %9 : vector<128x32xf32>
    %11 = math.sin %10 : vector<128x32xf32>
    %12 = math.cos %10 : vector<128x32xf32>
    %c0_8 = arith.constant 0 : index
    %c0_9 = arith.constant 0 : index
    %13 = vector.load %arg5[%c0_8, %c0_9] : memref<32x32xf32, #tpu.memory_space<vmem>>, vector<32x32xf32>
    %cst_10 = arith.constant dense<0.000000e+00> : vector<128x32xf32>
    %14 = tpu.matmul %11, %13, %cst_10 {dimension_numbers = #tpu.dot_dimension_numbers<[1], [0], [0], [1], [0, 0, 1, 1], [], []>} : vector<128x32xf32>, vector<32x32xf32>, vector<128x32xf32> -> vector<128x32xf32>
    %c0_11 = arith.constant 0 : index
    %c0_12 = arith.constant 0 : index
    %15 = vector.load %arg6[%c0_11, %c0_12] : memref<32x32xf32, #tpu.memory_space<vmem>>, vector<32x32xf32>
    %cst_13 = arith.constant dense<0.000000e+00> : vector<128x32xf32>
    %16 = tpu.matmul %12, %15, %cst_13 {dimension_numbers = #tpu.dot_dimension_numbers<[1], [0], [0], [1], [0, 0, 1, 1], [], []>} : vector<128x32xf32>, vector<32x32xf32>, vector<128x32xf32> -> vector<128x32xf32>
    %17 = arith.addf %14, %16 : vector<128x32xf32>
    %c0_14 = arith.constant 0 : index
    %c0_15 = arith.constant 0 : index
    %18 = vector.load %arg7[%c0_14, %c0_15] : memref<1x32xf32, #tpu.memory_space<vmem>>, vector<1x32xf32>
    %19 = vector.broadcast %18 : vector<1x32xf32> to vector<128x32xf32>
    %20 = arith.addf %17, %19 : vector<128x32xf32>
    %21 = math.sin %20 : vector<128x32xf32>
    %22 = math.cos %20 : vector<128x32xf32>
    %c0_16 = arith.constant 0 : index
    %c0_17 = arith.constant 0 : index
    %23 = vector.load %arg8[%c0_16, %c0_17] : memref<32x128xf32, #tpu.memory_space<vmem>>, vector<32x128xf32>
    %cst_18 = arith.constant dense<0.000000e+00> : vector<128x128xf32>
    %24 = tpu.matmul %21, %23, %cst_18 {dimension_numbers = #tpu.dot_dimension_numbers<[1], [0], [0], [1], [0, 0, 1, 1], [], []>} : vector<128x32xf32>, vector<32x128xf32>, vector<128x128xf32> -> vector<128x128xf32>
    %c0_19 = arith.constant 0 : index
    %c0_20 = arith.constant 0 : index
    %25 = vector.load %arg9[%c0_19, %c0_20] : memref<32x128xf32, #tpu.memory_space<vmem>>, vector<32x128xf32>
    %cst_21 = arith.constant dense<0.000000e+00> : vector<128x128xf32>
    %26 = tpu.matmul %22, %25, %cst_21 {dimension_numbers = #tpu.dot_dimension_numbers<[1], [0], [0], [1], [0, 0, 1, 1], [], []>} : vector<128x32xf32>, vector<32x128xf32>, vector<128x128xf32> -> vector<128x128xf32>
    %27 = arith.addf %24, %26 : vector<128x128xf32>
    %c0_22 = arith.constant 0 : index
    %c0_23 = arith.constant 0 : index
    %28 = vector.load %arg10[%c0_22, %c0_23] : memref<1x128xf32, #tpu.memory_space<vmem>>, vector<1x128xf32>
    %29 = vector.broadcast %28 : vector<1x128xf32> to vector<128x128xf32>
    %30 = arith.addf %27, %29 : vector<128x128xf32>
    %c0_24 = arith.constant 0 : index
    %c0_25 = arith.constant 0 : index
    %31 = vector.load %arg11[%c0_24, %c0_25] : memref<128x128xf32, #tpu.memory_space<vmem>>, vector<128x128xf32>
    tpu.vector_store %arg11[%c0_24, %c0_25], %30 {strides = array<i32>} : memref<128x128xf32, #tpu.memory_space<vmem>>, vector<128x128xf32>,
    return
  }
  func.func @transform_0(%arg0: i32) -> (i32, i32) {
    %c0_i32 = arith.constant 0 : i32
    %c0_i32_0 = arith.constant 0 : i32
    return %arg0, %c0_i32 : i32, i32
  }
  func.func @transform_1(%arg0: i32) -> (i32, i32) {
    %c0_i32 = arith.constant 0 : i32
    %c0_i32_0 = arith.constant 0 : i32
    %c0_i32_1 = arith.constant 0 : i32
    return %c0_i32, %c0_i32_0 : i32, i32
  }
  func.func @transform_2(%arg0: i32) -> (i32, i32) {
    %c0_i32 = arith.constant 0 : i32
    %c0_i32_0 = arith.constant 0 : i32
    %c0_i32_1 = arith.constant 0 : i32
    return %c0_i32, %c0_i32_0 : i32, i32
  }
  func.func @transform_3(%arg0: i32) -> (i32, i32) {
    %c0_i32 = arith.constant 0 : i32
    %c0_i32_0 = arith.constant 0 : i32
    %c0_i32_1 = arith.constant 0 : i32
    return %c0_i32, %c0_i32_0 : i32, i32
  }
  func.func @transform_4(%arg0: i32) -> (i32, i32) {
    %c0_i32 = arith.constant 0 : i32
    %c0_i32_0 = arith.constant 0 : i32
    %c0_i32_1 = arith.constant 0 : i32
    return %c0_i32, %c0_i32_0 : i32, i32
  }
  func.func @transform_5(%arg0: i32) -> (i32, i32) {
    %c0_i32 = arith.constant 0 : i32
    %c0_i32_0 = arith.constant 0 : i32
    %c0_i32_1 = arith.constant 0 : i32
    return %c0_i32, %c0_i32_0 : i32, i32
  }
  func.func @transform_6(%arg0: i32) -> (i32, i32) {
    %c0_i32 = arith.constant 0 : i32
    %c0_i32_0 = arith.constant 0 : i32
    %c0_i32_1 = arith.constant 0 : i32
    return %c0_i32, %c0_i32_0 : i32, i32
  }
  func.func @transform_7(%arg0: i32) -> (i32, i32) {
    %c0_i32 = arith.constant 0 : i32
    %c0_i32_0 = arith.constant 0 : i32
    %c0_i32_1 = arith.constant 0 : i32
    return %c0_i32, %c0_i32_0 : i32, i32
  }
  func.func @transform_8(%arg0: i32) -> (i32, i32) {
    %c0_i32 = arith.constant 0 : i32
    %c0_i32_0 = arith.constant 0 : i32
    %c0_i32_1 = arith.constant 0 : i32
    return %c0_i32, %c0_i32_0 : i32, i32
  }
  func.func @transform_9(%arg0: i32) -> (i32, i32) {
    %c0_i32 = arith.constant 0 : i32
    %c0_i32_0 = arith.constant 0 : i32
    %c0_i32_1 = arith.constant 0 : i32
    return %c0_i32, %c0_i32_0 : i32, i32
  }
  func.func @transform_10(%arg0: i32) -> (i32, i32) {
    %c0_i32 = arith.constant 0 : i32
    %c0_i32_0 = arith.constant 0 : i32
    return %arg0, %c0_i32 : i32, i32
  }
}

</mosaic_0001>

<llo_original>
// kernel: tpu_custom_call.1
$region0: #{tpu_custom_call.1}
  #allocation0 [shape = 'u32[]', space=smem, size = 0x4, offset = 0x4, fixed_abs, tag = 'smem constant byte address 0x4 - core index']
  #allocation1 [shape = 'u32[144,128]{1,0:T(1,128)}', space=vmem, size = 0x12000, scoped, tag = 'internal scratch']
  %s0 = inlined_call_operand.vmem [shape: f32[128,16], index: 0, kind: input, shape index: {}]
  %s1 = inlined_call_operand.vmem [shape: f32[16,32], index: 1, kind: input, shape index: {}]
  %s2 = inlined_call_operand.hbm [shape: f32[16,32], index: 2, kind: input, shape index: {}]
  %s3 = inlined_call_operand.vmem [shape: f32[1,32], index: 3, kind: input, shape index: {}]
  %s4 = inlined_call_operand.vmem [shape: f32[32,32], index: 4, kind: input, shape index: {}]
  %s5 = inlined_call_operand.vmem [shape: f32[32,32], index: 5, kind: input, shape index: {}]
  %s6 = inlined_call_operand.vmem [shape: f32[1,32], index: 6, kind: input, shape index: {}]
  %s7 = inlined_call_operand.vmem [shape: f32[32,128], index: 7, kind: input, shape index: {}]
  %s8 = inlined_call_operand.vmem [shape: f32[32,128], index: 8, kind: input, shape index: {}]
  %s9 = inlined_call_operand.vmem [shape: f32[1,128], index: 9, kind: input, shape index: {}]
  %s10 = inlined_call_operand.hbm [shape: f32[128,128], index: 10, kind: output, shape index: {}]
  %s11 = sld [smem:[#allocation0]]
  $region54: #{tpu_custom_call.1} parent=0
    _
  %s13 = ssub.s32 1, %s11
  %s14 = scalar_select 0, %s13, %s11
  $region1: #{tpu_custom_call.1} parent=0
    #allocation2 [shape = 'u8[8192]{0}', space=vmem, size = 0x2000, scoped, tag = 'input window, operand 2, single buffered']
    #allocation3 [shape = 's32[1]{0}', space=sflag, size = 0x4, scoped, tag = 'scoped memory for tpu_custom_call.1']
    #allocation4 [shape = 's32[1]{0}', space=sflag, size = 0x4, scoped, tag = 'scoped memory for tpu_custom_call.1']
    #allocation5 [shape = 'u8[65536]{0}', space=vmem, size = 0x10000, scoped, tag = 'output window, operand 0, single buffered']
    %15 = vsyncpa [#allocation3], 0
    %16 = vsyncpa [#allocation4], 0
    // Predicated region
    $region2: #{tpu_custom_call.1} parent=1 // pred_check
      _
    $region3: #{tpu_custom_call.1} parent=1 // pred_check_branch
      %18 = sbr.rel (0) target = $region5
    $region4: #{tpu_custom_call.1} parent=1 // pred_region
      _
    $region5: #{tpu_custom_call.1} parent=1 // pred_fallthru
      _
    // Predicated region
    $region6: #{tpu_custom_call.1} parent=1 // pred_check
      _
    $region7: #{tpu_custom_call.1} parent=1 // pred_check_branch
      %20 = sbr.rel (0) target = $region9
    $region8: #{tpu_custom_call.1} parent=1 // pred_region
      _
    $region9: #{tpu_custom_call.1} parent=1 // pred_fallthru
      _
    // Predicated region
    $region10: #{tpu_custom_call.1} parent=1 // pred_check
      _
    $region11: #{tpu_custom_call.1} parent=1 // pred_check_branch
      %22 = sbr.rel (0) target = $region13
    $region12: #{tpu_custom_call.1} parent=1 // pred_region
      %s24 = ssub.s32 256, 256
      %25 = vsyncadd [#allocation3], %s24
      %s26 = sshll.u32 [#allocation2], 4
      %s27 = int_to_ptr.vmem [resolvable:$true] %s26
      %32 = dma.hbm_to_vmem [thread:$0]  %s2, 256, %s27, [#allocation3], 128, 128, 8
    $region13: #{tpu_custom_call.1} parent=1 // pred_fallthru
      _
    // Predicated region
    $region14: #{tpu_custom_call.1} parent=1 // pred_check
      _
    $region15: #{tpu_custom_call.1} parent=1 // pred_check_branch
      %34 = sbr.rel (0) target = $region17
    $region16: #{tpu_custom_call.1} parent=1 // pred_region
      _
    $region17: #{tpu_custom_call.1} parent=1 // pred_fallthru
      _
    // Predicated region
    $region18: #{tpu_custom_call.1} parent=1 // pred_check
      _
    $region19: #{tpu_custom_call.1} parent=1 // pred_check_branch
      %36 = sbr.rel (0) target = $region21
    $region20: #{tpu_custom_call.1} parent=1 // pred_region
      _
    $region21: #{tpu_custom_call.1} parent=1 // pred_fallthru
      _
    // Predicated region
    $region22: #{tpu_custom_call.1} parent=1 // pred_check
      _
    $region23: #{tpu_custom_call.1} parent=1 // pred_check_branch
      %38 = sbr.rel (0) target = $region25
    $region24: #{tpu_custom_call.1} parent=1 // pred_region
      _
    $region25: #{tpu_custom_call.1} parent=1 // pred_fallthru
      _
    // Predicated region
    $region26: #{tpu_custom_call.1} parent=1 // pred_check
      _
    $region27: #{tpu_custom_call.1} parent=1 // pred_check_branch
      %40 = sbr.rel (0) target = $region29
    $region28: #{tpu_custom_call.1} parent=1 // pred_region
      _
    $region29: #{tpu_custom_call.1} parent=1 // pred_fallthru
      _
    // Predicated region
    $region30: #{tpu_custom_call.1} parent=1 // pred_check
      _
    $region31: #{tpu_custom_call.1} parent=1 // pred_check_branch
      %42 = sbr.rel (0) target = $region33
    $region32: #{tpu_custom_call.1} parent=1 // pred_region
      _
    $region33: #{tpu_custom_call.1} parent=1 // pred_fallthru
      _
    // Predicated region
    $region34: #{tpu_custom_call.1} parent=1 // pred_check
      _
    $region35: #{tpu_custom_call.1} parent=1 // pred_check_branch
      %44 = sbr.rel (0) target = $region37
    $region36: #{tpu_custom_call.1} parent=1 // pred_region
      _
    $region37: #{tpu_custom_call.1} parent=1 // pred_fallthru
      _
    // Predicated region
    $region38: #{tpu_custom_call.1} parent=1 // pred_check
      _
    $region39: #{tpu_custom_call.1} parent=1 // pred_check_branch
      %46 = sbr.rel (0) target = $region41
    $region40: #{tpu_custom_call.1} parent=1 // pred_region
      _
    $region41: #{tpu_custom_call.1} parent=1 // pred_fallthru
      _
    // Predicated region
    $region42: #{tpu_custom_call.1} parent=1 // pred_check
      _
    $region43: #{tpu_custom_call.1} parent=1 // pred_check_branch
      %48 = sbr.rel (0) target = $region45
    $region44: #{tpu_custom_call.1} parent=1 // pred_region
      %49 = dma.done [#allocation3], 256
    $region45: #{tpu_custom_call.1} parent=1 // pred_fallthru
      _
    %v50 = vld [vmem:[%s0] sm:$0xff]
    %v51 = vld [vmem:[%s0 + $0x8] sm:$0xff]
    %v52 = vld [vmem:[%s0 + $0x10] sm:$0xff]
    %v53 = vld [vmem:[%s0 + $0x18] sm:$0xff]
    %v54 = vld [vmem:[%s0 + $0x20] sm:$0xff]
    %v55 = vld [vmem:[%s0 + $0x28] sm:$0xff]
    %v56 = vld [vmem:[%s0 + $0x30] sm:$0xff]
    %v57 = vld [vmem:[%s0 + $0x38] sm:$0xff]
    %v58 = vld [vmem:[%s0 + $0x40] sm:$0xff]
    %v59 = vld [vmem:[%s0 + $0x48] sm:$0xff]
    %v60 = vld [vmem:[%s0 + $0x50] sm:$0xff]
    %v61 = vld [vmem:[%s0 + $0x58] sm:$0xff]
    %v62 = vld [vmem:[%s0 + $0x60] sm:$0xff]
    %v63 = vld [vmem:[%s0 + $0x68] sm:$0xff]
    %v64 = vld [vmem:[%s0 + $0x70] sm:$0xff]
    %v65 = vld [vmem:[%s0 + $0x78] sm:$0xff]
    %v66 = vand.u32 2147483647, %v50
    %vm67 = vcmp.le.f32.partialorder %v66, 0.7853982
    %vm68 = vcmp.lt.s32.totalorder %v50, 0
    %v69 = vand.u32 %v50, 2139095040
    %v70 = vshrl.u32 %v69, 23
    %v71 = vsub.s32 %v70, 127
    %v72 = vand.u32 2147483647, %v50
    %v73 = vand.u32 %v72, 8388607
    %v74 = vor.u32 %v73, 8388608
    %v75 = vsub.s32 0, %v74
    %v76 = vadd.s32 %v71, 1
    %vm77 = vcmp.gt.s32.totalorder %v76, 0
    %v78 = vsel %vm77, %v76, 0
    %v79 = vshrl.u32 %v78, 5
    %v80 = vand.u32 %v78, 31
    %v81 = vsub.s32 32, %v80
    %v82 = vshrl.u32 683565275, %v81
    %v83 = vshll.u32 683565275, %v80
    %v84 = vshrl.u32 2475754826, %v81
    %v85 = vor.u32 %v83, %v84
    %v86 = vshll.u32 2475754826, %v80
    %v87 = vshrl.u32 2131351028, %v81
    %v88 = vor.u32 %v86, %v87
    %v89 = vshll.u32 2131351028, %v80
    %v90 = vshrl.u32 2102212464, %v81
    %v91 = vor.u32 %v89, %v90
    %v92 = vshll.u32 2102212464, %v80
    %v93 = vshrl.u32 920167782, %v81
    %v94 = vor.u32 %v92, %v93
    %v95 = vshll.u32 920167782, %v80
    %v96 = vshrl.u32 1326507024, %v81
    %v97 = vor.u32 %v95, %v96
    %vm98 = vcmp.lt.s32.totalorder %v79, 1
    %vm99 = vcmp.lt.s32.totalorder %v79, 2
    %vm100 = vcmp.lt.s32.totalorder %v79, 3
    %vm101 = vcmp.lt.s32.totalorder %v79, 4
    %v102 = vsel %vm98, %v82, %v85
    %v103 = vsel %vm101, %v91, 2102212464
    %v104 = vsel %vm100, %v88, %v103
    %v105 = vsel %vm99, %v102, %v104
    %v106 = vsel %vm98, %v85, %v88
    %v107 = vsel %vm101, %v94, 920167782
    %v108 = vsel %vm100, %v91, %v107
    %v109 = vsel %vm99, %v106, %v108
    %v110 = vsel %vm98, %v88, %v91
    %v111 = vsel %vm101, %v97, 1326507024
    %v112 = vsel %vm100, %v94, %v111
    %v113 = vsel %vm99, %v110, %v112
    %v114 = vshll.u32 %v74, 8
    %v115 = vmul.u32.u64.compose %v114, %v113
    %v116 = vextract.low.u32 %v115
    %v117 = vextract.high.u32 %v115
    %v118 = vmul.u32.u64.compose %v114, %v109
    %v119 = vextract.low.u32 %v118
    %v120 = vextract.high.u32 %v118
    %v121 = vmul.u32 %v114, %v105
    %v122 = vadd.s32 %v117, %v119
    %vm123 = vc.u32 %v117, %v119
    %v124 = vadd.s32 %v120, 1
    %v125 = vsel %vm123, %v124, %v120
    %v126 = vadd.s32 %v121, %v125
    %v127 = vadd.s32 %v126, 536870912
    %v128 = vshrl.u32 %v127, 30
    %v129 = vshll.u32 %v128, 30
    %v130 = vsub.s32 %v126, %v129
    %vm131 = vcmp.lt.s32.totalorder %v130, 0
    %v132 = vsub.s32 0, %v130
    %v133 = vsel %vm131, %v132, %v130
    %v134 = vclz %v133
    %v135 = vsub.s32 %v134, 2
    %vm136 = vcmp.gt.s32.totalorder 0, %v135
    %v137 = vsel %vm136, 0, %v135
    %v138 = vsub.s32 32, %v137
    %v139 = vshll.u32 %v130, %v137
    %v140 = vshrl.u32 %v122, %v138
    %v141 = vor.u32 %v139, %v140
    %v142 = vsub.s32 4294967266, %v137
    %v143 = vadd.s32 %v142, 127
    %v144 = vshll.u32 %v143, 23
    %v145 = vor.u32 4788187, %v144
    %v146 = vand.u32 2147483647, %v145
    %v148 = vcvt.s32.f32 %v141
    %v149 = vmul.f32 %v148, %v146
    %v150 = vxor.u32 %v149, 2147483648
    %v151 = vsel %vm68, %v150, %v149
    %v152 = vsub.s32 4, %v128
    %v153 = vsel %vm68, %v152, %v128
    %v154 = vsel %vm67, %v50, %v151
    %v155 = vsel %vm67, 0, %v153
    %v156 = vcosq.f32.pop %v154
    %v157 = vsinq.f32.pop %v154
    %vm158 = vweird.f32 %v50
    %v159 = vadd.s32 %v155, 3
    %v160 = vand.u32 %v159, 3
    %vm161 = vcmp.lt.s32.totalorder %v160, 2
    %vm162 = vcmp.eq.s32.totalorder %v160, 0
    %v163 = vxor.u32 %v157, 2147483648
    %v164 = vsel %vm162, %v156, %v163
    %vm165 = vcmp.eq.s32.totalorder %v160, 2
    %v166 = vxor.u32 %v156, 2147483648
    %v167 = vsel %vm165, %v166, %v157
    %v168 = vsel %vm161, %v164, %v167
    %v169 = vsel %vm158, nan, %v168
    %v170 = vand.u32 2147483647, %v51
    %vm171 = vcmp.le.f32.partialorder %v170, 0.7853982
    %vm172 = vcmp.lt.s32.totalorder %v51, 0
    %v173 = vand.u32 %v51, 2139095040
    %v174 = vshrl.u32 %v173, 23
    %v175 = vsub.s32 %v174, 127
    %v176 = vand.u32 2147483647, %v51
    %v177 = vand.u32 %v176, 8388607
    %v178 = vor.u32 %v177, 8388608
    %v179 = vsub.s32 0, %v178
    %v180 = vadd.s32 %v175, 1
    %vm181 = vcmp.gt.s32.totalorder %v180, 0
    %v182 = vsel %vm181, %v180, 0
    %v183 = vshrl.u32 %v182, 5
    %v184 = vand.u32 %v182, 31
    %v185 = vsub.s32 32, %v184
    %v186 = vshrl.u32 683565275, %v185
    %v187 = vshll.u32 683565275, %v184
    %v188 = vshrl.u32 2475754826, %v185
    %v189 = vor.u32 %v187, %v188
    %v190 = vshll.u32 2475754826, %v184
    %v191 = vshrl.u32 2131351028, %v185
    %v192 = vor.u32 %v190, %v191
    %v193 = vshll.u32 2131351028, %v184
    %v194 = vshrl.u32 2102212464, %v185
    %v195 = vor.u32 %v193, %v194
    %v196 = vshll.u32 2102212464, %v184
    %v197 = vshrl.u32 920167782, %v185
    %v198 = vor.u32 %v196, %v197
    %v199 = vshll.u32 920167782, %v184
    %v200 = vshrl.u32 1326507024, %v185
    %v201 = vor.u32 %v199, %v200
    %vm202 = vcmp.lt.s32.totalorder %v183, 1
    %vm203 = vcmp.lt.s32.totalorder %v183, 2
    %vm204 = vcmp.lt.s32.totalorder %v183, 3
    %vm205 = vcmp.lt.s32.totalorder %v183, 4
    %v206 = vsel %vm202, %v186, %v189
    %v207 = vsel %vm205, %v195, 2102212464
    %v208 = vsel %vm204, %v192, %v207
    %v209 = vsel %vm203, %v206, %v208
    %v210 = vsel %vm202, %v189, %v192
    %v211 = vsel %vm205, %v198, 920167782
    %v212 = vsel %vm204, %v195, %v211
    %v213 = vsel %vm203, %v210, %v212
    %v214 = vsel %vm202, %v192, %v195
    %v215 = vsel %vm205, %v201, 1326507024
    %v216 = vsel %vm204, %v198, %v215
    %v217 = vsel %vm203, %v214, %v216
    %v218 = vshll.u32 %v178, 8
    %v219 = vmul.u32.u64.compose %v218, %v217
    %v220 = vextract.low.u32 %v219
    %v221 = vextract.high.u32 %v219
    %v222 = vmul.u32.u64.compose %v218, %v213
    %v223 = vextract.low.u32 %v222
    %v224 = vextract.high.u32 %v222
    %v225 = vmul.u32 %v218, %v209
    %v226 = vadd.s32 %v221, %v223
    %vm227 = vc.u32 %v221, %v223
    %v228 = vadd.s32 %v224, 1
    %v229 = vsel %vm227, %v228, %v224
    %v230 = vadd.s32 %v225, %v229
    %v231 = vadd.s32 %v230, 536870912
    %v232 = vshrl.u32 %v231, 30
    %v233 = vshll.u32 %v232, 30
    %v234 = vsub.s32 %v230, %v233
    %vm235 = vcmp.lt.s32.totalorder %v234, 0
    %v236 = vsub.s32 0, %v234
    %v237 = vsel %vm235, %v236, %v234
    %v238 = vclz %v237
    %v239 = vsub.s32 %v238, 2
    %vm240 = vcmp.gt.s32.totalorder 0, %v239
    %v241 = vsel %vm240, 0, %v239
    %v242 = vsub.s32 32, %v241
    %v243 = vshll.u32 %v234, %v241
    %v244 = vshrl.u32 %v226, %v242
    %v245 = vor.u32 %v243, %v244
    %v246 = vsub.s32 4294967266, %v241
    %v247 = vadd.s32 %v246, 127
    %v248 = vshll.u32 %v247, 23
    %v249 = vor.u32 4788187, %v248
    %v250 = vand.u32 2147483647, %v249
    %v252 = vcvt.s32.f32 %v245
    %v253 = vmul.f32 %v252, %v250
    %v254 = vxor.u32 %v253, 2147483648
    %v255 = vsel %vm172, %v254, %v253
    %v256 = vsub.s32 4, %v232
    %v257 = vsel %vm172, %v256, %v232
    %v258 = vsel %vm171, %v51, %v255
    %v259 = vsel %vm171, 0, %v257
    %v260 = vcosq.f32.pop %v258
    %v261 = vsinq.f32.pop %v258
    %vm262 = vweird.f32 %v51
    %v263 = vadd.s32 %v259, 3
    %v264 = vand.u32 %v263, 3
    %vm265 = vcmp.lt.s32.totalorder %v264, 2
    %vm266 = vcmp.eq.s32.totalorder %v264, 0
    %v267 = vxor.u32 %v261, 2147483648
    %v268 = vsel %vm266, %v260, %v267
    %vm269 = vcmp.eq.s32.totalorder %v264, 2
    %v270 = vxor.u32 %v260, 2147483648
    %v271 = vsel %vm269, %v270, %v261
    %v272 = vsel %vm265, %v268, %v271
    %v273 = vsel %vm262, nan, %v272
    %v274 = vand.u32 2147483647, %v52
    %vm275 = vcmp.le.f32.partialorder %v274, 0.7853982
    %vm276 = vcmp.lt.s32.totalorder %v52, 0
    %v277 = vand.u32 %v52, 2139095040
    %v278 = vshrl.u32 %v277, 23
    %v279 = vsub.s32 %v278, 127
    %v280 = vand.u32 2147483647, %v52
    %v281 = vand.u32 %v280, 8388607
    %v282 = vor.u32 %v281, 8388608
    %v283 = vsub.s32 0, %v282
    %v284 = vadd.s32 %v279, 1
    %vm285 = vcmp.gt.s32.totalorder %v284, 0
    %v286 = vsel %vm285, %v284, 0
    %v287 = vshrl.u32 %v286, 5
    %v288 = vand.u32 %v286, 31
    %v289 = vsub.s32 32, %v288
    %v290 = vshrl.u32 683565275, %v289
    %v291 = vshll.u32 683565275, %v288
    %v292 = vshrl.u32 2475754826, %v289
    %v293 = vor.u32 %v291, %v292
    %v294 = vshll.u32 2475754826, %v288
    %v295 = vshrl.u32 2131351028, %v289
    %v296 = vor.u32 %v294, %v295
    %v297 = vshll.u32 2131351028, %v288
    %v298 = vshrl.u32 2102212464, %v289
    %v299 = vor.u32 %v297, %v298
    %v300 = vshll.u32 2102212464, %v288
    %v301 = vshrl.u32 920167782, %v289
    %v302 = vor.u32 %v300, %v301
    %v303 = vshll.u32 920167782, %v288
    %v304 = vshrl.u32 1326507024, %v289
    %v305 = vor.u32 %v303, %v304
    %vm306 = vcmp.lt.s32.totalorder %v287, 1
    %vm307 = vcmp.lt.s32.totalorder %v287, 2
    %vm308 = vcmp.lt.s32.totalorder %v287, 3
    %vm309 = vcmp.lt.s32.totalorder %v287, 4
    %v310 = vsel %vm306, %v290, %v293
    %v311 = vsel %vm309, %v299, 2102212464
    %v312 = vsel %vm308, %v296, %v311
    %v313 = vsel %vm307, %v310, %v312
    %v314 = vsel %vm306, %v293, %v296
    %v315 = vsel %vm309, %v302, 920167782
    %v316 = vsel %vm308, %v299, %v315
    %v317 = vsel %vm307, %v314, %v316
    %v318 = vsel %vm306, %v296, %v299
    %v319 = vsel %vm309, %v305, 1326507024
    %v320 = vsel %vm308, %v302, %v319
    %v321 = vsel %vm307, %v318, %v320
    %v322 = vshll.u32 %v282, 8
    %v323 = vmul.u32.u64.compose %v322, %v321
    %v324 = vextract.low.u32 %v323
    %v325 = vextract.high.u32 %v323
    %v326 = vmul.u32.u64.compose %v322, %v317
    %v327 = vextract.low.u32 %v326
    %v328 = vextract.high.u32 %v326
    %v329 = vmul.u32 %v322, %v313
    %v330 = vadd.s32 %v325, %v327
    %vm331 = vc.u32 %v325, %v327
    %v332 = vadd.s32 %v328, 1
    %v333 = vsel %vm331, %v332, %v328
    %v334 = vadd.s32 %v329, %v333
    %v335 = vadd.s32 %v334, 536870912
    %v336 = vshrl.u32 %v335, 30
    %v337 = vshll.u32 %v336, 30
    %v338 = vsub.s32 %v334, %v337
    %vm339 = vcmp.lt.s32.totalorder %v338, 0
    %v340 = vsub.s32 0, %v338
    %v341 = vsel %vm339, %v340, %v338
    %v342 = vclz %v341
    %v343 = vsub.s32 %v342, 2
    %vm344 = vcmp.gt.s32.totalorder 0, %v343
    %v345 = vsel %vm344, 0, %v343
    %v346 = vsub.s32 32, %v345
    %v347 = vshll.u32 %v338, %v345
    %v348 = vshrl.u32 %v330, %v346
    %v349 = vor.u32 %v347, %v348
    %v350 = vsub.s32 4294967266, %v345
    %v351 = vadd.s32 %v350, 127
    %v352 = vshll.u32 %v351, 23
    %v353 = vor.u32 4788187, %v352
    %v354 = vand.u32 2147483647, %v353
    %v356 = vcvt.s32.f32 %v349
    %v357 = vmul.f32 %v356, %v354
    %v358 = vxor.u32 %v357, 2147483648
    %v359 = vsel %vm276, %v358, %v357
    %v360 = vsub.s32 4, %v336
    %v361 = vsel %vm276, %v360, %v336
    %v362 = vsel %vm275, %v52, %v359
    %v363 = vsel %vm275, 0, %v361
    %v364 = vcosq.f32.pop %v362
    %v365 = vsinq.f32.pop %v362
    %vm366 = vweird.f32 %v52
    %v367 = vadd.s32 %v363, 3
    %v368 = vand.u32 %v367, 3
    %vm369 = vcmp.lt.s32.totalorder %v368, 2
    %vm370 = vcmp.eq.s32.totalorder %v368, 0
    %v371 = vxor.u32 %v365, 2147483648
    %v372 = vsel %vm370, %v364, %v371
    %vm373 = vcmp.eq.s32.totalorder %v368, 2
    %v374 = vxor.u32 %v364, 2147483648
    %v375 = vsel %vm373, %v374, %v365
    %v376 = vsel %vm369, %v372, %v375
    %v377 = vsel %vm366, nan, %v376
    %v378 = vand.u32 2147483647, %v53
    %vm379 = vcmp.le.f32.partialorder %v378, 0.7853982
    %vm380 = vcmp.lt.s32.totalorder %v53, 0
    %v381 = vand.u32 %v53, 2139095040
    %v382 = vshrl.u32 %v381, 23
    %v383 = vsub.s32 %v382, 127
    %v384 = vand.u32 2147483647, %v53
    %v385 = vand.u32 %v384, 8388607
    %v386 = vor.u32 %v385, 8388608
    %v387 = vsub.s32 0, %v386
    %v388 = vadd.s32 %v383, 1
    %vm389 = vcmp.gt.s32.totalorder %v388, 0
    %v390 = vsel %vm389, %v388, 0
    %v391 = vshrl.u32 %v390, 5
    %v392 = vand.u32 %v390, 31
    %v393 = vsub.s32 32, %v392
    %v394 = vshrl.u32 683565275, %v393
    %v395 = vshll.u32 683565275, %v392
    %v396 = vshrl.u32 2475754826, %v393
    %v397 = vor.u32 %v395, %v396
    %v398 = vshll.u32 2475754826, %v392
    %v399 = vshrl.u32 2131351028, %v393
    %v400 = vor.u32 %v398, %v399
    %v401 = vshll.u32 2131351028, %v392
    %v402 = vshrl.u32 2102212464, %v393
    %v403 = vor.u32 %v401, %v402
    %v404 = vshll.u32 2102212464, %v392
    %v405 = vshrl.u32 920167782, %v393
    %v406 = vor.u32 %v404, %v405
    %v407 = vshll.u32 920167782, %v392
    %v408 = vshrl.u32 1326507024, %v393
    %v409 = vor.u32 %v407, %v408
    %vm410 = vcmp.lt.s32.totalorder %v391, 1
    %vm411 = vcmp.lt.s32.totalorder %v391, 2
    %vm412 = vcmp.lt.s32.totalorder %v391, 3
    %vm413 = vcmp.lt.s32.totalorder %v391, 4
    %v414 = vsel %vm410, %v394, %v397
    %v415 = vsel %vm413, %v403, 2102212464
    %v416 = vsel %vm412, %v400, %v415
    %v417 = vsel %vm411, %v414, %v416
    %v418 = vsel %vm410, %v397, %v400
    %v419 = vsel %vm413, %v406, 920167782
    %v420 = vsel %vm412, %v403, %v419
    %v421 = vsel %vm411, %v418, %v420
    %v422 = vsel %vm410, %v400, %v403
    %v423 = vsel %vm413, %v409, 1326507024
    %v424 = vsel %vm412, %v406, %v423
    %v425 = vsel %vm411, %v422, %v424
    %v426 = vshll.u32 %v386, 8
    %v427 = vmul.u32.u64.compose %v426, %v425
    %v428 = vextract.low.u32 %v427
    %v429 = vextract.high.u32 %v427
    %v430 = vmul.u32.u64.compose %v426, %v421
    %v431 = vextract.low.u32 %v430
    %v432 = vextract.high.u32 %v430
    %v433 = vmul.u32 %v426, %v417
    %v434 = vadd.s32 %v429, %v431
    %vm435 = vc.u32 %v429, %v431
    %v436 = vadd.s32 %v432, 1
    %v437 = vsel %vm435, %v436, %v432
    %v438 = vadd.s32 %v433, %v437
    %v439 = vadd.s32 %v438, 536870912
    %v440 = vshrl.u32 %v439, 30
    %v441 = vshll.u32 %v440, 30
    %v442 = vsub.s32 %v438, %v441
    %vm443 = vcmp.lt.s32.totalorder %v442, 0
    %v444 = vsub.s32 0, %v442
    %v445 = vsel %vm443, %v444, %v442
    %v446 = vclz %v445
    %v447 = vsub.s32 %v446, 2
    %vm448 = vcmp.gt.s32.totalorder 0, %v447
    %v449 = vsel %vm448, 0, %v447
    %v450 = vsub.s32 32, %v449
    %v451 = vshll.u32 %v442, %v449
    %v452 = vshrl.u32 %v434, %v450
    %v453 = vor.u32 %v451, %v452
    %v454 = vsub.s32 4294967266, %v449
    %v455 = vadd.s32 %v454, 127
    %v456 = vshll.u32 %v455, 23
    %v457 = vor.u32 4788187, %v456
    %v458 = vand.u32 2147483647, %v457
    %v460 = vcvt.s32.f32 %v453
    %v461 = vmul.f32 %v460, %v458
    %v462 = vxor.u32 %v461, 2147483648
    %v463 = vsel %vm380, %v462, %v461
    %v464 = vsub.s32 4, %v440
    %v465 = vsel %vm380, %v464, %v440
    %v466 = vsel %vm379, %v53, %v463
    %v467 = vsel %vm379, 0, %v465
    %v468 = vcosq.f32.pop %v466
    %v469 = vsinq.f32.pop %v466
    %vm470 = vweird.f32 %v53
    %v471 = vadd.s32 %v467, 3
    %v472 = vand.u32 %v471, 3
    %vm473 = vcmp.lt.s32.totalorder %v472, 2
    %vm474 = vcmp.eq.s32.totalorder %v472, 0
    %v475 = vxor.u32 %v469, 2147483648
    %v476 = vsel %vm474, %v468, %v475
    %vm477 = vcmp.eq.s32.totalorder %v472, 2
    %v478 = vxor.u32 %v468, 2147483648
    %v479 = vsel %vm477, %v478, %v469
    %v480 = vsel %vm473, %v476, %v479
    %v481 = vsel %vm470, nan, %v480
    %v482 = vand.u32 2147483647, %v54
    %vm483 = vcmp.le.f32.partialorder %v482, 0.7853982
    %vm484 = vcmp.lt.s32.totalorder %v54, 0
    %v485 = vand.u32 %v54, 2139095040
    %v486 = vshrl.u32 %v485, 23
    %v487 = vsub.s32 %v486, 127
    %v488 = vand.u32 2147483647, %v54
    %v489 = vand.u32 %v488, 8388607
    %v490 = vor.u32 %v489, 8388608
    %v491 = vsub.s32 0, %v490
    %v492 = vadd.s32 %v487, 1
    %vm493 = vcmp.gt.s32.totalorder %v492, 0
    %v494 = vsel %vm493, %v492, 0
    %v495 = vshrl.u32 %v494, 5
    %v496 = vand.u32 %v494, 31
    %v497 = vsub.s32 32, %v496
    %v498 = vshrl.u32 683565275, %v497
    %v499 = vshll.u32 683565275, %v496
    %v500 = vshrl.u32 2475754826, %v497
    %v501 = vor.u32 %v499, %v500
    %v502 = vshll.u32 2475754826, %v496
    %v503 = vshrl.u32 2131351028, %v497
    %v504 = vor.u32 %v502, %v503
    %v505 = vshll.u32 2131351028, %v496
    %v506 = vshrl.u32 2102212464, %v497
    %v507 = vor.u32 %v505, %v506
    %v508 = vshll.u32 2102212464, %v496
    %v509 = vshrl.u32 920167782, %v497
    %v510 = vor.u32 %v508, %v509
    %v511 = vshll.u32 920167782, %v496
    %v512 = vshrl.u32 1326507024, %v497
    %v513 = vor.u32 %v511, %v512
    %vm514 = vcmp.lt.s32.totalorder %v495, 1
    %vm515 = vcmp.lt.s32.totalorder %v495, 2
    %vm516 = vcmp.lt.s32.totalorder %v495, 3
    %vm517 = vcmp.lt.s32.totalorder %v495, 4
    %v518 = vsel %vm514, %v498, %v501
    %v519 = vsel %vm517, %v507, 2102212464
    %v520 = vsel %vm516, %v504, %v519
    %v521 = vsel %vm515, %v518, %v520
    %v522 = vsel %vm514, %v501, %v504
    %v523 = vsel %vm517, %v510, 920167782
    %v524 = vsel %vm516, %v507, %v523
    %v525 = vsel %vm515, %v522, %v524
    %v526 = vsel %vm514, %v504, %v507
    %v527 = vsel %vm517, %v513, 1326507024
    %v528 = vsel %vm516, %v510, %v527
    %v529 = vsel %vm515, %v526, %v528
    %v530 = vshll.u32 %v490, 8
    %v531 = vmul.u32.u64.compose %v530, %v529
    %v532 = vextract.low.u32 %v531
    %v533 = vextract.high.u32 %v531
    %v534 = vmul.u32.u64.compose %v530, %v525
    %v535 = vextract.low.u32 %v534
    %v536 = vextract.high.u32 %v534
    %v537 = vmul.u32 %v530, %v521
    %v538 = vadd.s32 %v533, %v535
    %vm539 = vc.u32 %v533, %v535
    %v540 = vadd.s32 %v536, 1
    %v541 = vsel %vm539, %v540, %v536
    %v542 = vadd.s32 %v537, %v541
    %v543 = vadd.s32 %v542, 536870912
    %v544 = vshrl.u32 %v543, 30
    %v545 = vshll.u32 %v544, 30
    %v546 = vsub.s32 %v542, %v545
    %vm547 = vcmp.lt.s32.totalorder %v546, 0
    %v548 = vsub.s32 0, %v546
    %v549 = vsel %vm547, %v548, %v546
    %v550 = vclz %v549
    %v551 = vsub.s32 %v550, 2
    %vm552 = vcmp.gt.s32.totalorder 0, %v551
    %v553 = vsel %vm552, 0, %v551
    %v554 = vsub.s32 32, %v553
    %v555 = vshll.u32 %v546, %v553
    %v556 = vshrl.u32 %v538, %v554
    %v557 = vor.u32 %v555, %v556
    %v558 = vsub.s32 4294967266, %v553
    %v559 = vadd.s32 %v558, 127
    %v560 = vshll.u32 %v559, 23
    %v561 = vor.u32 4788187, %v560
    %v562 = vand.u32 2147483647, %v561
    %v564 = vcvt.s32.f32 %v557
    %v565 = vmul.f32 %v564, %v562
    %v566 = vxor.u32 %v565, 2147483648
    %v567 = vsel %vm484, %v566, %v565
    %v568 = vsub.s32 4, %v544
    %v569 = vsel %vm484, %v568, %v544
    %v570 = vsel %vm483, %v54, %v567
    %v571 = vsel %vm483, 0, %v569
    %v572 = vcosq.f32.pop %v570
    %v573 = vsinq.f32.pop %v570
    %vm574 = vweird.f32 %v54
    %v575 = vadd.s32 %v571, 3
    %v576 = vand.u32 %v575, 3
    %vm577 = vcmp.lt.s32.totalorder %v576, 2
    %vm578 = vcmp.eq.s32.totalorder %v576, 0
    %v579 = vxor.u32 %v573, 2147483648
    %v580 = vsel %vm578, %v572, %v579
    %vm581 = vcmp.eq.s32.totalorder %v576, 2
    %v582 = vxor.u32 %v572, 2147483648
    %v583 = vsel %vm581, %v582, %v573
    %v584 = vsel %vm577, %v580, %v583
    %v585 = vsel %vm574, nan, %v584
    %v586 = vand.u32 2147483647, %v55
    %vm587 = vcmp.le.f32.partialorder %v586, 0.7853982
    %vm588 = vcmp.lt.s32.totalorder %v55, 0
    %v589 = vand.u32 %v55, 2139095040
    %v590 = vshrl.u32 %v589, 23
    %v591 = vsub.s32 %v590, 127
    %v592 = vand.u32 2147483647, %v55
    %v593 = vand.u32 %v592, 8388607
    %v594 = vor.u32 %v593, 8388608
    %v595 = vsub.s32 0, %v594
    %v596 = vadd.s32 %v591, 1
    %vm597 = vcmp.gt.s32.totalorder %v596, 0
    %v598 = vsel %vm597, %v596, 0
    %v599 = vshrl.u32 %v598, 5
    %v600 = vand.u32 %v598, 31
    %v601 = vsub.s32 32, %v600
    %v602 = vshrl.u32 683565275, %v601
    %v603 = vshll.u32 683565275, %v600
    %v604 = vshrl.u32 2475754826, %v601
    %v605 = vor.u32 %v603, %v604
    %v606 = vshll.u32 2475754826, %v600
    %v607 = vshrl.u32 2131351028, %v601
    %v608 = vor.u32 %v606, %v607
    %v609 = vshll.u32 2131351028, %v600
    %v610 = vshrl.u32 2102212464, %v601
    %v611 = vor.u32 %v609, %v610
    %v612 = vshll.u32 2102212464, %v600
    %v613 = vshrl.u32 920167782, %v601
    %v614 = vor.u32 %v612, %v613
    %v615 = vshll.u32 920167782, %v600
    %v616 = vshrl.u32 1326507024, %v601
    %v617 = vor.u32 %v615, %v616
    %vm618 = vcmp.lt.s32.totalorder %v599, 1
    %vm619 = vcmp.lt.s32.totalorder %v599, 2
    %vm620 = vcmp.lt.s32.totalorder %v599, 3
    %vm621 = vcmp.lt.s32.totalorder %v599, 4
    %v622 = vsel %vm618, %v602, %v605
    %v623 = vsel %vm621, %v611, 2102212464
    %v624 = vsel %vm620, %v608, %v623
    %v625 = vsel %vm619, %v622, %v624
    %v626 = vsel %vm618, %v605, %v608
    %v627 = vsel %vm621, %v614, 920167782
    %v628 = vsel %vm620, %v611, %v627
    %v629 = vsel %vm619, %v626, %v628
    %v630 = vsel %vm618, %v608, %v611
    %v631 = vsel %vm621, %v617, 1326507024
    %v632 = vsel %vm620, %v614, %v631
    %v633 = vsel %vm619, %v630, %v632
    %v634 = vshll.u32 %v594, 8
    %v635 = vmul.u32.u64.compose %v634, %v633
    %v636 = vextract.low.u32 %v635
    %v637 = vextract.high.u32 %v635
    %v638 = vmul.u32.u64.compose %v634, %v629
    %v639 = vextract.low.u32 %v638
    %v640 = vextract.high.u32 %v638
    %v641 = vmul.u32 %v634, %v625
    %v642 = vadd.s32 %v637, %v639
    %vm643 = vc.u32 %v637, %v639
    %v644 = vadd.s32 %v640, 1
    %v645 = vsel %vm643, %v644, %v640
    %v646 = vadd.s32 %v641, %v645
    %v647 = vadd.s32 %v646, 536870912
    %v648 = vshrl.u32 %v647, 30
    %v649 = vshll.u32 %v648, 30
    %v650 = vsub.s32 %v646, %v649
    %vm651 = vcmp.lt.s32.totalorder %v650, 0
    %v652 = vsub.s32 0, %v650
    %v653 = vsel %vm651, %v652, %v650
    %v654 = vclz %v653
    %v655 = vsub.s32 %v654, 2
    %vm656 = vcmp.gt.s32.totalorder 0, %v655
    %v657 = vsel %vm656, 0, %v655
    %v658 = vsub.s32 32, %v657
    %v659 = vshll.u32 %v650, %v657
    %v660 = vshrl.u32 %v642, %v658
    %v661 = vor.u32 %v659, %v660
    %v662 = vsub.s32 4294967266, %v657
    %v663 = vadd.s32 %v662, 127
    %v664 = vshll.u32 %v663, 23
    %v665 = vor.u32 4788187, %v664
    %v666 = vand.u32 2147483647, %v665
    %v668 = vcvt.s32.f32 %v661
    %v669 = vmul.f32 %v668, %v666
    %v670 = vxor.u32 %v669, 2147483648
    %v671 = vsel %vm588, %v670, %v669
    %v672 = vsub.s32 4, %v648
    %v673 = vsel %vm588, %v672, %v648
    %v674 = vsel %vm587, %v55, %v671
    %v675 = vsel %vm587, 0, %v673
    %v676 = vcosq.f32.pop %v674
    %v677 = vsinq.f32.pop %v674
    %vm678 = vweird.f32 %v55
    %v679 = vadd.s32 %v675, 3
    %v680 = vand.u32 %v679, 3
    %vm681 = vcmp.lt.s32.totalorder %v680, 2
    %vm682 = vcmp.eq.s32.totalorder %v680, 0
    %v683 = vxor.u32 %v677, 2147483648
    %v684 = vsel %vm682, %v676, %v683
    %vm685 = vcmp.eq.s32.totalorder %v680, 2
    %v686 = vxor.u32 %v676, 2147483648
    %v687 = vsel %vm685, %v686, %v677
    %v688 = vsel %vm681, %v684, %v687
    %v689 = vsel %vm678, nan, %v688
    %v690 = vand.u32 2147483647, %v56
    %vm691 = vcmp.le.f32.partialorder %v690, 0.7853982
    %vm692 = vcmp.lt.s32.totalorder %v56, 0
    %v693 = vand.u32 %v56, 2139095040
    %v694 = vshrl.u32 %v693, 23
    %v695 = vsub.s32 %v694, 127
    %v696 = vand.u32 2147483647, %v56
    %v697 = vand.u32 %v696, 8388607
    %v698 = vor.u32 %v697, 8388608
    %v699 = vsub.s32 0, %v698
    %v700 = vadd.s32 %v695, 1
    %vm701 = vcmp.gt.s32.totalorder %v700, 0
    %v702 = vsel %vm701, %v700, 0
    %v703 = vshrl.u32 %v702, 5
    %v704 = vand.u32 %v702, 31
    %v705 = vsub.s32 32, %v704
    %v706 = vshrl.u32 683565275, %v705
    %v707 = vshll.u32 683565275, %v704
    %v708 = vshrl.u32 2475754826, %v705
    %v709 = vor.u32 %v707, %v708
    %v710 = vshll.u32 2475754826, %v704
    %v711 = vshrl.u32 2131351028, %v705
    %v712 = vor.u32 %v710, %v711
    %v713 = vshll.u32 2131351028, %v704
    %v714 = vshrl.u32 2102212464, %v705
    %v715 = vor.u32 %v713, %v714
    %v716 = vshll.u32 2102212464, %v704
    %v717 = vshrl.u32 920167782, %v705
    %v718 = vor.u32 %v716, %v717
    %v719 = vshll.u32 920167782, %v704
    %v720 = vshrl.u32 1326507024, %v705
    %v721 = vor.u32 %v719, %v720
    %vm722 = vcmp.lt.s32.totalorder %v703, 1
    %vm723 = vcmp.lt.s32.totalorder %v703, 2
    %vm724 = vcmp.lt.s32.totalorder %v703, 3
    %vm725 = vcmp.lt.s32.totalorder %v703, 4
    %v726 = vsel %vm722, %v706, %v709
    %v727 = vsel %vm725, %v715, 2102212464
    %v728 = vsel %vm724, %v712, %v727
    %v729 = vsel %vm723, %v726, %v728
    %v730 = vsel %vm722, %v709, %v712
    %v731 = vsel %vm725, %v718, 920167782
    %v732 = vsel %vm724, %v715, %v731
    %v733 = vsel %vm723, %v730, %v732
    %v734 = vsel %vm722, %v712, %v715
    %v735 = vsel %vm725, %v721, 1326507024
    %v736 = vsel %vm724, %v718, %v735
    %v737 = vsel %vm723, %v734, %v736
    %v738 = vshll.u32 %v698, 8
    %v739 = vmul.u32.u64.compose %v738, %v737
    %v740 = vextract.low.u32 %v739
    %v741 = vextract.high.u32 %v739
    %v742 = vmul.u32.u64.compose %v738, %v733
    %v743 = vextract.low.u32 %v742
    %v744 = vextract.high.u32 %v742
    %v745 = vmul.u32 %v738, %v729
    %v746 = vadd.s32 %v741, %v743
    %vm747 = vc.u32 %v741, %v743
    %v748 = vadd.s32 %v744, 1
    %v749 = vsel %vm747, %v748, %v744
    %v750 = vadd.s32 %v745, %v749
    %v751 = vadd.s32 %v750, 536870912
    %v752 = vshrl.u32 %v751, 30
    %v753 = vshll.u32 %v752, 30
    %v754 = vsub.s32 %v750, %v753
    %vm755 = vcmp.lt.s32.totalorder %v754, 0
    %v756 = vsub.s32 0, %v754
    %v757 = vsel %vm755, %v756, %v754
    %v758 = vclz %v757
    %v759 = vsub.s32 %v758, 2
    %vm760 = vcmp.gt.s32.totalorder 0, %v759
    %v761 = vsel %vm760, 0, %v759
    %v762 = vsub.s32 32, %v761
    %v763 = vshll.u32 %v754, %v761
    %v764 = vshrl.u32 %v746, %v762
    %v765 = vor.u32 %v763, %v764
    %v766 = vsub.s32 4294967266, %v761
    %v767 = vadd.s32 %v766, 127
    %v768 = vshll.u32 %v767, 23
    %v769 = vor.u32 4788187, %v768
    %v770 = vand.u32 2147483647, %v769
    %v772 = vcvt.s32.f32 %v765
    %v773 = vmul.f32 %v772, %v770
    %v774 = vxor.u32 %v773, 2147483648
    %v775 = vsel %vm692, %v774, %v773
    %v776 = vsub.s32 4, %v752
    %v777 = vsel %vm692, %v776, %v752
    %v778 = vsel %vm691, %v56, %v775
    %v779 = vsel %vm691, 0, %v777
    %v780 = vcosq.f32.pop %v778
    %v781 = vsinq.f32.pop %v778
    %vm782 = vweird.f32 %v56
    %v783 = vadd.s32 %v779, 3
    %v784 = vand.u32 %v783, 3
    %vm785 = vcmp.lt.s32.totalorder %v784, 2
    %vm786 = vcmp.eq.s32.totalorder %v784, 0
    %v787 = vxor.u32 %v781, 2147483648
    %v788 = vsel %vm786, %v780, %v787
    %vm789 = vcmp.eq.s32.totalorder %v784, 2
    %v790 = vxor.u32 %v780, 2147483648
    %v791 = vsel %vm789, %v790, %v781
    %v792 = vsel %vm785, %v788, %v791
    %v793 = vsel %vm782, nan, %v792
    %v794 = vand.u32 2147483647, %v57
    %vm795 = vcmp.le.f32.partialorder %v794, 0.7853982
    %vm796 = vcmp.lt.s32.totalorder %v57, 0
    %v797 = vand.u32 %v57, 2139095040
    %v798 = vshrl.u32 %v797, 23
    %v799 = vsub.s32 %v798, 127
    %v800 = vand.u32 2147483647, %v57
    %v801 = vand.u32 %v800, 8388607
    %v802 = vor.u32 %v801, 8388608
    %v803 = vsub.s32 0, %v802
    %v804 = vadd.s32 %v799, 1
    %vm805 = vcmp.gt.s32.totalorder %v804, 0
    %v806 = vsel %vm805, %v804, 0
    %v807 = vshrl.u32 %v806, 5
    %v808 = vand.u32 %v806, 31
    %v809 = vsub.s32 32, %v808
    %v810 = vshrl.u32 683565275, %v809
    %v811 = vshll.u32 683565275, %v808
    %v812 = vshrl.u32 2475754826, %v809
    %v813 = vor.u32 %v811, %v812
    %v814 = vshll.u32 2475754826, %v808
    %v815 = vshrl.u32 2131351028, %v809
    %v816 = vor.u32 %v814, %v815
    %v817 = vshll.u32 2131351028, %v808
    %v818 = vshrl.u32 2102212464, %v809
    %v819 = vor.u32 %v817, %v818
    %v820 = vshll.u32 2102212464, %v808
    %v821 = vshrl.u32 920167782, %v809
    %v822 = vor.u32 %v820, %v821
    %v823 = vshll.u32 920167782, %v808
    %v824 = vshrl.u32 1326507024, %v809
    %v825 = vor.u32 %v823, %v824
    %vm826 = vcmp.lt.s32.totalorder %v807, 1
    %vm827 = vcmp.lt.s32.totalorder %v807, 2
    %vm828 = vcmp.lt.s32.totalorder %v807, 3
    %vm829 = vcmp.lt.s32.totalorder %v807, 4
    %v830 = vsel %vm826, %v810, %v813
    %v831 = vsel %vm829, %v819, 2102212464
    %v832 = vsel %vm828, %v816, %v831
    %v833 = vsel %vm827, %v830, %v832
    %v834 = vsel %vm826, %v813, %v816
    %v835 = vsel %vm829, %v822, 920167782
    %v836 = vsel %vm828, %v819, %v835
    %v837 = vsel %vm827, %v834, %v836
    %v838 = vsel %vm826, %v816, %v819
    %v839 = vsel %vm829, %v825, 1326507024
    %v840 = vsel %vm828, %v822, %v839
    %v841 = vsel %vm827, %v838, %v840
    %v842 = vshll.u32 %v802, 8
    %v843 = vmul.u32.u64.compose %v842, %v841
    %v844 = vextract.low.u32 %v843
    %v845 = vextract.high.u32 %v843
    %v846 = vmul.u32.u64.compose %v842, %v837
    %v847 = vextract.low.u32 %v846
    %v848 = vextract.high.u32 %v846
    %v849 = vmul.u32 %v842, %v833
    %v850 = vadd.s32 %v845, %v847
    %vm851 = vc.u32 %v845, %v847
    %v852 = vadd.s32 %v848, 1
    %v853 = vsel %vm851, %v852, %v848
    %v854 = vadd.s32 %v849, %v853
    %v855 = vadd.s32 %v854, 536870912
    %v856 = vshrl.u32 %v855, 30
    %v857 = vshll.u32 %v856, 30
    %v858 = vsub.s32 %v854, %v857
    %vm859 = vcmp.lt.s32.totalorder %v858, 0
    %v860 = vsub.s32 0, %v858
    %v861 = vsel %vm859, %v860, %v858
    %v862 = vclz %v861
    %v863 = vsub.s32 %v862, 2
    %vm864 = vcmp.gt.s32.totalorder 0, %v863
    %v865 = vsel %vm864, 0, %v863
    %v866 = vsub.s32 32, %v865
    %v867 = vshll.u32 %v858, %v865
    %v868 = vshrl.u32 %v850, %v866
    %v869 = vor.u32 %v867, %v868
    %v870 = vsub.s32 4294967266, %v865
    %v871 = vadd.s32 %v870, 127
    %v872 = vshll.u32 %v871, 23
    %v873 = vor.u32 4788187, %v872
    %v874 = vand.u32 2147483647, %v873
    %v876 = vcvt.s32.f32 %v869
    %v877 = vmul.f32 %v876, %v874
    %v878 = vxor.u32 %v877, 2147483648
    %v879 = vsel %vm796, %v878, %v877
    %v880 = vsub.s32 4, %v856
    %v881 = vsel %vm796, %v880, %v856
    %v882 = vsel %vm795, %v57, %v879
    %v883 = vsel %vm795, 0, %v881
    %v884 = vcosq.f32.pop %v882
    %v885 = vsinq.f32.pop %v882
    %vm886 = vweird.f32 %v57
    %v887 = vadd.s32 %v883, 3
    %v888 = vand.u32 %v887, 3
    %vm889 = vcmp.lt.s32.totalorder %v888, 2
    %vm890 = vcmp.eq.s32.totalorder %v888, 0
    %v891 = vxor.u32 %v885, 2147483648
    %v892 = vsel %vm890, %v884, %v891
    %vm893 = vcmp.eq.s32.totalorder %v888, 2
    %v894 = vxor.u32 %v884, 2147483648
    %v895 = vsel %vm893, %v894, %v885
    %v896 = vsel %vm889, %v892, %v895
    %v897 = vsel %vm886, nan, %v896
    %v898 = vand.u32 2147483647, %v58
    %vm899 = vcmp.le.f32.partialorder %v898, 0.7853982
    %vm900 = vcmp.lt.s32.totalorder %v58, 0
    %v901 = vand.u32 %v58, 2139095040
    %v902 = vshrl.u32 %v901, 23
    %v903 = vsub.s32 %v902, 127
    %v904 = vand.u32 2147483647, %v58
    %v905 = vand.u32 %v904, 8388607
    %v906 = vor.u32 %v905, 8388608
    %v907 = vsub.s32 0, %v906
    %v908 = vadd.s32 %v903, 1
    %vm909 = vcmp.gt.s32.totalorder %v908, 0
    %v910 = vsel %vm909, %v908, 0
    %v911 = vshrl.u32 %v910, 5
    %v912 = vand.u32 %v910, 31
    %v913 = vsub.s32 32, %v912
    %v914 = vshrl.u32 683565275, %v913
    %v915 = vshll.u32 683565275, %v912
    %v916 = vshrl.u32 2475754826, %v913
    %v917 = vor.u32 %v915, %v916
    %v918 = vshll.u32 2475754826, %v912
    %v919 = vshrl.u32 2131351028, %v913
    %v920 = vor.u32 %v918, %v919
    %v921 = vshll.u32 2131351028, %v912
    %v922 = vshrl.u32 2102212464, %v913
    %v923 = vor.u32 %v921, %v922
    %v924 = vshll.u32 2102212464, %v912
    %v925 = vshrl.u32 920167782, %v913
    %v926 = vor.u32 %v924, %v925
    %v927 = vshll.u32 920167782, %v912
    %v928 = vshrl.u32 1326507024, %v913
    %v929 = vor.u32 %v927, %v928
    %vm930 = vcmp.lt.s32.totalorder %v911, 1
    %vm931 = vcmp.lt.s32.totalorder %v911, 2
    %vm932 = vcmp.lt.s32.totalorder %v911, 3
    %vm933 = vcmp.lt.s32.totalorder %v911, 4
    %v934 = vsel %vm930, %v914, %v917
    %v935 = vsel %vm933, %v923, 2102212464
    %v936 = vsel %vm932, %v920, %v935
    %v937 = vsel %vm931, %v934, %v936
    %v938 = vsel %vm930, %v917, %v920
    %v939 = vsel %vm933, %v926, 920167782
    %v940 = vsel %vm932, %v923, %v939
    %v941 = vsel %vm931, %v938, %v940
    %v942 = vsel %vm930, %v920, %v923
    %v943 = vsel %vm933, %v929, 1326507024
    %v944 = vsel %vm932, %v926, %v943
    %v945 = vsel %vm931, %v942, %v944
    %v946 = vshll.u32 %v906, 8
    %v947 = vmul.u32.u64.compose %v946, %v945
    %v948 = vextract.low.u32 %v947
    %v949 = vextract.high.u32 %v947
    %v950 = vmul.u32.u64.compose %v946, %v941
    %v951 = vextract.low.u32 %v950
    %v952 = vextract.high.u32 %v950
    %v953 = vmul.u32 %v946, %v937
    %v954 = vadd.s32 %v949, %v951
    %vm955 = vc.u32 %v949, %v951
    %v956 = vadd.s32 %v952, 1
    %v957 = vsel %vm955, %v956, %v952
    %v958 = vadd.s32 %v953, %v957
    %v959 = vadd.s32 %v958, 536870912
    %v960 = vshrl.u32 %v959, 30
    %v961 = vshll.u32 %v960, 30
    %v962 = vsub.s32 %v958, %v961
    %vm963 = vcmp.lt.s32.totalorder %v962, 0
    %v964 = vsub.s32 0, %v962
    %v965 = vsel %vm963, %v964, %v962
    %v966 = vclz %v965
    %v967 = vsub.s32 %v966, 2
    %vm968 = vcmp.gt.s32.totalorder 0, %v967
    %v969 = vsel %vm968, 0, %v967
    %v970 = vsub.s32 32, %v969
    %v971 = vshll.u32 %v962, %v969
    %v972 = vshrl.u32 %v954, %v970
    %v973 = vor.u32 %v971, %v972
    %v974 = vsub.s32 4294967266, %v969
    %v975 = vadd.s32 %v974, 127
    %v976 = vshll.u32 %v975, 23
    %v977 = vor.u32 4788187, %v976
    %v978 = vand.u32 2147483647, %v977
    %v980 = vcvt.s32.f32 %v973
    %v981 = vmul.f32 %v980, %v978
    %v982 = vxor.u32 %v981, 2147483648
    %v983 = vsel %vm900, %v982, %v981
    %v984 = vsub.s32 4, %v960
    %v985 = vsel %vm900, %v984, %v960
    %v986 = vsel %vm899, %v58, %v983
    %v987 = vsel %vm899, 0, %v985
    %v988 = vcosq.f32.pop %v986
    %v989 = vsinq.f32.pop %v986
    %vm990 = vweird.f32 %v58
    %v991 = vadd.s32 %v987, 3
    %v992 = vand.u32 %v991, 3
    %vm993 = vcmp.lt.s32.totalorder %v992, 2
    %vm994 = vcmp.eq.s32.totalorder %v992, 0
    %v995 = vxor.u32 %v989, 2147483648
    %v996 = vsel %vm994, %v988, %v995
    %vm997 = vcmp.eq.s32.totalorder %v992, 2
    %v998 = vxor.u32 %v988, 2147483648
    %v999 = vsel %vm997, %v998, %v989
    %v1000 = vsel %vm993, %v996, %v999
    %v1001 = vsel %vm990, nan, %v1000
    %v1002 = vand.u32 2147483647, %v59
    %vm1003 = vcmp.le.f32.partialorder %v1002, 0.7853982
    %vm1004 = vcmp.lt.s32.totalorder %v59, 0
    %v1005 = vand.u32 %v59, 2139095040
    %v1006 = vshrl.u32 %v1005, 23
    %v1007 = vsub.s32 %v1006, 127
    %v1008 = vand.u32 2147483647, %v59
    %v1009 = vand.u32 %v1008, 8388607
    %v1010 = vor.u32 %v1009, 8388608
    %v1011 = vsub.s32 0, %v1010
    %v1012 = vadd.s32 %v1007, 1
    %vm1013 = vcmp.gt.s32.totalorder %v1012, 0
    %v1014 = vsel %vm1013, %v1012, 0
    %v1015 = vshrl.u32 %v1014, 5
    %v1016 = vand.u32 %v1014, 31
    %v1017 = vsub.s32 32, %v1016
    %v1018 = vshrl.u32 683565275, %v1017
    %v1019 = vshll.u32 683565275, %v1016
    %v1020 = vshrl.u32 2475754826, %v1017
    %v1021 = vor.u32 %v1019, %v1020
    %v1022 = vshll.u32 2475754826, %v1016
    %v1023 = vshrl.u32 2131351028, %v1017
    %v1024 = vor.u32 %v1022, %v1023
    %v1025 = vshll.u32 2131351028, %v1016
    %v1026 = vshrl.u32 2102212464, %v1017
    %v1027 = vor.u32 %v1025, %v1026
    %v1028 = vshll.u32 2102212464, %v1016
    %v1029 = vshrl.u32 920167782, %v1017
    %v1030 = vor.u32 %v1028, %v1029
    %v1031 = vshll.u32 920167782, %v1016
    %v1032 = vshrl.u32 1326507024, %v1017
    %v1033 = vor.u32 %v1031, %v1032
    %vm1034 = vcmp.lt.s32.totalorder %v1015, 1
    %vm1035 = vcmp.lt.s32.totalorder %v1015, 2
    %vm1036 = vcmp.lt.s32.totalorder %v1015, 3
    %vm1037 = vcmp.lt.s32.totalorder %v1015, 4
    %v1038 = vsel %vm1034, %v1018, %v1021
    %v1039 = vsel %vm1037, %v1027, 2102212464
    %v1040 = vsel %vm1036, %v1024, %v1039
    %v1041 = vsel %vm1035, %v1038, %v1040
    %v1042 = vsel %vm1034, %v1021, %v1024
    %v1043 = vsel %vm1037, %v1030, 920167782
    %v1044 = vsel %vm1036, %v1027, %v1043
    %v1045 = vsel %vm1035, %v1042, %v1044
    %v1046 = vsel %vm1034, %v1024, %v1027
    %v1047 = vsel %vm1037, %v1033, 1326507024
    %v1048 = vsel %vm1036, %v1030, %v1047
    %v1049 = vsel %vm1035, %v1046, %v1048
    %v1050 = vshll.u32 %v1010, 8
    %v1051 = vmul.u32.u64.compose %v1050, %v1049
    %v1052 = vextract.low.u32 %v1051
    %v1053 = vextract.high.u32 %v1051
    %v1054 = vmul.u32.u64.compose %v1050, %v1045
    %v1055 = vextract.low.u32 %v1054
    %v1056 = vextract.high.u32 %v1054
    %v1057 = vmul.u32 %v1050, %v1041
    %v1058 = vadd.s32 %v1053, %v1055
    %vm1059 = vc.u32 %v1053, %v1055
    %v1060 = vadd.s32 %v1056, 1
    %v1061 = vsel %vm1059, %v1060, %v1056
    %v1062 = vadd.s32 %v1057, %v1061
    %v1063 = vadd.s32 %v1062, 536870912
    %v1064 = vshrl.u32 %v1063, 30
    %v1065 = vshll.u32 %v1064, 30
    %v1066 = vsub.s32 %v1062, %v1065
    %vm1067 = vcmp.lt.s32.totalorder %v1066, 0
    %v1068 = vsub.s32 0, %v1066
    %v1069 = vsel %vm1067, %v1068, %v1066
    %v1070 = vclz %v1069
    %v1071 = vsub.s32 %v1070, 2
    %vm1072 = vcmp.gt.s32.totalorder 0, %v1071
    %v1073 = vsel %vm1072, 0, %v1071
    %v1074 = vsub.s32 32, %v1073
    %v1075 = vshll.u32 %v1066, %v1073
    %v1076 = vshrl.u32 %v1058, %v1074
    %v1077 = vor.u32 %v1075, %v1076
    %v1078 = vsub.s32 4294967266, %v1073
    %v1079 = vadd.s32 %v1078, 127
    %v1080 = vshll.u32 %v1079, 23
    %v1081 = vor.u32 4788187, %v1080
    %v1082 = vand.u32 2147483647, %v1081
    %v1084 = vcvt.s32.f32 %v1077
    %v1085 = vmul.f32 %v1084, %v1082
    %v1086 = vxor.u32 %v1085, 2147483648
    %v1087 = vsel %vm1004, %v1086, %v1085
    %v1088 = vsub.s32 4, %v1064
    %v1089 = vsel %vm1004, %v1088, %v1064
    %v1090 = vsel %vm1003, %v59, %v1087
    %v1091 = vsel %vm1003, 0, %v1089
    %v1092 = vcosq.f32.pop %v1090
    %v1093 = vsinq.f32.pop %v1090
    %vm1094 = vweird.f32 %v59
    %v1095 = vadd.s32 %v1091, 3
    %v1096 = vand.u32 %v1095, 3
    %vm1097 = vcmp.lt.s32.totalorder %v1096, 2
    %vm1098 = vcmp.eq.s32.totalorder %v1096, 0
    %v1099 = vxor.u32 %v1093, 2147483648
    %v1100 = vsel %vm1098, %v1092, %v1099
    %vm1101 = vcmp.eq.s32.totalorder %v1096, 2
    %v1102 = vxor.u32 %v1092, 2147483648
    %v1103 = vsel %vm1101, %v1102, %v1093
    %v1104 = vsel %vm1097, %v1100, %v1103
    %v1105 = vsel %vm1094, nan, %v1104
    %v1106 = vand.u32 2147483647, %v60
    %vm1107 = vcmp.le.f32.partialorder %v1106, 0.7853982
    %vm1108 = vcmp.lt.s32.totalorder %v60, 0
    %v1109 = vand.u32 %v60, 2139095040
    %v1110 = vshrl.u32 %v1109, 23
    %v1111 = vsub.s32 %v1110, 127
    %v1112 = vand.u32 2147483647, %v60
    %v1113 = vand.u32 %v1112, 8388607
    %v1114 = vor.u32 %v1113, 8388608
    %v1115 = vsub.s32 0, %v1114
    %v1116 = vadd.s32 %v1111, 1
    %vm1117 = vcmp.gt.s32.totalorder %v1116, 0
    %v1118 = vsel %vm1117, %v1116, 0
    %v1119 = vshrl.u32 %v1118, 5
    %v1120 = vand.u32 %v1118, 31
    %v1121 = vsub.s32 32, %v1120
    %v1122 = vshrl.u32 683565275, %v1121
    %v1123 = vshll.u32 683565275, %v1120
    %v1124 = vshrl.u32 2475754826, %v1121
    %v1125 = vor.u32 %v1123, %v1124
    %v1126 = vshll.u32 2475754826, %v1120
    %v1127 = vshrl.u32 2131351028, %v1121
    %v1128 = vor.u32 %v1126, %v1127
    %v1129 = vshll.u32 2131351028, %v1120
    %v1130 = vshrl.u32 2102212464, %v1121
    %v1131 = vor.u32 %v1129, %v1130
    %v1132 = vshll.u32 2102212464, %v1120
    %v1133 = vshrl.u32 920167782, %v1121
    %v1134 = vor.u32 %v1132, %v1133
    %v1135 = vshll.u32 920167782, %v1120
    %v1136 = vshrl.u32 1326507024, %v1121
    %v1137 = vor.u32 %v1135, %v1136
    %vm1138 = vcmp.lt.s32.totalorder %v1119, 1
    %vm1139 = vcmp.lt.s32.totalorder %v1119, 2
    %vm1140 = vcmp.lt.s32.totalorder %v1119, 3
    %vm1141 = vcmp.lt.s32.totalorder %v1119, 4
    %v1142 = vsel %vm1138, %v1122, %v1125
    %v1143 = vsel %vm1141, %v1131, 2102212464
    %v1144 = vsel %vm1140, %v1128, %v1143
    %v1145 = vsel %vm1139, %v1142, %v1144
    %v1146 = vsel %vm1138, %v1125, %v1128
    %v1147 = vsel %vm1141, %v1134, 920167782
    %v1148 = vsel %vm1140, %v1131, %v1147
    %v1149 = vsel %vm1139, %v1146, %v1148
    %v1150 = vsel %vm1138, %v1128, %v1131
    %v1151 = vsel %vm1141, %v1137, 1326507024
    %v1152 = vsel %vm1140, %v1134, %v1151
    %v1153 = vsel %vm1139, %v1150, %v1152
    %v1154 = vshll.u32 %v1114, 8
    %v1155 = vmul.u32.u64.compose %v1154, %v1153
    %v1156 = vextract.low.u32 %v1155
    %v1157 = vextract.high.u32 %v1155
    %v1158 = vmul.u32.u64.compose %v1154, %v1149
    %v1159 = vextract.low.u32 %v1158
    %v1160 = vextract.high.u32 %v1158
    %v1161 = vmul.u32 %v1154, %v1145
    %v1162 = vadd.s32 %v1157, %v1159
    %vm1163 = vc.u32 %v1157, %v1159
    %v1164 = vadd.s32 %v1160, 1
    %v1165 = vsel %vm1163, %v1164, %v1160
    %v1166 = vadd.s32 %v1161, %v1165
    %v1167 = vadd.s32 %v1166, 536870912
    %v1168 = vshrl.u32 %v1167, 30
    %v1169 = vshll.u32 %v1168, 30
    %v1170 = vsub.s32 %v1166, %v1169
    %vm1171 = vcmp.lt.s32.totalorder %v1170, 0
    %v1172 = vsub.s32 0, %v1170
    %v1173 = vsel %vm1171, %v1172, %v1170
    %v1174 = vclz %v1173
    %v1175 = vsub.s32 %v1174, 2
    %vm1176 = vcmp.gt.s32.totalorder 0, %v1175
    %v1177 = vsel %vm1176, 0, %v1175
    %v1178 = vsub.s32 32, %v1177
    %v1179 = vshll.u32 %v1170, %v1177
    %v1180 = vshrl.u32 %v1162, %v1178
    %v1181 = vor.u32 %v1179, %v1180
    %v1182 = vsub.s32 4294967266, %v1177
    %v1183 = vadd.s32 %v1182, 127
    %v1184 = vshll.u32 %v1183, 23
    %v1185 = vor.u32 4788187, %v1184
    %v1186 = vand.u32 2147483647, %v1185
    %v1188 = vcvt.s32.f32 %v1181
    %v1189 = vmul.f32 %v1188, %v1186
    %v1190 = vxor.u32 %v1189, 2147483648
    %v1191 = vsel %vm1108, %v1190, %v1189
    %v1192 = vsub.s32 4, %v1168
    %v1193 = vsel %vm1108, %v1192, %v1168
    %v1194 = vsel %vm1107, %v60, %v1191
    %v1195 = vsel %vm1107, 0, %v1193
    %v1196 = vcosq.f32.pop %v1194
    %v1197 = vsinq.f32.pop %v1194
    %vm1198 = vweird.f32 %v60
    %v1199 = vadd.s32 %v1195, 3
    %v1200 = vand.u32 %v1199, 3
    %vm1201 = vcmp.lt.s32.totalorder %v1200, 2
    %vm1202 = vcmp.eq.s32.totalorder %v1200, 0
    %v1203 = vxor.u32 %v1197, 2147483648
    %v1204 = vsel %vm1202, %v1196, %v1203
    %vm1205 = vcmp.eq.s32.totalorder %v1200, 2
    %v1206 = vxor.u32 %v1196, 2147483648
    %v1207 = vsel %vm1205, %v1206, %v1197
    %v1208 = vsel %vm1201, %v1204, %v1207
    %v1209 = vsel %vm1198, nan, %v1208
    %v1210 = vand.u32 2147483647, %v61
    %vm1211 = vcmp.le.f32.partialorder %v1210, 0.7853982
    %vm1212 = vcmp.lt.s32.totalorder %v61, 0
    %v1213 = vand.u32 %v61, 2139095040
    %v1214 = vshrl.u32 %v1213, 23
    %v1215 = vsub.s32 %v1214, 127
    %v1216 = vand.u32 2147483647, %v61
    %v1217 = vand.u32 %v1216, 8388607
    %v1218 = vor.u32 %v1217, 8388608
    %v1219 = vsub.s32 0, %v1218
    %v1220 = vadd.s32 %v1215, 1
    %vm1221 = vcmp.gt.s32.totalorder %v1220, 0
    %v1222 = vsel %vm1221, %v1220, 0
    %v1223 = vshrl.u32 %v1222, 5
    %v1224 = vand.u32 %v1222, 31
    %v1225 = vsub.s32 32, %v1224
    %v1226 = vshrl.u32 683565275, %v1225
    %v1227 = vshll.u32 683565275, %v1224
    %v1228 = vshrl.u32 2475754826, %v1225
    %v1229 = vor.u32 %v1227, %v1228
    %v1230 = vshll.u32 2475754826, %v1224
    %v1231 = vshrl.u32 2131351028, %v1225
    %v1232 = vor.u32 %v1230, %v1231
    %v1233 = vshll.u32 2131351028, %v1224
    %v1234 = vshrl.u32 2102212464, %v1225
    %v1235 = vor.u32 %v1233, %v1234
    %v1236 = vshll.u32 2102212464, %v1224
    %v1237 = vshrl.u32 920167782, %v1225
    %v1238 = vor.u32 %v1236, %v1237
    %v1239 = vshll.u32 920167782, %v1224
    %v1240 = vshrl.u32 1326507024, %v1225
    %v1241 = vor.u32 %v1239, %v1240
    %vm1242 = vcmp.lt.s32.totalorder %v1223, 1
    %vm1243 = vcmp.lt.s32.totalorder %v1223, 2
    %vm1244 = vcmp.lt.s32.totalorder %v1223, 3
    %vm1245 = vcmp.lt.s32.totalorder %v1223, 4
    %v1246 = vsel %vm1242, %v1226, %v1229
    %v1247 = vsel %vm1245, %v1235, 2102212464
    %v1248 = vsel %vm1244, %v1232, %v1247
    %v1249 = vsel %vm1243, %v1246, %v1248
    %v1250 = vsel %vm1242, %v1229, %v1232
    %v1251 = vsel %vm1245, %v1238, 920167782
    %v1252 = vsel %vm1244, %v1235, %v1251
    %v1253 = vsel %vm1243, %v1250, %v1252
    %v1254 = vsel %vm1242, %v1232, %v1235
    %v1255 = vsel %vm1245, %v1241, 1326507024
    %v1256 = vsel %vm1244, %v1238, %v1255
    %v1257 = vsel %vm1243, %v1254, %v1256
    %v1258 = vshll.u32 %v1218, 8
    %v1259 = vmul.u32.u64.compose %v1258, %v1257
    %v1260 = vextract.low.u32 %v1259
    %v1261 = vextract.high.u32 %v1259
    %v1262 = vmul.u32.u64.compose %v1258, %v1253
    %v1263 = vextract.low.u32 %v1262
    %v1264 = vextract.high.u32 %v1262
    %v1265 = vmul.u32 %v1258, %v1249
    %v1266 = vadd.s32 %v1261, %v1263
    %vm1267 = vc.u32 %v1261, %v1263
    %v1268 = vadd.s32 %v1264, 1
    %v1269 = vsel %vm1267, %v1268, %v1264
    %v1270 = vadd.s32 %v1265, %v1269
    %v1271 = vadd.s32 %v1270, 536870912
    %v1272 = vshrl.u32 %v1271, 30
    %v1273 = vshll.u32 %v1272, 30
    %v1274 = vsub.s32 %v1270, %v1273
    %vm1275 = vcmp.lt.s32.totalorder %v1274, 0
    %v1276 = vsub.s32 0, %v1274
    %v1277 = vsel %vm1275, %v1276, %v1274
    %v1278 = vclz %v1277
    %v1279 = vsub.s32 %v1278, 2
    %vm1280 = vcmp.gt.s32.totalorder 0, %v1279
    %v1281 = vsel %vm1280, 0, %v1279
    %v1282 = vsub.s32 32, %v1281
    %v1283 = vshll.u32 %v1274, %v1281
    %v1284 = vshrl.u32 %v1266, %v1282
    %v1285 = vor.u32 %v1283, %v1284
    %v1286 = vsub.s32 4294967266, %v1281
    %v1287 = vadd.s32 %v1286, 127
    %v1288 = vshll.u32 %v1287, 23
    %v1289 = vor.u32 4788187, %v1288
    %v1290 = vand.u32 2147483647, %v1289
    %v1292 = vcvt.s32.f32 %v1285
    %v1293 = vmul.f32 %v1292, %v1290
    %v1294 = vxor.u32 %v1293, 2147483648
    %v1295 = vsel %vm1212, %v1294, %v1293
    %v1296 = vsub.s32 4, %v1272
    %v1297 = vsel %vm1212, %v1296, %v1272
    %v1298 = vsel %vm1211, %v61, %v1295
    %v1299 = vsel %vm1211, 0, %v1297
    %v1300 = vcosq.f32.pop %v1298
    %v1301 = vsinq.f32.pop %v1298
    %vm1302 = vweird.f32 %v61
    %v1303 = vadd.s32 %v1299, 3
    %v1304 = vand.u32 %v1303, 3
    %vm1305 = vcmp.lt.s32.totalorder %v1304, 2
    %vm1306 = vcmp.eq.s32.totalorder %v1304, 0
    %v1307 = vxor.u32 %v1301, 2147483648
    %v1308 = vsel %vm1306, %v1300, %v1307
    %vm1309 = vcmp.eq.s32.totalorder %v1304, 2
    %v1310 = vxor.u32 %v1300, 2147483648
    %v1311 = vsel %vm1309, %v1310, %v1301
    %v1312 = vsel %vm1305, %v1308, %v1311
    %v1313 = vsel %vm1302, nan, %v1312
    %v1314 = vand.u32 2147483647, %v62
    %vm1315 = vcmp.le.f32.partialorder %v1314, 0.7853982
    %vm1316 = vcmp.lt.s32.totalorder %v62, 0
    %v1317 = vand.u32 %v62, 2139095040
    %v1318 = vshrl.u32 %v1317, 23
    %v1319 = vsub.s32 %v1318, 127
    %v1320 = vand.u32 2147483647, %v62
    %v1321 = vand.u32 %v1320, 8388607
    %v1322 = vor.u32 %v1321, 8388608
    %v1323 = vsub.s32 0, %v1322
    %v1324 = vadd.s32 %v1319, 1
    %vm1325 = vcmp.gt.s32.totalorder %v1324, 0
    %v1326 = vsel %vm1325, %v1324, 0
    %v1327 = vshrl.u32 %v1326, 5
    %v1328 = vand.u32 %v1326, 31
    %v1329 = vsub.s32 32, %v1328
    %v1330 = vshrl.u32 683565275, %v1329
    %v1331 = vshll.u32 683565275, %v1328
    %v1332 = vshrl.u32 2475754826, %v1329
    %v1333 = vor.u32 %v1331, %v1332
    %v1334 = vshll.u32 2475754826, %v1328
    %v1335 = vshrl.u32 2131351028, %v1329
    %v1336 = vor.u32 %v1334, %v1335
    %v1337 = vshll.u32 2131351028, %v1328
    %v1338 = vshrl.u32 2102212464, %v1329
    %v1339 = vor.u32 %v1337, %v1338
    %v1340 = vshll.u32 2102212464, %v1328
    %v1341 = vshrl.u32 920167782, %v1329
    %v1342 = vor.u32 %v1340, %v1341
    %v1343 = vshll.u32 920167782, %v1328
    %v1344 = vshrl.u32 1326507024, %v1329
    %v1345 = vor.u32 %v1343, %v1344
    %vm1346 = vcmp.lt.s32.totalorder %v1327, 1
    %vm1347 = vcmp.lt.s32.totalorder %v1327, 2
    %vm1348 = vcmp.lt.s32.totalorder %v1327, 3
    %vm1349 = vcmp.lt.s32.totalorder %v1327, 4
    %v1350 = vsel %vm1346, %v1330, %v1333
    %v1351 = vsel %vm1349, %v1339, 2102212464
    %v1352 = vsel %vm1348, %v1336, %v1351
    %v1353 = vsel %vm1347, %v1350, %v1352
    %v1354 = vsel %vm1346, %v1333, %v1336
    %v1355 = vsel %vm1349, %v1342, 920167782
    %v1356 = vsel %vm1348, %v1339, %v1355
    %v1357 = vsel %vm1347, %v1354, %v1356
    %v1358 = vsel %vm1346, %v1336, %v1339
    %v1359 = vsel %vm1349, %v1345, 1326507024
    %v1360 = vsel %vm1348, %v1342, %v1359
    %v1361 = vsel %vm1347, %v1358, %v1360
    %v1362 = vshll.u32 %v1322, 8
    %v1363 = vmul.u32.u64.compose %v1362, %v1361
    %v1364 = vextract.low.u32 %v1363
    %v1365 = vextract.high.u32 %v1363
    %v1366 = vmul.u32.u64.compose %v1362, %v1357
    %v1367 = vextract.low.u32 %v1366
    %v1368 = vextract.high.u32 %v1366
    %v1369 = vmul.u32 %v1362, %v1353
    %v1370 = vadd.s32 %v1365, %v1367
    %vm1371 = vc.u32 %v1365, %v1367
    %v1372 = vadd.s32 %v1368, 1
    %v1373 = vsel %vm1371, %v1372, %v1368
    %v1374 = vadd.s32 %v1369, %v1373
    %v1375 = vadd.s32 %v1374, 536870912
    %v1376 = vshrl.u32 %v1375, 30
    %v1377 = vshll.u32 %v1376, 30
    %v1378 = vsub.s32 %v1374, %v1377
    %vm1379 = vcmp.lt.s32.totalorder %v1378, 0
    %v1380 = vsub.s32 0, %v1378
    %v1381 = vsel %vm1379, %v1380, %v1378
    %v1382 = vclz %v1381
    %v1383 = vsub.s32 %v1382, 2
    %vm1384 = vcmp.gt.s32.totalorder 0, %v1383
    %v1385 = vsel %vm1384, 0, %v1383
    %v1386 = vsub.s32 32, %v1385
    %v1387 = vshll.u32 %v1378, %v1385
    %v1388 = vshrl.u32 %v1370, %v1386
    %v1389 = vor.u32 %v1387, %v1388
    %v1390 = vsub.s32 4294967266, %v1385
    %v1391 = vadd.s32 %v1390, 127
    %v1392 = vshll.u32 %v1391, 23
    %v1393 = vor.u32 4788187, %v1392
    %v1394 = vand.u32 2147483647, %v1393
    %v1396 = vcvt.s32.f32 %v1389
    %v1397 = vmul.f32 %v1396, %v1394
    %v1398 = vxor.u32 %v1397, 2147483648
    %v1399 = vsel %vm1316, %v1398, %v1397
    %v1400 = vsub.s32 4, %v1376
    %v1401 = vsel %vm1316, %v1400, %v1376
    %v1402 = vsel %vm1315, %v62, %v1399
    %v1403 = vsel %vm1315, 0, %v1401
    %v1404 = vcosq.f32.pop %v1402
    %v1405 = vsinq.f32.pop %v1402
    %vm1406 = vweird.f32 %v62
    %v1407 = vadd.s32 %v1403, 3
    %v1408 = vand.u32 %v1407, 3
    %vm1409 = vcmp.lt.s32.totalorder %v1408, 2
    %vm1410 = vcmp.eq.s32.totalorder %v1408, 0
    %v1411 = vxor.u32 %v1405, 2147483648
    %v1412 = vsel %vm1410, %v1404, %v1411
    %vm1413 = vcmp.eq.s32.totalorder %v1408, 2
    %v1414 = vxor.u32 %v1404, 2147483648
    %v1415 = vsel %vm1413, %v1414, %v1405
    %v1416 = vsel %vm1409, %v1412, %v1415
    %v1417 = vsel %vm1406, nan, %v1416
    %v1418 = vand.u32 2147483647, %v63
    %vm1419 = vcmp.le.f32.partialorder %v1418, 0.7853982
    %vm1420 = vcmp.lt.s32.totalorder %v63, 0
    %v1421 = vand.u32 %v63, 2139095040
    %v1422 = vshrl.u32 %v1421, 23
    %v1423 = vsub.s32 %v1422, 127
    %v1424 = vand.u32 2147483647, %v63
    %v1425 = vand.u32 %v1424, 8388607
    %v1426 = vor.u32 %v1425, 8388608
    %v1427 = vsub.s32 0, %v1426
    %v1428 = vadd.s32 %v1423, 1
    %vm1429 = vcmp.gt.s32.totalorder %v1428, 0
    %v1430 = vsel %vm1429, %v1428, 0
    %v1431 = vshrl.u32 %v1430, 5
    %v1432 = vand.u32 %v1430, 31
    %v1433 = vsub.s32 32, %v1432
    %v1434 = vshrl.u32 683565275, %v1433
    %v1435 = vshll.u32 683565275, %v1432
    %v1436 = vshrl.u32 2475754826, %v1433
    %v1437 = vor.u32 %v1435, %v1436
    %v1438 = vshll.u32 2475754826, %v1432
    %v1439 = vshrl.u32 2131351028, %v1433
    %v1440 = vor.u32 %v1438, %v1439
    %v1441 = vshll.u32 2131351028, %v1432
    %v1442 = vshrl.u32 2102212464, %v1433
    %v1443 = vor.u32 %v1441, %v1442
    %v1444 = vshll.u32 2102212464, %v1432
    %v1445 = vshrl.u32 920167782, %v1433
    %v1446 = vor.u32 %v1444, %v1445
    %v1447 = vshll.u32 920167782, %v1432
    %v1448 = vshrl.u32 1326507024, %v1433
    %v1449 = vor.u32 %v1447, %v1448
    %vm1450 = vcmp.lt.s32.totalorder %v1431, 1
    %vm1451 = vcmp.lt.s32.totalorder %v1431, 2
    %vm1452 = vcmp.lt.s32.totalorder %v1431, 3
    %vm1453 = vcmp.lt.s32.totalorder %v1431, 4
    %v1454 = vsel %vm1450, %v1434, %v1437
    %v1455 = vsel %vm1453, %v1443, 2102212464
    %v1456 = vsel %vm1452, %v1440, %v1455
    %v1457 = vsel %vm1451, %v1454, %v1456
    %v1458 = vsel %vm1450, %v1437, %v1440
    %v1459 = vsel %vm1453, %v1446, 920167782
    %v1460 = vsel %vm1452, %v1443, %v1459
    %v1461 = vsel %vm1451, %v1458, %v1460
    %v1462 = vsel %vm1450, %v1440, %v1443
    %v1463 = vsel %vm1453, %v1449, 1326507024
    %v1464 = vsel %vm1452, %v1446, %v1463
    %v1465 = vsel %vm1451, %v1462, %v1464
    %v1466 = vshll.u32 %v1426, 8
    %v1467 = vmul.u32.u64.compose %v1466, %v1465
    %v1468 = vextract.low.u32 %v1467
    %v1469 = vextract.high.u32 %v1467
    %v1470 = vmul.u32.u64.compose %v1466, %v1461
    %v1471 = vextract.low.u32 %v1470
    %v1472 = vextract.high.u32 %v1470
    %v1473 = vmul.u32 %v1466, %v1457
    %v1474 = vadd.s32 %v1469, %v1471
    %vm1475 = vc.u32 %v1469, %v1471
    %v1476 = vadd.s32 %v1472, 1
    %v1477 = vsel %vm1475, %v1476, %v1472
    %v1478 = vadd.s32 %v1473, %v1477
    %v1479 = vadd.s32 %v1478, 536870912
    %v1480 = vshrl.u32 %v1479, 30
    %v1481 = vshll.u32 %v1480, 30
    %v1482 = vsub.s32 %v1478, %v1481
    %vm1483 = vcmp.lt.s32.totalorder %v1482, 0
    %v1484 = vsub.s32 0, %v1482
    %v1485 = vsel %vm1483, %v1484, %v1482
    %v1486 = vclz %v1485
    %v1487 = vsub.s32 %v1486, 2
    %vm1488 = vcmp.gt.s32.totalorder 0, %v1487
    %v1489 = vsel %vm1488, 0, %v1487
    %v1490 = vsub.s32 32, %v1489
    %v1491 = vshll.u32 %v1482, %v1489
    %v1492 = vshrl.u32 %v1474, %v1490
    %v1493 = vor.u32 %v1491, %v1492
    %v1494 = vsub.s32 4294967266, %v1489
    %v1495 = vadd.s32 %v1494, 127
    %v1496 = vshll.u32 %v1495, 23
    %v1497 = vor.u32 4788187, %v1496
    %v1498 = vand.u32 2147483647, %v1497
    %v1500 = vcvt.s32.f32 %v1493
    %v1501 = vmul.f32 %v1500, %v1498
    %v1502 = vxor.u32 %v1501, 2147483648
    %v1503 = vsel %vm1420, %v1502, %v1501
    %v1504 = vsub.s32 4, %v1480
    %v1505 = vsel %vm1420, %v1504, %v1480
    %v1506 = vsel %vm1419, %v63, %v1503
    %v1507 = vsel %vm1419, 0, %v1505
    %v1508 = vcosq.f32.pop %v1506
    %v1509 = vsinq.f32.pop %v1506
    %vm1510 = vweird.f32 %v63
    %v1511 = vadd.s32 %v1507, 3
    %v1512 = vand.u32 %v1511, 3
    %vm1513 = vcmp.lt.s32.totalorder %v1512, 2
    %vm1514 = vcmp.eq.s32.totalorder %v1512, 0
    %v1515 = vxor.u32 %v1509, 2147483648
    %v1516 = vsel %vm1514, %v1508, %v1515
    %vm1517 = vcmp.eq.s32.totalorder %v1512, 2
    %v1518 = vxor.u32 %v1508, 2147483648
    %v1519 = vsel %vm1517, %v1518, %v1509
    %v1520 = vsel %vm1513, %v1516, %v1519
    %v1521 = vsel %vm1510, nan, %v1520
    %v1522 = vand.u32 2147483647, %v64
    %vm1523 = vcmp.le.f32.partialorder %v1522, 0.7853982
    %vm1524 = vcmp.lt.s32.totalorder %v64, 0
    %v1525 = vand.u32 %v64, 2139095040
    %v1526 = vshrl.u32 %v1525, 23
    %v1527 = vsub.s32 %v1526, 127
    %v1528 = vand.u32 2147483647, %v64
    %v1529 = vand.u32 %v1528, 8388607
    %v1530 = vor.u32 %v1529, 8388608
    %v1531 = vsub.s32 0, %v1530
    %v1532 = vadd.s32 %v1527, 1
    %vm1533 = vcmp.gt.s32.totalorder %v1532, 0
    %v1534 = vsel %vm1533, %v1532, 0
    %v1535 = vshrl.u32 %v1534, 5
    %v1536 = vand.u32 %v1534, 31
    %v1537 = vsub.s32 32, %v1536
    %v1538 = vshrl.u32 683565275, %v1537
    %v1539 = vshll.u32 683565275, %v1536
    %v1540 = vshrl.u32 2475754826, %v1537
    %v1541 = vor.u32 %v1539, %v1540
    %v1542 = vshll.u32 2475754826, %v1536
    %v1543 = vshrl.u32 2131351028, %v1537
    %v1544 = vor.u32 %v1542, %v1543
    %v1545 = vshll.u32 2131351028, %v1536
    %v1546 = vshrl.u32 2102212464, %v1537
    %v1547 = vor.u32 %v1545, %v1546
    %v1548 = vshll.u32 2102212464, %v1536
    %v1549 = vshrl.u32 920167782, %v1537
    %v1550 = vor.u32 %v1548, %v1549
    %v1551 = vshll.u32 920167782, %v1536
    %v1552 = vshrl.u32 1326507024, %v1537
    %v1553 = vor.u32 %v1551, %v1552
    %vm1554 = vcmp.lt.s32.totalorder %v1535, 1
    %vm1555 = vcmp.lt.s32.totalorder %v1535, 2
    %vm1556 = vcmp.lt.s32.totalorder %v1535, 3
    %vm1557 = vcmp.lt.s32.totalorder %v1535, 4
    %v1558 = vsel %vm1554, %v1538, %v1541
    %v1559 = vsel %vm1557, %v1547, 2102212464
    %v1560 = vsel %vm1556, %v1544, %v1559
    %v1561 = vsel %vm1555, %v1558, %v1560
    %v1562 = vsel %vm1554, %v1541, %v1544
    %v1563 = vsel %vm1557, %v1550, 920167782
    %v1564 = vsel %vm1556, %v1547, %v1563
    %v1565 = vsel %vm1555, %v1562, %v1564
    %v1566 = vsel %vm1554, %v1544, %v1547
    %v1567 = vsel %vm1557, %v1553, 1326507024
    %v1568 = vsel %vm1556, %v1550, %v1567
    %v1569 = vsel %vm1555, %v1566, %v1568
    %v1570 = vshll.u32 %v1530, 8
    %v1571 = vmul.u32.u64.compose %v1570, %v1569
    %v1572 = vextract.low.u32 %v1571
    %v1573 = vextract.high.u32 %v1571
    %v1574 = vmul.u32.u64.compose %v1570, %v1565
    %v1575 = vextract.low.u32 %v1574
    %v1576 = vextract.high.u32 %v1574
    %v1577 = vmul.u32 %v1570, %v1561
    %v1578 = vadd.s32 %v1573, %v1575
    %vm1579 = vc.u32 %v1573, %v1575
    %v1580 = vadd.s32 %v1576, 1
    %v1581 = vsel %vm1579, %v1580, %v1576
    %v1582 = vadd.s32 %v1577, %v1581
    %v1583 = vadd.s32 %v1582, 536870912
    %v1584 = vshrl.u32 %v1583, 30
    %v1585 = vshll.u32 %v1584, 30
    %v1586 = vsub.s32 %v1582, %v1585
    %vm1587 = vcmp.lt.s32.totalorder %v1586, 0
    %v1588 = vsub.s32 0, %v1586
    %v1589 = vsel %vm1587, %v1588, %v1586
    %v1590 = vclz %v1589
    %v1591 = vsub.s32 %v1590, 2
    %vm1592 = vcmp.gt.s32.totalorder 0, %v1591
    %v1593 = vsel %vm1592, 0, %v1591
    %v1594 = vsub.s32 32, %v1593
    %v1595 = vshll.u32 %v1586, %v1593
    %v1596 = vshrl.u32 %v1578, %v1594
    %v1597 = vor.u32 %v1595, %v1596
    %v1598 = vsub.s32 4294967266, %v1593
    %v1599 = vadd.s32 %v1598, 127
    %v1600 = vshll.u32 %v1599, 23
    %v1601 = vor.u32 4788187, %v1600
    %v1602 = vand.u32 2147483647, %v1601
    %v1604 = vcvt.s32.f32 %v1597
    %v1605 = vmul.f32 %v1604, %v1602
    %v1606 = vxor.u32 %v1605, 2147483648
    %v1607 = vsel %vm1524, %v1606, %v1605
    %v1608 = vsub.s32 4, %v1584
    %v1609 = vsel %vm1524, %v1608, %v1584
    %v1610 = vsel %vm1523, %v64, %v1607
    %v1611 = vsel %vm1523, 0, %v1609
    %v1612 = vcosq.f32.pop %v1610
    %v1613 = vsinq.f32.pop %v1610
    %vm1614 = vweird.f32 %v64
    %v1615 = vadd.s32 %v1611, 3
    %v1616 = vand.u32 %v1615, 3
    %vm1617 = vcmp.lt.s32.totalorder %v1616, 2
    %vm1618 = vcmp.eq.s32.totalorder %v1616, 0
    %v1619 = vxor.u32 %v1613, 2147483648
    %v1620 = vsel %vm1618, %v1612, %v1619
    %vm1621 = vcmp.eq.s32.totalorder %v1616, 2
    %v1622 = vxor.u32 %v1612, 2147483648
    %v1623 = vsel %vm1621, %v1622, %v1613
    %v1624 = vsel %vm1617, %v1620, %v1623
    %v1625 = vsel %vm1614, nan, %v1624
    %v1626 = vand.u32 2147483647, %v65
    %vm1627 = vcmp.le.f32.partialorder %v1626, 0.7853982
    %vm1628 = vcmp.lt.s32.totalorder %v65, 0
    %v1629 = vand.u32 %v65, 2139095040
    %v1630 = vshrl.u32 %v1629, 23
    %v1631 = vsub.s32 %v1630, 127
    %v1632 = vand.u32 2147483647, %v65
    %v1633 = vand.u32 %v1632, 8388607
    %v1634 = vor.u32 %v1633, 8388608
    %v1635 = vsub.s32 0, %v1634
    %v1636 = vadd.s32 %v1631, 1
    %vm1637 = vcmp.gt.s32.totalorder %v1636, 0
    %v1638 = vsel %vm1637, %v1636, 0
    %v1639 = vshrl.u32 %v1638, 5
    %v1640 = vand.u32 %v1638, 31
    %v1641 = vsub.s32 32, %v1640
    %v1642 = vshrl.u32 683565275, %v1641
    %v1643 = vshll.u32 683565275, %v1640
    %v1644 = vshrl.u32 2475754826, %v1641
    %v1645 = vor.u32 %v1643, %v1644
    %v1646 = vshll.u32 2475754826, %v1640
    %v1647 = vshrl.u32 2131351028, %v1641
    %v1648 = vor.u32 %v1646, %v1647
    %v1649 = vshll.u32 2131351028, %v1640
    %v1650 = vshrl.u32 2102212464, %v1641
    %v1651 = vor.u32 %v1649, %v1650
    %v1652 = vshll.u32 2102212464, %v1640
    %v1653 = vshrl.u32 920167782, %v1641
    %v1654 = vor.u32 %v1652, %v1653
    %v1655 = vshll.u32 920167782, %v1640
    %v1656 = vshrl.u32 1326507024, %v1641
    %v1657 = vor.u32 %v1655, %v1656
    %vm1658 = vcmp.lt.s32.totalorder %v1639, 1
    %vm1659 = vcmp.lt.s32.totalorder %v1639, 2
    %vm1660 = vcmp.lt.s32.totalorder %v1639, 3
    %vm1661 = vcmp.lt.s32.totalorder %v1639, 4
    %v1662 = vsel %vm1658, %v1642, %v1645
    %v1663 = vsel %vm1661, %v1651, 2102212464
    %v1664 = vsel %vm1660, %v1648, %v1663
    %v1665 = vsel %vm1659, %v1662, %v1664
    %v1666 = vsel %vm1658, %v1645, %v1648
    %v1667 = vsel %vm1661, %v1654, 920167782
    %v1668 = vsel %vm1660, %v1651, %v1667
    %v1669 = vsel %vm1659, %v1666, %v1668
    %v1670 = vsel %vm1658, %v1648, %v1651
    %v1671 = vsel %vm1661, %v1657, 1326507024
    %v1672 = vsel %vm1660, %v1654, %v1671
    %v1673 = vsel %vm1659, %v1670, %v1672
    %v1674 = vshll.u32 %v1634, 8
    %v1675 = vmul.u32.u64.compose %v1674, %v1673
    %v1676 = vextract.low.u32 %v1675
    %v1677 = vextract.high.u32 %v1675
    %v1678 = vmul.u32.u64.compose %v1674, %v1669
    %v1679 = vextract.low.u32 %v1678
    %v1680 = vextract.high.u32 %v1678
    %v1681 = vmul.u32 %v1674, %v1665
    %v1682 = vadd.s32 %v1677, %v1679
    %vm1683 = vc.u32 %v1677, %v1679
    %v1684 = vadd.s32 %v1680, 1
    %v1685 = vsel %vm1683, %v1684, %v1680
    %v1686 = vadd.s32 %v1681, %v1685
    %v1687 = vadd.s32 %v1686, 536870912
    %v1688 = vshrl.u32 %v1687, 30
    %v1689 = vshll.u32 %v1688, 30
    %v1690 = vsub.s32 %v1686, %v1689
    %vm1691 = vcmp.lt.s32.totalorder %v1690, 0
    %v1692 = vsub.s32 0, %v1690
    %v1693 = vsel %vm1691, %v1692, %v1690
    %v1694 = vclz %v1693
    %v1695 = vsub.s32 %v1694, 2
    %vm1696 = vcmp.gt.s32.totalorder 0, %v1695
    %v1697 = vsel %vm1696, 0, %v1695
    %v1698 = vsub.s32 32, %v1697
    %v1699 = vshll.u32 %v1690, %v1697
    %v1700 = vshrl.u32 %v1682, %v1698
    %v1701 = vor.u32 %v1699, %v1700
    %v1702 = vsub.s32 4294967266, %v1697
    %v1703 = vadd.s32 %v1702, 127
    %v1704 = vshll.u32 %v1703, 23
    %v1705 = vor.u32 4788187, %v1704
    %v1706 = vand.u32 2147483647, %v1705
    %v1708 = vcvt.s32.f32 %v1701
    %v1709 = vmul.f32 %v1708, %v1706
    %v1710 = vxor.u32 %v1709, 2147483648
    %v1711 = vsel %vm1628, %v1710, %v1709
    %v1712 = vsub.s32 4, %v1688
    %v1713 = vsel %vm1628, %v1712, %v1688
    %v1714 = vsel %vm1627, %v65, %v1711
    %v1715 = vsel %vm1627, 0, %v1713
    %v1716 = vcosq.f32.pop %v1714
    %v1717 = vsinq.f32.pop %v1714
    %vm1718 = vweird.f32 %v65
    %v1719 = vadd.s32 %v1715, 3
    %v1720 = vand.u32 %v1719, 3
    %vm1721 = vcmp.lt.s32.totalorder %v1720, 2
    %vm1722 = vcmp.eq.s32.totalorder %v1720, 0
    %v1723 = vxor.u32 %v1717, 2147483648
    %v1724 = vsel %vm1722, %v1716, %v1723
    %vm1725 = vcmp.eq.s32.totalorder %v1720, 2
    %v1726 = vxor.u32 %v1716, 2147483648
    %v1727 = vsel %vm1725, %v1726, %v1717
    %v1728 = vsel %vm1721, %v1724, %v1727
    %v1729 = vsel %vm1718, nan, %v1728
    %v1730 = vand.u32 2147483647, %v50
    %vm1731 = vcmp.le.f32.partialorder %v1730, 0.7853982
    %vm1732 = vcmp.lt.s32.totalorder %v50, 0
    %v1733 = vand.u32 %v50, 2139095040
    %v1734 = vshrl.u32 %v1733, 23
    %v1735 = vsub.s32 %v1734, 127
    %v1736 = vand.u32 2147483647, %v50
    %v1737 = vand.u32 %v1736, 8388607
    %v1738 = vor.u32 %v1737, 8388608
    %v1739 = vsub.s32 0, %v1738
    %v1740 = vadd.s32 %v1735, 1
    %vm1741 = vcmp.gt.s32.totalorder %v1740, 0
    %v1742 = vsel %vm1741, %v1740, 0
    %v1743 = vshrl.u32 %v1742, 5
    %v1744 = vand.u32 %v1742, 31
    %v1745 = vsub.s32 32, %v1744
    %v1746 = vshrl.u32 683565275, %v1745
    %v1747 = vshll.u32 683565275, %v1744
    %v1748 = vshrl.u32 2475754826, %v1745
    %v1749 = vor.u32 %v1747, %v1748
    %v1750 = vshll.u32 2475754826, %v1744
    %v1751 = vshrl.u32 2131351028, %v1745
    %v1752 = vor.u32 %v1750, %v1751
    %v1753 = vshll.u32 2131351028, %v1744
    %v1754 = vshrl.u32 2102212464, %v1745
    %v1755 = vor.u32 %v1753, %v1754
    %v1756 = vshll.u32 2102212464, %v1744
    %v1757 = vshrl.u32 920167782, %v1745
    %v1758 = vor.u32 %v1756, %v1757
    %v1759 = vshll.u32 920167782, %v1744
    %v1760 = vshrl.u32 1326507024, %v1745
    %v1761 = vor.u32 %v1759, %v1760
    %vm1762 = vcmp.lt.s32.totalorder %v1743, 1
    %vm1763 = vcmp.lt.s32.totalorder %v1743, 2
    %vm1764 = vcmp.lt.s32.totalorder %v1743, 3
    %vm1765 = vcmp.lt.s32.totalorder %v1743, 4
    %v1766 = vsel %vm1762, %v1746, %v1749
    %v1767 = vsel %vm1765, %v1755, 2102212464
    %v1768 = vsel %vm1764, %v1752, %v1767
    %v1769 = vsel %vm1763, %v1766, %v1768
    %v1770 = vsel %vm1762, %v1749, %v1752
    %v1771 = vsel %vm1765, %v1758, 920167782
    %v1772 = vsel %vm1764, %v1755, %v1771
    %v1773 = vsel %vm1763, %v1770, %v1772
    %v1774 = vsel %vm1762, %v1752, %v1755
    %v1775 = vsel %vm1765, %v1761, 1326507024
    %v1776 = vsel %vm1764, %v1758, %v1775
    %v1777 = vsel %vm1763, %v1774, %v1776
    %v1778 = vshll.u32 %v1738, 8
    %v1779 = vmul.u32.u64.compose %v1778, %v1777
    %v1780 = vextract.low.u32 %v1779
    %v1781 = vextract.high.u32 %v1779
    %v1782 = vmul.u32.u64.compose %v1778, %v1773
    %v1783 = vextract.low.u32 %v1782
    %v1784 = vextract.high.u32 %v1782
    %v1785 = vmul.u32 %v1778, %v1769
    %v1786 = vadd.s32 %v1781, %v1783
    %vm1787 = vc.u32 %v1781, %v1783
    %v1788 = vadd.s32 %v1784, 1
    %v1789 = vsel %vm1787, %v1788, %v1784
    %v1790 = vadd.s32 %v1785, %v1789
    %v1791 = vadd.s32 %v1790, 536870912
    %v1792 = vshrl.u32 %v1791, 30
    %v1793 = vshll.u32 %v1792, 30
    %v1794 = vsub.s32 %v1790, %v1793
    %vm1795 = vcmp.lt.s32.totalorder %v1794, 0
    %v1796 = vsub.s32 0, %v1794
    %v1797 = vsel %vm1795, %v1796, %v1794
    %v1798 = vclz %v1797
    %v1799 = vsub.s32 %v1798, 2
    %vm1800 = vcmp.gt.s32.totalorder 0, %v1799
    %v1801 = vsel %vm1800, 0, %v1799
    %v1802 = vsub.s32 32, %v1801
    %v1803 = vshll.u32 %v1794, %v1801
    %v1804 = vshrl.u32 %v1786, %v1802
    %v1805 = vor.u32 %v1803, %v1804
    %v1806 = vsub.s32 4294967266, %v1801
    %v1807 = vadd.s32 %v1806, 127
    %v1808 = vshll.u32 %v1807, 23
    %v1809 = vor.u32 4788187, %v1808
    %v1810 = vand.u32 2147483647, %v1809
    %v1812 = vcvt.s32.f32 %v1805
    %v1813 = vmul.f32 %v1812, %v1810
    %v1814 = vxor.u32 %v1813, 2147483648
    %v1815 = vsel %vm1732, %v1814, %v1813
    %v1816 = vsub.s32 4, %v1792
    %v1817 = vsel %vm1732, %v1816, %v1792
    %v1818 = vsel %vm1731, %v50, %v1815
    %v1819 = vsel %vm1731, 0, %v1817
    %v1820 = vcosq.f32.pop %v1818
    %v1821 = vsinq.f32.pop %v1818
    %vm1822 = vweird.f32 %v50
    %v1823 = vand.u32 %v1819, 3
    %vm1824 = vcmp.lt.s32.totalorder %v1823, 2
    %vm1825 = vcmp.eq.s32.totalorder %v1823, 0
    %v1826 = vxor.u32 %v1821, 2147483648
    %v1827 = vsel %vm1825, %v1820, %v1826
    %vm1828 = vcmp.eq.s32.totalorder %v1823, 2
    %v1829 = vxor.u32 %v1820, 2147483648
    %v1830 = vsel %vm1828, %v1829, %v1821
    %v1831 = vsel %vm1824, %v1827, %v1830
    %v1832 = vsel %vm1822, nan, %v1831
    %v1833 = vand.u32 2147483647, %v51
    %vm1834 = vcmp.le.f32.partialorder %v1833, 0.7853982
    %vm1835 = vcmp.lt.s32.totalorder %v51, 0
    %v1836 = vand.u32 %v51, 2139095040
    %v1837 = vshrl.u32 %v1836, 23
    %v1838 = vsub.s32 %v1837, 127
    %v1839 = vand.u32 2147483647, %v51
    %v1840 = vand.u32 %v1839, 8388607
    %v1841 = vor.u32 %v1840, 8388608
    %v1842 = vsub.s32 0, %v1841
    %v1843 = vadd.s32 %v1838, 1
    %vm1844 = vcmp.gt.s32.totalorder %v1843, 0
    %v1845 = vsel %vm1844, %v1843, 0
    %v1846 = vshrl.u32 %v1845, 5
    %v1847 = vand.u32 %v1845, 31
    %v1848 = vsub.s32 32, %v1847
    %v1849 = vshrl.u32 683565275, %v1848
    %v1850 = vshll.u32 683565275, %v1847
    %v1851 = vshrl.u32 2475754826, %v1848
    %v1852 = vor.u32 %v1850, %v1851
    %v1853 = vshll.u32 2475754826, %v1847
    %v1854 = vshrl.u32 2131351028, %v1848
    %v1855 = vor.u32 %v1853, %v1854
    %v1856 = vshll.u32 2131351028, %v1847
    %v1857 = vshrl.u32 2102212464, %v1848
    %v1858 = vor.u32 %v1856, %v1857
    %v1859 = vshll.u32 2102212464, %v1847
    %v1860 = vshrl.u32 920167782, %v1848
    %v1861 = vor.u32 %v1859, %v1860
    %v1862 = vshll.u32 920167782, %v1847
    %v1863 = vshrl.u32 1326507024, %v1848
    %v1864 = vor.u32 %v1862, %v1863
    %vm1865 = vcmp.lt.s32.totalorder %v1846, 1
    %vm1866 = vcmp.lt.s32.totalorder %v1846, 2
    %vm1867 = vcmp.lt.s32.totalorder %v1846, 3
    %vm1868 = vcmp.lt.s32.totalorder %v1846, 4
    %v1869 = vsel %vm1865, %v1849, %v1852
    %v1870 = vsel %vm1868, %v1858, 2102212464
    %v1871 = vsel %vm1867, %v1855, %v1870
    %v1872 = vsel %vm1866, %v1869, %v1871
    %v1873 = vsel %vm1865, %v1852, %v1855
    %v1874 = vsel %vm1868, %v1861, 920167782
    %v1875 = vsel %vm1867, %v1858, %v1874
    %v1876 = vsel %vm1866, %v1873, %v1875
    %v1877 = vsel %vm1865, %v1855, %v1858
    %v1878 = vsel %vm1868, %v1864, 1326507024
    %v1879 = vsel %vm1867, %v1861, %v1878
    %v1880 = vsel %vm1866, %v1877, %v1879
    %v1881 = vshll.u32 %v1841, 8
    %v1882 = vmul.u32.u64.compose %v1881, %v1880
    %v1883 = vextract.low.u32 %v1882
    %v1884 = vextract.high.u32 %v1882
    %v1885 = vmul.u32.u64.compose %v1881, %v1876
    %v1886 = vextract.low.u32 %v1885
    %v1887 = vextract.high.u32 %v1885
    %v1888 = vmul.u32 %v1881, %v1872
    %v1889 = vadd.s32 %v1884, %v1886
    %vm1890 = vc.u32 %v1884, %v1886
    %v1891 = vadd.s32 %v1887, 1
    %v1892 = vsel %vm1890, %v1891, %v1887
    %v1893 = vadd.s32 %v1888, %v1892
    %v1894 = vadd.s32 %v1893, 536870912
    %v1895 = vshrl.u32 %v1894, 30
    %v1896 = vshll.u32 %v1895, 30
    %v1897 = vsub.s32 %v1893, %v1896
    %vm1898 = vcmp.lt.s32.totalorder %v1897, 0
    %v1899 = vsub.s32 0, %v1897
    %v1900 = vsel %vm1898, %v1899, %v1897
    %v1901 = vclz %v1900
    %v1902 = vsub.s32 %v1901, 2
    %vm1903 = vcmp.gt.s32.totalorder 0, %v1902
    %v1904 = vsel %vm1903, 0, %v1902
    %v1905 = vsub.s32 32, %v1904
    %v1906 = vshll.u32 %v1897, %v1904
    %v1907 = vshrl.u32 %v1889, %v1905
    %v1908 = vor.u32 %v1906, %v1907
    %v1909 = vsub.s32 4294967266, %v1904
    %v1910 = vadd.s32 %v1909, 127
    %v1911 = vshll.u32 %v1910, 23
    %v1912 = vor.u32 4788187, %v1911
    %v1913 = vand.u32 2147483647, %v1912
    %v1915 = vcvt.s32.f32 %v1908
    %v1916 = vmul.f32 %v1915, %v1913
    %v1917 = vxor.u32 %v1916, 2147483648
    %v1918 = vsel %vm1835, %v1917, %v1916
    %v1919 = vsub.s32 4, %v1895
    %v1920 = vsel %vm1835, %v1919, %v1895
    %v1921 = vsel %vm1834, %v51, %v1918
    %v1922 = vsel %vm1834, 0, %v1920
    %v1923 = vcosq.f32.pop %v1921
    %v1924 = vsinq.f32.pop %v1921
    %vm1925 = vweird.f32 %v51
    %v1926 = vand.u32 %v1922, 3
    %vm1927 = vcmp.lt.s32.totalorder %v1926, 2
    %vm1928 = vcmp.eq.s32.totalorder %v1926, 0
    %v1929 = vxor.u32 %v1924, 2147483648
    %v1930 = vsel %vm1928, %v1923, %v1929
    %vm1931 = vcmp.eq.s32.totalorder %v1926, 2
    %v1932 = vxor.u32 %v1923, 2147483648
    %v1933 = vsel %vm1931, %v1932, %v1924
    %v1934 = vsel %vm1927, %v1930, %v1933
    %v1935 = vsel %vm1925, nan, %v1934
    %v1936 = vand.u32 2147483647, %v52
    %vm1937 = vcmp.le.f32.partialorder %v1936, 0.7853982
    %vm1938 = vcmp.lt.s32.totalorder %v52, 0
    %v1939 = vand.u32 %v52, 2139095040
    %v1940 = vshrl.u32 %v1939, 23
    %v1941 = vsub.s32 %v1940, 127
    %v1942 = vand.u32 2147483647, %v52
    %v1943 = vand.u32 %v1942, 8388607
    %v1944 = vor.u32 %v1943, 8388608
    %v1945 = vsub.s32 0, %v1944
    %v1946 = vadd.s32 %v1941, 1
    %vm1947 = vcmp.gt.s32.totalorder %v1946, 0
    %v1948 = vsel %vm1947, %v1946, 0
    %v1949 = vshrl.u32 %v1948, 5
    %v1950 = vand.u32 %v1948, 31
    %v1951 = vsub.s32 32, %v1950
    %v1952 = vshrl.u32 683565275, %v1951
    %v1953 = vshll.u32 683565275, %v1950
    %v1954 = vshrl.u32 2475754826, %v1951
    %v1955 = vor.u32 %v1953, %v1954
    %v1956 = vshll.u32 2475754826, %v1950
    %v1957 = vshrl.u32 2131351028, %v1951
    %v1958 = vor.u32 %v1956, %v1957
    %v1959 = vshll.u32 2131351028, %v1950
    %v1960 = vshrl.u32 2102212464, %v1951
    %v1961 = vor.u32 %v1959, %v1960
    %v1962 = vshll.u32 2102212464, %v1950
    %v1963 = vshrl.u32 920167782, %v1951
    %v1964 = vor.u32 %v1962, %v1963
    %v1965 = vshll.u32 920167782, %v1950
    %v1966 = vshrl.u32 1326507024, %v1951
    %v1967 = vor.u32 %v1965, %v1966
    %vm1968 = vcmp.lt.s32.totalorder %v1949, 1
    %vm1969 = vcmp.lt.s32.totalorder %v1949, 2
    %vm1970 = vcmp.lt.s32.totalorder %v1949, 3
    %vm1971 = vcmp.lt.s32.totalorder %v1949, 4
    %v1972 = vsel %vm1968, %v1952, %v1955
    %v1973 = vsel %vm1971, %v1961, 2102212464
    %v1974 = vsel %vm1970, %v1958, %v1973
    %v1975 = vsel %vm1969, %v1972, %v1974
    %v1976 = vsel %vm1968, %v1955, %v1958
    %v1977 = vsel %vm1971, %v1964, 920167782
    %v1978 = vsel %vm1970, %v1961, %v1977
    %v1979 = vsel %vm1969, %v1976, %v1978
    %v1980 = vsel %vm1968, %v1958, %v1961
    %v1981 = vsel %vm1971, %v1967, 1326507024
    %v1982 = vsel %vm1970, %v1964, %v1981
    %v1983 = vsel %vm1969, %v1980, %v1982
    %v1984 = vshll.u32 %v1944, 8
    %v1985 = vmul.u32.u64.compose %v1984, %v1983
    %v1986 = vextract.low.u32 %v1985
    %v1987 = vextract.high.u32 %v1985
    %v1988 = vmul.u32.u64.compose %v1984, %v1979
    %v1989 = vextract.low.u32 %v1988
    %v1990 = vextract.high.u32 %v1988
    %v1991 = vmul.u32 %v1984, %v1975
    %v1992 = vadd.s32 %v1987, %v1989
    %vm1993 = vc.u32 %v1987, %v1989
    %v1994 = vadd.s32 %v1990, 1
    %v1995 = vsel %vm1993, %v1994, %v1990
    %v1996 = vadd.s32 %v1991, %v1995
    %v1997 = vadd.s32 %v1996, 536870912
    %v1998 = vshrl.u32 %v1997, 30
    %v1999 = vshll.u32 %v1998, 30
    %v2000 = vsub.s32 %v1996, %v1999
    %vm2001 = vcmp.lt.s32.totalorder %v2000, 0
    %v2002 = vsub.s32 0, %v2000
    %v2003 = vsel %vm2001, %v2002, %v2000
    %v2004 = vclz %v2003
    %v2005 = vsub.s32 %v2004, 2
    %vm2006 = vcmp.gt.s32.totalorder 0, %v2005
    %v2007 = vsel %vm2006, 0, %v2005
    %v2008 = vsub.s32 32, %v2007
    %v2009 = vshll.u32 %v2000, %v2007
    %v2010 = vshrl.u32 %v1992, %v2008
    %v2011 = vor.u32 %v2009, %v2010
    %v2012 = vsub.s32 4294967266, %v2007
    %v2013 = vadd.s32 %v2012, 127
    %v2014 = vshll.u32 %v2013, 23
    %v2015 = vor.u32 4788187, %v2014
    %v2016 = vand.u32 2147483647, %v2015
    %v2018 = vcvt.s32.f32 %v2011
    %v2019 = vmul.f32 %v2018, %v2016
    %v2020 = vxor.u32 %v2019, 2147483648
    %v2021 = vsel %vm1938, %v2020, %v2019
    %v2022 = vsub.s32 4, %v1998
    %v2023 = vsel %vm1938, %v2022, %v1998
    %v2024 = vsel %vm1937, %v52, %v2021
    %v2025 = vsel %vm1937, 0, %v2023
    %v2026 = vcosq.f32.pop %v2024
    %v2027 = vsinq.f32.pop %v2024
    %vm2028 = vweird.f32 %v52
    %v2029 = vand.u32 %v2025, 3
    %vm2030 = vcmp.lt.s32.totalorder %v2029, 2
    %vm2031 = vcmp.eq.s32.totalorder %v2029, 0
    %v2032 = vxor.u32 %v2027, 2147483648
    %v2033 = vsel %vm2031, %v2026, %v2032
    %vm2034 = vcmp.eq.s32.totalorder %v2029, 2
    %v2035 = vxor.u32 %v2026, 2147483648
    %v2036 = vsel %vm2034, %v2035, %v2027
    %v2037 = vsel %vm2030, %v2033, %v2036
    %v2038 = vsel %vm2028, nan, %v2037
    %v2039 = vand.u32 2147483647, %v53
    %vm2040 = vcmp.le.f32.partialorder %v2039, 0.7853982
    %vm2041 = vcmp.lt.s32.totalorder %v53, 0
    %v2042 = vand.u32 %v53, 2139095040
    %v2043 = vshrl.u32 %v2042, 23
    %v2044 = vsub.s32 %v2043, 127
    %v2045 = vand.u32 2147483647, %v53
    %v2046 = vand.u32 %v2045, 8388607
    %v2047 = vor.u32 %v2046, 8388608
    %v2048 = vsub.s32 0, %v2047
    %v2049 = vadd.s32 %v2044, 1
    %vm2050 = vcmp.gt.s32.totalorder %v2049, 0
    %v2051 = vsel %vm2050, %v2049, 0
    %v2052 = vshrl.u32 %v2051, 5
    %v2053 = vand.u32 %v2051, 31
    %v2054 = vsub.s32 32, %v2053
    %v2055 = vshrl.u32 683565275, %v2054
    %v2056 = vshll.u32 683565275, %v2053
    %v2057 = vshrl.u32 2475754826, %v2054
    %v2058 = vor.u32 %v2056, %v2057
    %v2059 = vshll.u32 2475754826, %v2053
    %v2060 = vshrl.u32 2131351028, %v2054
    %v2061 = vor.u32 %v2059, %v2060
    %v2062 = vshll.u32 2131351028, %v2053
    %v2063 = vshrl.u32 2102212464, %v2054
    %v2064 = vor.u32 %v2062, %v2063
    %v2065 = vshll.u32 2102212464, %v2053
    %v2066 = vshrl.u32 920167782, %v2054
    %v2067 = vor.u32 %v2065, %v2066
    %v2068 = vshll.u32 920167782, %v2053
    %v2069 = vshrl.u32 1326507024, %v2054
    %v2070 = vor.u32 %v2068, %v2069
    %vm2071 = vcmp.lt.s32.totalorder %v2052, 1
    %vm2072 = vcmp.lt.s32.totalorder %v2052, 2
    %vm2073 = vcmp.lt.s32.totalorder %v2052, 3
    %vm2074 = vcmp.lt.s32.totalorder %v2052, 4
    %v2075 = vsel %vm2071, %v2055, %v2058
    %v2076 = vsel %vm2074, %v2064, 2102212464
    %v2077 = vsel %vm2073, %v2061, %v2076
    %v2078 = vsel %vm2072, %v2075, %v2077
    %v2079 = vsel %vm2071, %v2058, %v2061
    %v2080 = vsel %vm2074, %v2067, 920167782
    %v2081 = vsel %vm2073, %v2064, %v2080
    %v2082 = vsel %vm2072, %v2079, %v2081
    %v2083 = vsel %vm2071, %v2061, %v2064
    %v2084 = vsel %vm2074, %v2070, 1326507024
    %v2085 = vsel %vm2073, %v2067, %v2084
    %v2086 = vsel %vm2072, %v2083, %v2085
    %v2087 = vshll.u32 %v2047, 8
    %v2088 = vmul.u32.u64.compose %v2087, %v2086
    %v2089 = vextract.low.u32 %v2088
    %v2090 = vextract.high.u32 %v2088
    %v2091 = vmul.u32.u64.compose %v2087, %v2082
    %v2092 = vextract.low.u32 %v2091
    %v2093 = vextract.high.u32 %v2091
    %v2094 = vmul.u32 %v2087, %v2078
    %v2095 = vadd.s32 %v2090, %v2092
    %vm2096 = vc.u32 %v2090, %v2092
    %v2097 = vadd.s32 %v2093, 1
    %v2098 = vsel %vm2096, %v2097, %v2093
    %v2099 = vadd.s32 %v2094, %v2098
    %v2100 = vadd.s32 %v2099, 536870912
    %v2101 = vshrl.u32 %v2100, 30
    %v2102 = vshll.u32 %v2101, 30
    %v2103 = vsub.s32 %v2099, %v2102
    %vm2104 = vcmp.lt.s32.totalorder %v2103, 0
    %v2105 = vsub.s32 0, %v2103
    %v2106 = vsel %vm2104, %v2105, %v2103
    %v2107 = vclz %v2106
    %v2108 = vsub.s32 %v2107, 2
    %vm2109 = vcmp.gt.s32.totalorder 0, %v2108
    %v2110 = vsel %vm2109, 0, %v2108
    %v2111 = vsub.s32 32, %v2110
    %v2112 = vshll.u32 %v2103, %v2110
    %v2113 = vshrl.u32 %v2095, %v2111
    %v2114 = vor.u32 %v2112, %v2113
    %v2115 = vsub.s32 4294967266, %v2110
    %v2116 = vadd.s32 %v2115, 127
    %v2117 = vshll.u32 %v2116, 23
    %v2118 = vor.u32 4788187, %v2117
    %v2119 = vand.u32 2147483647, %v2118
    %v2121 = vcvt.s32.f32 %v2114
    %v2122 = vmul.f32 %v2121, %v2119
    %v2123 = vxor.u32 %v2122, 2147483648
    %v2124 = vsel %vm2041, %v2123, %v2122
    %v2125 = vsub.s32 4, %v2101
    %v2126 = vsel %vm2041, %v2125, %v2101
    %v2127 = vsel %vm2040, %v53, %v2124
    %v2128 = vsel %vm2040, 0, %v2126
    %v2129 = vcosq.f32.pop %v2127
    %v2130 = vsinq.f32.pop %v2127
    %vm2131 = vweird.f32 %v53
    %v2132 = vand.u32 %v2128, 3
    %vm2133 = vcmp.lt.s32.totalorder %v2132, 2
    %vm2134 = vcmp.eq.s32.totalorder %v2132, 0
    %v2135 = vxor.u32 %v2130, 2147483648
    %v2136 = vsel %vm2134, %v2129, %v2135
    %vm2137 = vcmp.eq.s32.totalorder %v2132, 2
    %v2138 = vxor.u32 %v2129, 2147483648
    %v2139 = vsel %vm2137, %v2138, %v2130
    %v2140 = vsel %vm2133, %v2136, %v2139
    %v2141 = vsel %vm2131, nan, %v2140
    %v2142 = vand.u32 2147483647, %v54
    %vm2143 = vcmp.le.f32.partialorder %v2142, 0.7853982
    %vm2144 = vcmp.lt.s32.totalorder %v54, 0
    %v2145 = vand.u32 %v54, 2139095040
    %v2146 = vshrl.u32 %v2145, 23
    %v2147 = vsub.s32 %v2146, 127
    %v2148 = vand.u32 2147483647, %v54
    %v2149 = vand.u32 %v2148, 8388607
    %v2150 = vor.u32 %v2149, 8388608
    %v2151 = vsub.s32 0, %v2150
    %v2152 = vadd.s32 %v2147, 1
    %vm2153 = vcmp.gt.s32.totalorder %v2152, 0
    %v2154 = vsel %vm2153, %v2152, 0
    %v2155 = vshrl.u32 %v2154, 5
    %v2156 = vand.u32 %v2154, 31
    %v2157 = vsub.s32 32, %v2156
    %v2158 = vshrl.u32 683565275, %v2157
    %v2159 = vshll.u32 683565275, %v2156
    %v2160 = vshrl.u32 2475754826, %v2157
    %v2161 = vor.u32 %v2159, %v2160
    %v2162 = vshll.u32 2475754826, %v2156
    %v2163 = vshrl.u32 2131351028, %v2157
    %v2164 = vor.u32 %v2162, %v2163
    %v2165 = vshll.u32 2131351028, %v2156
    %v2166 = vshrl.u32 2102212464, %v2157
    %v2167 = vor.u32 %v2165, %v2166
    %v2168 = vshll.u32 2102212464, %v2156
    %v2169 = vshrl.u32 920167782, %v2157
    %v2170 = vor.u32 %v2168, %v2169
    %v2171 = vshll.u32 920167782, %v2156
    %v2172 = vshrl.u32 1326507024, %v2157
    %v2173 = vor.u32 %v2171, %v2172
    %vm2174 = vcmp.lt.s32.totalorder %v2155, 1
    %vm2175 = vcmp.lt.s32.totalorder %v2155, 2
    %vm2176 = vcmp.lt.s32.totalorder %v2155, 3
    %vm2177 = vcmp.lt.s32.totalorder %v2155, 4
    %v2178 = vsel %vm2174, %v2158, %v2161
    %v2179 = vsel %vm2177, %v2167, 2102212464
    %v2180 = vsel %vm2176, %v2164, %v2179
    %v2181 = vsel %vm2175, %v2178, %v2180
    %v2182 = vsel %vm2174, %v2161, %v2164
    %v2183 = vsel %vm2177, %v2170, 920167782
    %v2184 = vsel %vm2176, %v2167, %v2183
    %v2185 = vsel %vm2175, %v2182, %v2184
    %v2186 = vsel %vm2174, %v2164, %v2167
    %v2187 = vsel %vm2177, %v2173, 1326507024
    %v2188 = vsel %vm2176, %v2170, %v2187
    %v2189 = vsel %vm2175, %v2186, %v2188
    %v2190 = vshll.u32 %v2150, 8
    %v2191 = vmul.u32.u64.compose %v2190, %v2189
    %v2192 = vextract.low.u32 %v2191
    %v2193 = vextract.high.u32 %v2191
    %v2194 = vmul.u32.u64.compose %v2190, %v2185
    %v2195 = vextract.low.u32 %v2194
    %v2196 = vextract.high.u32 %v2194
    %v2197 = vmul.u32 %v2190, %v2181
    %v2198 = vadd.s32 %v2193, %v2195
    %vm2199 = vc.u32 %v2193, %v2195
    %v2200 = vadd.s32 %v2196, 1
    %v2201 = vsel %vm2199, %v2200, %v2196
    %v2202 = vadd.s32 %v2197, %v2201
    %v2203 = vadd.s32 %v2202, 536870912
    %v2204 = vshrl.u32 %v2203, 30
    %v2205 = vshll.u32 %v2204, 30
    %v2206 = vsub.s32 %v2202, %v2205
    %vm2207 = vcmp.lt.s32.totalorder %v2206, 0
    %v2208 = vsub.s32 0, %v2206
    %v2209 = vsel %vm2207, %v2208, %v2206
    %v2210 = vclz %v2209
    %v2211 = vsub.s32 %v2210, 2
    %vm2212 = vcmp.gt.s32.totalorder 0, %v2211
    %v2213 = vsel %vm2212, 0, %v2211
    %v2214 = vsub.s32 32, %v2213
    %v2215 = vshll.u32 %v2206, %v2213
    %v2216 = vshrl.u32 %v2198, %v2214
    %v2217 = vor.u32 %v2215, %v2216
    %v2218 = vsub.s32 4294967266, %v2213
    %v2219 = vadd.s32 %v2218, 127
    %v2220 = vshll.u32 %v2219, 23
    %v2221 = vor.u32 4788187, %v2220
    %v2222 = vand.u32 2147483647, %v2221
    %v2224 = vcvt.s32.f32 %v2217
    %v2225 = vmul.f32 %v2224, %v2222
    %v2226 = vxor.u32 %v2225, 2147483648
    %v2227 = vsel %vm2144, %v2226, %v2225
    %v2228 = vsub.s32 4, %v2204
    %v2229 = vsel %vm2144, %v2228, %v2204
    %v2230 = vsel %vm2143, %v54, %v2227
    %v2231 = vsel %vm2143, 0, %v2229
    %v2232 = vcosq.f32.pop %v2230
    %v2233 = vsinq.f32.pop %v2230
    %vm2234 = vweird.f32 %v54
    %v2235 = vand.u32 %v2231, 3
    %vm2236 = vcmp.lt.s32.totalorder %v2235, 2
    %vm2237 = vcmp.eq.s32.totalorder %v2235, 0
    %v2238 = vxor.u32 %v2233, 2147483648
    %v2239 = vsel %vm2237, %v2232, %v2238
    %vm2240 = vcmp.eq.s32.totalorder %v2235, 2
    %v2241 = vxor.u32 %v2232, 2147483648
    %v2242 = vsel %vm2240, %v2241, %v2233
    %v2243 = vsel %vm2236, %v2239, %v2242
    %v2244 = vsel %vm2234, nan, %v2243
    %v2245 = vand.u32 2147483647, %v55
    %vm2246 = vcmp.le.f32.partialorder %v2245, 0.7853982
    %vm2247 = vcmp.lt.s32.totalorder %v55, 0
    %v2248 = vand.u32 %v55, 2139095040
    %v2249 = vshrl.u32 %v2248, 23
    %v2250 = vsub.s32 %v2249, 127
    %v2251 = vand.u32 2147483647, %v55
    %v2252 = vand.u32 %v2251, 8388607
    %v2253 = vor.u32 %v2252, 8388608
    %v2254 = vsub.s32 0, %v2253
    %v2255 = vadd.s32 %v2250, 1
    %vm2256 = vcmp.gt.s32.totalorder %v2255, 0
    %v2257 = vsel %vm2256, %v2255, 0
    %v2258 = vshrl.u32 %v2257, 5
    %v2259 = vand.u32 %v2257, 31
    %v2260 = vsub.s32 32, %v2259
    %v2261 = vshrl.u32 683565275, %v2260
    %v2262 = vshll.u32 683565275, %v2259
    %v2263 = vshrl.u32 2475754826, %v2260
    %v2264 = vor.u32 %v2262, %v2263
    %v2265 = vshll.u32 2475754826, %v2259
    %v2266 = vshrl.u32 2131351028, %v2260
    %v2267 = vor.u32 %v2265, %v2266
    %v2268 = vshll.u32 2131351028, %v2259
    %v2269 = vshrl.u32 2102212464, %v2260
    %v2270 = vor.u32 %v2268, %v2269
    %v2271 = vshll.u32 2102212464, %v2259
    %v2272 = vshrl.u32 920167782, %v2260
    %v2273 = vor.u32 %v2271, %v2272
    %v2274 = vshll.u32 920167782, %v2259
    %v2275 = vshrl.u32 1326507024, %v2260
    %v2276 = vor.u32 %v2274, %v2275
    %vm2277 = vcmp.lt.s32.totalorder %v2258, 1
    %vm2278 = vcmp.lt.s32.totalorder %v2258, 2
    %vm2279 = vcmp.lt.s32.totalorder %v2258, 3
    %vm2280 = vcmp.lt.s32.totalorder %v2258, 4
    %v2281 = vsel %vm2277, %v2261, %v2264
    %v2282 = vsel %vm2280, %v2270, 2102212464
    %v2283 = vsel %vm2279, %v2267, %v2282
    %v2284 = vsel %vm2278, %v2281, %v2283
    %v2285 = vsel %vm2277, %v2264, %v2267
    %v2286 = vsel %vm2280, %v2273, 920167782
    %v2287 = vsel %vm2279, %v2270, %v2286
    %v2288 = vsel %vm2278, %v2285, %v2287
    %v2289 = vsel %vm2277, %v2267, %v2270
    %v2290 = vsel %vm2280, %v2276, 1326507024
    %v2291 = vsel %vm2279, %v2273, %v2290
    %v2292 = vsel %vm2278, %v2289, %v2291
    %v2293 = vshll.u32 %v2253, 8
    %v2294 = vmul.u32.u64.compose %v2293, %v2292
    %v2295 = vextract.low.u32 %v2294
    %v2296 = vextract.high.u32 %v2294
    %v2297 = vmul.u32.u64.compose %v2293, %v2288
    %v2298 = vextract.low.u32 %v2297
    %v2299 = vextract.high.u32 %v2297
    %v2300 = vmul.u32 %v2293, %v2284
    %v2301 = vadd.s32 %v2296, %v2298
    %vm2302 = vc.u32 %v2296, %v2298
    %v2303 = vadd.s32 %v2299, 1
    %v2304 = vsel %vm2302, %v2303, %v2299
    %v2305 = vadd.s32 %v2300, %v2304
    %v2306 = vadd.s32 %v2305, 536870912
    %v2307 = vshrl.u32 %v2306, 30
    %v2308 = vshll.u32 %v2307, 30
    %v2309 = vsub.s32 %v2305, %v2308
    %vm2310 = vcmp.lt.s32.totalorder %v2309, 0
    %v2311 = vsub.s32 0, %v2309
    %v2312 = vsel %vm2310, %v2311, %v2309
    %v2313 = vclz %v2312
    %v2314 = vsub.s32 %v2313, 2
    %vm2315 = vcmp.gt.s32.totalorder 0, %v2314
    %v2316 = vsel %vm2315, 0, %v2314
    %v2317 = vsub.s32 32, %v2316
    %v2318 = vshll.u32 %v2309, %v2316
    %v2319 = vshrl.u32 %v2301, %v2317
    %v2320 = vor.u32 %v2318, %v2319
    %v2321 = vsub.s32 4294967266, %v2316
    %v2322 = vadd.s32 %v2321, 127
    %v2323 = vshll.u32 %v2322, 23
    %v2324 = vor.u32 4788187, %v2323
    %v2325 = vand.u32 2147483647, %v2324
    %v2327 = vcvt.s32.f32 %v2320
    %v2328 = vmul.f32 %v2327, %v2325
    %v2329 = vxor.u32 %v2328, 2147483648
    %v2330 = vsel %vm2247, %v2329, %v2328
    %v2331 = vsub.s32 4, %v2307
    %v2332 = vsel %vm2247, %v2331, %v2307
    %v2333 = vsel %vm2246, %v55, %v2330
    %v2334 = vsel %vm2246, 0, %v2332
    %v2335 = vcosq.f32.pop %v2333
    %v2336 = vsinq.f32.pop %v2333
    %vm2337 = vweird.f32 %v55
    %v2338 = vand.u32 %v2334, 3
    %vm2339 = vcmp.lt.s32.totalorder %v2338, 2
    %vm2340 = vcmp.eq.s32.totalorder %v2338, 0
    %v2341 = vxor.u32 %v2336, 2147483648
    %v2342 = vsel %vm2340, %v2335, %v2341
    %vm2343 = vcmp.eq.s32.totalorder %v2338, 2
    %v2344 = vxor.u32 %v2335, 2147483648
    %v2345 = vsel %vm2343, %v2344, %v2336
    %v2346 = vsel %vm2339, %v2342, %v2345
    %v2347 = vsel %vm2337, nan, %v2346
    %v2348 = vand.u32 2147483647, %v56
    %vm2349 = vcmp.le.f32.partialorder %v2348, 0.7853982
    %vm2350 = vcmp.lt.s32.totalorder %v56, 0
    %v2351 = vand.u32 %v56, 2139095040
    %v2352 = vshrl.u32 %v2351, 23
    %v2353 = vsub.s32 %v2352, 127
    %v2354 = vand.u32 2147483647, %v56
    %v2355 = vand.u32 %v2354, 8388607
    %v2356 = vor.u32 %v2355, 8388608
    %v2357 = vsub.s32 0, %v2356
    %v2358 = vadd.s32 %v2353, 1
    %vm2359 = vcmp.gt.s32.totalorder %v2358, 0
    %v2360 = vsel %vm2359, %v2358, 0
    %v2361 = vshrl.u32 %v2360, 5
    %v2362 = vand.u32 %v2360, 31
    %v2363 = vsub.s32 32, %v2362
    %v2364 = vshrl.u32 683565275, %v2363
    %v2365 = vshll.u32 683565275, %v2362
    %v2366 = vshrl.u32 2475754826, %v2363
    %v2367 = vor.u32 %v2365, %v2366
    %v2368 = vshll.u32 2475754826, %v2362
    %v2369 = vshrl.u32 2131351028, %v2363
    %v2370 = vor.u32 %v2368, %v2369
    %v2371 = vshll.u32 2131351028, %v2362
    %v2372 = vshrl.u32 2102212464, %v2363
    %v2373 = vor.u32 %v2371, %v2372
    %v2374 = vshll.u32 2102212464, %v2362
    %v2375 = vshrl.u32 920167782, %v2363
    %v2376 = vor.u32 %v2374, %v2375
    %v2377 = vshll.u32 920167782, %v2362
    %v2378 = vshrl.u32 1326507024, %v2363
    %v2379 = vor.u32 %v2377, %v2378
    %vm2380 = vcmp.lt.s32.totalorder %v2361, 1
    %vm2381 = vcmp.lt.s32.totalorder %v2361, 2
    %vm2382 = vcmp.lt.s32.totalorder %v2361, 3
    %vm2383 = vcmp.lt.s32.totalorder %v2361, 4
    %v2384 = vsel %vm2380, %v2364, %v2367
    %v2385 = vsel %vm2383, %v2373, 2102212464
    %v2386 = vsel %vm2382, %v2370, %v2385
    %v2387 = vsel %vm2381, %v2384, %v2386
    %v2388 = vsel %vm2380, %v2367, %v2370
    %v2389 = vsel %vm2383, %v2376, 920167782
    %v2390 = vsel %vm2382, %v2373, %v2389
    %v2391 = vsel %vm2381, %v2388, %v2390
    %v2392 = vsel %vm2380, %v2370, %v2373
    %v2393 = vsel %vm2383, %v2379, 1326507024
    %v2394 = vsel %vm2382, %v2376, %v2393
    %v2395 = vsel %vm2381, %v2392, %v2394
    %v2396 = vshll.u32 %v2356, 8
    %v2397 = vmul.u32.u64.compose %v2396, %v2395
    %v2398 = vextract.low.u32 %v2397
    %v2399 = vextract.high.u32 %v2397
    %v2400 = vmul.u32.u64.compose %v2396, %v2391
    %v2401 = vextract.low.u32 %v2400
    %v2402 = vextract.high.u32 %v2400
    %v2403 = vmul.u32 %v2396, %v2387
    %v2404 = vadd.s32 %v2399, %v2401
    %vm2405 = vc.u32 %v2399, %v2401
    %v2406 = vadd.s32 %v2402, 1
    %v2407 = vsel %vm2405, %v2406, %v2402
    %v2408 = vadd.s32 %v2403, %v2407
    %v2409 = vadd.s32 %v2408, 536870912
    %v2410 = vshrl.u32 %v2409, 30
    %v2411 = vshll.u32 %v2410, 30
    %v2412 = vsub.s32 %v2408, %v2411
    %vm2413 = vcmp.lt.s32.totalorder %v2412, 0
    %v2414 = vsub.s32 0, %v2412
    %v2415 = vsel %vm2413, %v2414, %v2412
    %v2416 = vclz %v2415
    %v2417 = vsub.s32 %v2416, 2
    %vm2418 = vcmp.gt.s32.totalorder 0, %v2417
    %v2419 = vsel %vm2418, 0, %v2417
    %v2420 = vsub.s32 32, %v2419
    %v2421 = vshll.u32 %v2412, %v2419
    %v2422 = vshrl.u32 %v2404, %v2420
    %v2423 = vor.u32 %v2421, %v2422
    %v2424 = vsub.s32 4294967266, %v2419
    %v2425 = vadd.s32 %v2424, 127
    %v2426 = vshll.u32 %v2425, 23
    %v2427 = vor.u32 4788187, %v2426
    %v2428 = vand.u32 2147483647, %v2427
    %v2430 = vcvt.s32.f32 %v2423
    %v2431 = vmul.f32 %v2430, %v2428
    %v2432 = vxor.u32 %v2431, 2147483648
    %v2433 = vsel %vm2350, %v2432, %v2431
    %v2434 = vsub.s32 4, %v2410
    %v2435 = vsel %vm2350, %v2434, %v2410
    %v2436 = vsel %vm2349, %v56, %v2433
    %v2437 = vsel %vm2349, 0, %v2435
    %v2438 = vcosq.f32.pop %v2436
    %v2439 = vsinq.f32.pop %v2436
    %vm2440 = vweird.f32 %v56
    %v2441 = vand.u32 %v2437, 3
    %vm2442 = vcmp.lt.s32.totalorder %v2441, 2
    %vm2443 = vcmp.eq.s32.totalorder %v2441, 0
    %v2444 = vxor.u32 %v2439, 2147483648
    %v2445 = vsel %vm2443, %v2438, %v2444
    %vm2446 = vcmp.eq.s32.totalorder %v2441, 2
    %v2447 = vxor.u32 %v2438, 2147483648
    %v2448 = vsel %vm2446, %v2447, %v2439
    %v2449 = vsel %vm2442, %v2445, %v2448
    %v2450 = vsel %vm2440, nan, %v2449
    %v2451 = vand.u32 2147483647, %v57
    %vm2452 = vcmp.le.f32.partialorder %v2451, 0.7853982
    %vm2453 = vcmp.lt.s32.totalorder %v57, 0
    %v2454 = vand.u32 %v57, 2139095040
    %v2455 = vshrl.u32 %v2454, 23
    %v2456 = vsub.s32 %v2455, 127
    %v2457 = vand.u32 2147483647, %v57
    %v2458 = vand.u32 %v2457, 8388607
    %v2459 = vor.u32 %v2458, 8388608
    %v2460 = vsub.s32 0, %v2459
    %v2461 = vadd.s32 %v2456, 1
    %vm2462 = vcmp.gt.s32.totalorder %v2461, 0
    %v2463 = vsel %vm2462, %v2461, 0
    %v2464 = vshrl.u32 %v2463, 5
    %v2465 = vand.u32 %v2463, 31
    %v2466 = vsub.s32 32, %v2465
    %v2467 = vshrl.u32 683565275, %v2466
    %v2468 = vshll.u32 683565275, %v2465
    %v2469 = vshrl.u32 2475754826, %v2466
    %v2470 = vor.u32 %v2468, %v2469
    %v2471 = vshll.u32 2475754826, %v2465
    %v2472 = vshrl.u32 2131351028, %v2466
    %v2473 = vor.u32 %v2471, %v2472
    %v2474 = vshll.u32 2131351028, %v2465
    %v2475 = vshrl.u32 2102212464, %v2466
    %v2476 = vor.u32 %v2474, %v2475
    %v2477 = vshll.u32 2102212464, %v2465
    %v2478 = vshrl.u32 920167782, %v2466
    %v2479 = vor.u32 %v2477, %v2478
    %v2480 = vshll.u32 920167782, %v2465
    %v2481 = vshrl.u32 1326507024, %v2466
    %v2482 = vor.u32 %v2480, %v2481
    %vm2483 = vcmp.lt.s32.totalorder %v2464, 1
    %vm2484 = vcmp.lt.s32.totalorder %v2464, 2
    %vm2485 = vcmp.lt.s32.totalorder %v2464, 3
    %vm2486 = vcmp.lt.s32.totalorder %v2464, 4
    %v2487 = vsel %vm2483, %v2467, %v2470
    %v2488 = vsel %vm2486, %v2476, 2102212464
    %v2489 = vsel %vm2485, %v2473, %v2488
    %v2490 = vsel %vm2484, %v2487, %v2489
    %v2491 = vsel %vm2483, %v2470, %v2473
    %v2492 = vsel %vm2486, %v2479, 920167782
    %v2493 = vsel %vm2485, %v2476, %v2492
    %v2494 = vsel %vm2484, %v2491, %v2493
    %v2495 = vsel %vm2483, %v2473, %v2476
    %v2496 = vsel %vm2486, %v2482, 1326507024
    %v2497 = vsel %vm2485, %v2479, %v2496
    %v2498 = vsel %vm2484, %v2495, %v2497
    %v2499 = vshll.u32 %v2459, 8
    %v2500 = vmul.u32.u64.compose %v2499, %v2498
    %v2501 = vextract.low.u32 %v2500
    %v2502 = vextract.high.u32 %v2500
    %v2503 = vmul.u32.u64.compose %v2499, %v2494
    %v2504 = vextract.low.u32 %v2503
    %v2505 = vextract.high.u32 %v2503
    %v2506 = vmul.u32 %v2499, %v2490
    %v2507 = vadd.s32 %v2502, %v2504
    %vm2508 = vc.u32 %v2502, %v2504
    %v2509 = vadd.s32 %v2505, 1
    %v2510 = vsel %vm2508, %v2509, %v2505
    %v2511 = vadd.s32 %v2506, %v2510
    %v2512 = vadd.s32 %v2511, 536870912
    %v2513 = vshrl.u32 %v2512, 30
    %v2514 = vshll.u32 %v2513, 30
    %v2515 = vsub.s32 %v2511, %v2514
    %vm2516 = vcmp.lt.s32.totalorder %v2515, 0
    %v2517 = vsub.s32 0, %v2515
    %v2518 = vsel %vm2516, %v2517, %v2515
    %v2519 = vclz %v2518
    %v2520 = vsub.s32 %v2519, 2
    %vm2521 = vcmp.gt.s32.totalorder 0, %v2520
    %v2522 = vsel %vm2521, 0, %v2520
    %v2523 = vsub.s32 32, %v2522
    %v2524 = vshll.u32 %v2515, %v2522
    %v2525 = vshrl.u32 %v2507, %v2523
    %v2526 = vor.u32 %v2524, %v2525
    %v2527 = vsub.s32 4294967266, %v2522
    %v2528 = vadd.s32 %v2527, 127
    %v2529 = vshll.u32 %v2528, 23
    %v2530 = vor.u32 4788187, %v2529
    %v2531 = vand.u32 2147483647, %v2530
    %v2533 = vcvt.s32.f32 %v2526
    %v2534 = vmul.f32 %v2533, %v2531
    %v2535 = vxor.u32 %v2534, 2147483648
    %v2536 = vsel %vm2453, %v2535, %v2534
    %v2537 = vsub.s32 4, %v2513
    %v2538 = vsel %vm2453, %v2537, %v2513
    %v2539 = vsel %vm2452, %v57, %v2536
    %v2540 = vsel %vm2452, 0, %v2538
    %v2541 = vcosq.f32.pop %v2539
    %v2542 = vsinq.f32.pop %v2539
    %vm2543 = vweird.f32 %v57
    %v2544 = vand.u32 %v2540, 3
    %vm2545 = vcmp.lt.s32.totalorder %v2544, 2
    %vm2546 = vcmp.eq.s32.totalorder %v2544, 0
    %v2547 = vxor.u32 %v2542, 2147483648
    %v2548 = vsel %vm2546, %v2541, %v2547
    %vm2549 = vcmp.eq.s32.totalorder %v2544, 2
    %v2550 = vxor.u32 %v2541, 2147483648
    %v2551 = vsel %vm2549, %v2550, %v2542
    %v2552 = vsel %vm2545, %v2548, %v2551
    %v2553 = vsel %vm2543, nan, %v2552
    %v2554 = vand.u32 2147483647, %v58
    %vm2555 = vcmp.le.f32.partialorder %v2554, 0.7853982
    %vm2556 = vcmp.lt.s32.totalorder %v58, 0
    %v2557 = vand.u32 %v58, 2139095040
    %v2558 = vshrl.u32 %v2557, 23
    %v2559 = vsub.s32 %v2558, 127
    %v2560 = vand.u32 2147483647, %v58
    %v2561 = vand.u32 %v2560, 8388607
    %v2562 = vor.u32 %v2561, 8388608
    %v2563 = vsub.s32 0, %v2562
    %v2564 = vadd.s32 %v2559, 1
    %vm2565 = vcmp.gt.s32.totalorder %v2564, 0
    %v2566 = vsel %vm2565, %v2564, 0
    %v2567 = vshrl.u32 %v2566, 5
    %v2568 = vand.u32 %v2566, 31
    %v2569 = vsub.s32 32, %v2568
    %v2570 = vshrl.u32 683565275, %v2569
    %v2571 = vshll.u32 683565275, %v2568
    %v2572 = vshrl.u32 2475754826, %v2569
    %v2573 = vor.u32 %v2571, %v2572
    %v2574 = vshll.u32 2475754826, %v2568
    %v2575 = vshrl.u32 2131351028, %v2569
    %v2576 = vor.u32 %v2574, %v2575
    %v2577 = vshll.u32 2131351028, %v2568
    %v2578 = vshrl.u32 2102212464, %v2569
    %v2579 = vor.u32 %v2577, %v2578
    %v2580 = vshll.u32 2102212464, %v2568
    %v2581 = vshrl.u32 920167782, %v2569
    %v2582 = vor.u32 %v2580, %v2581
    %v2583 = vshll.u32 920167782, %v2568
    %v2584 = vshrl.u32 1326507024, %v2569
    %v2585 = vor.u32 %v2583, %v2584
    %vm2586 = vcmp.lt.s32.totalorder %v2567, 1
    %vm2587 = vcmp.lt.s32.totalorder %v2567, 2
    %vm2588 = vcmp.lt.s32.totalorder %v2567, 3
    %vm2589 = vcmp.lt.s32.totalorder %v2567, 4
    %v2590 = vsel %vm2586, %v2570, %v2573
    %v2591 = vsel %vm2589, %v2579, 2102212464
    %v2592 = vsel %vm2588, %v2576, %v2591
    %v2593 = vsel %vm2587, %v2590, %v2592
    %v2594 = vsel %vm2586, %v2573, %v2576
    %v2595 = vsel %vm2589, %v2582, 920167782
    %v2596 = vsel %vm2588, %v2579, %v2595
    %v2597 = vsel %vm2587, %v2594, %v2596
    %v2598 = vsel %vm2586, %v2576, %v2579
    %v2599 = vsel %vm2589, %v2585, 1326507024
    %v2600 = vsel %vm2588, %v2582, %v2599
    %v2601 = vsel %vm2587, %v2598, %v2600
    %v2602 = vshll.u32 %v2562, 8
    %v2603 = vmul.u32.u64.compose %v2602, %v2601
    %v2604 = vextract.low.u32 %v2603
    %v2605 = vextract.high.u32 %v2603
    %v2606 = vmul.u32.u64.compose %v2602, %v2597
    %v2607 = vextract.low.u32 %v2606
    %v2608 = vextract.high.u32 %v2606
    %v2609 = vmul.u32 %v2602, %v2593
    %v2610 = vadd.s32 %v2605, %v2607
    %vm2611 = vc.u32 %v2605, %v2607
    %v2612 = vadd.s32 %v2608, 1
    %v2613 = vsel %vm2611, %v2612, %v2608
    %v2614 = vadd.s32 %v2609, %v2613
    %v2615 = vadd.s32 %v2614, 536870912
    %v2616 = vshrl.u32 %v2615, 30
    %v2617 = vshll.u32 %v2616, 30
    %v2618 = vsub.s32 %v2614, %v2617
    %vm2619 = vcmp.lt.s32.totalorder %v2618, 0
    %v2620 = vsub.s32 0, %v2618
    %v2621 = vsel %vm2619, %v2620, %v2618
    %v2622 = vclz %v2621
    %v2623 = vsub.s32 %v2622, 2
    %vm2624 = vcmp.gt.s32.totalorder 0, %v2623
    %v2625 = vsel %vm2624, 0, %v2623
    %v2626 = vsub.s32 32, %v2625
    %v2627 = vshll.u32 %v2618, %v2625
    %v2628 = vshrl.u32 %v2610, %v2626
    %v2629 = vor.u32 %v2627, %v2628
    %v2630 = vsub.s32 4294967266, %v2625
    %v2631 = vadd.s32 %v2630, 127
    %v2632 = vshll.u32 %v2631, 23
    %v2633 = vor.u32 4788187, %v2632
    %v2634 = vand.u32 2147483647, %v2633
    %v2636 = vcvt.s32.f32 %v2629
    %v2637 = vmul.f32 %v2636, %v2634
    %v2638 = vxor.u32 %v2637, 2147483648
    %v2639 = vsel %vm2556, %v2638, %v2637
    %v2640 = vsub.s32 4, %v2616
    %v2641 = vsel %vm2556, %v2640, %v2616
    %v2642 = vsel %vm2555, %v58, %v2639
    %v2643 = vsel %vm2555, 0, %v2641
    %v2644 = vcosq.f32.pop %v2642
    %v2645 = vsinq.f32.pop %v2642
    %vm2646 = vweird.f32 %v58
    %v2647 = vand.u32 %v2643, 3
    %vm2648 = vcmp.lt.s32.totalorder %v2647, 2
    %vm2649 = vcmp.eq.s32.totalorder %v2647, 0
    %v2650 = vxor.u32 %v2645, 2147483648
    %v2651 = vsel %vm2649, %v2644, %v2650
    %vm2652 = vcmp.eq.s32.totalorder %v2647, 2
    %v2653 = vxor.u32 %v2644, 2147483648
    %v2654 = vsel %vm2652, %v2653, %v2645
    %v2655 = vsel %vm2648, %v2651, %v2654
    %v2656 = vsel %vm2646, nan, %v2655
    %v2657 = vand.u32 2147483647, %v59
    %vm2658 = vcmp.le.f32.partialorder %v2657, 0.7853982
    %vm2659 = vcmp.lt.s32.totalorder %v59, 0
    %v2660 = vand.u32 %v59, 2139095040
    %v2661 = vshrl.u32 %v2660, 23
    %v2662 = vsub.s32 %v2661, 127
    %v2663 = vand.u32 2147483647, %v59
    %v2664 = vand.u32 %v2663, 8388607
    %v2665 = vor.u32 %v2664, 8388608
    %v2666 = vsub.s32 0, %v2665
    %v2667 = vadd.s32 %v2662, 1
    %vm2668 = vcmp.gt.s32.totalorder %v2667, 0
    %v2669 = vsel %vm2668, %v2667, 0
    %v2670 = vshrl.u32 %v2669, 5
    %v2671 = vand.u32 %v2669, 31
    %v2672 = vsub.s32 32, %v2671
    %v2673 = vshrl.u32 683565275, %v2672
    %v2674 = vshll.u32 683565275, %v2671
    %v2675 = vshrl.u32 2475754826, %v2672
    %v2676 = vor.u32 %v2674, %v2675
    %v2677 = vshll.u32 2475754826, %v2671
    %v2678 = vshrl.u32 2131351028, %v2672
    %v2679 = vor.u32 %v2677, %v2678
    %v2680 = vshll.u32 2131351028, %v2671
    %v2681 = vshrl.u32 2102212464, %v2672
    %v2682 = vor.u32 %v2680, %v2681
    %v2683 = vshll.u32 2102212464, %v2671
    %v2684 = vshrl.u32 920167782, %v2672
    %v2685 = vor.u32 %v2683, %v2684
    %v2686 = vshll.u32 920167782, %v2671
    %v2687 = vshrl.u32 1326507024, %v2672
    %v2688 = vor.u32 %v2686, %v2687
    %vm2689 = vcmp.lt.s32.totalorder %v2670, 1
    %vm2690 = vcmp.lt.s32.totalorder %v2670, 2
    %vm2691 = vcmp.lt.s32.totalorder %v2670, 3
    %vm2692 = vcmp.lt.s32.totalorder %v2670, 4
    %v2693 = vsel %vm2689, %v2673, %v2676
    %v2694 = vsel %vm2692, %v2682, 2102212464
    %v2695 = vsel %vm2691, %v2679, %v2694
    %v2696 = vsel %vm2690, %v2693, %v2695
    %v2697 = vsel %vm2689, %v2676, %v2679
    %v2698 = vsel %vm2692, %v2685, 920167782
    %v2699 = vsel %vm2691, %v2682, %v2698
    %v2700 = vsel %vm2690, %v2697, %v2699
    %v2701 = vsel %vm2689, %v2679, %v2682
    %v2702 = vsel %vm2692, %v2688, 1326507024
    %v2703 = vsel %vm2691, %v2685, %v2702
    %v2704 = vsel %vm2690, %v2701, %v2703
    %v2705 = vshll.u32 %v2665, 8
    %v2706 = vmul.u32.u64.compose %v2705, %v2704
    %v2707 = vextract.low.u32 %v2706
    %v2708 = vextract.high.u32 %v2706
    %v2709 = vmul.u32.u64.compose %v2705, %v2700
    %v2710 = vextract.low.u32 %v2709
    %v2711 = vextract.high.u32 %v2709
    %v2712 = vmul.u32 %v2705, %v2696
    %v2713 = vadd.s32 %v2708, %v2710
    %vm2714 = vc.u32 %v2708, %v2710
    %v2715 = vadd.s32 %v2711, 1
    %v2716 = vsel %vm2714, %v2715, %v2711
    %v2717 = vadd.s32 %v2712, %v2716
    %v2718 = vadd.s32 %v2717, 536870912
    %v2719 = vshrl.u32 %v2718, 30
    %v2720 = vshll.u32 %v2719, 30
    %v2721 = vsub.s32 %v2717, %v2720
    %vm2722 = vcmp.lt.s32.totalorder %v2721, 0
    %v2723 = vsub.s32 0, %v2721
    %v2724 = vsel %vm2722, %v2723, %v2721
    %v2725 = vclz %v2724
    %v2726 = vsub.s32 %v2725, 2
    %vm2727 = vcmp.gt.s32.totalorder 0, %v2726
    %v2728 = vsel %vm2727, 0, %v2726
    %v2729 = vsub.s32 32, %v2728
    %v2730 = vshll.u32 %v2721, %v2728
    %v2731 = vshrl.u32 %v2713, %v2729
    %v2732 = vor.u32 %v2730, %v2731
    %v2733 = vsub.s32 4294967266, %v2728
    %v2734 = vadd.s32 %v2733, 127
    %v2735 = vshll.u32 %v2734, 23
    %v2736 = vor.u32 4788187, %v2735
    %v2737 = vand.u32 2147483647, %v2736
    %v2739 = vcvt.s32.f32 %v2732
    %v2740 = vmul.f32 %v2739, %v2737
    %v2741 = vxor.u32 %v2740, 2147483648
    %v2742 = vsel %vm2659, %v2741, %v2740
    %v2743 = vsub.s32 4, %v2719
    %v2744 = vsel %vm2659, %v2743, %v2719
    %v2745 = vsel %vm2658, %v59, %v2742
    %v2746 = vsel %vm2658, 0, %v2744
    %v2747 = vcosq.f32.pop %v2745
    %v2748 = vsinq.f32.pop %v2745
    %vm2749 = vweird.f32 %v59
    %v2750 = vand.u32 %v2746, 3
    %vm2751 = vcmp.lt.s32.totalorder %v2750, 2
    %vm2752 = vcmp.eq.s32.totalorder %v2750, 0
    %v2753 = vxor.u32 %v2748, 2147483648
    %v2754 = vsel %vm2752, %v2747, %v2753
    %vm2755 = vcmp.eq.s32.totalorder %v2750, 2
    %v2756 = vxor.u32 %v2747, 2147483648
    %v2757 = vsel %vm2755, %v2756, %v2748
    %v2758 = vsel %vm2751, %v2754, %v2757
    %v2759 = vsel %vm2749, nan, %v2758
    %v2760 = vand.u32 2147483647, %v60
    %vm2761 = vcmp.le.f32.partialorder %v2760, 0.7853982
    %vm2762 = vcmp.lt.s32.totalorder %v60, 0
    %v2763 = vand.u32 %v60, 2139095040
    %v2764 = vshrl.u32 %v2763, 23
    %v2765 = vsub.s32 %v2764, 127
    %v2766 = vand.u32 2147483647, %v60
    %v2767 = vand.u32 %v2766, 8388607
    %v2768 = vor.u32 %v2767, 8388608
    %v2769 = vsub.s32 0, %v2768
    %v2770 = vadd.s32 %v2765, 1
    %vm2771 = vcmp.gt.s32.totalorder %v2770, 0
    %v2772 = vsel %vm2771, %v2770, 0
    %v2773 = vshrl.u32 %v2772, 5
    %v2774 = vand.u32 %v2772, 31
    %v2775 = vsub.s32 32, %v2774
    %v2776 = vshrl.u32 683565275, %v2775
    %v2777 = vshll.u32 683565275, %v2774
    %v2778 = vshrl.u32 2475754826, %v2775
    %v2779 = vor.u32 %v2777, %v2778
    %v2780 = vshll.u32 2475754826, %v2774
    %v2781 = vshrl.u32 2131351028, %v2775
    %v2782 = vor.u32 %v2780, %v2781
    %v2783 = vshll.u32 2131351028, %v2774
    %v2784 = vshrl.u32 2102212464, %v2775
    %v2785 = vor.u32 %v2783, %v2784
    %v2786 = vshll.u32 2102212464, %v2774
    %v2787 = vshrl.u32 920167782, %v2775
    %v2788 = vor.u32 %v2786, %v2787
    %v2789 = vshll.u32 920167782, %v2774
    %v2790 = vshrl.u32 1326507024, %v2775
    %v2791 = vor.u32 %v2789, %v2790
    %vm2792 = vcmp.lt.s32.totalorder %v2773, 1
    %vm2793 = vcmp.lt.s32.totalorder %v2773, 2
    %vm2794 = vcmp.lt.s32.totalorder %v2773, 3
    %vm2795 = vcmp.lt.s32.totalorder %v2773, 4
    %v2796 = vsel %vm2792, %v2776, %v2779
    %v2797 = vsel %vm2795, %v2785, 2102212464
    %v2798 = vsel %vm2794, %v2782, %v2797
    %v2799 = vsel %vm2793, %v2796, %v2798
    %v2800 = vsel %vm2792, %v2779, %v2782
    %v2801 = vsel %vm2795, %v2788, 920167782
    %v2802 = vsel %vm2794, %v2785, %v2801
    %v2803 = vsel %vm2793, %v2800, %v2802
    %v2804 = vsel %vm2792, %v2782, %v2785
    %v2805 = vsel %vm2795, %v2791, 1326507024
    %v2806 = vsel %vm2794, %v2788, %v2805
    %v2807 = vsel %vm2793, %v2804, %v2806
    %v2808 = vshll.u32 %v2768, 8
    %v2809 = vmul.u32.u64.compose %v2808, %v2807
    %v2810 = vextract.low.u32 %v2809
    %v2811 = vextract.high.u32 %v2809
    %v2812 = vmul.u32.u64.compose %v2808, %v2803
    %v2813 = vextract.low.u32 %v2812
    %v2814 = vextract.high.u32 %v2812
    %v2815 = vmul.u32 %v2808, %v2799
    %v2816 = vadd.s32 %v2811, %v2813
    %vm2817 = vc.u32 %v2811, %v2813
    %v2818 = vadd.s32 %v2814, 1
    %v2819 = vsel %vm2817, %v2818, %v2814
    %v2820 = vadd.s32 %v2815, %v2819
    %v2821 = vadd.s32 %v2820, 536870912
    %v2822 = vshrl.u32 %v2821, 30
    %v2823 = vshll.u32 %v2822, 30
    %v2824 = vsub.s32 %v2820, %v2823
    %vm2825 = vcmp.lt.s32.totalorder %v2824, 0
    %v2826 = vsub.s32 0, %v2824
    %v2827 = vsel %vm2825, %v2826, %v2824
    %v2828 = vclz %v2827
    %v2829 = vsub.s32 %v2828, 2
    %vm2830 = vcmp.gt.s32.totalorder 0, %v2829
    %v2831 = vsel %vm2830, 0, %v2829
    %v2832 = vsub.s32 32, %v2831
    %v2833 = vshll.u32 %v2824, %v2831
    %v2834 = vshrl.u32 %v2816, %v2832
    %v2835 = vor.u32 %v2833, %v2834
    %v2836 = vsub.s32 4294967266, %v2831
    %v2837 = vadd.s32 %v2836, 127
    %v2838 = vshll.u32 %v2837, 23
    %v2839 = vor.u32 4788187, %v2838
    %v2840 = vand.u32 2147483647, %v2839
    %v2842 = vcvt.s32.f32 %v2835
    %v2843 = vmul.f32 %v2842, %v2840
    %v2844 = vxor.u32 %v2843, 2147483648
    %v2845 = vsel %vm2762, %v2844, %v2843
    %v2846 = vsub.s32 4, %v2822
    %v2847 = vsel %vm2762, %v2846, %v2822
    %v2848 = vsel %vm2761, %v60, %v2845
    %v2849 = vsel %vm2761, 0, %v2847
    %v2850 = vcosq.f32.pop %v2848
    %v2851 = vsinq.f32.pop %v2848
    %vm2852 = vweird.f32 %v60
    %v2853 = vand.u32 %v2849, 3
    %vm2854 = vcmp.lt.s32.totalorder %v2853, 2
    %vm2855 = vcmp.eq.s32.totalorder %v2853, 0
    %v2856 = vxor.u32 %v2851, 2147483648
    %v2857 = vsel %vm2855, %v2850, %v2856
    %vm2858 = vcmp.eq.s32.totalorder %v2853, 2
    %v2859 = vxor.u32 %v2850, 2147483648
    %v2860 = vsel %vm2858, %v2859, %v2851
    %v2861 = vsel %vm2854, %v2857, %v2860
    %v2862 = vsel %vm2852, nan, %v2861
    %v2863 = vand.u32 2147483647, %v61
    %vm2864 = vcmp.le.f32.partialorder %v2863, 0.7853982
    %vm2865 = vcmp.lt.s32.totalorder %v61, 0
    %v2866 = vand.u32 %v61, 2139095040
    %v2867 = vshrl.u32 %v2866, 23
    %v2868 = vsub.s32 %v2867, 127
    %v2869 = vand.u32 2147483647, %v61
    %v2870 = vand.u32 %v2869, 8388607
    %v2871 = vor.u32 %v2870, 8388608
    %v2872 = vsub.s32 0, %v2871
    %v2873 = vadd.s32 %v2868, 1
    %vm2874 = vcmp.gt.s32.totalorder %v2873, 0
    %v2875 = vsel %vm2874, %v2873, 0
    %v2876 = vshrl.u32 %v2875, 5
    %v2877 = vand.u32 %v2875, 31
    %v2878 = vsub.s32 32, %v2877
    %v2879 = vshrl.u32 683565275, %v2878
    %v2880 = vshll.u32 683565275, %v2877
    %v2881 = vshrl.u32 2475754826, %v2878
    %v2882 = vor.u32 %v2880, %v2881
    %v2883 = vshll.u32 2475754826, %v2877
    %v2884 = vshrl.u32 2131351028, %v2878
    %v2885 = vor.u32 %v2883, %v2884
    %v2886 = vshll.u32 2131351028, %v2877
    %v2887 = vshrl.u32 2102212464, %v2878
    %v2888 = vor.u32 %v2886, %v2887
    %v2889 = vshll.u32 2102212464, %v2877
    %v2890 = vshrl.u32 920167782, %v2878
    %v2891 = vor.u32 %v2889, %v2890
    %v2892 = vshll.u32 920167782, %v2877
    %v2893 = vshrl.u32 1326507024, %v2878
    %v2894 = vor.u32 %v2892, %v2893
    %vm2895 = vcmp.lt.s32.totalorder %v2876, 1
    %vm2896 = vcmp.lt.s32.totalorder %v2876, 2
    %vm2897 = vcmp.lt.s32.totalorder %v2876, 3
    %vm2898 = vcmp.lt.s32.totalorder %v2876, 4
    %v2899 = vsel %vm2895, %v2879, %v2882
    %v2900 = vsel %vm2898, %v2888, 2102212464
    %v2901 = vsel %vm2897, %v2885, %v2900
    %v2902 = vsel %vm2896, %v2899, %v2901
    %v2903 = vsel %vm2895, %v2882, %v2885
    %v2904 = vsel %vm2898, %v2891, 920167782
    %v2905 = vsel %vm2897, %v2888, %v2904
    %v2906 = vsel %vm2896, %v2903, %v2905
    %v2907 = vsel %vm2895, %v2885, %v2888
    %v2908 = vsel %vm2898, %v2894, 1326507024
    %v2909 = vsel %vm2897, %v2891, %v2908
    %v2910 = vsel %vm2896, %v2907, %v2909
    %v2911 = vshll.u32 %v2871, 8
    %v2912 = vmul.u32.u64.compose %v2911, %v2910
    %v2913 = vextract.low.u32 %v2912
    %v2914 = vextract.high.u32 %v2912
    %v2915 = vmul.u32.u64.compose %v2911, %v2906
    %v2916 = vextract.low.u32 %v2915
    %v2917 = vextract.high.u32 %v2915
    %v2918 = vmul.u32 %v2911, %v2902
    %v2919 = vadd.s32 %v2914, %v2916
    %vm2920 = vc.u32 %v2914, %v2916
    %v2921 = vadd.s32 %v2917, 1
    %v2922 = vsel %vm2920, %v2921, %v2917
    %v2923 = vadd.s32 %v2918, %v2922
    %v2924 = vadd.s32 %v2923, 536870912
    %v2925 = vshrl.u32 %v2924, 30
    %v2926 = vshll.u32 %v2925, 30
    %v2927 = vsub.s32 %v2923, %v2926
    %vm2928 = vcmp.lt.s32.totalorder %v2927, 0
    %v2929 = vsub.s32 0, %v2927
    %v2930 = vsel %vm2928, %v2929, %v2927
    %v2931 = vclz %v2930
    %v2932 = vsub.s32 %v2931, 2
    %vm2933 = vcmp.gt.s32.totalorder 0, %v2932
    %v2934 = vsel %vm2933, 0, %v2932
    %v2935 = vsub.s32 32, %v2934
    %v2936 = vshll.u32 %v2927, %v2934
    %v2937 = vshrl.u32 %v2919, %v2935
    %v2938 = vor.u32 %v2936, %v2937
    %v2939 = vsub.s32 4294967266, %v2934
    %v2940 = vadd.s32 %v2939, 127
    %v2941 = vshll.u32 %v2940, 23
    %v2942 = vor.u32 4788187, %v2941
    %v2943 = vand.u32 2147483647, %v2942
    %v2945 = vcvt.s32.f32 %v2938
    %v2946 = vmul.f32 %v2945, %v2943
    %v2947 = vxor.u32 %v2946, 2147483648
    %v2948 = vsel %vm2865, %v2947, %v2946
    %v2949 = vsub.s32 4, %v2925
    %v2950 = vsel %vm2865, %v2949, %v2925
    %v2951 = vsel %vm2864, %v61, %v2948
    %v2952 = vsel %vm2864, 0, %v2950
    %v2953 = vcosq.f32.pop %v2951
    %v2954 = vsinq.f32.pop %v2951
    %vm2955 = vweird.f32 %v61
    %v2956 = vand.u32 %v2952, 3
    %vm2957 = vcmp.lt.s32.totalorder %v2956, 2
    %vm2958 = vcmp.eq.s32.totalorder %v2956, 0
    %v2959 = vxor.u32 %v2954, 2147483648
    %v2960 = vsel %vm2958, %v2953, %v2959
    %vm2961 = vcmp.eq.s32.totalorder %v2956, 2
    %v2962 = vxor.u32 %v2953, 2147483648
    %v2963 = vsel %vm2961, %v2962, %v2954
    %v2964 = vsel %vm2957, %v2960, %v2963
    %v2965 = vsel %vm2955, nan, %v2964
    %v2966 = vand.u32 2147483647, %v62
    %vm2967 = vcmp.le.f32.partialorder %v2966, 0.7853982
    %vm2968 = vcmp.lt.s32.totalorder %v62, 0
    %v2969 = vand.u32 %v62, 2139095040
    %v2970 = vshrl.u32 %v2969, 23
    %v2971 = vsub.s32 %v2970, 127
    %v2972 = vand.u32 2147483647, %v62
    %v2973 = vand.u32 %v2972, 8388607
    %v2974 = vor.u32 %v2973, 8388608
    %v2975 = vsub.s32 0, %v2974
    %v2976 = vadd.s32 %v2971, 1
    %vm2977 = vcmp.gt.s32.totalorder %v2976, 0
    %v2978 = vsel %vm2977, %v2976, 0
    %v2979 = vshrl.u32 %v2978, 5
    %v2980 = vand.u32 %v2978, 31
    %v2981 = vsub.s32 32, %v2980
    %v2982 = vshrl.u32 683565275, %v2981
    %v2983 = vshll.u32 683565275, %v2980
    %v2984 = vshrl.u32 2475754826, %v2981
    %v2985 = vor.u32 %v2983, %v2984
    %v2986 = vshll.u32 2475754826, %v2980
    %v2987 = vshrl.u32 2131351028, %v2981
    %v2988 = vor.u32 %v2986, %v2987
    %v2989 = vshll.u32 2131351028, %v2980
    %v2990 = vshrl.u32 2102212464, %v2981
    %v2991 = vor.u32 %v2989, %v2990
    %v2992 = vshll.u32 2102212464, %v2980
    %v2993 = vshrl.u32 920167782, %v2981
    %v2994 = vor.u32 %v2992, %v2993
    %v2995 = vshll.u32 920167782, %v2980
    %v2996 = vshrl.u32 1326507024, %v2981
    %v2997 = vor.u32 %v2995, %v2996
    %vm2998 = vcmp.lt.s32.totalorder %v2979, 1
    %vm2999 = vcmp.lt.s32.totalorder %v2979, 2
    %vm3000 = vcmp.lt.s32.totalorder %v2979, 3
    %vm3001 = vcmp.lt.s32.totalorder %v2979, 4
    %v3002 = vsel %vm2998, %v2982, %v2985
    %v3003 = vsel %vm3001, %v2991, 2102212464
    %v3004 = vsel %vm3000, %v2988, %v3003
    %v3005 = vsel %vm2999, %v3002, %v3004
    %v3006 = vsel %vm2998, %v2985, %v2988
    %v3007 = vsel %vm3001, %v2994, 920167782
    %v3008 = vsel %vm3000, %v2991, %v3007
    %v3009 = vsel %vm2999, %v3006, %v3008
    %v3010 = vsel %vm2998, %v2988, %v2991
    %v3011 = vsel %vm3001, %v2997, 1326507024
    %v3012 = vsel %vm3000, %v2994, %v3011
    %v3013 = vsel %vm2999, %v3010, %v3012
    %v3014 = vshll.u32 %v2974, 8
    %v3015 = vmul.u32.u64.compose %v3014, %v3013
    %v3016 = vextract.low.u32 %v3015
    %v3017 = vextract.high.u32 %v3015
    %v3018 = vmul.u32.u64.compose %v3014, %v3009
    %v3019 = vextract.low.u32 %v3018
    %v3020 = vextract.high.u32 %v3018
    %v3021 = vmul.u32 %v3014, %v3005
    %v3022 = vadd.s32 %v3017, %v3019
    %vm3023 = vc.u32 %v3017, %v3019
    %v3024 = vadd.s32 %v3020, 1
    %v3025 = vsel %vm3023, %v3024, %v3020
    %v3026 = vadd.s32 %v3021, %v3025
    %v3027 = vadd.s32 %v3026, 536870912
    %v3028 = vshrl.u32 %v3027, 30
    %v3029 = vshll.u32 %v3028, 30
    %v3030 = vsub.s32 %v3026, %v3029
    %vm3031 = vcmp.lt.s32.totalorder %v3030, 0
    %v3032 = vsub.s32 0, %v3030
    %v3033 = vsel %vm3031, %v3032, %v3030
    %v3034 = vclz %v3033
    %v3035 = vsub.s32 %v3034, 2
    %vm3036 = vcmp.gt.s32.totalorder 0, %v3035
    %v3037 = vsel %vm3036, 0, %v3035
    %v3038 = vsub.s32 32, %v3037
    %v3039 = vshll.u32 %v3030, %v3037
    %v3040 = vshrl.u32 %v3022, %v3038
    %v3041 = vor.u32 %v3039, %v3040
    %v3042 = vsub.s32 4294967266, %v3037
    %v3043 = vadd.s32 %v3042, 127
    %v3044 = vshll.u32 %v3043, 23
    %v3045 = vor.u32 4788187, %v3044
    %v3046 = vand.u32 2147483647, %v3045
    %v3048 = vcvt.s32.f32 %v3041
    %v3049 = vmul.f32 %v3048, %v3046
    %v3050 = vxor.u32 %v3049, 2147483648
    %v3051 = vsel %vm2968, %v3050, %v3049
    %v3052 = vsub.s32 4, %v3028
    %v3053 = vsel %vm2968, %v3052, %v3028
    %v3054 = vsel %vm2967, %v62, %v3051
    %v3055 = vsel %vm2967, 0, %v3053
    %v3056 = vcosq.f32.pop %v3054
    %v3057 = vsinq.f32.pop %v3054
    %vm3058 = vweird.f32 %v62
    %v3059 = vand.u32 %v3055, 3
    %vm3060 = vcmp.lt.s32.totalorder %v3059, 2
    %vm3061 = vcmp.eq.s32.totalorder %v3059, 0
    %v3062 = vxor.u32 %v3057, 2147483648
    %v3063 = vsel %vm3061, %v3056, %v3062
    %vm3064 = vcmp.eq.s32.totalorder %v3059, 2
    %v3065 = vxor.u32 %v3056, 2147483648
    %v3066 = vsel %vm3064, %v3065, %v3057
    %v3067 = vsel %vm3060, %v3063, %v3066
    %v3068 = vsel %vm3058, nan, %v3067
    %v3069 = vand.u32 2147483647, %v63
    %vm3070 = vcmp.le.f32.partialorder %v3069, 0.7853982
    %vm3071 = vcmp.lt.s32.totalorder %v63, 0
    %v3072 = vand.u32 %v63, 2139095040
    %v3073 = vshrl.u32 %v3072, 23
    %v3074 = vsub.s32 %v3073, 127
    %v3075 = vand.u32 2147483647, %v63
    %v3076 = vand.u32 %v3075, 8388607
    %v3077 = vor.u32 %v3076, 8388608
    %v3078 = vsub.s32 0, %v3077
    %v3079 = vadd.s32 %v3074, 1
    %vm3080 = vcmp.gt.s32.totalorder %v3079, 0
    %v3081 = vsel %vm3080, %v3079, 0
    %v3082 = vshrl.u32 %v3081, 5
    %v3083 = vand.u32 %v3081, 31
    %v3084 = vsub.s32 32, %v3083
    %v3085 = vshrl.u32 683565275, %v3084
    %v3086 = vshll.u32 683565275, %v3083
    %v3087 = vshrl.u32 2475754826, %v3084
    %v3088 = vor.u32 %v3086, %v3087
    %v3089 = vshll.u32 2475754826, %v3083
    %v3090 = vshrl.u32 2131351028, %v3084
    %v3091 = vor.u32 %v3089, %v3090
    %v3092 = vshll.u32 2131351028, %v3083
    %v3093 = vshrl.u32 2102212464, %v3084
    %v3094 = vor.u32 %v3092, %v3093
    %v3095 = vshll.u32 2102212464, %v3083
    %v3096 = vshrl.u32 920167782, %v3084
    %v3097 = vor.u32 %v3095, %v3096
    %v3098 = vshll.u32 920167782, %v3083
    %v3099 = vshrl.u32 1326507024, %v3084
    %v3100 = vor.u32 %v3098, %v3099
    %vm3101 = vcmp.lt.s32.totalorder %v3082, 1
    %vm3102 = vcmp.lt.s32.totalorder %v3082, 2
    %vm3103 = vcmp.lt.s32.totalorder %v3082, 3
    %vm3104 = vcmp.lt.s32.totalorder %v3082, 4
    %v3105 = vsel %vm3101, %v3085, %v3088
    %v3106 = vsel %vm3104, %v3094, 2102212464
    %v3107 = vsel %vm3103, %v3091, %v3106
    %v3108 = vsel %vm3102, %v3105, %v3107
    %v3109 = vsel %vm3101, %v3088, %v3091
    %v3110 = vsel %vm3104, %v3097, 920167782
    %v3111 = vsel %vm3103, %v3094, %v3110
    %v3112 = vsel %vm3102, %v3109, %v3111
    %v3113 = vsel %vm3101, %v3091, %v3094
    %v3114 = vsel %vm3104, %v3100, 1326507024
    %v3115 = vsel %vm3103, %v3097, %v3114
    %v3116 = vsel %vm3102, %v3113, %v3115
    %v3117 = vshll.u32 %v3077, 8
    %v3118 = vmul.u32.u64.compose %v3117, %v3116
    %v3119 = vextract.low.u32 %v3118
    %v3120 = vextract.high.u32 %v3118
    %v3121 = vmul.u32.u64.compose %v3117, %v3112
    %v3122 = vextract.low.u32 %v3121
    %v3123 = vextract.high.u32 %v3121
    %v3124 = vmul.u32 %v3117, %v3108
    %v3125 = vadd.s32 %v3120, %v3122
    %vm3126 = vc.u32 %v3120, %v3122
    %v3127 = vadd.s32 %v3123, 1
    %v3128 = vsel %vm3126, %v3127, %v3123
    %v3129 = vadd.s32 %v3124, %v3128
    %v3130 = vadd.s32 %v3129, 536870912
    %v3131 = vshrl.u32 %v3130, 30
    %v3132 = vshll.u32 %v3131, 30
    %v3133 = vsub.s32 %v3129, %v3132
    %vm3134 = vcmp.lt.s32.totalorder %v3133, 0
    %v3135 = vsub.s32 0, %v3133
    %v3136 = vsel %vm3134, %v3135, %v3133
    %v3137 = vclz %v3136
    %v3138 = vsub.s32 %v3137, 2
    %vm3139 = vcmp.gt.s32.totalorder 0, %v3138
    %v3140 = vsel %vm3139, 0, %v3138
    %v3141 = vsub.s32 32, %v3140
    %v3142 = vshll.u32 %v3133, %v3140
    %v3143 = vshrl.u32 %v3125, %v3141
    %v3144 = vor.u32 %v3142, %v3143
    %v3145 = vsub.s32 4294967266, %v3140
    %v3146 = vadd.s32 %v3145, 127
    %v3147 = vshll.u32 %v3146, 23
    %v3148 = vor.u32 4788187, %v3147
    %v3149 = vand.u32 2147483647, %v3148
    %v3151 = vcvt.s32.f32 %v3144
    %v3152 = vmul.f32 %v3151, %v3149
    %v3153 = vxor.u32 %v3152, 2147483648
    %v3154 = vsel %vm3071, %v3153, %v3152
    %v3155 = vsub.s32 4, %v3131
    %v3156 = vsel %vm3071, %v3155, %v3131
    %v3157 = vsel %vm3070, %v63, %v3154
    %v3158 = vsel %vm3070, 0, %v3156
    %v3159 = vcosq.f32.pop %v3157
    %v3160 = vsinq.f32.pop %v3157
    %vm3161 = vweird.f32 %v63
    %v3162 = vand.u32 %v3158, 3
    %vm3163 = vcmp.lt.s32.totalorder %v3162, 2
    %vm3164 = vcmp.eq.s32.totalorder %v3162, 0
    %v3165 = vxor.u32 %v3160, 2147483648
    %v3166 = vsel %vm3164, %v3159, %v3165
    %vm3167 = vcmp.eq.s32.totalorder %v3162, 2
    %v3168 = vxor.u32 %v3159, 2147483648
    %v3169 = vsel %vm3167, %v3168, %v3160
    %v3170 = vsel %vm3163, %v3166, %v3169
    %v3171 = vsel %vm3161, nan, %v3170
    %v3172 = vand.u32 2147483647, %v64
    %vm3173 = vcmp.le.f32.partialorder %v3172, 0.7853982
    %vm3174 = vcmp.lt.s32.totalorder %v64, 0
    %v3175 = vand.u32 %v64, 2139095040
    %v3176 = vshrl.u32 %v3175, 23
    %v3177 = vsub.s32 %v3176, 127
    %v3178 = vand.u32 2147483647, %v64
    %v3179 = vand.u32 %v3178, 8388607
    %v3180 = vor.u32 %v3179, 8388608
    %v3181 = vsub.s32 0, %v3180
    %v3182 = vadd.s32 %v3177, 1
    %vm3183 = vcmp.gt.s32.totalorder %v3182, 0
    %v3184 = vsel %vm3183, %v3182, 0
    %v3185 = vshrl.u32 %v3184, 5
    %v3186 = vand.u32 %v3184, 31
    %v3187 = vsub.s32 32, %v3186
    %v3188 = vshrl.u32 683565275, %v3187
    %v3189 = vshll.u32 683565275, %v3186
    %v3190 = vshrl.u32 2475754826, %v3187
    %v3191 = vor.u32 %v3189, %v3190
    %v3192 = vshll.u32 2475754826, %v3186
    %v3193 = vshrl.u32 2131351028, %v3187
    %v3194 = vor.u32 %v3192, %v3193
    %v3195 = vshll.u32 2131351028, %v3186
    %v3196 = vshrl.u32 2102212464, %v3187
    %v3197 = vor.u32 %v3195, %v3196
    %v3198 = vshll.u32 2102212464, %v3186
    %v3199 = vshrl.u32 920167782, %v3187
    %v3200 = vor.u32 %v3198, %v3199
    %v3201 = vshll.u32 920167782, %v3186
    %v3202 = vshrl.u32 1326507024, %v3187
    %v3203 = vor.u32 %v3201, %v3202
    %vm3204 = vcmp.lt.s32.totalorder %v3185, 1
    %vm3205 = vcmp.lt.s32.totalorder %v3185, 2
    %vm3206 = vcmp.lt.s32.totalorder %v3185, 3
    %vm3207 = vcmp.lt.s32.totalorder %v3185, 4
    %v3208 = vsel %vm3204, %v3188, %v3191
    %v3209 = vsel %vm3207, %v3197, 2102212464
    %v3210 = vsel %vm3206, %v3194, %v3209
    %v3211 = vsel %vm3205, %v3208, %v3210
    %v3212 = vsel %vm3204, %v3191, %v3194
    %v3213 = vsel %vm3207, %v3200, 920167782
    %v3214 = vsel %vm3206, %v3197, %v3213
    %v3215 = vsel %vm3205, %v3212, %v3214
    %v3216 = vsel %vm3204, %v3194, %v3197
    %v3217 = vsel %vm3207, %v3203, 1326507024
    %v3218 = vsel %vm3206, %v3200, %v3217
    %v3219 = vsel %vm3205, %v3216, %v3218
    %v3220 = vshll.u32 %v3180, 8
    %v3221 = vmul.u32.u64.compose %v3220, %v3219
    %v3222 = vextract.low.u32 %v3221
    %v3223 = vextract.high.u32 %v3221
    %v3224 = vmul.u32.u64.compose %v3220, %v3215
    %v3225 = vextract.low.u32 %v3224
    %v3226 = vextract.high.u32 %v3224
    %v3227 = vmul.u32 %v3220, %v3211
    %v3228 = vadd.s32 %v3223, %v3225
    %vm3229 = vc.u32 %v3223, %v3225
    %v3230 = vadd.s32 %v3226, 1
    %v3231 = vsel %vm3229, %v3230, %v3226
    %v3232 = vadd.s32 %v3227, %v3231
    %v3233 = vadd.s32 %v3232, 536870912
    %v3234 = vshrl.u32 %v3233, 30
    %v3235 = vshll.u32 %v3234, 30
    %v3236 = vsub.s32 %v3232, %v3235
    %vm3237 = vcmp.lt.s32.totalorder %v3236, 0
    %v3238 = vsub.s32 0, %v3236
    %v3239 = vsel %vm3237, %v3238, %v3236
    %v3240 = vclz %v3239
    %v3241 = vsub.s32 %v3240, 2
    %vm3242 = vcmp.gt.s32.totalorder 0, %v3241
    %v3243 = vsel %vm3242, 0, %v3241
    %v3244 = vsub.s32 32, %v3243
    %v3245 = vshll.u32 %v3236, %v3243
    %v3246 = vshrl.u32 %v3228, %v3244
    %v3247 = vor.u32 %v3245, %v3246
    %v3248 = vsub.s32 4294967266, %v3243
    %v3249 = vadd.s32 %v3248, 127
    %v3250 = vshll.u32 %v3249, 23
    %v3251 = vor.u32 4788187, %v3250
    %v3252 = vand.u32 2147483647, %v3251
    %v3254 = vcvt.s32.f32 %v3247
    %v3255 = vmul.f32 %v3254, %v3252
    %v3256 = vxor.u32 %v3255, 2147483648
    %v3257 = vsel %vm3174, %v3256, %v3255
    %v3258 = vsub.s32 4, %v3234
    %v3259 = vsel %vm3174, %v3258, %v3234
    %v3260 = vsel %vm3173, %v64, %v3257
    %v3261 = vsel %vm3173, 0, %v3259
    %v3262 = vcosq.f32.pop %v3260
    %v3263 = vsinq.f32.pop %v3260
    %vm3264 = vweird.f32 %v64
    %v3265 = vand.u32 %v3261, 3
    %vm3266 = vcmp.lt.s32.totalorder %v3265, 2
    %vm3267 = vcmp.eq.s32.totalorder %v3265, 0
    %v3268 = vxor.u32 %v3263, 2147483648
    %v3269 = vsel %vm3267, %v3262, %v3268
    %vm3270 = vcmp.eq.s32.totalorder %v3265, 2
    %v3271 = vxor.u32 %v3262, 2147483648
    %v3272 = vsel %vm3270, %v3271, %v3263
    %v3273 = vsel %vm3266, %v3269, %v3272
    %v3274 = vsel %vm3264, nan, %v3273
    %v3275 = vand.u32 2147483647, %v65
    %vm3276 = vcmp.le.f32.partialorder %v3275, 0.7853982
    %vm3277 = vcmp.lt.s32.totalorder %v65, 0
    %v3278 = vand.u32 %v65, 2139095040
    %v3279 = vshrl.u32 %v3278, 23
    %v3280 = vsub.s32 %v3279, 127
    %v3281 = vand.u32 2147483647, %v65
    %v3282 = vand.u32 %v3281, 8388607
    %v3283 = vor.u32 %v3282, 8388608
    %v3284 = vsub.s32 0, %v3283
    %v3285 = vadd.s32 %v3280, 1
    %vm3286 = vcmp.gt.s32.totalorder %v3285, 0
    %v3287 = vsel %vm3286, %v3285, 0
    %v3288 = vshrl.u32 %v3287, 5
    %v3289 = vand.u32 %v3287, 31
    %v3290 = vsub.s32 32, %v3289
    %v3291 = vshrl.u32 683565275, %v3290
    %v3292 = vshll.u32 683565275, %v3289
    %v3293 = vshrl.u32 2475754826, %v3290
    %v3294 = vor.u32 %v3292, %v3293
    %v3295 = vshll.u32 2475754826, %v3289
    %v3296 = vshrl.u32 2131351028, %v3290
    %v3297 = vor.u32 %v3295, %v3296
    %v3298 = vshll.u32 2131351028, %v3289
    %v3299 = vshrl.u32 2102212464, %v3290
    %v3300 = vor.u32 %v3298, %v3299
    %v3301 = vshll.u32 2102212464, %v3289
    %v3302 = vshrl.u32 920167782, %v3290
    %v3303 = vor.u32 %v3301, %v3302
    %v3304 = vshll.u32 920167782, %v3289
    %v3305 = vshrl.u32 1326507024, %v3290
    %v3306 = vor.u32 %v3304, %v3305
    %vm3307 = vcmp.lt.s32.totalorder %v3288, 1
    %vm3308 = vcmp.lt.s32.totalorder %v3288, 2
    %vm3309 = vcmp.lt.s32.totalorder %v3288, 3
    %vm3310 = vcmp.lt.s32.totalorder %v3288, 4
    %v3311 = vsel %vm3307, %v3291, %v3294
    %v3312 = vsel %vm3310, %v3300, 2102212464
    %v3313 = vsel %vm3309, %v3297, %v3312
    %v3314 = vsel %vm3308, %v3311, %v3313
    %v3315 = vsel %vm3307, %v3294, %v3297
    %v3316 = vsel %vm3310, %v3303, 920167782
    %v3317 = vsel %vm3309, %v3300, %v3316
    %v3318 = vsel %vm3308, %v3315, %v3317
    %v3319 = vsel %vm3307, %v3297, %v3300
    %v3320 = vsel %vm3310, %v3306, 1326507024
    %v3321 = vsel %vm3309, %v3303, %v3320
    %v3322 = vsel %vm3308, %v3319, %v3321
    %v3323 = vshll.u32 %v3283, 8
    %v3324 = vmul.u32.u64.compose %v3323, %v3322
    %v3325 = vextract.low.u32 %v3324
    %v3326 = vextract.high.u32 %v3324
    %v3327 = vmul.u32.u64.compose %v3323, %v3318
    %v3328 = vextract.low.u32 %v3327
    %v3329 = vextract.high.u32 %v3327
    %v3330 = vmul.u32 %v3323, %v3314
    %v3331 = vadd.s32 %v3326, %v3328
    %vm3332 = vc.u32 %v3326, %v3328
    %v3333 = vadd.s32 %v3329, 1
    %v3334 = vsel %vm3332, %v3333, %v3329
    %v3335 = vadd.s32 %v3330, %v3334
    %v3336 = vadd.s32 %v3335, 536870912
    %v3337 = vshrl.u32 %v3336, 30
    %v3338 = vshll.u32 %v3337, 30
    %v3339 = vsub.s32 %v3335, %v3338
    %vm3340 = vcmp.lt.s32.totalorder %v3339, 0
    %v3341 = vsub.s32 0, %v3339
    %v3342 = vsel %vm3340, %v3341, %v3339
    %v3343 = vclz %v3342
    %v3344 = vsub.s32 %v3343, 2
    %vm3345 = vcmp.gt.s32.totalorder 0, %v3344
    %v3346 = vsel %vm3345, 0, %v3344
    %v3347 = vsub.s32 32, %v3346
    %v3348 = vshll.u32 %v3339, %v3346
    %v3349 = vshrl.u32 %v3331, %v3347
    %v3350 = vor.u32 %v3348, %v3349
    %v3351 = vsub.s32 4294967266, %v3346
    %v3352 = vadd.s32 %v3351, 127
    %v3353 = vshll.u32 %v3352, 23
    %v3354 = vor.u32 4788187, %v3353
    %v3355 = vand.u32 2147483647, %v3354
    %v3357 = vcvt.s32.f32 %v3350
    %v3358 = vmul.f32 %v3357, %v3355
    %v3359 = vxor.u32 %v3358, 2147483648
    %v3360 = vsel %vm3277, %v3359, %v3358
    %v3361 = vsub.s32 4, %v3337
    %v3362 = vsel %vm3277, %v3361, %v3337
    %v3363 = vsel %vm3276, %v65, %v3360
    %v3364 = vsel %vm3276, 0, %v3362
    %v3365 = vcosq.f32.pop %v3363
    %v3366 = vsinq.f32.pop %v3363
    %vm3367 = vweird.f32 %v65
    %v3368 = vand.u32 %v3364, 3
    %vm3369 = vcmp.lt.s32.totalorder %v3368, 2
    %vm3370 = vcmp.eq.s32.totalorder %v3368, 0
    %v3371 = vxor.u32 %v3366, 2147483648
    %v3372 = vsel %vm3370, %v3365, %v3371
    %vm3373 = vcmp.eq.s32.totalorder %v3368, 2
    %v3374 = vxor.u32 %v3365, 2147483648
    %v3375 = vsel %vm3373, %v3374, %v3366
    %v3376 = vsel %vm3369, %v3372, %v3375
    %v3377 = vsel %vm3367, nan, %v3376
    %v3378 = vld [vmem:[%s1] sm:$0xff]
    %v3379 = vld [vmem:[%s1 + $0x8] sm:$0xff]
    %v3380 = vld [vmem:[#allocation2] sm:$0xff]
    %v3381 = vld [vmem:[#allocation2 + $0x8] sm:$0xff]
    %vm3382 = vcmask 130048
    %v3384 = vsel %vm3382, %v1832, 0
    %v3387 = vsel %vm3382, %v1935, 0
    %v3390 = vsel %vm3382, %v2038, 0
    %v3393 = vsel %vm3382, %v2141, 0
    %v3396 = vsel %vm3382, %v2244, 0
    %v3399 = vsel %vm3382, %v2347, 0
    %v3402 = vsel %vm3382, %v2450, 0
    %v3405 = vsel %vm3382, %v2553, 0
    %v3408 = vsel %vm3382, %v2656, 0
    %v3411 = vsel %vm3382, %v2759, 0
    %v3414 = vsel %vm3382, %v2862, 0
    %v3417 = vsel %vm3382, %v2965, 0
    %v3420 = vsel %vm3382, %v3068, 0
    %v3423 = vsel %vm3382, %v3171, 0
    %v3426 = vsel %vm3382, %v3274, 0
    %v3429 = vsel %vm3382, %v3377, 0
    %3431 = vmatprep.subr.mxu0 0.0
    %3432 = vmatpush1.msra.mxu0 0.0
    %3433 = vmatprep.subr.mxu0 0.0
    %3434 = vmatpush1.msra.mxu0 0.0
    %3435 = vmatprep.subr.mxu0 0.0
    %3436 = vmatpush1.msra.mxu0 0.0
    %3437 = vmatprep.subr.mxu0 0.0
    %3438 = vmatpush1.msra.mxu0 0.0
    %3439 = vmatprep.subr.mxu0 0.0
    %3440 = vmatpush1.msra.mxu0 0.0
    %3441 = vmatprep.subr.mxu0 0.0
    %3442 = vmatpush1.msra.mxu0 0.0
    %3443 = vmatprep.subr.mxu0 0.0
    %3444 = vmatpush1.msra.mxu0 0.0
    %3445 = vmatprep.subr.mxu0 0.0
    %3446 = vmatpush1.msra.mxu0 0.0
    %3447 = vmatprep.subr.mxu0 0.0
    %3448 = vmatpush1.msra.mxu0 0.0
    %3449 = vmatprep.subr.mxu0 0.0
    %3450 = vmatpush1.msra.mxu0 0.0
    %3451 = vmatprep.subr.mxu0 0.0
    %3452 = vmatpush1.msra.mxu0 0.0
    %3453 = vmatprep.subr.mxu0 0.0
    %3454 = vmatpush1.msra.mxu0 0.0
    %3455 = vmatprep.subr.mxu0 0.0
    %3456 = vmatpush1.msra.mxu0 0.0
    %3457 = vmatprep.subr.mxu0 0.0
    %3458 = vmatpush1.msra.mxu0 0.0
    %3459 = vmatprep.subr.mxu0 0.0
    %3460 = vmatpush1.msra.mxu0 %v3381
    %3461 = vmatprep.subr.mxu0 0.0
    %3462 = vmatpush1.msra.mxu0 %v3380
    %3463 = vmatprep.subr.mxu0 0.0
    %3464 = vmatpush2.msra.mxu0 0.0
    %3465 = vmatprep.subr.mxu0 0.0
    %3466 = vmatpush2.msra.mxu0 0.0
    %3467 = vmatprep.subr.mxu0 0.0
    %3468 = vmatpush2.msra.mxu0 0.0
    %3469 = vmatprep.subr.mxu0 0.0
    %3470 = vmatpush2.msra.mxu0 0.0
    %3471 = vmatprep.subr.mxu0 0.0
    %3472 = vmatpush2.msra.mxu0 0.0
    %3473 = vmatprep.subr.mxu0 0.0
    %3474 = vmatpush2.msra.mxu0 0.0
    %3475 = vmatprep.subr.mxu0 0.0
    %3476 = vmatpush2.msra.mxu0 0.0
    %3477 = vmatprep.subr.mxu0 0.0
    %3478 = vmatpush2.msra.mxu0 0.0
    %3479 = vmatprep.subr.mxu0 0.0
    %3480 = vmatpush2.msra.mxu0 0.0
    %3481 = vmatprep.subr.mxu0 0.0
    %3482 = vmatpush2.msra.mxu0 0.0
    %3483 = vmatprep.subr.mxu0 0.0
    %3484 = vmatpush2.msra.mxu0 0.0
    %3485 = vmatprep.subr.mxu0 0.0
    %3486 = vmatpush2.msra.mxu0 0.0
    %3487 = vmatprep.subr.mxu0 0.0
    %3488 = vmatpush2.msra.mxu0 0.0
    %3489 = vmatprep.subr.mxu0 0.0
    %3490 = vmatpush2.msra.mxu0 0.0
    %3491 = vmatprep.subr.mxu0 0.0
    %3492 = vmatpush2.msra.mxu0 0.0
    %3493 = vmatprep.subr.mxu0 0.0
    %3494 = vmatpush2.msra.mxu0 0.0
    %3495 = vmatprep.mubr.f32.mxu0 0.0
    %3496 = vmatmul.mubr.f32.gmra.mxu0 %v3384
    %v3497 = vpop.f32.mrf.mxu0
    %v3498 = vadd.f32 0.0, %v3497
    %v3499 = vpop.f32.mrf.mxu0
    %3500 = vmatprep.mubr.f32.mxu0 0.0
    %3501 = vmatmul.mubr.f32.gmra.mxu0 %v3387
    %v3502 = vpop.f32.mrf.mxu0
    %v3503 = vadd.f32 0.0, %v3502
    %v3504 = vpop.f32.mrf.mxu0
    %3505 = vmatprep.mubr.f32.mxu0 0.0
    %3506 = vmatmul.mubr.f32.gmra.mxu0 %v3390
    %v3507 = vpop.f32.mrf.mxu0
    %v3508 = vadd.f32 0.0, %v3507
    %v3509 = vpop.f32.mrf.mxu0
    %3510 = vmatprep.mubr.f32.mxu0 0.0
    %3511 = vmatmul.mubr.f32.gmra.mxu0 %v3393
    %v3512 = vpop.f32.mrf.mxu0
    %v3513 = vadd.f32 0.0, %v3512
    %v3514 = vpop.f32.mrf.mxu0
    %3515 = vmatprep.mubr.f32.mxu0 0.0
    %3516 = vmatmul.mubr.f32.gmra.mxu0 %v3396
    %v3517 = vpop.f32.mrf.mxu0
    %v3518 = vadd.f32 0.0, %v3517
    %v3519 = vpop.f32.mrf.mxu0
    %3520 = vmatprep.mubr.f32.mxu0 0.0
    %3521 = vmatmul.mubr.f32.gmra.mxu0 %v3399
    %v3522 = vpop.f32.mrf.mxu0
    %v3523 = vadd.f32 0.0, %v3522
    %v3524 = vpop.f32.mrf.mxu0
    %3525 = vmatprep.mubr.f32.mxu0 0.0
    %3526 = vmatmul.mubr.f32.gmra.mxu0 %v3402
    %v3527 = vpop.f32.mrf.mxu0
    %v3528 = vadd.f32 0.0, %v3527
    %v3529 = vpop.f32.mrf.mxu0
    %3530 = vmatprep.mubr.f32.mxu0 0.0
    %3531 = vmatmul.mubr.f32.gmra.mxu0 %v3405
    %v3532 = vpop.f32.mrf.mxu0
    %v3533 = vadd.f32 0.0, %v3532
    %v3534 = vpop.f32.mrf.mxu0
    %3535 = vmatprep.mubr.f32.mxu0 0.0
    %3536 = vmatmul.mubr.f32.gmra.mxu0 %v3408
    %v3537 = vpop.f32.mrf.mxu0
    %v3538 = vadd.f32 0.0, %v3537
    %v3539 = vpop.f32.mrf.mxu0
    %3540 = vmatprep.mubr.f32.mxu0 0.0
    %3541 = vmatmul.mubr.f32.gmra.mxu0 %v3411
    %v3542 = vpop.f32.mrf.mxu0
    %v3543 = vadd.f32 0.0, %v3542
    %v3544 = vpop.f32.mrf.mxu0
    %3545 = vmatprep.mubr.f32.mxu0 0.0
    %3546 = vmatmul.mubr.f32.gmra.mxu0 %v3414
    %v3547 = vpop.f32.mrf.mxu0
    %v3548 = vadd.f32 0.0, %v3547
    %v3549 = vpop.f32.mrf.mxu0
    %3550 = vmatprep.mubr.f32.mxu0 0.0
    %3551 = vmatmul.mubr.f32.gmra.mxu0 %v3417
    %v3552 = vpop.f32.mrf.mxu0
    %v3553 = vadd.f32 0.0, %v3552
    %v3554 = vpop.f32.mrf.mxu0
    %3555 = vmatprep.mubr.f32.mxu0 0.0
    %3556 = vmatmul.mubr.f32.gmra.mxu0 %v3420
    %v3557 = vpop.f32.mrf.mxu0
    %v3558 = vadd.f32 0.0, %v3557
    %v3559 = vpop.f32.mrf.mxu0
    %3560 = vmatprep.mubr.f32.mxu0 0.0
    %3561 = vmatmul.mubr.f32.gmra.mxu0 %v3423
    %v3562 = vpop.f32.mrf.mxu0
    %v3563 = vadd.f32 0.0, %v3562
    %v3564 = vpop.f32.mrf.mxu0
    %3565 = vmatprep.mubr.f32.mxu0 0.0
    %3566 = vmatmul.mubr.f32.gmra.mxu0 %v3426
    %v3567 = vpop.f32.mrf.mxu0
    %v3568 = vadd.f32 0.0, %v3567
    %v3569 = vpop.f32.mrf.mxu0
    %3570 = vmatprep.mubr.f32.mxu0 0.0
    %3571 = vmatmul.mubr.f32.gmra.mxu0 %v3429
    %v3572 = vpop.f32.mrf.mxu0
    %v3573 = vadd.f32 0.0, %v3572
    %v3574 = vpop.f32.mrf.mxu0
    %3575 = vdwg.mxu0
    %v3577 = vsel %vm3382, %v169, 0
    %v3580 = vsel %vm3382, %v273, 0
    %v3583 = vsel %vm3382, %v377, 0
    %v3586 = vsel %vm3382, %v481, 0
    %v3589 = vsel %vm3382, %v585, 0
    %v3592 = vsel %vm3382, %v689, 0
    %v3595 = vsel %vm3382, %v793, 0
    %v3598 = vsel %vm3382, %v897, 0
    %v3601 = vsel %vm3382, %v1001, 0
    %v3604 = vsel %vm3382, %v1105, 0
    %v3607 = vsel %vm3382, %v1209, 0
    %v3610 = vsel %vm3382, %v1313, 0
    %v3613 = vsel %vm3382, %v1417, 0
    %v3616 = vsel %vm3382, %v1521, 0
    %v3619 = vsel %vm3382, %v1625, 0
    %v3622 = vsel %vm3382, %v1729, 0
    %3624 = vmatprep.subr.mxu0 0.0
    %3625 = vmatpush1.msra.mxu0 0.0
    %3626 = vmatprep.subr.mxu0 0.0
    %3627 = vmatpush1.msra.mxu0 0.0
    %3628 = vmatprep.subr.mxu0 0.0
    %3629 = vmatpush1.msra.mxu0 0.0
    %3630 = vmatprep.subr.mxu0 0.0
    %3631 = vmatpush1.msra.mxu0 0.0
    %3632 = vmatprep.subr.mxu0 0.0
    %3633 = vmatpush1.msra.mxu0 0.0
    %3634 = vmatprep.subr.mxu0 0.0
    %3635 = vmatpush1.msra.mxu0 0.0
    %3636 = vmatprep.subr.mxu0 0.0
    %3637 = vmatpush1.msra.mxu0 0.0
    %3638 = vmatprep.subr.mxu0 0.0
    %3639 = vmatpush1.msra.mxu0 0.0
    %3640 = vmatprep.subr.mxu0 0.0
    %3641 = vmatpush1.msra.mxu0 0.0
    %3642 = vmatprep.subr.mxu0 0.0
    %3643 = vmatpush1.msra.mxu0 0.0
    %3644 = vmatprep.subr.mxu0 0.0
    %3645 = vmatpush1.msra.mxu0 0.0
    %3646 = vmatprep.subr.mxu0 0.0
    %3647 = vmatpush1.msra.mxu0 0.0
    %3648 = vmatprep.subr.mxu0 0.0
    %3649 = vmatpush1.msra.mxu0 0.0
    %3650 = vmatprep.subr.mxu0 0.0
    %3651 = vmatpush1.msra.mxu0 0.0
    %3652 = vmatprep.subr.mxu0 0.0
    %3653 = vmatpush1.msra.mxu0 %v3379
    %3654 = vmatprep.subr.mxu0 0.0
    %3655 = vmatpush1.msra.mxu0 %v3378
    %3656 = vmatprep.subr.mxu0 0.0
    %3657 = vmatpush2.msra.mxu0 0.0
    %3658 = vmatprep.subr.mxu0 0.0
    %3659 = vmatpush2.msra.mxu0 0.0
    %3660 = vmatprep.subr.mxu0 0.0
    %3661 = vmatpush2.msra.mxu0 0.0
    %3662 = vmatprep.subr.mxu0 0.0
    %3663 = vmatpush2.msra.mxu0 0.0
    %3664 = vmatprep.subr.mxu0 0.0
    %3665 = vmatpush2.msra.mxu0 0.0
    %3666 = vmatprep.subr.mxu0 0.0
    %3667 = vmatpush2.msra.mxu0 0.0
    %3668 = vmatprep.subr.mxu0 0.0
    %3669 = vmatpush2.msra.mxu0 0.0
    %3670 = vmatprep.subr.mxu0 0.0
    %3671 = vmatpush2.msra.mxu0 0.0
    %3672 = vmatprep.subr.mxu0 0.0
    %3673 = vmatpush2.msra.mxu0 0.0
    %3674 = vmatprep.subr.mxu0 0.0
    %3675 = vmatpush2.msra.mxu0 0.0
    %3676 = vmatprep.subr.mxu0 0.0
    %3677 = vmatpush2.msra.mxu0 0.0
    %3678 = vmatprep.subr.mxu0 0.0
    %3679 = vmatpush2.msra.mxu0 0.0
    %3680 = vmatprep.subr.mxu0 0.0
    %3681 = vmatpush2.msra.mxu0 0.0
    %3682 = vmatprep.subr.mxu0 0.0
    %3683 = vmatpush2.msra.mxu0 0.0
    %3684 = vmatprep.subr.mxu0 0.0
    %3685 = vmatpush2.msra.mxu0 0.0
    %3686 = vmatprep.subr.mxu0 0.0
    %3687 = vmatpush2.msra.mxu0 0.0
    %3688 = vmatprep.mubr.f32.mxu0 0.0
    %3689 = vmatmul.mubr.f32.gmra.mxu0 %v3577
    %v3690 = vpop.f32.mrf.mxu0
    %v3691 = vadd.f32 %v3498, %v3690
    %v3692 = vpop.f32.mrf.mxu0
    %3693 = vmatprep.mubr.f32.mxu0 0.0
    %3694 = vmatmul.mubr.f32.gmra.mxu0 %v3580
    %v3695 = vpop.f32.mrf.mxu0
    %v3696 = vadd.f32 %v3503, %v3695
    %v3697 = vpop.f32.mrf.mxu0
    %3698 = vmatprep.mubr.f32.mxu0 0.0
    %3699 = vmatmul.mubr.f32.gmra.mxu0 %v3583
    %v3700 = vpop.f32.mrf.mxu0
    %v3701 = vadd.f32 %v3508, %v3700
    %v3702 = vpop.f32.mrf.mxu0
    %3703 = vmatprep.mubr.f32.mxu0 0.0
    %3704 = vmatmul.mubr.f32.gmra.mxu0 %v3586
    %v3705 = vpop.f32.mrf.mxu0
    %v3706 = vadd.f32 %v3513, %v3705
    %v3707 = vpop.f32.mrf.mxu0
    %3708 = vmatprep.mubr.f32.mxu0 0.0
    %3709 = vmatmul.mubr.f32.gmra.mxu0 %v3589
    %v3710 = vpop.f32.mrf.mxu0
    %v3711 = vadd.f32 %v3518, %v3710
    %v3712 = vpop.f32.mrf.mxu0
    %3713 = vmatprep.mubr.f32.mxu0 0.0
    %3714 = vmatmul.mubr.f32.gmra.mxu0 %v3592
    %v3715 = vpop.f32.mrf.mxu0
    %v3716 = vadd.f32 %v3523, %v3715
    %v3717 = vpop.f32.mrf.mxu0
    %3718 = vmatprep.mubr.f32.mxu0 0.0
    %3719 = vmatmul.mubr.f32.gmra.mxu0 %v3595
    %v3720 = vpop.f32.mrf.mxu0
    %v3721 = vadd.f32 %v3528, %v3720
    %v3722 = vpop.f32.mrf.mxu0
    %3723 = vmatprep.mubr.f32.mxu0 0.0
    %3724 = vmatmul.mubr.f32.gmra.mxu0 %v3598
    %v3725 = vpop.f32.mrf.mxu0
    %v3726 = vadd.f32 %v3533, %v3725
    %v3727 = vpop.f32.mrf.mxu0
    %3728 = vmatprep.mubr.f32.mxu0 0.0
    %3729 = vmatmul.mubr.f32.gmra.mxu0 %v3601
    %v3730 = vpop.f32.mrf.mxu0
    %v3731 = vadd.f32 %v3538, %v3730
    %v3732 = vpop.f32.mrf.mxu0
    %3733 = vmatprep.mubr.f32.mxu0 0.0
    %3734 = vmatmul.mubr.f32.gmra.mxu0 %v3604
    %v3735 = vpop.f32.mrf.mxu0
    %v3736 = vadd.f32 %v3543, %v3735
    %v3737 = vpop.f32.mrf.mxu0
    %3738 = vmatprep.mubr.f32.mxu0 0.0
    %3739 = vmatmul.mubr.f32.gmra.mxu0 %v3607
    %v3740 = vpop.f32.mrf.mxu0
    %v3741 = vadd.f32 %v3548, %v3740
    %v3742 = vpop.f32.mrf.mxu0
    %3743 = vmatprep.mubr.f32.mxu0 0.0
    %3744 = vmatmul.mubr.f32.gmra.mxu0 %v3610
    %v3745 = vpop.f32.mrf.mxu0
    %v3746 = vadd.f32 %v3553, %v3745
    %v3747 = vpop.f32.mrf.mxu0
    %3748 = vmatprep.mubr.f32.mxu0 0.0
    %3749 = vmatmul.mubr.f32.gmra.mxu0 %v3613
    %v3750 = vpop.f32.mrf.mxu0
    %v3751 = vadd.f32 %v3558, %v3750
    %v3752 = vpop.f32.mrf.mxu0
    %3753 = vmatprep.mubr.f32.mxu0 0.0
    %3754 = vmatmul.mubr.f32.gmra.mxu0 %v3616
    %v3755 = vpop.f32.mrf.mxu0
    %v3756 = vadd.f32 %v3563, %v3755
    %v3757 = vpop.f32.mrf.mxu0
    %3758 = vmatprep.mubr.f32.mxu0 0.0
    %3759 = vmatmul.mubr.f32.gmra.mxu0 %v3619
    %v3760 = vpop.f32.mrf.mxu0
    %v3761 = vadd.f32 %v3568, %v3760
    %v3762 = vpop.f32.mrf.mxu0
    %3763 = vmatprep.mubr.f32.mxu0 0.0
    %3764 = vmatmul.mubr.f32.gmra.mxu0 %v3622
    %v3765 = vpop.f32.mrf.mxu0
    %v3766 = vadd.f32 %v3573, %v3765
    %v3767 = vpop.f32.mrf.mxu0
    %3768 = vdwg.mxu0
    %v3769 = vld [vmem:[%s3] sm:$0x1]
    %v3771 = vlaneseq
    %v3772 = vshrl.u32 %v3771, 7
    %v3773 = vsub.s32 0, %v3772
    %v3774 = vrot.slane %v3769, %v3773
    %v3776 = vadd.f32 %v3691, %v3774
    %v3777 = vadd.f32 %v3696, %v3774
    %v3778 = vadd.f32 %v3701, %v3774
    %v3779 = vadd.f32 %v3706, %v3774
    %v3780 = vadd.f32 %v3711, %v3774
    %v3781 = vadd.f32 %v3716, %v3774
    %v3782 = vadd.f32 %v3721, %v3774
    %v3783 = vadd.f32 %v3726, %v3774
    %v3784 = vadd.f32 %v3731, %v3774
    %v3785 = vadd.f32 %v3736, %v3774
    %v3786 = vadd.f32 %v3741, %v3774
    %v3787 = vadd.f32 %v3746, %v3774
    %v3788 = vadd.f32 %v3751, %v3774
    %v3789 = vadd.f32 %v3756, %v3774
    %v3790 = vadd.f32 %v3761, %v3774
    %v3791 = vadd.f32 %v3766, %v3774
    %v3792 = vand.u32 2147483647, %v3776
    %vm3793 = vcmp.le.f32.partialorder %v3792, 0.7853982
    %vm3794 = vcmp.lt.s32.totalorder %v3776, 0
    %v3795 = vand.u32 %v3776, 2139095040
    %v3796 = vshrl.u32 %v3795, 23
    %v3797 = vsub.s32 %v3796, 127
    %v3798 = vand.u32 2147483647, %v3776
    %v3799 = vand.u32 %v3798, 8388607
    %v3800 = vor.u32 %v3799, 8388608
    %v3801 = vsub.s32 0, %v3800
    %v3802 = vadd.s32 %v3797, 1
    %vm3803 = vcmp.gt.s32.totalorder %v3802, 0
    %v3804 = vsel %vm3803, %v3802, 0
    %v3805 = vshrl.u32 %v3804, 5
    %v3806 = vand.u32 %v3804, 31
    %v3807 = vsub.s32 32, %v3806
    %v3808 = vshrl.u32 683565275, %v3807
    %v3809 = vshll.u32 683565275, %v3806
    %v3810 = vshrl.u32 2475754826, %v3807
    %v3811 = vor.u32 %v3809, %v3810
    %v3812 = vshll.u32 2475754826, %v3806
    %v3813 = vshrl.u32 2131351028, %v3807
    %v3814 = vor.u32 %v3812, %v3813
    %v3815 = vshll.u32 2131351028, %v3806
    %v3816 = vshrl.u32 2102212464, %v3807
    %v3817 = vor.u32 %v3815, %v3816
    %v3818 = vshll.u32 2102212464, %v3806
    %v3819 = vshrl.u32 920167782, %v3807
    %v3820 = vor.u32 %v3818, %v3819
    %v3821 = vshll.u32 920167782, %v3806
    %v3822 = vshrl.u32 1326507024, %v3807
    %v3823 = vor.u32 %v3821, %v3822
    %vm3824 = vcmp.lt.s32.totalorder %v3805, 1
    %vm3825 = vcmp.lt.s32.totalorder %v3805, 2
    %vm3826 = vcmp.lt.s32.totalorder %v3805, 3
    %vm3827 = vcmp.lt.s32.totalorder %v3805, 4
    %v3828 = vsel %vm3824, %v3808, %v3811
    %v3829 = vsel %vm3827, %v3817, 2102212464
    %v3830 = vsel %vm3826, %v3814, %v3829
    %v3831 = vsel %vm3825, %v3828, %v3830
    %v3832 = vsel %vm3824, %v3811, %v3814
    %v3833 = vsel %vm3827, %v3820, 920167782
    %v3834 = vsel %vm3826, %v3817, %v3833
    %v3835 = vsel %vm3825, %v3832, %v3834
    %v3836 = vsel %vm3824, %v3814, %v3817
    %v3837 = vsel %vm3827, %v3823, 1326507024
    %v3838 = vsel %vm3826, %v3820, %v3837
    %v3839 = vsel %vm3825, %v3836, %v3838
    %v3840 = vshll.u32 %v3800, 8
    %v3841 = vmul.u32.u64.compose %v3840, %v3839
    %v3842 = vextract.low.u32 %v3841
    %v3843 = vextract.high.u32 %v3841
    %v3844 = vmul.u32.u64.compose %v3840, %v3835
    %v3845 = vextract.low.u32 %v3844
    %v3846 = vextract.high.u32 %v3844
    %v3847 = vmul.u32 %v3840, %v3831
    %v3848 = vadd.s32 %v3843, %v3845
    %vm3849 = vc.u32 %v3843, %v3845
    %v3850 = vadd.s32 %v3846, 1
    %v3851 = vsel %vm3849, %v3850, %v3846
    %v3852 = vadd.s32 %v3847, %v3851
    %v3853 = vadd.s32 %v3852, 536870912
    %v3854 = vshrl.u32 %v3853, 30
    %v3855 = vshll.u32 %v3854, 30
    %v3856 = vsub.s32 %v3852, %v3855
    %vm3857 = vcmp.lt.s32.totalorder %v3856, 0
    %v3858 = vsub.s32 0, %v3856
    %v3859 = vsel %vm3857, %v3858, %v3856
    %v3860 = vclz %v3859
    %v3861 = vsub.s32 %v3860, 2
    %vm3862 = vcmp.gt.s32.totalorder 0, %v3861
    %v3863 = vsel %vm3862, 0, %v3861
    %v3864 = vsub.s32 32, %v3863
    %v3865 = vshll.u32 %v3856, %v3863
    %v3866 = vshrl.u32 %v3848, %v3864
    %v3867 = vor.u32 %v3865, %v3866
    %v3868 = vsub.s32 4294967266, %v3863
    %v3869 = vadd.s32 %v3868, 127
    %v3870 = vshll.u32 %v3869, 23
    %v3871 = vor.u32 4788187, %v3870
    %v3872 = vand.u32 2147483647, %v3871
    %v3874 = vcvt.s32.f32 %v3867
    %v3875 = vmul.f32 %v3874, %v3872
    %v3876 = vxor.u32 %v3875, 2147483648
    %v3877 = vsel %vm3794, %v3876, %v3875
    %v3878 = vsub.s32 4, %v3854
    %v3879 = vsel %vm3794, %v3878, %v3854
    %v3880 = vsel %vm3793, %v3776, %v3877
    %v3881 = vsel %vm3793, 0, %v3879
    %v3882 = vcosq.f32.pop %v3880
    %v3883 = vsinq.f32.pop %v3880
    %vm3884 = vweird.f32 %v3776
    %v3885 = vadd.s32 %v3881, 3
    %v3886 = vand.u32 %v3885, 3
    %vm3887 = vcmp.lt.s32.totalorder %v3886, 2
    %vm3888 = vcmp.eq.s32.totalorder %v3886, 0
    %v3889 = vxor.u32 %v3883, 2147483648
    %v3890 = vsel %vm3888, %v3882, %v3889
    %vm3891 = vcmp.eq.s32.totalorder %v3886, 2
    %v3892 = vxor.u32 %v3882, 2147483648
    %v3893 = vsel %vm3891, %v3892, %v3883
    %v3894 = vsel %vm3887, %v3890, %v3893
    %v3895 = vsel %vm3884, nan, %v3894
    %v3896 = vand.u32 2147483647, %v3777
    %vm3897 = vcmp.le.f32.partialorder %v3896, 0.7853982
    %vm3898 = vcmp.lt.s32.totalorder %v3777, 0
    %v3899 = vand.u32 %v3777, 2139095040
    %v3900 = vshrl.u32 %v3899, 23
    %v3901 = vsub.s32 %v3900, 127
    %v3902 = vand.u32 2147483647, %v3777
    %v3903 = vand.u32 %v3902, 8388607
    %v3904 = vor.u32 %v3903, 8388608
    %v3905 = vsub.s32 0, %v3904
    %v3906 = vadd.s32 %v3901, 1
    %vm3907 = vcmp.gt.s32.totalorder %v3906, 0
    %v3908 = vsel %vm3907, %v3906, 0
    %v3909 = vshrl.u32 %v3908, 5
    %v3910 = vand.u32 %v3908, 31
    %v3911 = vsub.s32 32, %v3910
    %v3912 = vshrl.u32 683565275, %v3911
    %v3913 = vshll.u32 683565275, %v3910
    %v3914 = vshrl.u32 2475754826, %v3911
    %v3915 = vor.u32 %v3913, %v3914
    %v3916 = vshll.u32 2475754826, %v3910
    %v3917 = vshrl.u32 2131351028, %v3911
    %v3918 = vor.u32 %v3916, %v3917
    %v3919 = vshll.u32 2131351028, %v3910
    %v3920 = vshrl.u32 2102212464, %v3911
    %v3921 = vor.u32 %v3919, %v3920
    %v3922 = vshll.u32 2102212464, %v3910
    %v3923 = vshrl.u32 920167782, %v3911
    %v3924 = vor.u32 %v3922, %v3923
    %v3925 = vshll.u32 920167782, %v3910
    %v3926 = vshrl.u32 1326507024, %v3911
    %v3927 = vor.u32 %v3925, %v3926
    %vm3928 = vcmp.lt.s32.totalorder %v3909, 1
    %vm3929 = vcmp.lt.s32.totalorder %v3909, 2
    %vm3930 = vcmp.lt.s32.totalorder %v3909, 3
    %vm3931 = vcmp.lt.s32.totalorder %v3909, 4
    %v3932 = vsel %vm3928, %v3912, %v3915
    %v3933 = vsel %vm3931, %v3921, 2102212464
    %v3934 = vsel %vm3930, %v3918, %v3933
    %v3935 = vsel %vm3929, %v3932, %v3934
    %v3936 = vsel %vm3928, %v3915, %v3918
    %v3937 = vsel %vm3931, %v3924, 920167782
    %v3938 = vsel %vm3930, %v3921, %v3937
    %v3939 = vsel %vm3929, %v3936, %v3938
    %v3940 = vsel %vm3928, %v3918, %v3921
    %v3941 = vsel %vm3931, %v3927, 1326507024
    %v3942 = vsel %vm3930, %v3924, %v3941
    %v3943 = vsel %vm3929, %v3940, %v3942
    %v3944 = vshll.u32 %v3904, 8
    %v3945 = vmul.u32.u64.compose %v3944, %v3943
    %v3946 = vextract.low.u32 %v3945
    %v3947 = vextract.high.u32 %v3945
    %v3948 = vmul.u32.u64.compose %v3944, %v3939
    %v3949 = vextract.low.u32 %v3948
    %v3950 = vextract.high.u32 %v3948
    %v3951 = vmul.u32 %v3944, %v3935
    %v3952 = vadd.s32 %v3947, %v3949
    %vm3953 = vc.u32 %v3947, %v3949
    %v3954 = vadd.s32 %v3950, 1
    %v3955 = vsel %vm3953, %v3954, %v3950
    %v3956 = vadd.s32 %v3951, %v3955
    %v3957 = vadd.s32 %v3956, 536870912
    %v3958 = vshrl.u32 %v3957, 30
    %v3959 = vshll.u32 %v3958, 30
    %v3960 = vsub.s32 %v3956, %v3959
    %vm3961 = vcmp.lt.s32.totalorder %v3960, 0
    %v3962 = vsub.s32 0, %v3960
    %v3963 = vsel %vm3961, %v3962, %v3960
    %v3964 = vclz %v3963
    %v3965 = vsub.s32 %v3964, 2
    %vm3966 = vcmp.gt.s32.totalorder 0, %v3965
    %v3967 = vsel %vm3966, 0, %v3965
    %v3968 = vsub.s32 32, %v3967
    %v3969 = vshll.u32 %v3960, %v3967
    %v3970 = vshrl.u32 %v3952, %v3968
    %v3971 = vor.u32 %v3969, %v3970
    %v3972 = vsub.s32 4294967266, %v3967
    %v3973 = vadd.s32 %v3972, 127
    %v3974 = vshll.u32 %v3973, 23
    %v3975 = vor.u32 4788187, %v3974
    %v3976 = vand.u32 2147483647, %v3975
    %v3978 = vcvt.s32.f32 %v3971
    %v3979 = vmul.f32 %v3978, %v3976
    %v3980 = vxor.u32 %v3979, 2147483648
    %v3981 = vsel %vm3898, %v3980, %v3979
    %v3982 = vsub.s32 4, %v3958
    %v3983 = vsel %vm3898, %v3982, %v3958
    %v3984 = vsel %vm3897, %v3777, %v3981
    %v3985 = vsel %vm3897, 0, %v3983
    %v3986 = vcosq.f32.pop %v3984
    %v3987 = vsinq.f32.pop %v3984
    %vm3988 = vweird.f32 %v3777
    %v3989 = vadd.s32 %v3985, 3
    %v3990 = vand.u32 %v3989, 3
    %vm3991 = vcmp.lt.s32.totalorder %v3990, 2
    %vm3992 = vcmp.eq.s32.totalorder %v3990, 0
    %v3993 = vxor.u32 %v3987, 2147483648
    %v3994 = vsel %vm3992, %v3986, %v3993
    %vm3995 = vcmp.eq.s32.totalorder %v3990, 2
    %v3996 = vxor.u32 %v3986, 2147483648
    %v3997 = vsel %vm3995, %v3996, %v3987
    %v3998 = vsel %vm3991, %v3994, %v3997
    %v3999 = vsel %vm3988, nan, %v3998
    %v4000 = vand.u32 2147483647, %v3778
    %vm4001 = vcmp.le.f32.partialorder %v4000, 0.7853982
    %vm4002 = vcmp.lt.s32.totalorder %v3778, 0
    %v4003 = vand.u32 %v3778, 2139095040
    %v4004 = vshrl.u32 %v4003, 23
    %v4005 = vsub.s32 %v4004, 127
    %v4006 = vand.u32 2147483647, %v3778
    %v4007 = vand.u32 %v4006, 8388607
    %v4008 = vor.u32 %v4007, 8388608
    %v4009 = vsub.s32 0, %v4008
    %v4010 = vadd.s32 %v4005, 1
    %vm4011 = vcmp.gt.s32.totalorder %v4010, 0
    %v4012 = vsel %vm4011, %v4010, 0
    %v4013 = vshrl.u32 %v4012, 5
    %v4014 = vand.u32 %v4012, 31
    %v4015 = vsub.s32 32, %v4014
    %v4016 = vshrl.u32 683565275, %v4015
    %v4017 = vshll.u32 683565275, %v4014
    %v4018 = vshrl.u32 2475754826, %v4015
    %v4019 = vor.u32 %v4017, %v4018
    %v4020 = vshll.u32 2475754826, %v4014
    %v4021 = vshrl.u32 2131351028, %v4015
    %v4022 = vor.u32 %v4020, %v4021
    %v4023 = vshll.u32 2131351028, %v4014
    %v4024 = vshrl.u32 2102212464, %v4015
    %v4025 = vor.u32 %v4023, %v4024
    %v4026 = vshll.u32 2102212464, %v4014
    %v4027 = vshrl.u32 920167782, %v4015
    %v4028 = vor.u32 %v4026, %v4027
    %v4029 = vshll.u32 920167782, %v4014
    %v4030 = vshrl.u32 1326507024, %v4015
    %v4031 = vor.u32 %v4029, %v4030
    %vm4032 = vcmp.lt.s32.totalorder %v4013, 1
    %vm4033 = vcmp.lt.s32.totalorder %v4013, 2
    %vm4034 = vcmp.lt.s32.totalorder %v4013, 3
    %vm4035 = vcmp.lt.s32.totalorder %v4013, 4
    %v4036 = vsel %vm4032, %v4016, %v4019
    %v4037 = vsel %vm4035, %v4025, 2102212464
    %v4038 = vsel %vm4034, %v4022, %v4037
    %v4039 = vsel %vm4033, %v4036, %v4038
    %v4040 = vsel %vm4032, %v4019, %v4022
    %v4041 = vsel %vm4035, %v4028, 920167782
    %v4042 = vsel %vm4034, %v4025, %v4041
    %v4043 = vsel %vm4033, %v4040, %v4042
    %v4044 = vsel %vm4032, %v4022, %v4025
    %v4045 = vsel %vm4035, %v4031, 1326507024
    %v4046 = vsel %vm4034, %v4028, %v4045
    %v4047 = vsel %vm4033, %v4044, %v4046
    %v4048 = vshll.u32 %v4008, 8
    %v4049 = vmul.u32.u64.compose %v4048, %v4047
    %v4050 = vextract.low.u32 %v4049
    %v4051 = vextract.high.u32 %v4049
    %v4052 = vmul.u32.u64.compose %v4048, %v4043
    %v4053 = vextract.low.u32 %v4052
    %v4054 = vextract.high.u32 %v4052
    %v4055 = vmul.u32 %v4048, %v4039
    %v4056 = vadd.s32 %v4051, %v4053
    %vm4057 = vc.u32 %v4051, %v4053
    %v4058 = vadd.s32 %v4054, 1
    %v4059 = vsel %vm4057, %v4058, %v4054
    %v4060 = vadd.s32 %v4055, %v4059
    %v4061 = vadd.s32 %v4060, 536870912
    %v4062 = vshrl.u32 %v4061, 30
    %v4063 = vshll.u32 %v4062, 30
    %v4064 = vsub.s32 %v4060, %v4063
    %vm4065 = vcmp.lt.s32.totalorder %v4064, 0
    %v4066 = vsub.s32 0, %v4064
    %v4067 = vsel %vm4065, %v4066, %v4064
    %v4068 = vclz %v4067
    %v4069 = vsub.s32 %v4068, 2
    %vm4070 = vcmp.gt.s32.totalorder 0, %v4069
    %v4071 = vsel %vm4070, 0, %v4069
    %v4072 = vsub.s32 32, %v4071
    %v4073 = vshll.u32 %v4064, %v4071
    %v4074 = vshrl.u32 %v4056, %v4072
    %v4075 = vor.u32 %v4073, %v4074
    %v4076 = vsub.s32 4294967266, %v4071
    %v4077 = vadd.s32 %v4076, 127
    %v4078 = vshll.u32 %v4077, 23
    %v4079 = vor.u32 4788187, %v4078
    %v4080 = vand.u32 2147483647, %v4079
    %v4082 = vcvt.s32.f32 %v4075
    %v4083 = vmul.f32 %v4082, %v4080
    %v4084 = vxor.u32 %v4083, 2147483648
    %v4085 = vsel %vm4002, %v4084, %v4083
    %v4086 = vsub.s32 4, %v4062
    %v4087 = vsel %vm4002, %v4086, %v4062
    %v4088 = vsel %vm4001, %v3778, %v4085
    %v4089 = vsel %vm4001, 0, %v4087
    %v4090 = vcosq.f32.pop %v4088
    %v4091 = vsinq.f32.pop %v4088
    %vm4092 = vweird.f32 %v3778
    %v4093 = vadd.s32 %v4089, 3
    %v4094 = vand.u32 %v4093, 3
    %vm4095 = vcmp.lt.s32.totalorder %v4094, 2
    %vm4096 = vcmp.eq.s32.totalorder %v4094, 0
    %v4097 = vxor.u32 %v4091, 2147483648
    %v4098 = vsel %vm4096, %v4090, %v4097
    %vm4099 = vcmp.eq.s32.totalorder %v4094, 2
    %v4100 = vxor.u32 %v4090, 2147483648
    %v4101 = vsel %vm4099, %v4100, %v4091
    %v4102 = vsel %vm4095, %v4098, %v4101
    %v4103 = vsel %vm4092, nan, %v4102
    %v4104 = vand.u32 2147483647, %v3779
    %vm4105 = vcmp.le.f32.partialorder %v4104, 0.7853982
    %vm4106 = vcmp.lt.s32.totalorder %v3779, 0
    %v4107 = vand.u32 %v3779, 2139095040
    %v4108 = vshrl.u32 %v4107, 23
    %v4109 = vsub.s32 %v4108, 127
    %v4110 = vand.u32 2147483647, %v3779
    %v4111 = vand.u32 %v4110, 8388607
    %v4112 = vor.u32 %v4111, 8388608
    %v4113 = vsub.s32 0, %v4112
    %v4114 = vadd.s32 %v4109, 1
    %vm4115 = vcmp.gt.s32.totalorder %v4114, 0
    %v4116 = vsel %vm4115, %v4114, 0
    %v4117 = vshrl.u32 %v4116, 5
    %v4118 = vand.u32 %v4116, 31
    %v4119 = vsub.s32 32, %v4118
    %v4120 = vshrl.u32 683565275, %v4119
    %v4121 = vshll.u32 683565275, %v4118
    %v4122 = vshrl.u32 2475754826, %v4119
    %v4123 = vor.u32 %v4121, %v4122
    %v4124 = vshll.u32 2475754826, %v4118
    %v4125 = vshrl.u32 2131351028, %v4119
    %v4126 = vor.u32 %v4124, %v4125
    %v4127 = vshll.u32 2131351028, %v4118
    %v4128 = vshrl.u32 2102212464, %v4119
    %v4129 = vor.u32 %v4127, %v4128
    %v4130 = vshll.u32 2102212464, %v4118
    %v4131 = vshrl.u32 920167782, %v4119
    %v4132 = vor.u32 %v4130, %v4131
    %v4133 = vshll.u32 920167782, %v4118
    %v4134 = vshrl.u32 1326507024, %v4119
    %v4135 = vor.u32 %v4133, %v4134
    %vm4136 = vcmp.lt.s32.totalorder %v4117, 1
    %vm4137 = vcmp.lt.s32.totalorder %v4117, 2
    %vm4138 = vcmp.lt.s32.totalorder %v4117, 3
    %vm4139 = vcmp.lt.s32.totalorder %v4117, 4
    %v4140 = vsel %vm4136, %v4120, %v4123
    %v4141 = vsel %vm4139, %v4129, 2102212464
    %v4142 = vsel %vm4138, %v4126, %v4141
    %v4143 = vsel %vm4137, %v4140, %v4142
    %v4144 = vsel %vm4136, %v4123, %v4126
    %v4145 = vsel %vm4139, %v4132, 920167782
    %v4146 = vsel %vm4138, %v4129, %v4145
    %v4147 = vsel %vm4137, %v4144, %v4146
    %v4148 = vsel %vm4136, %v4126, %v4129
    %v4149 = vsel %vm4139, %v4135, 1326507024
    %v4150 = vsel %vm4138, %v4132, %v4149
    %v4151 = vsel %vm4137, %v4148, %v4150
    %v4152 = vshll.u32 %v4112, 8
    %v4153 = vmul.u32.u64.compose %v4152, %v4151
    %v4154 = vextract.low.u32 %v4153
    %v4155 = vextract.high.u32 %v4153
    %v4156 = vmul.u32.u64.compose %v4152, %v4147
    %v4157 = vextract.low.u32 %v4156
    %v4158 = vextract.high.u32 %v4156
    %v4159 = vmul.u32 %v4152, %v4143
    %v4160 = vadd.s32 %v4155, %v4157
    %vm4161 = vc.u32 %v4155, %v4157
    %v4162 = vadd.s32 %v4158, 1
    %v4163 = vsel %vm4161, %v4162, %v4158
    %v4164 = vadd.s32 %v4159, %v4163
    %v4165 = vadd.s32 %v4164, 536870912
    %v4166 = vshrl.u32 %v4165, 30
    %v4167 = vshll.u32 %v4166, 30
    %v4168 = vsub.s32 %v4164, %v4167
    %vm4169 = vcmp.lt.s32.totalorder %v4168, 0
    %v4170 = vsub.s32 0, %v4168
    %v4171 = vsel %vm4169, %v4170, %v4168
    %v4172 = vclz %v4171
    %v4173 = vsub.s32 %v4172, 2
    %vm4174 = vcmp.gt.s32.totalorder 0, %v4173
    %v4175 = vsel %vm4174, 0, %v4173
    %v4176 = vsub.s32 32, %v4175
    %v4177 = vshll.u32 %v4168, %v4175
    %v4178 = vshrl.u32 %v4160, %v4176
    %v4179 = vor.u32 %v4177, %v4178
    %v4180 = vsub.s32 4294967266, %v4175
    %v4181 = vadd.s32 %v4180, 127
    %v4182 = vshll.u32 %v4181, 23
    %v4183 = vor.u32 4788187, %v4182
    %v4184 = vand.u32 2147483647, %v4183
    %v4186 = vcvt.s32.f32 %v4179
    %v4187 = vmul.f32 %v4186, %v4184
    %v4188 = vxor.u32 %v4187, 2147483648
    %v4189 = vsel %vm4106, %v4188, %v4187
    %v4190 = vsub.s32 4, %v4166
    %v4191 = vsel %vm4106, %v4190, %v4166
    %v4192 = vsel %vm4105, %v3779, %v4189
    %v4193 = vsel %vm4105, 0, %v4191
    %v4194 = vcosq.f32.pop %v4192
    %v4195 = vsinq.f32.pop %v4192
    %vm4196 = vweird.f32 %v3779
    %v4197 = vadd.s32 %v4193, 3
    %v4198 = vand.u32 %v4197, 3
    %vm4199 = vcmp.lt.s32.totalorder %v4198, 2
    %vm4200 = vcmp.eq.s32.totalorder %v4198, 0
    %v4201 = vxor.u32 %v4195, 2147483648
    %v4202 = vsel %vm4200, %v4194, %v4201
    %vm4203 = vcmp.eq.s32.totalorder %v4198, 2
    %v4204 = vxor.u32 %v4194, 2147483648
    %v4205 = vsel %vm4203, %v4204, %v4195
    %v4206 = vsel %vm4199, %v4202, %v4205
    %v4207 = vsel %vm4196, nan, %v4206
    %v4208 = vand.u32 2147483647, %v3780
    %vm4209 = vcmp.le.f32.partialorder %v4208, 0.7853982
    %vm4210 = vcmp.lt.s32.totalorder %v3780, 0
    %v4211 = vand.u32 %v3780, 2139095040
    %v4212 = vshrl.u32 %v4211, 23
    %v4213 = vsub.s32 %v4212, 127
    %v4214 = vand.u32 2147483647, %v3780
    %v4215 = vand.u32 %v4214, 8388607
    %v4216 = vor.u32 %v4215, 8388608
    %v4217 = vsub.s32 0, %v4216
    %v4218 = vadd.s32 %v4213, 1
    %vm4219 = vcmp.gt.s32.totalorder %v4218, 0
    %v4220 = vsel %vm4219, %v4218, 0
    %v4221 = vshrl.u32 %v4220, 5
    %v4222 = vand.u32 %v4220, 31
    %v4223 = vsub.s32 32, %v4222
    %v4224 = vshrl.u32 683565275, %v4223
    %v4225 = vshll.u32 683565275, %v4222
    %v4226 = vshrl.u32 2475754826, %v4223
    %v4227 = vor.u32 %v4225, %v4226
    %v4228 = vshll.u32 2475754826, %v4222
    %v4229 = vshrl.u32 2131351028, %v4223
    %v4230 = vor.u32 %v4228, %v4229
    %v4231 = vshll.u32 2131351028, %v4222
    %v4232 = vshrl.u32 2102212464, %v4223
    %v4233 = vor.u32 %v4231, %v4232
    %v4234 = vshll.u32 2102212464, %v4222
    %v4235 = vshrl.u32 920167782, %v4223
    %v4236 = vor.u32 %v4234, %v4235
    %v4237 = vshll.u32 920167782, %v4222
    %v4238 = vshrl.u32 1326507024, %v4223
    %v4239 = vor.u32 %v4237, %v4238
    %vm4240 = vcmp.lt.s32.totalorder %v4221, 1
    %vm4241 = vcmp.lt.s32.totalorder %v4221, 2
    %vm4242 = vcmp.lt.s32.totalorder %v4221, 3
    %vm4243 = vcmp.lt.s32.totalorder %v4221, 4
    %v4244 = vsel %vm4240, %v4224, %v4227
    %v4245 = vsel %vm4243, %v4233, 2102212464
    %v4246 = vsel %vm4242, %v4230, %v4245
    %v4247 = vsel %vm4241, %v4244, %v4246
    %v4248 = vsel %vm4240, %v4227, %v4230
    %v4249 = vsel %vm4243, %v4236, 920167782
    %v4250 = vsel %vm4242, %v4233, %v4249
    %v4251 = vsel %vm4241, %v4248, %v4250
    %v4252 = vsel %vm4240, %v4230, %v4233
    %v4253 = vsel %vm4243, %v4239, 1326507024
    %v4254 = vsel %vm4242, %v4236, %v4253
    %v4255 = vsel %vm4241, %v4252, %v4254
    %v4256 = vshll.u32 %v4216, 8
    %v4257 = vmul.u32.u64.compose %v4256, %v4255
    %v4258 = vextract.low.u32 %v4257
    %v4259 = vextract.high.u32 %v4257
    %v4260 = vmul.u32.u64.compose %v4256, %v4251
    %v4261 = vextract.low.u32 %v4260
    %v4262 = vextract.high.u32 %v4260
    %v4263 = vmul.u32 %v4256, %v4247
    %v4264 = vadd.s32 %v4259, %v4261
    %vm4265 = vc.u32 %v4259, %v4261
    %v4266 = vadd.s32 %v4262, 1
    %v4267 = vsel %vm4265, %v4266, %v4262
    %v4268 = vadd.s32 %v4263, %v4267
    %v4269 = vadd.s32 %v4268, 536870912
    %v4270 = vshrl.u32 %v4269, 30
    %v4271 = vshll.u32 %v4270, 30
    %v4272 = vsub.s32 %v4268, %v4271
    %vm4273 = vcmp.lt.s32.totalorder %v4272, 0
    %v4274 = vsub.s32 0, %v4272
    %v4275 = vsel %vm4273, %v4274, %v4272
    %v4276 = vclz %v4275
    %v4277 = vsub.s32 %v4276, 2
    %vm4278 = vcmp.gt.s32.totalorder 0, %v4277
    %v4279 = vsel %vm4278, 0, %v4277
    %v4280 = vsub.s32 32, %v4279
    %v4281 = vshll.u32 %v4272, %v4279
    %v4282 = vshrl.u32 %v4264, %v4280
    %v4283 = vor.u32 %v4281, %v4282
    %v4284 = vsub.s32 4294967266, %v4279
    %v4285 = vadd.s32 %v4284, 127
    %v4286 = vshll.u32 %v4285, 23
    %v4287 = vor.u32 4788187, %v4286
    %v4288 = vand.u32 2147483647, %v4287
    %v4290 = vcvt.s32.f32 %v4283
    %v4291 = vmul.f32 %v4290, %v4288
    %v4292 = vxor.u32 %v4291, 2147483648
    %v4293 = vsel %vm4210, %v4292, %v4291
    %v4294 = vsub.s32 4, %v4270
    %v4295 = vsel %vm4210, %v4294, %v4270
    %v4296 = vsel %vm4209, %v3780, %v4293
    %v4297 = vsel %vm4209, 0, %v4295
    %v4298 = vcosq.f32.pop %v4296
    %v4299 = vsinq.f32.pop %v4296
    %vm4300 = vweird.f32 %v3780
    %v4301 = vadd.s32 %v4297, 3
    %v4302 = vand.u32 %v4301, 3
    %vm4303 = vcmp.lt.s32.totalorder %v4302, 2
    %vm4304 = vcmp.eq.s32.totalorder %v4302, 0
    %v4305 = vxor.u32 %v4299, 2147483648
    %v4306 = vsel %vm4304, %v4298, %v4305
    %vm4307 = vcmp.eq.s32.totalorder %v4302, 2
    %v4308 = vxor.u32 %v4298, 2147483648
    %v4309 = vsel %vm4307, %v4308, %v4299
    %v4310 = vsel %vm4303, %v4306, %v4309
    %v4311 = vsel %vm4300, nan, %v4310
    %v4312 = vand.u32 2147483647, %v3781
    %vm4313 = vcmp.le.f32.partialorder %v4312, 0.7853982
    %vm4314 = vcmp.lt.s32.totalorder %v3781, 0
    %v4315 = vand.u32 %v3781, 2139095040
    %v4316 = vshrl.u32 %v4315, 23
    %v4317 = vsub.s32 %v4316, 127
    %v4318 = vand.u32 2147483647, %v3781
    %v4319 = vand.u32 %v4318, 8388607
    %v4320 = vor.u32 %v4319, 8388608
    %v4321 = vsub.s32 0, %v4320
    %v4322 = vadd.s32 %v4317, 1
    %vm4323 = vcmp.gt.s32.totalorder %v4322, 0
    %v4324 = vsel %vm4323, %v4322, 0
    %v4325 = vshrl.u32 %v4324, 5
    %v4326 = vand.u32 %v4324, 31
    %v4327 = vsub.s32 32, %v4326
    %v4328 = vshrl.u32 683565275, %v4327
    %v4329 = vshll.u32 683565275, %v4326
    %v4330 = vshrl.u32 2475754826, %v4327
    %v4331 = vor.u32 %v4329, %v4330
    %v4332 = vshll.u32 2475754826, %v4326
    %v4333 = vshrl.u32 2131351028, %v4327
    %v4334 = vor.u32 %v4332, %v4333
    %v4335 = vshll.u32 2131351028, %v4326
    %v4336 = vshrl.u32 2102212464, %v4327
    %v4337 = vor.u32 %v4335, %v4336
    %v4338 = vshll.u32 2102212464, %v4326
    %v4339 = vshrl.u32 920167782, %v4327
    %v4340 = vor.u32 %v4338, %v4339
    %v4341 = vshll.u32 920167782, %v4326
    %v4342 = vshrl.u32 1326507024, %v4327
    %v4343 = vor.u32 %v4341, %v4342
    %vm4344 = vcmp.lt.s32.totalorder %v4325, 1
    %vm4345 = vcmp.lt.s32.totalorder %v4325, 2
    %vm4346 = vcmp.lt.s32.totalorder %v4325, 3
    %vm4347 = vcmp.lt.s32.totalorder %v4325, 4
    %v4348 = vsel %vm4344, %v4328, %v4331
    %v4349 = vsel %vm4347, %v4337, 2102212464
    %v4350 = vsel %vm4346, %v4334, %v4349
    %v4351 = vsel %vm4345, %v4348, %v4350
    %v4352 = vsel %vm4344, %v4331, %v4334
    %v4353 = vsel %vm4347, %v4340, 920167782
    %v4354 = vsel %vm4346, %v4337, %v4353
    %v4355 = vsel %vm4345, %v4352, %v4354
    %v4356 = vsel %vm4344, %v4334, %v4337
    %v4357 = vsel %vm4347, %v4343, 1326507024
    %v4358 = vsel %vm4346, %v4340, %v4357
    %v4359 = vsel %vm4345, %v4356, %v4358
    %v4360 = vshll.u32 %v4320, 8
    %v4361 = vmul.u32.u64.compose %v4360, %v4359
    %v4362 = vextract.low.u32 %v4361
    %v4363 = vextract.high.u32 %v4361
    %v4364 = vmul.u32.u64.compose %v4360, %v4355
    %v4365 = vextract.low.u32 %v4364
    %v4366 = vextract.high.u32 %v4364
    %v4367 = vmul.u32 %v4360, %v4351
    %v4368 = vadd.s32 %v4363, %v4365
    %vm4369 = vc.u32 %v4363, %v4365
    %v4370 = vadd.s32 %v4366, 1
    %v4371 = vsel %vm4369, %v4370, %v4366
    %v4372 = vadd.s32 %v4367, %v4371
    %v4373 = vadd.s32 %v4372, 536870912
    %v4374 = vshrl.u32 %v4373, 30
    %v4375 = vshll.u32 %v4374, 30
    %v4376 = vsub.s32 %v4372, %v4375
    %vm4377 = vcmp.lt.s32.totalorder %v4376, 0
    %v4378 = vsub.s32 0, %v4376
    %v4379 = vsel %vm4377, %v4378, %v4376
    %v4380 = vclz %v4379
    %v4381 = vsub.s32 %v4380, 2
    %vm4382 = vcmp.gt.s32.totalorder 0, %v4381
    %v4383 = vsel %vm4382, 0, %v4381
    %v4384 = vsub.s32 32, %v4383
    %v4385 = vshll.u32 %v4376, %v4383
    %v4386 = vshrl.u32 %v4368, %v4384
    %v4387 = vor.u32 %v4385, %v4386
    %v4388 = vsub.s32 4294967266, %v4383
    %v4389 = vadd.s32 %v4388, 127
    %v4390 = vshll.u32 %v4389, 23
    %v4391 = vor.u32 4788187, %v4390
    %v4392 = vand.u32 2147483647, %v4391
    %v4394 = vcvt.s32.f32 %v4387
    %v4395 = vmul.f32 %v4394, %v4392
    %v4396 = vxor.u32 %v4395, 2147483648
    %v4397 = vsel %vm4314, %v4396, %v4395
    %v4398 = vsub.s32 4, %v4374
    %v4399 = vsel %vm4314, %v4398, %v4374
    %v4400 = vsel %vm4313, %v3781, %v4397
    %v4401 = vsel %vm4313, 0, %v4399
    %v4402 = vcosq.f32.pop %v4400
    %v4403 = vsinq.f32.pop %v4400
    %vm4404 = vweird.f32 %v3781
    %v4405 = vadd.s32 %v4401, 3
    %v4406 = vand.u32 %v4405, 3
    %vm4407 = vcmp.lt.s32.totalorder %v4406, 2
    %vm4408 = vcmp.eq.s32.totalorder %v4406, 0
    %v4409 = vxor.u32 %v4403, 2147483648
    %v4410 = vsel %vm4408, %v4402, %v4409
    %vm4411 = vcmp.eq.s32.totalorder %v4406, 2
    %v4412 = vxor.u32 %v4402, 2147483648
    %v4413 = vsel %vm4411, %v4412, %v4403
    %v4414 = vsel %vm4407, %v4410, %v4413
    %v4415 = vsel %vm4404, nan, %v4414
    %v4416 = vand.u32 2147483647, %v3782
    %vm4417 = vcmp.le.f32.partialorder %v4416, 0.7853982
    %vm4418 = vcmp.lt.s32.totalorder %v3782, 0
    %v4419 = vand.u32 %v3782, 2139095040
    %v4420 = vshrl.u32 %v4419, 23
    %v4421 = vsub.s32 %v4420, 127
    %v4422 = vand.u32 2147483647, %v3782
    %v4423 = vand.u32 %v4422, 8388607
    %v4424 = vor.u32 %v4423, 8388608
    %v4425 = vsub.s32 0, %v4424
    %v4426 = vadd.s32 %v4421, 1
    %vm4427 = vcmp.gt.s32.totalorder %v4426, 0
    %v4428 = vsel %vm4427, %v4426, 0
    %v4429 = vshrl.u32 %v4428, 5
    %v4430 = vand.u32 %v4428, 31
    %v4431 = vsub.s32 32, %v4430
    %v4432 = vshrl.u32 683565275, %v4431
    %v4433 = vshll.u32 683565275, %v4430
    %v4434 = vshrl.u32 2475754826, %v4431
    %v4435 = vor.u32 %v4433, %v4434
    %v4436 = vshll.u32 2475754826, %v4430
    %v4437 = vshrl.u32 2131351028, %v4431
    %v4438 = vor.u32 %v4436, %v4437
    %v4439 = vshll.u32 2131351028, %v4430
    %v4440 = vshrl.u32 2102212464, %v4431
    %v4441 = vor.u32 %v4439, %v4440
    %v4442 = vshll.u32 2102212464, %v4430
    %v4443 = vshrl.u32 920167782, %v4431
    %v4444 = vor.u32 %v4442, %v4443
    %v4445 = vshll.u32 920167782, %v4430
    %v4446 = vshrl.u32 1326507024, %v4431
    %v4447 = vor.u32 %v4445, %v4446
    %vm4448 = vcmp.lt.s32.totalorder %v4429, 1
    %vm4449 = vcmp.lt.s32.totalorder %v4429, 2
    %vm4450 = vcmp.lt.s32.totalorder %v4429, 3
    %vm4451 = vcmp.lt.s32.totalorder %v4429, 4
    %v4452 = vsel %vm4448, %v4432, %v4435
    %v4453 = vsel %vm4451, %v4441, 2102212464
    %v4454 = vsel %vm4450, %v4438, %v4453
    %v4455 = vsel %vm4449, %v4452, %v4454
    %v4456 = vsel %vm4448, %v4435, %v4438
    %v4457 = vsel %vm4451, %v4444, 920167782
    %v4458 = vsel %vm4450, %v4441, %v4457
    %v4459 = vsel %vm4449, %v4456, %v4458
    %v4460 = vsel %vm4448, %v4438, %v4441
    %v4461 = vsel %vm4451, %v4447, 1326507024
    %v4462 = vsel %vm4450, %v4444, %v4461
    %v4463 = vsel %vm4449, %v4460, %v4462
    %v4464 = vshll.u32 %v4424, 8
    %v4465 = vmul.u32.u64.compose %v4464, %v4463
    %v4466 = vextract.low.u32 %v4465
    %v4467 = vextract.high.u32 %v4465
    %v4468 = vmul.u32.u64.compose %v4464, %v4459
    %v4469 = vextract.low.u32 %v4468
    %v4470 = vextract.high.u32 %v4468
    %v4471 = vmul.u32 %v4464, %v4455
    %v4472 = vadd.s32 %v4467, %v4469
    %vm4473 = vc.u32 %v4467, %v4469
    %v4474 = vadd.s32 %v4470, 1
    %v4475 = vsel %vm4473, %v4474, %v4470
    %v4476 = vadd.s32 %v4471, %v4475
    %v4477 = vadd.s32 %v4476, 536870912
    %v4478 = vshrl.u32 %v4477, 30
    %v4479 = vshll.u32 %v4478, 30
    %v4480 = vsub.s32 %v4476, %v4479
    %vm4481 = vcmp.lt.s32.totalorder %v4480, 0
    %v4482 = vsub.s32 0, %v4480
    %v4483 = vsel %vm4481, %v4482, %v4480
    %v4484 = vclz %v4483
    %v4485 = vsub.s32 %v4484, 2
    %vm4486 = vcmp.gt.s32.totalorder 0, %v4485
    %v4487 = vsel %vm4486, 0, %v4485
    %v4488 = vsub.s32 32, %v4487
    %v4489 = vshll.u32 %v4480, %v4487
    %v4490 = vshrl.u32 %v4472, %v4488
    %v4491 = vor.u32 %v4489, %v4490
    %v4492 = vsub.s32 4294967266, %v4487
    %v4493 = vadd.s32 %v4492, 127
    %v4494 = vshll.u32 %v4493, 23
    %v4495 = vor.u32 4788187, %v4494
    %v4496 = vand.u32 2147483647, %v4495
    %v4498 = vcvt.s32.f32 %v4491
    %v4499 = vmul.f32 %v4498, %v4496
    %v4500 = vxor.u32 %v4499, 2147483648
    %v4501 = vsel %vm4418, %v4500, %v4499
    %v4502 = vsub.s32 4, %v4478
    %v4503 = vsel %vm4418, %v4502, %v4478
    %v4504 = vsel %vm4417, %v3782, %v4501
    %v4505 = vsel %vm4417, 0, %v4503
    %v4506 = vcosq.f32.pop %v4504
    %v4507 = vsinq.f32.pop %v4504
    %vm4508 = vweird.f32 %v3782
    %v4509 = vadd.s32 %v4505, 3
    %v4510 = vand.u32 %v4509, 3
    %vm4511 = vcmp.lt.s32.totalorder %v4510, 2
    %vm4512 = vcmp.eq.s32.totalorder %v4510, 0
    %v4513 = vxor.u32 %v4507, 2147483648
    %v4514 = vsel %vm4512, %v4506, %v4513
    %vm4515 = vcmp.eq.s32.totalorder %v4510, 2
    %v4516 = vxor.u32 %v4506, 2147483648
    %v4517 = vsel %vm4515, %v4516, %v4507
    %v4518 = vsel %vm4511, %v4514, %v4517
    %v4519 = vsel %vm4508, nan, %v4518
    %v4520 = vand.u32 2147483647, %v3783
    %vm4521 = vcmp.le.f32.partialorder %v4520, 0.7853982
    %vm4522 = vcmp.lt.s32.totalorder %v3783, 0
    %v4523 = vand.u32 %v3783, 2139095040
    %v4524 = vshrl.u32 %v4523, 23
    %v4525 = vsub.s32 %v4524, 127
    %v4526 = vand.u32 2147483647, %v3783
    %v4527 = vand.u32 %v4526, 8388607
    %v4528 = vor.u32 %v4527, 8388608
    %v4529 = vsub.s32 0, %v4528
    %v4530 = vadd.s32 %v4525, 1
    %vm4531 = vcmp.gt.s32.totalorder %v4530, 0
    %v4532 = vsel %vm4531, %v4530, 0
    %v4533 = vshrl.u32 %v4532, 5
    %v4534 = vand.u32 %v4532, 31
    %v4535 = vsub.s32 32, %v4534
    %v4536 = vshrl.u32 683565275, %v4535
    %v4537 = vshll.u32 683565275, %v4534
    %v4538 = vshrl.u32 2475754826, %v4535
    %v4539 = vor.u32 %v4537, %v4538
    %v4540 = vshll.u32 2475754826, %v4534
    %v4541 = vshrl.u32 2131351028, %v4535
    %v4542 = vor.u32 %v4540, %v4541
    %v4543 = vshll.u32 2131351028, %v4534
    %v4544 = vshrl.u32 2102212464, %v4535
    %v4545 = vor.u32 %v4543, %v4544
    %v4546 = vshll.u32 2102212464, %v4534
    %v4547 = vshrl.u32 920167782, %v4535
    %v4548 = vor.u32 %v4546, %v4547
    %v4549 = vshll.u32 920167782, %v4534
    %v4550 = vshrl.u32 1326507024, %v4535
    %v4551 = vor.u32 %v4549, %v4550
    %vm4552 = vcmp.lt.s32.totalorder %v4533, 1
    %vm4553 = vcmp.lt.s32.totalorder %v4533, 2
    %vm4554 = vcmp.lt.s32.totalorder %v4533, 3
    %vm4555 = vcmp.lt.s32.totalorder %v4533, 4
    %v4556 = vsel %vm4552, %v4536, %v4539
    %v4557 = vsel %vm4555, %v4545, 2102212464
    %v4558 = vsel %vm4554, %v4542, %v4557
    %v4559 = vsel %vm4553, %v4556, %v4558
    %v4560 = vsel %vm4552, %v4539, %v4542
    %v4561 = vsel %vm4555, %v4548, 920167782
    %v4562 = vsel %vm4554, %v4545, %v4561
    %v4563 = vsel %vm4553, %v4560, %v4562
    %v4564 = vsel %vm4552, %v4542, %v4545
    %v4565 = vsel %vm4555, %v4551, 1326507024
    %v4566 = vsel %vm4554, %v4548, %v4565
    %v4567 = vsel %vm4553, %v4564, %v4566
    %v4568 = vshll.u32 %v4528, 8
    %v4569 = vmul.u32.u64.compose %v4568, %v4567
    %v4570 = vextract.low.u32 %v4569
    %v4571 = vextract.high.u32 %v4569
    %v4572 = vmul.u32.u64.compose %v4568, %v4563
    %v4573 = vextract.low.u32 %v4572
    %v4574 = vextract.high.u32 %v4572
    %v4575 = vmul.u32 %v4568, %v4559
    %v4576 = vadd.s32 %v4571, %v4573
    %vm4577 = vc.u32 %v4571, %v4573
    %v4578 = vadd.s32 %v4574, 1
    %v4579 = vsel %vm4577, %v4578, %v4574
    %v4580 = vadd.s32 %v4575, %v4579
    %v4581 = vadd.s32 %v4580, 536870912
    %v4582 = vshrl.u32 %v4581, 30
    %v4583 = vshll.u32 %v4582, 30
    %v4584 = vsub.s32 %v4580, %v4583
    %vm4585 = vcmp.lt.s32.totalorder %v4584, 0
    %v4586 = vsub.s32 0, %v4584
    %v4587 = vsel %vm4585, %v4586, %v4584
    %v4588 = vclz %v4587
    %v4589 = vsub.s32 %v4588, 2
    %vm4590 = vcmp.gt.s32.totalorder 0, %v4589
    %v4591 = vsel %vm4590, 0, %v4589
    %v4592 = vsub.s32 32, %v4591
    %v4593 = vshll.u32 %v4584, %v4591
    %v4594 = vshrl.u32 %v4576, %v4592
    %v4595 = vor.u32 %v4593, %v4594
    %v4596 = vsub.s32 4294967266, %v4591
    %v4597 = vadd.s32 %v4596, 127
    %v4598 = vshll.u32 %v4597, 23
    %v4599 = vor.u32 4788187, %v4598
    %v4600 = vand.u32 2147483647, %v4599
    %v4602 = vcvt.s32.f32 %v4595
    %v4603 = vmul.f32 %v4602, %v4600
    %v4604 = vxor.u32 %v4603, 2147483648
    %v4605 = vsel %vm4522, %v4604, %v4603
    %v4606 = vsub.s32 4, %v4582
    %v4607 = vsel %vm4522, %v4606, %v4582
    %v4608 = vsel %vm4521, %v3783, %v4605
    %v4609 = vsel %vm4521, 0, %v4607
    %v4610 = vcosq.f32.pop %v4608
    %v4611 = vsinq.f32.pop %v4608
    %vm4612 = vweird.f32 %v3783
    %v4613 = vadd.s32 %v4609, 3
    %v4614 = vand.u32 %v4613, 3
    %vm4615 = vcmp.lt.s32.totalorder %v4614, 2
    %vm4616 = vcmp.eq.s32.totalorder %v4614, 0
    %v4617 = vxor.u32 %v4611, 2147483648
    %v4618 = vsel %vm4616, %v4610, %v4617
    %vm4619 = vcmp.eq.s32.totalorder %v4614, 2
    %v4620 = vxor.u32 %v4610, 2147483648
    %v4621 = vsel %vm4619, %v4620, %v4611
    %v4622 = vsel %vm4615, %v4618, %v4621
    %v4623 = vsel %vm4612, nan, %v4622
    %v4624 = vand.u32 2147483647, %v3784
    %vm4625 = vcmp.le.f32.partialorder %v4624, 0.7853982
    %vm4626 = vcmp.lt.s32.totalorder %v3784, 0
    %v4627 = vand.u32 %v3784, 2139095040
    %v4628 = vshrl.u32 %v4627, 23
    %v4629 = vsub.s32 %v4628, 127
    %v4630 = vand.u32 2147483647, %v3784
    %v4631 = vand.u32 %v4630, 8388607
    %v4632 = vor.u32 %v4631, 8388608
    %v4633 = vsub.s32 0, %v4632
    %v4634 = vadd.s32 %v4629, 1
    %vm4635 = vcmp.gt.s32.totalorder %v4634, 0
    %v4636 = vsel %vm4635, %v4634, 0
    %v4637 = vshrl.u32 %v4636, 5
    %v4638 = vand.u32 %v4636, 31
    %v4639 = vsub.s32 32, %v4638
    %v4640 = vshrl.u32 683565275, %v4639
    %v4641 = vshll.u32 683565275, %v4638
    %v4642 = vshrl.u32 2475754826, %v4639
    %v4643 = vor.u32 %v4641, %v4642
    %v4644 = vshll.u32 2475754826, %v4638
    %v4645 = vshrl.u32 2131351028, %v4639
    %v4646 = vor.u32 %v4644, %v4645
    %v4647 = vshll.u32 2131351028, %v4638
    %v4648 = vshrl.u32 2102212464, %v4639
    %v4649 = vor.u32 %v4647, %v4648
    %v4650 = vshll.u32 2102212464, %v4638
    %v4651 = vshrl.u32 920167782, %v4639
    %v4652 = vor.u32 %v4650, %v4651
    %v4653 = vshll.u32 920167782, %v4638
    %v4654 = vshrl.u32 1326507024, %v4639
    %v4655 = vor.u32 %v4653, %v4654
    %vm4656 = vcmp.lt.s32.totalorder %v4637, 1
    %vm4657 = vcmp.lt.s32.totalorder %v4637, 2
    %vm4658 = vcmp.lt.s32.totalorder %v4637, 3
    %vm4659 = vcmp.lt.s32.totalorder %v4637, 4
    %v4660 = vsel %vm4656, %v4640, %v4643
    %v4661 = vsel %vm4659, %v4649, 2102212464
    %v4662 = vsel %vm4658, %v4646, %v4661
    %v4663 = vsel %vm4657, %v4660, %v4662
    %v4664 = vsel %vm4656, %v4643, %v4646
    %v4665 = vsel %vm4659, %v4652, 920167782
    %v4666 = vsel %vm4658, %v4649, %v4665
    %v4667 = vsel %vm4657, %v4664, %v4666
    %v4668 = vsel %vm4656, %v4646, %v4649
    %v4669 = vsel %vm4659, %v4655, 1326507024
    %v4670 = vsel %vm4658, %v4652, %v4669
    %v4671 = vsel %vm4657, %v4668, %v4670
    %v4672 = vshll.u32 %v4632, 8
    %v4673 = vmul.u32.u64.compose %v4672, %v4671
    %v4674 = vextract.low.u32 %v4673
    %v4675 = vextract.high.u32 %v4673
    %v4676 = vmul.u32.u64.compose %v4672, %v4667
    %v4677 = vextract.low.u32 %v4676
    %v4678 = vextract.high.u32 %v4676
    %v4679 = vmul.u32 %v4672, %v4663
    %v4680 = vadd.s32 %v4675, %v4677
    %vm4681 = vc.u32 %v4675, %v4677
    %v4682 = vadd.s32 %v4678, 1
    %v4683 = vsel %vm4681, %v4682, %v4678
    %v4684 = vadd.s32 %v4679, %v4683
    %v4685 = vadd.s32 %v4684, 536870912
    %v4686 = vshrl.u32 %v4685, 30
    %v4687 = vshll.u32 %v4686, 30
    %v4688 = vsub.s32 %v4684, %v4687
    %vm4689 = vcmp.lt.s32.totalorder %v4688, 0
    %v4690 = vsub.s32 0, %v4688
    %v4691 = vsel %vm4689, %v4690, %v4688
    %v4692 = vclz %v4691
    %v4693 = vsub.s32 %v4692, 2
    %vm4694 = vcmp.gt.s32.totalorder 0, %v4693
    %v4695 = vsel %vm4694, 0, %v4693
    %v4696 = vsub.s32 32, %v4695
    %v4697 = vshll.u32 %v4688, %v4695
    %v4698 = vshrl.u32 %v4680, %v4696
    %v4699 = vor.u32 %v4697, %v4698
    %v4700 = vsub.s32 4294967266, %v4695
    %v4701 = vadd.s32 %v4700, 127
    %v4702 = vshll.u32 %v4701, 23
    %v4703 = vor.u32 4788187, %v4702
    %v4704 = vand.u32 2147483647, %v4703
    %v4706 = vcvt.s32.f32 %v4699
    %v4707 = vmul.f32 %v4706, %v4704
    %v4708 = vxor.u32 %v4707, 2147483648
    %v4709 = vsel %vm4626, %v4708, %v4707
    %v4710 = vsub.s32 4, %v4686
    %v4711 = vsel %vm4626, %v4710, %v4686
    %v4712 = vsel %vm4625, %v3784, %v4709
    %v4713 = vsel %vm4625, 0, %v4711
    %v4714 = vcosq.f32.pop %v4712
    %v4715 = vsinq.f32.pop %v4712
    %vm4716 = vweird.f32 %v3784
    %v4717 = vadd.s32 %v4713, 3
    %v4718 = vand.u32 %v4717, 3
    %vm4719 = vcmp.lt.s32.totalorder %v4718, 2
    %vm4720 = vcmp.eq.s32.totalorder %v4718, 0
    %v4721 = vxor.u32 %v4715, 2147483648
    %v4722 = vsel %vm4720, %v4714, %v4721
    %vm4723 = vcmp.eq.s32.totalorder %v4718, 2
    %v4724 = vxor.u32 %v4714, 2147483648
    %v4725 = vsel %vm4723, %v4724, %v4715
    %v4726 = vsel %vm4719, %v4722, %v4725
    %v4727 = vsel %vm4716, nan, %v4726
    %v4728 = vand.u32 2147483647, %v3785
    %vm4729 = vcmp.le.f32.partialorder %v4728, 0.7853982
    %vm4730 = vcmp.lt.s32.totalorder %v3785, 0
    %v4731 = vand.u32 %v3785, 2139095040
    %v4732 = vshrl.u32 %v4731, 23
    %v4733 = vsub.s32 %v4732, 127
    %v4734 = vand.u32 2147483647, %v3785
    %v4735 = vand.u32 %v4734, 8388607
    %v4736 = vor.u32 %v4735, 8388608
    %v4737 = vsub.s32 0, %v4736
    %v4738 = vadd.s32 %v4733, 1
    %vm4739 = vcmp.gt.s32.totalorder %v4738, 0
    %v4740 = vsel %vm4739, %v4738, 0
    %v4741 = vshrl.u32 %v4740, 5
    %v4742 = vand.u32 %v4740, 31
    %v4743 = vsub.s32 32, %v4742
    %v4744 = vshrl.u32 683565275, %v4743
    %v4745 = vshll.u32 683565275, %v4742
    %v4746 = vshrl.u32 2475754826, %v4743
    %v4747 = vor.u32 %v4745, %v4746
    %v4748 = vshll.u32 2475754826, %v4742
    %v4749 = vshrl.u32 2131351028, %v4743
    %v4750 = vor.u32 %v4748, %v4749
    %v4751 = vshll.u32 2131351028, %v4742
    %v4752 = vshrl.u32 2102212464, %v4743
    %v4753 = vor.u32 %v4751, %v4752
    %v4754 = vshll.u32 2102212464, %v4742
    %v4755 = vshrl.u32 920167782, %v4743
    %v4756 = vor.u32 %v4754, %v4755
    %v4757 = vshll.u32 920167782, %v4742
    %v4758 = vshrl.u32 1326507024, %v4743
    %v4759 = vor.u32 %v4757, %v4758
    %vm4760 = vcmp.lt.s32.totalorder %v4741, 1
    %vm4761 = vcmp.lt.s32.totalorder %v4741, 2
    %vm4762 = vcmp.lt.s32.totalorder %v4741, 3
    %vm4763 = vcmp.lt.s32.totalorder %v4741, 4
    %v4764 = vsel %vm4760, %v4744, %v4747
    %v4765 = vsel %vm4763, %v4753, 2102212464
    %v4766 = vsel %vm4762, %v4750, %v4765
    %v4767 = vsel %vm4761, %v4764, %v4766
    %v4768 = vsel %vm4760, %v4747, %v4750
    %v4769 = vsel %vm4763, %v4756, 920167782
    %v4770 = vsel %vm4762, %v4753, %v4769
    %v4771 = vsel %vm4761, %v4768, %v4770
    %v4772 = vsel %vm4760, %v4750, %v4753
    %v4773 = vsel %vm4763, %v4759, 1326507024
    %v4774 = vsel %vm4762, %v4756, %v4773
    %v4775 = vsel %vm4761, %v4772, %v4774
    %v4776 = vshll.u32 %v4736, 8
    %v4777 = vmul.u32.u64.compose %v4776, %v4775
    %v4778 = vextract.low.u32 %v4777
    %v4779 = vextract.high.u32 %v4777
    %v4780 = vmul.u32.u64.compose %v4776, %v4771
    %v4781 = vextract.low.u32 %v4780
    %v4782 = vextract.high.u32 %v4780
    %v4783 = vmul.u32 %v4776, %v4767
    %v4784 = vadd.s32 %v4779, %v4781
    %vm4785 = vc.u32 %v4779, %v4781
    %v4786 = vadd.s32 %v4782, 1
    %v4787 = vsel %vm4785, %v4786, %v4782
    %v4788 = vadd.s32 %v4783, %v4787
    %v4789 = vadd.s32 %v4788, 536870912
    %v4790 = vshrl.u32 %v4789, 30
    %v4791 = vshll.u32 %v4790, 30
    %v4792 = vsub.s32 %v4788, %v4791
    %vm4793 = vcmp.lt.s32.totalorder %v4792, 0
    %v4794 = vsub.s32 0, %v4792
    %v4795 = vsel %vm4793, %v4794, %v4792
    %v4796 = vclz %v4795
    %v4797 = vsub.s32 %v4796, 2
    %vm4798 = vcmp.gt.s32.totalorder 0, %v4797
    %v4799 = vsel %vm4798, 0, %v4797
    %v4800 = vsub.s32 32, %v4799
    %v4801 = vshll.u32 %v4792, %v4799
    %v4802 = vshrl.u32 %v4784, %v4800
    %v4803 = vor.u32 %v4801, %v4802
    %v4804 = vsub.s32 4294967266, %v4799
    %v4805 = vadd.s32 %v4804, 127
    %v4806 = vshll.u32 %v4805, 23
    %v4807 = vor.u32 4788187, %v4806
    %v4808 = vand.u32 2147483647, %v4807
    %v4810 = vcvt.s32.f32 %v4803
    %v4811 = vmul.f32 %v4810, %v4808
    %v4812 = vxor.u32 %v4811, 2147483648
    %v4813 = vsel %vm4730, %v4812, %v4811
    %v4814 = vsub.s32 4, %v4790
    %v4815 = vsel %vm4730, %v4814, %v4790
    %v4816 = vsel %vm4729, %v3785, %v4813
    %v4817 = vsel %vm4729, 0, %v4815
    %v4818 = vcosq.f32.pop %v4816
    %v4819 = vsinq.f32.pop %v4816
    %vm4820 = vweird.f32 %v3785
    %v4821 = vadd.s32 %v4817, 3
    %v4822 = vand.u32 %v4821, 3
    %vm4823 = vcmp.lt.s32.totalorder %v4822, 2
    %vm4824 = vcmp.eq.s32.totalorder %v4822, 0
    %v4825 = vxor.u32 %v4819, 2147483648
    %v4826 = vsel %vm4824, %v4818, %v4825
    %vm4827 = vcmp.eq.s32.totalorder %v4822, 2
    %v4828 = vxor.u32 %v4818, 2147483648
    %v4829 = vsel %vm4827, %v4828, %v4819
    %v4830 = vsel %vm4823, %v4826, %v4829
    %v4831 = vsel %vm4820, nan, %v4830
    %v4832 = vand.u32 2147483647, %v3786
    %vm4833 = vcmp.le.f32.partialorder %v4832, 0.7853982
    %vm4834 = vcmp.lt.s32.totalorder %v3786, 0
    %v4835 = vand.u32 %v3786, 2139095040
    %v4836 = vshrl.u32 %v4835, 23
    %v4837 = vsub.s32 %v4836, 127
    %v4838 = vand.u32 2147483647, %v3786
    %v4839 = vand.u32 %v4838, 8388607
    %v4840 = vor.u32 %v4839, 8388608
    %v4841 = vsub.s32 0, %v4840
    %v4842 = vadd.s32 %v4837, 1
    %vm4843 = vcmp.gt.s32.totalorder %v4842, 0
    %v4844 = vsel %vm4843, %v4842, 0
    %v4845 = vshrl.u32 %v4844, 5
    %v4846 = vand.u32 %v4844, 31
    %v4847 = vsub.s32 32, %v4846
    %v4848 = vshrl.u32 683565275, %v4847
    %v4849 = vshll.u32 683565275, %v4846
    %v4850 = vshrl.u32 2475754826, %v4847
    %v4851 = vor.u32 %v4849, %v4850
    %v4852 = vshll.u32 2475754826, %v4846
    %v4853 = vshrl.u32 2131351028, %v4847
    %v4854 = vor.u32 %v4852, %v4853
    %v4855 = vshll.u32 2131351028, %v4846
    %v4856 = vshrl.u32 2102212464, %v4847
    %v4857 = vor.u32 %v4855, %v4856
    %v4858 = vshll.u32 2102212464, %v4846
    %v4859 = vshrl.u32 920167782, %v4847
    %v4860 = vor.u32 %v4858, %v4859
    %v4861 = vshll.u32 920167782, %v4846
    %v4862 = vshrl.u32 1326507024, %v4847
    %v4863 = vor.u32 %v4861, %v4862
    %vm4864 = vcmp.lt.s32.totalorder %v4845, 1
    %vm4865 = vcmp.lt.s32.totalorder %v4845, 2
    %vm4866 = vcmp.lt.s32.totalorder %v4845, 3
    %vm4867 = vcmp.lt.s32.totalorder %v4845, 4
    %v4868 = vsel %vm4864, %v4848, %v4851
    %v4869 = vsel %vm4867, %v4857, 2102212464
    %v4870 = vsel %vm4866, %v4854, %v4869
    %v4871 = vsel %vm4865, %v4868, %v4870
    %v4872 = vsel %vm4864, %v4851, %v4854
    %v4873 = vsel %vm4867, %v4860, 920167782
    %v4874 = vsel %vm4866, %v4857, %v4873
    %v4875 = vsel %vm4865, %v4872, %v4874
    %v4876 = vsel %vm4864, %v4854, %v4857
    %v4877 = vsel %vm4867, %v4863, 1326507024
    %v4878 = vsel %vm4866, %v4860, %v4877
    %v4879 = vsel %vm4865, %v4876, %v4878
    %v4880 = vshll.u32 %v4840, 8
    %v4881 = vmul.u32.u64.compose %v4880, %v4879
    %v4882 = vextract.low.u32 %v4881
    %v4883 = vextract.high.u32 %v4881
    %v4884 = vmul.u32.u64.compose %v4880, %v4875
    %v4885 = vextract.low.u32 %v4884
    %v4886 = vextract.high.u32 %v4884
    %v4887 = vmul.u32 %v4880, %v4871
    %v4888 = vadd.s32 %v4883, %v4885
    %vm4889 = vc.u32 %v4883, %v4885
    %v4890 = vadd.s32 %v4886, 1
    %v4891 = vsel %vm4889, %v4890, %v4886
    %v4892 = vadd.s32 %v4887, %v4891
    %v4893 = vadd.s32 %v4892, 536870912
    %v4894 = vshrl.u32 %v4893, 30
    %v4895 = vshll.u32 %v4894, 30
    %v4896 = vsub.s32 %v4892, %v4895
    %vm4897 = vcmp.lt.s32.totalorder %v4896, 0
    %v4898 = vsub.s32 0, %v4896
    %v4899 = vsel %vm4897, %v4898, %v4896
    %v4900 = vclz %v4899
    %v4901 = vsub.s32 %v4900, 2
    %vm4902 = vcmp.gt.s32.totalorder 0, %v4901
    %v4903 = vsel %vm4902, 0, %v4901
    %v4904 = vsub.s32 32, %v4903
    %v4905 = vshll.u32 %v4896, %v4903
    %v4906 = vshrl.u32 %v4888, %v4904
    %v4907 = vor.u32 %v4905, %v4906
    %v4908 = vsub.s32 4294967266, %v4903
    %v4909 = vadd.s32 %v4908, 127
    %v4910 = vshll.u32 %v4909, 23
    %v4911 = vor.u32 4788187, %v4910
    %v4912 = vand.u32 2147483647, %v4911
    %v4914 = vcvt.s32.f32 %v4907
    %v4915 = vmul.f32 %v4914, %v4912
    %v4916 = vxor.u32 %v4915, 2147483648
    %v4917 = vsel %vm4834, %v4916, %v4915
    %v4918 = vsub.s32 4, %v4894
    %v4919 = vsel %vm4834, %v4918, %v4894
    %v4920 = vsel %vm4833, %v3786, %v4917
    %v4921 = vsel %vm4833, 0, %v4919
    %v4922 = vcosq.f32.pop %v4920
    %v4923 = vsinq.f32.pop %v4920
    %vm4924 = vweird.f32 %v3786
    %v4925 = vadd.s32 %v4921, 3
    %v4926 = vand.u32 %v4925, 3
    %vm4927 = vcmp.lt.s32.totalorder %v4926, 2
    %vm4928 = vcmp.eq.s32.totalorder %v4926, 0
    %v4929 = vxor.u32 %v4923, 2147483648
    %v4930 = vsel %vm4928, %v4922, %v4929
    %vm4931 = vcmp.eq.s32.totalorder %v4926, 2
    %v4932 = vxor.u32 %v4922, 2147483648
    %v4933 = vsel %vm4931, %v4932, %v4923
    %v4934 = vsel %vm4927, %v4930, %v4933
    %v4935 = vsel %vm4924, nan, %v4934
    %v4936 = vand.u32 2147483647, %v3787
    %vm4937 = vcmp.le.f32.partialorder %v4936, 0.7853982
    %vm4938 = vcmp.lt.s32.totalorder %v3787, 0
    %v4939 = vand.u32 %v3787, 2139095040
    %v4940 = vshrl.u32 %v4939, 23
    %v4941 = vsub.s32 %v4940, 127
    %v4942 = vand.u32 2147483647, %v3787
    %v4943 = vand.u32 %v4942, 8388607
    %v4944 = vor.u32 %v4943, 8388608
    %v4945 = vsub.s32 0, %v4944
    %v4946 = vadd.s32 %v4941, 1
    %vm4947 = vcmp.gt.s32.totalorder %v4946, 0
    %v4948 = vsel %vm4947, %v4946, 0
    %v4949 = vshrl.u32 %v4948, 5
    %v4950 = vand.u32 %v4948, 31
    %v4951 = vsub.s32 32, %v4950
    %v4952 = vshrl.u32 683565275, %v4951
    %v4953 = vshll.u32 683565275, %v4950
    %v4954 = vshrl.u32 2475754826, %v4951
    %v4955 = vor.u32 %v4953, %v4954
    %v4956 = vshll.u32 2475754826, %v4950
    %v4957 = vshrl.u32 2131351028, %v4951
    %v4958 = vor.u32 %v4956, %v4957
    %v4959 = vshll.u32 2131351028, %v4950
    %v4960 = vshrl.u32 2102212464, %v4951
    %v4961 = vor.u32 %v4959, %v4960
    %v4962 = vshll.u32 2102212464, %v4950
    %v4963 = vshrl.u32 920167782, %v4951
    %v4964 = vor.u32 %v4962, %v4963
    %v4965 = vshll.u32 920167782, %v4950
    %v4966 = vshrl.u32 1326507024, %v4951
    %v4967 = vor.u32 %v4965, %v4966
    %vm4968 = vcmp.lt.s32.totalorder %v4949, 1
    %vm4969 = vcmp.lt.s32.totalorder %v4949, 2
    %vm4970 = vcmp.lt.s32.totalorder %v4949, 3
    %vm4971 = vcmp.lt.s32.totalorder %v4949, 4
    %v4972 = vsel %vm4968, %v4952, %v4955
    %v4973 = vsel %vm4971, %v4961, 2102212464
    %v4974 = vsel %vm4970, %v4958, %v4973
    %v4975 = vsel %vm4969, %v4972, %v4974
    %v4976 = vsel %vm4968, %v4955, %v4958
    %v4977 = vsel %vm4971, %v4964, 920167782
    %v4978 = vsel %vm4970, %v4961, %v4977
    %v4979 = vsel %vm4969, %v4976, %v4978
    %v4980 = vsel %vm4968, %v4958, %v4961
    %v4981 = vsel %vm4971, %v4967, 1326507024
    %v4982 = vsel %vm4970, %v4964, %v4981
    %v4983 = vsel %vm4969, %v4980, %v4982
    %v4984 = vshll.u32 %v4944, 8
    %v4985 = vmul.u32.u64.compose %v4984, %v4983
    %v4986 = vextract.low.u32 %v4985
    %v4987 = vextract.high.u32 %v4985
    %v4988 = vmul.u32.u64.compose %v4984, %v4979
    %v4989 = vextract.low.u32 %v4988
    %v4990 = vextract.high.u32 %v4988
    %v4991 = vmul.u32 %v4984, %v4975
    %v4992 = vadd.s32 %v4987, %v4989
    %vm4993 = vc.u32 %v4987, %v4989
    %v4994 = vadd.s32 %v4990, 1
    %v4995 = vsel %vm4993, %v4994, %v4990
    %v4996 = vadd.s32 %v4991, %v4995
    %v4997 = vadd.s32 %v4996, 536870912
    %v4998 = vshrl.u32 %v4997, 30
    %v4999 = vshll.u32 %v4998, 30
    %v5000 = vsub.s32 %v4996, %v4999
    %vm5001 = vcmp.lt.s32.totalorder %v5000, 0
    %v5002 = vsub.s32 0, %v5000
    %v5003 = vsel %vm5001, %v5002, %v5000
    %v5004 = vclz %v5003
    %v5005 = vsub.s32 %v5004, 2
    %vm5006 = vcmp.gt.s32.totalorder 0, %v5005
    %v5007 = vsel %vm5006, 0, %v5005
    %v5008 = vsub.s32 32, %v5007
    %v5009 = vshll.u32 %v5000, %v5007
    %v5010 = vshrl.u32 %v4992, %v5008
    %v5011 = vor.u32 %v5009, %v5010
    %v5012 = vsub.s32 4294967266, %v5007
    %v5013 = vadd.s32 %v5012, 127
    %v5014 = vshll.u32 %v5013, 23
    %v5015 = vor.u32 4788187, %v5014
    %v5016 = vand.u32 2147483647, %v5015
    %v5018 = vcvt.s32.f32 %v5011
    %v5019 = vmul.f32 %v5018, %v5016
    %v5020 = vxor.u32 %v5019, 2147483648
    %v5021 = vsel %vm4938, %v5020, %v5019
    %v5022 = vsub.s32 4, %v4998
    %v5023 = vsel %vm4938, %v5022, %v4998
    %v5024 = vsel %vm4937, %v3787, %v5021
    %v5025 = vsel %vm4937, 0, %v5023
    %v5026 = vcosq.f32.pop %v5024
    %v5027 = vsinq.f32.pop %v5024
    %vm5028 = vweird.f32 %v3787
    %v5029 = vadd.s32 %v5025, 3
    %v5030 = vand.u32 %v5029, 3
    %vm5031 = vcmp.lt.s32.totalorder %v5030, 2
    %vm5032 = vcmp.eq.s32.totalorder %v5030, 0
    %v5033 = vxor.u32 %v5027, 2147483648
    %v5034 = vsel %vm5032, %v5026, %v5033
    %vm5035 = vcmp.eq.s32.totalorder %v5030, 2
    %v5036 = vxor.u32 %v5026, 2147483648
    %v5037 = vsel %vm5035, %v5036, %v5027
    %v5038 = vsel %vm5031, %v5034, %v5037
    %v5039 = vsel %vm5028, nan, %v5038
    %v5040 = vand.u32 2147483647, %v3788
    %vm5041 = vcmp.le.f32.partialorder %v5040, 0.7853982
    %vm5042 = vcmp.lt.s32.totalorder %v3788, 0
    %v5043 = vand.u32 %v3788, 2139095040
    %v5044 = vshrl.u32 %v5043, 23
    %v5045 = vsub.s32 %v5044, 127
    %v5046 = vand.u32 2147483647, %v3788
    %v5047 = vand.u32 %v5046, 8388607
    %v5048 = vor.u32 %v5047, 8388608
    %v5049 = vsub.s32 0, %v5048
    %v5050 = vadd.s32 %v5045, 1
    %vm5051 = vcmp.gt.s32.totalorder %v5050, 0
    %v5052 = vsel %vm5051, %v5050, 0
    %v5053 = vshrl.u32 %v5052, 5
    %v5054 = vand.u32 %v5052, 31
    %v5055 = vsub.s32 32, %v5054
    %v5056 = vshrl.u32 683565275, %v5055
    %v5057 = vshll.u32 683565275, %v5054
    %v5058 = vshrl.u32 2475754826, %v5055
    %v5059 = vor.u32 %v5057, %v5058
    %v5060 = vshll.u32 2475754826, %v5054
    %v5061 = vshrl.u32 2131351028, %v5055
    %v5062 = vor.u32 %v5060, %v5061
    %v5063 = vshll.u32 2131351028, %v5054
    %v5064 = vshrl.u32 2102212464, %v5055
    %v5065 = vor.u32 %v5063, %v5064
    %v5066 = vshll.u32 2102212464, %v5054
    %v5067 = vshrl.u32 920167782, %v5055
    %v5068 = vor.u32 %v5066, %v5067
    %v5069 = vshll.u32 920167782, %v5054
    %v5070 = vshrl.u32 1326507024, %v5055
    %v5071 = vor.u32 %v5069, %v5070
    %vm5072 = vcmp.lt.s32.totalorder %v5053, 1
    %vm5073 = vcmp.lt.s32.totalorder %v5053, 2
    %vm5074 = vcmp.lt.s32.totalorder %v5053, 3
    %vm5075 = vcmp.lt.s32.totalorder %v5053, 4
    %v5076 = vsel %vm5072, %v5056, %v5059
    %v5077 = vsel %vm5075, %v5065, 2102212464
    %v5078 = vsel %vm5074, %v5062, %v5077
    %v5079 = vsel %vm5073, %v5076, %v5078
    %v5080 = vsel %vm5072, %v5059, %v5062
    %v5081 = vsel %vm5075, %v5068, 920167782
    %v5082 = vsel %vm5074, %v5065, %v5081
    %v5083 = vsel %vm5073, %v5080, %v5082
    %v5084 = vsel %vm5072, %v5062, %v5065
    %v5085 = vsel %vm5075, %v5071, 1326507024
    %v5086 = vsel %vm5074, %v5068, %v5085
    %v5087 = vsel %vm5073, %v5084, %v5086
    %v5088 = vshll.u32 %v5048, 8
    %v5089 = vmul.u32.u64.compose %v5088, %v5087
    %v5090 = vextract.low.u32 %v5089
    %v5091 = vextract.high.u32 %v5089
    %v5092 = vmul.u32.u64.compose %v5088, %v5083
    %v5093 = vextract.low.u32 %v5092
    %v5094 = vextract.high.u32 %v5092
    %v5095 = vmul.u32 %v5088, %v5079
    %v5096 = vadd.s32 %v5091, %v5093
    %vm5097 = vc.u32 %v5091, %v5093
    %v5098 = vadd.s32 %v5094, 1
    %v5099 = vsel %vm5097, %v5098, %v5094
    %v5100 = vadd.s32 %v5095, %v5099
    %v5101 = vadd.s32 %v5100, 536870912
    %v5102 = vshrl.u32 %v5101, 30
    %v5103 = vshll.u32 %v5102, 30
    %v5104 = vsub.s32 %v5100, %v5103
    %vm5105 = vcmp.lt.s32.totalorder %v5104, 0
    %v5106 = vsub.s32 0, %v5104
    %v5107 = vsel %vm5105, %v5106, %v5104
    %v5108 = vclz %v5107
    %v5109 = vsub.s32 %v5108, 2
    %vm5110 = vcmp.gt.s32.totalorder 0, %v5109
    %v5111 = vsel %vm5110, 0, %v5109
    %v5112 = vsub.s32 32, %v5111
    %v5113 = vshll.u32 %v5104, %v5111
    %v5114 = vshrl.u32 %v5096, %v5112
    %v5115 = vor.u32 %v5113, %v5114
    %v5116 = vsub.s32 4294967266, %v5111
    %v5117 = vadd.s32 %v5116, 127
    %v5118 = vshll.u32 %v5117, 23
    %v5119 = vor.u32 4788187, %v5118
    %v5120 = vand.u32 2147483647, %v5119
    %v5122 = vcvt.s32.f32 %v5115
    %v5123 = vmul.f32 %v5122, %v5120
    %v5124 = vxor.u32 %v5123, 2147483648
    %v5125 = vsel %vm5042, %v5124, %v5123
    %v5126 = vsub.s32 4, %v5102
    %v5127 = vsel %vm5042, %v5126, %v5102
    %v5128 = vsel %vm5041, %v3788, %v5125
    %v5129 = vsel %vm5041, 0, %v5127
    %v5130 = vcosq.f32.pop %v5128
    %v5131 = vsinq.f32.pop %v5128
    %vm5132 = vweird.f32 %v3788
    %v5133 = vadd.s32 %v5129, 3
    %v5134 = vand.u32 %v5133, 3
    %vm5135 = vcmp.lt.s32.totalorder %v5134, 2
    %vm5136 = vcmp.eq.s32.totalorder %v5134, 0
    %v5137 = vxor.u32 %v5131, 2147483648
    %v5138 = vsel %vm5136, %v5130, %v5137
    %vm5139 = vcmp.eq.s32.totalorder %v5134, 2
    %v5140 = vxor.u32 %v5130, 2147483648
    %v5141 = vsel %vm5139, %v5140, %v5131
    %v5142 = vsel %vm5135, %v5138, %v5141
    %v5143 = vsel %vm5132, nan, %v5142
    %v5144 = vand.u32 2147483647, %v3789
    %vm5145 = vcmp.le.f32.partialorder %v5144, 0.7853982
    %vm5146 = vcmp.lt.s32.totalorder %v3789, 0
    %v5147 = vand.u32 %v3789, 2139095040
    %v5148 = vshrl.u32 %v5147, 23
    %v5149 = vsub.s32 %v5148, 127
    %v5150 = vand.u32 2147483647, %v3789
    %v5151 = vand.u32 %v5150, 8388607
    %v5152 = vor.u32 %v5151, 8388608
    %v5153 = vsub.s32 0, %v5152
    %v5154 = vadd.s32 %v5149, 1
    %vm5155 = vcmp.gt.s32.totalorder %v5154, 0
    %v5156 = vsel %vm5155, %v5154, 0
    %v5157 = vshrl.u32 %v5156, 5
    %v5158 = vand.u32 %v5156, 31
    %v5159 = vsub.s32 32, %v5158
    %v5160 = vshrl.u32 683565275, %v5159
    %v5161 = vshll.u32 683565275, %v5158
    %v5162 = vshrl.u32 2475754826, %v5159
    %v5163 = vor.u32 %v5161, %v5162
    %v5164 = vshll.u32 2475754826, %v5158
    %v5165 = vshrl.u32 2131351028, %v5159
    %v5166 = vor.u32 %v5164, %v5165
    %v5167 = vshll.u32 2131351028, %v5158
    %v5168 = vshrl.u32 2102212464, %v5159
    %v5169 = vor.u32 %v5167, %v5168
    %v5170 = vshll.u32 2102212464, %v5158
    %v5171 = vshrl.u32 920167782, %v5159
    %v5172 = vor.u32 %v5170, %v5171
    %v5173 = vshll.u32 920167782, %v5158
    %v5174 = vshrl.u32 1326507024, %v5159
    %v5175 = vor.u32 %v5173, %v5174
    %vm5176 = vcmp.lt.s32.totalorder %v5157, 1
    %vm5177 = vcmp.lt.s32.totalorder %v5157, 2
    %vm5178 = vcmp.lt.s32.totalorder %v5157, 3
    %vm5179 = vcmp.lt.s32.totalorder %v5157, 4
    %v5180 = vsel %vm5176, %v5160, %v5163
    %v5181 = vsel %vm5179, %v5169, 2102212464
    %v5182 = vsel %vm5178, %v5166, %v5181
    %v5183 = vsel %vm5177, %v5180, %v5182
    %v5184 = vsel %vm5176, %v5163, %v5166
    %v5185 = vsel %vm5179, %v5172, 920167782
    %v5186 = vsel %vm5178, %v5169, %v5185
    %v5187 = vsel %vm5177, %v5184, %v5186
    %v5188 = vsel %vm5176, %v5166, %v5169
    %v5189 = vsel %vm5179, %v5175, 1326507024
    %v5190 = vsel %vm5178, %v5172, %v5189
    %v5191 = vsel %vm5177, %v5188, %v5190
    %v5192 = vshll.u32 %v5152, 8
    %v5193 = vmul.u32.u64.compose %v5192, %v5191
    %v5194 = vextract.low.u32 %v5193
    %v5195 = vextract.high.u32 %v5193
    %v5196 = vmul.u32.u64.compose %v5192, %v5187
    %v5197 = vextract.low.u32 %v5196
    %v5198 = vextract.high.u32 %v5196
    %v5199 = vmul.u32 %v5192, %v5183
    %v5200 = vadd.s32 %v5195, %v5197
    %vm5201 = vc.u32 %v5195, %v5197
    %v5202 = vadd.s32 %v5198, 1
    %v5203 = vsel %vm5201, %v5202, %v5198
    %v5204 = vadd.s32 %v5199, %v5203
    %v5205 = vadd.s32 %v5204, 536870912
    %v5206 = vshrl.u32 %v5205, 30
    %v5207 = vshll.u32 %v5206, 30
    %v5208 = vsub.s32 %v5204, %v5207
    %vm5209 = vcmp.lt.s32.totalorder %v5208, 0
    %v5210 = vsub.s32 0, %v5208
    %v5211 = vsel %vm5209, %v5210, %v5208
    %v5212 = vclz %v5211
    %v5213 = vsub.s32 %v5212, 2
    %vm5214 = vcmp.gt.s32.totalorder 0, %v5213
    %v5215 = vsel %vm5214, 0, %v5213
    %v5216 = vsub.s32 32, %v5215
    %v5217 = vshll.u32 %v5208, %v5215
    %v5218 = vshrl.u32 %v5200, %v5216
    %v5219 = vor.u32 %v5217, %v5218
    %v5220 = vsub.s32 4294967266, %v5215
    %v5221 = vadd.s32 %v5220, 127
    %v5222 = vshll.u32 %v5221, 23
    %v5223 = vor.u32 4788187, %v5222
    %v5224 = vand.u32 2147483647, %v5223
    %v5226 = vcvt.s32.f32 %v5219
    %v5227 = vmul.f32 %v5226, %v5224
    %v5228 = vxor.u32 %v5227, 2147483648
    %v5229 = vsel %vm5146, %v5228, %v5227
    %v5230 = vsub.s32 4, %v5206
    %v5231 = vsel %vm5146, %v5230, %v5206
    %v5232 = vsel %vm5145, %v3789, %v5229
    %v5233 = vsel %vm5145, 0, %v5231
    %v5234 = vcosq.f32.pop %v5232
    %v5235 = vsinq.f32.pop %v5232
    %vm5236 = vweird.f32 %v3789
    %v5237 = vadd.s32 %v5233, 3
    %v5238 = vand.u32 %v5237, 3
    %vm5239 = vcmp.lt.s32.totalorder %v5238, 2
    %vm5240 = vcmp.eq.s32.totalorder %v5238, 0
    %v5241 = vxor.u32 %v5235, 2147483648
    %v5242 = vsel %vm5240, %v5234, %v5241
    %vm5243 = vcmp.eq.s32.totalorder %v5238, 2
    %v5244 = vxor.u32 %v5234, 2147483648
    %v5245 = vsel %vm5243, %v5244, %v5235
    %v5246 = vsel %vm5239, %v5242, %v5245
    %v5247 = vsel %vm5236, nan, %v5246
    %v5248 = vand.u32 2147483647, %v3790
    %vm5249 = vcmp.le.f32.partialorder %v5248, 0.7853982
    %vm5250 = vcmp.lt.s32.totalorder %v3790, 0
    %v5251 = vand.u32 %v3790, 2139095040
    %v5252 = vshrl.u32 %v5251, 23
    %v5253 = vsub.s32 %v5252, 127
    %v5254 = vand.u32 2147483647, %v3790
    %v5255 = vand.u32 %v5254, 8388607
    %v5256 = vor.u32 %v5255, 8388608
    %v5257 = vsub.s32 0, %v5256
    %v5258 = vadd.s32 %v5253, 1
    %vm5259 = vcmp.gt.s32.totalorder %v5258, 0
    %v5260 = vsel %vm5259, %v5258, 0
    %v5261 = vshrl.u32 %v5260, 5
    %v5262 = vand.u32 %v5260, 31
    %v5263 = vsub.s32 32, %v5262
    %v5264 = vshrl.u32 683565275, %v5263
    %v5265 = vshll.u32 683565275, %v5262
    %v5266 = vshrl.u32 2475754826, %v5263
    %v5267 = vor.u32 %v5265, %v5266
    %v5268 = vshll.u32 2475754826, %v5262
    %v5269 = vshrl.u32 2131351028, %v5263
    %v5270 = vor.u32 %v5268, %v5269
    %v5271 = vshll.u32 2131351028, %v5262
    %v5272 = vshrl.u32 2102212464, %v5263
    %v5273 = vor.u32 %v5271, %v5272
    %v5274 = vshll.u32 2102212464, %v5262
    %v5275 = vshrl.u32 920167782, %v5263
    %v5276 = vor.u32 %v5274, %v5275
    %v5277 = vshll.u32 920167782, %v5262
    %v5278 = vshrl.u32 1326507024, %v5263
    %v5279 = vor.u32 %v5277, %v5278
    %vm5280 = vcmp.lt.s32.totalorder %v5261, 1
    %vm5281 = vcmp.lt.s32.totalorder %v5261, 2
    %vm5282 = vcmp.lt.s32.totalorder %v5261, 3
    %vm5283 = vcmp.lt.s32.totalorder %v5261, 4
    %v5284 = vsel %vm5280, %v5264, %v5267
    %v5285 = vsel %vm5283, %v5273, 2102212464
    %v5286 = vsel %vm5282, %v5270, %v5285
    %v5287 = vsel %vm5281, %v5284, %v5286
    %v5288 = vsel %vm5280, %v5267, %v5270
    %v5289 = vsel %vm5283, %v5276, 920167782
    %v5290 = vsel %vm5282, %v5273, %v5289
    %v5291 = vsel %vm5281, %v5288, %v5290
    %v5292 = vsel %vm5280, %v5270, %v5273
    %v5293 = vsel %vm5283, %v5279, 1326507024
    %v5294 = vsel %vm5282, %v5276, %v5293
    %v5295 = vsel %vm5281, %v5292, %v5294
    %v5296 = vshll.u32 %v5256, 8
    %v5297 = vmul.u32.u64.compose %v5296, %v5295
    %v5298 = vextract.low.u32 %v5297
    %v5299 = vextract.high.u32 %v5297
    %v5300 = vmul.u32.u64.compose %v5296, %v5291
    %v5301 = vextract.low.u32 %v5300
    %v5302 = vextract.high.u32 %v5300
    %v5303 = vmul.u32 %v5296, %v5287
    %v5304 = vadd.s32 %v5299, %v5301
    %vm5305 = vc.u32 %v5299, %v5301
    %v5306 = vadd.s32 %v5302, 1
    %v5307 = vsel %vm5305, %v5306, %v5302
    %v5308 = vadd.s32 %v5303, %v5307
    %v5309 = vadd.s32 %v5308, 536870912
    %v5310 = vshrl.u32 %v5309, 30
    %v5311 = vshll.u32 %v5310, 30
    %v5312 = vsub.s32 %v5308, %v5311
    %vm5313 = vcmp.lt.s32.totalorder %v5312, 0
    %v5314 = vsub.s32 0, %v5312
    %v5315 = vsel %vm5313, %v5314, %v5312
    %v5316 = vclz %v5315
    %v5317 = vsub.s32 %v5316, 2
    %vm5318 = vcmp.gt.s32.totalorder 0, %v5317
    %v5319 = vsel %vm5318, 0, %v5317
    %v5320 = vsub.s32 32, %v5319
    %v5321 = vshll.u32 %v5312, %v5319
    %v5322 = vshrl.u32 %v5304, %v5320
    %v5323 = vor.u32 %v5321, %v5322
    %v5324 = vsub.s32 4294967266, %v5319
    %v5325 = vadd.s32 %v5324, 127
    %v5326 = vshll.u32 %v5325, 23
    %v5327 = vor.u32 4788187, %v5326
    %v5328 = vand.u32 2147483647, %v5327
    %v5330 = vcvt.s32.f32 %v5323
    %v5331 = vmul.f32 %v5330, %v5328
    %v5332 = vxor.u32 %v5331, 2147483648
    %v5333 = vsel %vm5250, %v5332, %v5331
    %v5334 = vsub.s32 4, %v5310
    %v5335 = vsel %vm5250, %v5334, %v5310
    %v5336 = vsel %vm5249, %v3790, %v5333
    %v5337 = vsel %vm5249, 0, %v5335
    %v5338 = vcosq.f32.pop %v5336
    %v5339 = vsinq.f32.pop %v5336
    %vm5340 = vweird.f32 %v3790
    %v5341 = vadd.s32 %v5337, 3
    %v5342 = vand.u32 %v5341, 3
    %vm5343 = vcmp.lt.s32.totalorder %v5342, 2
    %vm5344 = vcmp.eq.s32.totalorder %v5342, 0
    %v5345 = vxor.u32 %v5339, 2147483648
    %v5346 = vsel %vm5344, %v5338, %v5345
    %vm5347 = vcmp.eq.s32.totalorder %v5342, 2
    %v5348 = vxor.u32 %v5338, 2147483648
    %v5349 = vsel %vm5347, %v5348, %v5339
    %v5350 = vsel %vm5343, %v5346, %v5349
    %v5351 = vsel %vm5340, nan, %v5350
    %v5352 = vand.u32 2147483647, %v3791
    %vm5353 = vcmp.le.f32.partialorder %v5352, 0.7853982
    %vm5354 = vcmp.lt.s32.totalorder %v3791, 0
    %v5355 = vand.u32 %v3791, 2139095040
    %v5356 = vshrl.u32 %v5355, 23
    %v5357 = vsub.s32 %v5356, 127
    %v5358 = vand.u32 2147483647, %v3791
    %v5359 = vand.u32 %v5358, 8388607
    %v5360 = vor.u32 %v5359, 8388608
    %v5361 = vsub.s32 0, %v5360
    %v5362 = vadd.s32 %v5357, 1
    %vm5363 = vcmp.gt.s32.totalorder %v5362, 0
    %v5364 = vsel %vm5363, %v5362, 0
    %v5365 = vshrl.u32 %v5364, 5
    %v5366 = vand.u32 %v5364, 31
    %v5367 = vsub.s32 32, %v5366
    %v5368 = vshrl.u32 683565275, %v5367
    %v5369 = vshll.u32 683565275, %v5366
    %v5370 = vshrl.u32 2475754826, %v5367
    %v5371 = vor.u32 %v5369, %v5370
    %v5372 = vshll.u32 2475754826, %v5366
    %v5373 = vshrl.u32 2131351028, %v5367
    %v5374 = vor.u32 %v5372, %v5373
    %v5375 = vshll.u32 2131351028, %v5366
    %v5376 = vshrl.u32 2102212464, %v5367
    %v5377 = vor.u32 %v5375, %v5376
    %v5378 = vshll.u32 2102212464, %v5366
    %v5379 = vshrl.u32 920167782, %v5367
    %v5380 = vor.u32 %v5378, %v5379
    %v5381 = vshll.u32 920167782, %v5366
    %v5382 = vshrl.u32 1326507024, %v5367
    %v5383 = vor.u32 %v5381, %v5382
    %vm5384 = vcmp.lt.s32.totalorder %v5365, 1
    %vm5385 = vcmp.lt.s32.totalorder %v5365, 2
    %vm5386 = vcmp.lt.s32.totalorder %v5365, 3
    %vm5387 = vcmp.lt.s32.totalorder %v5365, 4
    %v5388 = vsel %vm5384, %v5368, %v5371
    %v5389 = vsel %vm5387, %v5377, 2102212464
    %v5390 = vsel %vm5386, %v5374, %v5389
    %v5391 = vsel %vm5385, %v5388, %v5390
    %v5392 = vsel %vm5384, %v5371, %v5374
    %v5393 = vsel %vm5387, %v5380, 920167782
    %v5394 = vsel %vm5386, %v5377, %v5393
    %v5395 = vsel %vm5385, %v5392, %v5394
    %v5396 = vsel %vm5384, %v5374, %v5377
    %v5397 = vsel %vm5387, %v5383, 1326507024
    %v5398 = vsel %vm5386, %v5380, %v5397
    %v5399 = vsel %vm5385, %v5396, %v5398
    %v5400 = vshll.u32 %v5360, 8
    %v5401 = vmul.u32.u64.compose %v5400, %v5399
    %v5402 = vextract.low.u32 %v5401
    %v5403 = vextract.high.u32 %v5401
    %v5404 = vmul.u32.u64.compose %v5400, %v5395
    %v5405 = vextract.low.u32 %v5404
    %v5406 = vextract.high.u32 %v5404
    %v5407 = vmul.u32 %v5400, %v5391
    %v5408 = vadd.s32 %v5403, %v5405
    %vm5409 = vc.u32 %v5403, %v5405
    %v5410 = vadd.s32 %v5406, 1
    %v5411 = vsel %vm5409, %v5410, %v5406
    %v5412 = vadd.s32 %v5407, %v5411
    %v5413 = vadd.s32 %v5412, 536870912
    %v5414 = vshrl.u32 %v5413, 30
    %v5415 = vshll.u32 %v5414, 30
    %v5416 = vsub.s32 %v5412, %v5415
    %vm5417 = vcmp.lt.s32.totalorder %v5416, 0
    %v5418 = vsub.s32 0, %v5416
    %v5419 = vsel %vm5417, %v5418, %v5416
    %v5420 = vclz %v5419
    %v5421 = vsub.s32 %v5420, 2
    %vm5422 = vcmp.gt.s32.totalorder 0, %v5421
    %v5423 = vsel %vm5422, 0, %v5421
    %v5424 = vsub.s32 32, %v5423
    %v5425 = vshll.u32 %v5416, %v5423
    %v5426 = vshrl.u32 %v5408, %v5424
    %v5427 = vor.u32 %v5425, %v5426
    %v5428 = vsub.s32 4294967266, %v5423
    %v5429 = vadd.s32 %v5428, 127
    %v5430 = vshll.u32 %v5429, 23
    %v5431 = vor.u32 4788187, %v5430
    %v5432 = vand.u32 2147483647, %v5431
    %v5434 = vcvt.s32.f32 %v5427
    %v5435 = vmul.f32 %v5434, %v5432
    %v5436 = vxor.u32 %v5435, 2147483648
    %v5437 = vsel %vm5354, %v5436, %v5435
    %v5438 = vsub.s32 4, %v5414
    %v5439 = vsel %vm5354, %v5438, %v5414
    %v5440 = vsel %vm5353, %v3791, %v5437
    %v5441 = vsel %vm5353, 0, %v5439
    %v5442 = vcosq.f32.pop %v5440
    %v5443 = vsinq.f32.pop %v5440
    %vm5444 = vweird.f32 %v3791
    %v5445 = vadd.s32 %v5441, 3
    %v5446 = vand.u32 %v5445, 3
    %vm5447 = vcmp.lt.s32.totalorder %v5446, 2
    %vm5448 = vcmp.eq.s32.totalorder %v5446, 0
    %v5449 = vxor.u32 %v5443, 2147483648
    %v5450 = vsel %vm5448, %v5442, %v5449
    %vm5451 = vcmp.eq.s32.totalorder %v5446, 2
    %v5452 = vxor.u32 %v5442, 2147483648
    %v5453 = vsel %vm5451, %v5452, %v5443
    %v5454 = vsel %vm5447, %v5450, %v5453
    %v5455 = vsel %vm5444, nan, %v5454
    %v5456 = vand.u32 2147483647, %v3776
    %vm5457 = vcmp.le.f32.partialorder %v5456, 0.7853982
    %vm5458 = vcmp.lt.s32.totalorder %v3776, 0
    %v5459 = vand.u32 %v3776, 2139095040
    %v5460 = vshrl.u32 %v5459, 23
    %v5461 = vsub.s32 %v5460, 127
    %v5462 = vand.u32 2147483647, %v3776
    %v5463 = vand.u32 %v5462, 8388607
    %v5464 = vor.u32 %v5463, 8388608
    %v5465 = vsub.s32 0, %v5464
    %v5466 = vadd.s32 %v5461, 1
    %vm5467 = vcmp.gt.s32.totalorder %v5466, 0
    %v5468 = vsel %vm5467, %v5466, 0
    %v5469 = vshrl.u32 %v5468, 5
    %v5470 = vand.u32 %v5468, 31
    %v5471 = vsub.s32 32, %v5470
    %v5472 = vshrl.u32 683565275, %v5471
    %v5473 = vshll.u32 683565275, %v5470
    %v5474 = vshrl.u32 2475754826, %v5471
    %v5475 = vor.u32 %v5473, %v5474
    %v5476 = vshll.u32 2475754826, %v5470
    %v5477 = vshrl.u32 2131351028, %v5471
    %v5478 = vor.u32 %v5476, %v5477
    %v5479 = vshll.u32 2131351028, %v5470
    %v5480 = vshrl.u32 2102212464, %v5471
    %v5481 = vor.u32 %v5479, %v5480
    %v5482 = vshll.u32 2102212464, %v5470
    %v5483 = vshrl.u32 920167782, %v5471
    %v5484 = vor.u32 %v5482, %v5483
    %v5485 = vshll.u32 920167782, %v5470
    %v5486 = vshrl.u32 1326507024, %v5471
    %v5487 = vor.u32 %v5485, %v5486
    %vm5488 = vcmp.lt.s32.totalorder %v5469, 1
    %vm5489 = vcmp.lt.s32.totalorder %v5469, 2
    %vm5490 = vcmp.lt.s32.totalorder %v5469, 3
    %vm5491 = vcmp.lt.s32.totalorder %v5469, 4
    %v5492 = vsel %vm5488, %v5472, %v5475
    %v5493 = vsel %vm5491, %v5481, 2102212464
    %v5494 = vsel %vm5490, %v5478, %v5493
    %v5495 = vsel %vm5489, %v5492, %v5494
    %v5496 = vsel %vm5488, %v5475, %v5478
    %v5497 = vsel %vm5491, %v5484, 920167782
    %v5498 = vsel %vm5490, %v5481, %v5497
    %v5499 = vsel %vm5489, %v5496, %v5498
    %v5500 = vsel %vm5488, %v5478, %v5481
    %v5501 = vsel %vm5491, %v5487, 1326507024
    %v5502 = vsel %vm5490, %v5484, %v5501
    %v5503 = vsel %vm5489, %v5500, %v5502
    %v5504 = vshll.u32 %v5464, 8
    %v5505 = vmul.u32.u64.compose %v5504, %v5503
    %v5506 = vextract.low.u32 %v5505
    %v5507 = vextract.high.u32 %v5505
    %v5508 = vmul.u32.u64.compose %v5504, %v5499
    %v5509 = vextract.low.u32 %v5508
    %v5510 = vextract.high.u32 %v5508
    %v5511 = vmul.u32 %v5504, %v5495
    %v5512 = vadd.s32 %v5507, %v5509
    %vm5513 = vc.u32 %v5507, %v5509
    %v5514 = vadd.s32 %v5510, 1
    %v5515 = vsel %vm5513, %v5514, %v5510
    %v5516 = vadd.s32 %v5511, %v5515
    %v5517 = vadd.s32 %v5516, 536870912
    %v5518 = vshrl.u32 %v5517, 30
    %v5519 = vshll.u32 %v5518, 30
    %v5520 = vsub.s32 %v5516, %v5519
    %vm5521 = vcmp.lt.s32.totalorder %v5520, 0
    %v5522 = vsub.s32 0, %v5520
    %v5523 = vsel %vm5521, %v5522, %v5520
    %v5524 = vclz %v5523
    %v5525 = vsub.s32 %v5524, 2
    %vm5526 = vcmp.gt.s32.totalorder 0, %v5525
    %v5527 = vsel %vm5526, 0, %v5525
    %v5528 = vsub.s32 32, %v5527
    %v5529 = vshll.u32 %v5520, %v5527
    %v5530 = vshrl.u32 %v5512, %v5528
    %v5531 = vor.u32 %v5529, %v5530
    %v5532 = vsub.s32 4294967266, %v5527
    %v5533 = vadd.s32 %v5532, 127
    %v5534 = vshll.u32 %v5533, 23
    %v5535 = vor.u32 4788187, %v5534
    %v5536 = vand.u32 2147483647, %v5535
    %v5538 = vcvt.s32.f32 %v5531
    %v5539 = vmul.f32 %v5538, %v5536
    %v5540 = vxor.u32 %v5539, 2147483648
    %v5541 = vsel %vm5458, %v5540, %v5539
    %v5542 = vsub.s32 4, %v5518
    %v5543 = vsel %vm5458, %v5542, %v5518
    %v5544 = vsel %vm5457, %v3776, %v5541
    %v5545 = vsel %vm5457, 0, %v5543
    %v5546 = vcosq.f32.pop %v5544
    %v5547 = vsinq.f32.pop %v5544
    %vm5548 = vweird.f32 %v3776
    %v5549 = vand.u32 %v5545, 3
    %vm5550 = vcmp.lt.s32.totalorder %v5549, 2
    %vm5551 = vcmp.eq.s32.totalorder %v5549, 0
    %v5552 = vxor.u32 %v5547, 2147483648
    %v5553 = vsel %vm5551, %v5546, %v5552
    %vm5554 = vcmp.eq.s32.totalorder %v5549, 2
    %v5555 = vxor.u32 %v5546, 2147483648
    %v5556 = vsel %vm5554, %v5555, %v5547
    %v5557 = vsel %vm5550, %v5553, %v5556
    %v5558 = vsel %vm5548, nan, %v5557
    %v5559 = vand.u32 2147483647, %v3777
    %vm5560 = vcmp.le.f32.partialorder %v5559, 0.7853982
    %vm5561 = vcmp.lt.s32.totalorder %v3777, 0
    %v5562 = vand.u32 %v3777, 2139095040
    %v5563 = vshrl.u32 %v5562, 23
    %v5564 = vsub.s32 %v5563, 127
    %v5565 = vand.u32 2147483647, %v3777
    %v5566 = vand.u32 %v5565, 8388607
    %v5567 = vor.u32 %v5566, 8388608
    %v5568 = vsub.s32 0, %v5567
    %v5569 = vadd.s32 %v5564, 1
    %vm5570 = vcmp.gt.s32.totalorder %v5569, 0
    %v5571 = vsel %vm5570, %v5569, 0
    %v5572 = vshrl.u32 %v5571, 5
    %v5573 = vand.u32 %v5571, 31
    %v5574 = vsub.s32 32, %v5573
    %v5575 = vshrl.u32 683565275, %v5574
    %v5576 = vshll.u32 683565275, %v5573
    %v5577 = vshrl.u32 2475754826, %v5574
    %v5578 = vor.u32 %v5576, %v5577
    %v5579 = vshll.u32 2475754826, %v5573
    %v5580 = vshrl.u32 2131351028, %v5574
    %v5581 = vor.u32 %v5579, %v5580
    %v5582 = vshll.u32 2131351028, %v5573
    %v5583 = vshrl.u32 2102212464, %v5574
    %v5584 = vor.u32 %v5582, %v5583
    %v5585 = vshll.u32 2102212464, %v5573
    %v5586 = vshrl.u32 920167782, %v5574
    %v5587 = vor.u32 %v5585, %v5586
    %v5588 = vshll.u32 920167782, %v5573
    %v5589 = vshrl.u32 1326507024, %v5574
    %v5590 = vor.u32 %v5588, %v5589
    %vm5591 = vcmp.lt.s32.totalorder %v5572, 1
    %vm5592 = vcmp.lt.s32.totalorder %v5572, 2
    %vm5593 = vcmp.lt.s32.totalorder %v5572, 3
    %vm5594 = vcmp.lt.s32.totalorder %v5572, 4
    %v5595 = vsel %vm5591, %v5575, %v5578
    %v5596 = vsel %vm5594, %v5584, 2102212464
    %v5597 = vsel %vm5593, %v5581, %v5596
    %v5598 = vsel %vm5592, %v5595, %v5597
    %v5599 = vsel %vm5591, %v5578, %v5581
    %v5600 = vsel %vm5594, %v5587, 920167782
    %v5601 = vsel %vm5593, %v5584, %v5600
    %v5602 = vsel %vm5592, %v5599, %v5601
    %v5603 = vsel %vm5591, %v5581, %v5584
    %v5604 = vsel %vm5594, %v5590, 1326507024
    %v5605 = vsel %vm5593, %v5587, %v5604
    %v5606 = vsel %vm5592, %v5603, %v5605
    %v5607 = vshll.u32 %v5567, 8
    %v5608 = vmul.u32.u64.compose %v5607, %v5606
    %v5609 = vextract.low.u32 %v5608
    %v5610 = vextract.high.u32 %v5608
    %v5611 = vmul.u32.u64.compose %v5607, %v5602
    %v5612 = vextract.low.u32 %v5611
    %v5613 = vextract.high.u32 %v5611
    %v5614 = vmul.u32 %v5607, %v5598
    %v5615 = vadd.s32 %v5610, %v5612
    %vm5616 = vc.u32 %v5610, %v5612
    %v5617 = vadd.s32 %v5613, 1
    %v5618 = vsel %vm5616, %v5617, %v5613
    %v5619 = vadd.s32 %v5614, %v5618
    %v5620 = vadd.s32 %v5619, 536870912
    %v5621 = vshrl.u32 %v5620, 30
    %v5622 = vshll.u32 %v5621, 30
    %v5623 = vsub.s32 %v5619, %v5622
    %vm5624 = vcmp.lt.s32.totalorder %v5623, 0
    %v5625 = vsub.s32 0, %v5623
    %v5626 = vsel %vm5624, %v5625, %v5623
    %v5627 = vclz %v5626
    %v5628 = vsub.s32 %v5627, 2
    %vm5629 = vcmp.gt.s32.totalorder 0, %v5628
    %v5630 = vsel %vm5629, 0, %v5628
    %v5631 = vsub.s32 32, %v5630
    %v5632 = vshll.u32 %v5623, %v5630
    %v5633 = vshrl.u32 %v5615, %v5631
    %v5634 = vor.u32 %v5632, %v5633
    %v5635 = vsub.s32 4294967266, %v5630
    %v5636 = vadd.s32 %v5635, 127
    %v5637 = vshll.u32 %v5636, 23
    %v5638 = vor.u32 4788187, %v5637
    %v5639 = vand.u32 2147483647, %v5638
    %v5641 = vcvt.s32.f32 %v5634
    %v5642 = vmul.f32 %v5641, %v5639
    %v5643 = vxor.u32 %v5642, 2147483648
    %v5644 = vsel %vm5561, %v5643, %v5642
    %v5645 = vsub.s32 4, %v5621
    %v5646 = vsel %vm5561, %v5645, %v5621
    %v5647 = vsel %vm5560, %v3777, %v5644
    %v5648 = vsel %vm5560, 0, %v5646
    %v5649 = vcosq.f32.pop %v5647
    %v5650 = vsinq.f32.pop %v5647
    %vm5651 = vweird.f32 %v3777
    %v5652 = vand.u32 %v5648, 3
    %vm5653 = vcmp.lt.s32.totalorder %v5652, 2
    %vm5654 = vcmp.eq.s32.totalorder %v5652, 0
    %v5655 = vxor.u32 %v5650, 2147483648
    %v5656 = vsel %vm5654, %v5649, %v5655
    %vm5657 = vcmp.eq.s32.totalorder %v5652, 2
    %v5658 = vxor.u32 %v5649, 2147483648
    %v5659 = vsel %vm5657, %v5658, %v5650
    %v5660 = vsel %vm5653, %v5656, %v5659
    %v5661 = vsel %vm5651, nan, %v5660
    %v5662 = vand.u32 2147483647, %v3778
    %vm5663 = vcmp.le.f32.partialorder %v5662, 0.7853982
    %vm5664 = vcmp.lt.s32.totalorder %v3778, 0
    %v5665 = vand.u32 %v3778, 2139095040
    %v5666 = vshrl.u32 %v5665, 23
    %v5667 = vsub.s32 %v5666, 127
    %v5668 = vand.u32 2147483647, %v3778
    %v5669 = vand.u32 %v5668, 8388607
    %v5670 = vor.u32 %v5669, 8388608
    %v5671 = vsub.s32 0, %v5670
    %v5672 = vadd.s32 %v5667, 1
    %vm5673 = vcmp.gt.s32.totalorder %v5672, 0
    %v5674 = vsel %vm5673, %v5672, 0
    %v5675 = vshrl.u32 %v5674, 5
    %v5676 = vand.u32 %v5674, 31
    %v5677 = vsub.s32 32, %v5676
    %v5678 = vshrl.u32 683565275, %v5677
    %v5679 = vshll.u32 683565275, %v5676
    %v5680 = vshrl.u32 2475754826, %v5677
    %v5681 = vor.u32 %v5679, %v5680
    %v5682 = vshll.u32 2475754826, %v5676
    %v5683 = vshrl.u32 2131351028, %v5677
    %v5684 = vor.u32 %v5682, %v5683
    %v5685 = vshll.u32 2131351028, %v5676
    %v5686 = vshrl.u32 2102212464, %v5677
    %v5687 = vor.u32 %v5685, %v5686
    %v5688 = vshll.u32 2102212464, %v5676
    %v5689 = vshrl.u32 920167782, %v5677
    %v5690 = vor.u32 %v5688, %v5689
    %v5691 = vshll.u32 920167782, %v5676
    %v5692 = vshrl.u32 1326507024, %v5677
    %v5693 = vor.u32 %v5691, %v5692
    %vm5694 = vcmp.lt.s32.totalorder %v5675, 1
    %vm5695 = vcmp.lt.s32.totalorder %v5675, 2
    %vm5696 = vcmp.lt.s32.totalorder %v5675, 3
    %vm5697 = vcmp.lt.s32.totalorder %v5675, 4
    %v5698 = vsel %vm5694, %v5678, %v5681
    %v5699 = vsel %vm5697, %v5687, 2102212464
    %v5700 = vsel %vm5696, %v5684, %v5699
    %v5701 = vsel %vm5695, %v5698, %v5700
    %v5702 = vsel %vm5694, %v5681, %v5684
    %v5703 = vsel %vm5697, %v5690, 920167782
    %v5704 = vsel %vm5696, %v5687, %v5703
    %v5705 = vsel %vm5695, %v5702, %v5704
    %v5706 = vsel %vm5694, %v5684, %v5687
    %v5707 = vsel %vm5697, %v5693, 1326507024
    %v5708 = vsel %vm5696, %v5690, %v5707
    %v5709 = vsel %vm5695, %v5706, %v5708
    %v5710 = vshll.u32 %v5670, 8
    %v5711 = vmul.u32.u64.compose %v5710, %v5709
    %v5712 = vextract.low.u32 %v5711
    %v5713 = vextract.high.u32 %v5711
    %v5714 = vmul.u32.u64.compose %v5710, %v5705
    %v5715 = vextract.low.u32 %v5714
    %v5716 = vextract.high.u32 %v5714
    %v5717 = vmul.u32 %v5710, %v5701
    %v5718 = vadd.s32 %v5713, %v5715
    %vm5719 = vc.u32 %v5713, %v5715
    %v5720 = vadd.s32 %v5716, 1
    %v5721 = vsel %vm5719, %v5720, %v5716
    %v5722 = vadd.s32 %v5717, %v5721
    %v5723 = vadd.s32 %v5722, 536870912
    %v5724 = vshrl.u32 %v5723, 30
    %v5725 = vshll.u32 %v5724, 30
    %v5726 = vsub.s32 %v5722, %v5725
    %vm5727 = vcmp.lt.s32.totalorder %v5726, 0
    %v5728 = vsub.s32 0, %v5726
    %v5729 = vsel %vm5727, %v5728, %v5726
    %v5730 = vclz %v5729
    %v5731 = vsub.s32 %v5730, 2
    %vm5732 = vcmp.gt.s32.totalorder 0, %v5731
    %v5733 = vsel %vm5732, 0, %v5731
    %v5734 = vsub.s32 32, %v5733
    %v5735 = vshll.u32 %v5726, %v5733
    %v5736 = vshrl.u32 %v5718, %v5734
    %v5737 = vor.u32 %v5735, %v5736
    %v5738 = vsub.s32 4294967266, %v5733
    %v5739 = vadd.s32 %v5738, 127
    %v5740 = vshll.u32 %v5739, 23
    %v5741 = vor.u32 4788187, %v5740
    %v5742 = vand.u32 2147483647, %v5741
    %v5744 = vcvt.s32.f32 %v5737
    %v5745 = vmul.f32 %v5744, %v5742
    %v5746 = vxor.u32 %v5745, 2147483648
    %v5747 = vsel %vm5664, %v5746, %v5745
    %v5748 = vsub.s32 4, %v5724
    %v5749 = vsel %vm5664, %v5748, %v5724
    %v5750 = vsel %vm5663, %v3778, %v5747
    %v5751 = vsel %vm5663, 0, %v5749
    %v5752 = vcosq.f32.pop %v5750
    %v5753 = vsinq.f32.pop %v5750
    %vm5754 = vweird.f32 %v3778
    %v5755 = vand.u32 %v5751, 3
    %vm5756 = vcmp.lt.s32.totalorder %v5755, 2
    %vm5757 = vcmp.eq.s32.totalorder %v5755, 0
    %v5758 = vxor.u32 %v5753, 2147483648
    %v5759 = vsel %vm5757, %v5752, %v5758
    %vm5760 = vcmp.eq.s32.totalorder %v5755, 2
    %v5761 = vxor.u32 %v5752, 2147483648
    %v5762 = vsel %vm5760, %v5761, %v5753
    %v5763 = vsel %vm5756, %v5759, %v5762
    %v5764 = vsel %vm5754, nan, %v5763
    %v5765 = vand.u32 2147483647, %v3779
    %vm5766 = vcmp.le.f32.partialorder %v5765, 0.7853982
    %vm5767 = vcmp.lt.s32.totalorder %v3779, 0
    %v5768 = vand.u32 %v3779, 2139095040
    %v5769 = vshrl.u32 %v5768, 23
    %v5770 = vsub.s32 %v5769, 127
    %v5771 = vand.u32 2147483647, %v3779
    %v5772 = vand.u32 %v5771, 8388607
    %v5773 = vor.u32 %v5772, 8388608
    %v5774 = vsub.s32 0, %v5773
    %v5775 = vadd.s32 %v5770, 1
    %vm5776 = vcmp.gt.s32.totalorder %v5775, 0
    %v5777 = vsel %vm5776, %v5775, 0
    %v5778 = vshrl.u32 %v5777, 5
    %v5779 = vand.u32 %v5777, 31
    %v5780 = vsub.s32 32, %v5779
    %v5781 = vshrl.u32 683565275, %v5780
    %v5782 = vshll.u32 683565275, %v5779
    %v5783 = vshrl.u32 2475754826, %v5780
    %v5784 = vor.u32 %v5782, %v5783
    %v5785 = vshll.u32 2475754826, %v5779
    %v5786 = vshrl.u32 2131351028, %v5780
    %v5787 = vor.u32 %v5785, %v5786
    %v5788 = vshll.u32 2131351028, %v5779
    %v5789 = vshrl.u32 2102212464, %v5780
    %v5790 = vor.u32 %v5788, %v5789
    %v5791 = vshll.u32 2102212464, %v5779
    %v5792 = vshrl.u32 920167782, %v5780
    %v5793 = vor.u32 %v5791, %v5792
    %v5794 = vshll.u32 920167782, %v5779
    %v5795 = vshrl.u32 1326507024, %v5780
    %v5796 = vor.u32 %v5794, %v5795
    %vm5797 = vcmp.lt.s32.totalorder %v5778, 1
    %vm5798 = vcmp.lt.s32.totalorder %v5778, 2
    %vm5799 = vcmp.lt.s32.totalorder %v5778, 3
    %vm5800 = vcmp.lt.s32.totalorder %v5778, 4
    %v5801 = vsel %vm5797, %v5781, %v5784
    %v5802 = vsel %vm5800, %v5790, 2102212464
    %v5803 = vsel %vm5799, %v5787, %v5802
    %v5804 = vsel %vm5798, %v5801, %v5803
    %v5805 = vsel %vm5797, %v5784, %v5787
    %v5806 = vsel %vm5800, %v5793, 920167782
    %v5807 = vsel %vm5799, %v5790, %v5806
    %v5808 = vsel %vm5798, %v5805, %v5807
    %v5809 = vsel %vm5797, %v5787, %v5790
    %v5810 = vsel %vm5800, %v5796, 1326507024
    %v5811 = vsel %vm5799, %v5793, %v5810
    %v5812 = vsel %vm5798, %v5809, %v5811
    %v5813 = vshll.u32 %v5773, 8
    %v5814 = vmul.u32.u64.compose %v5813, %v5812
    %v5815 = vextract.low.u32 %v5814
    %v5816 = vextract.high.u32 %v5814
    %v5817 = vmul.u32.u64.compose %v5813, %v5808
    %v5818 = vextract.low.u32 %v5817
    %v5819 = vextract.high.u32 %v5817
    %v5820 = vmul.u32 %v5813, %v5804
    %v5821 = vadd.s32 %v5816, %v5818
    %vm5822 = vc.u32 %v5816, %v5818
    %v5823 = vadd.s32 %v5819, 1
    %v5824 = vsel %vm5822, %v5823, %v5819
    %v5825 = vadd.s32 %v5820, %v5824
    %v5826 = vadd.s32 %v5825, 536870912
    %v5827 = vshrl.u32 %v5826, 30
    %v5828 = vshll.u32 %v5827, 30
    %v5829 = vsub.s32 %v5825, %v5828
    %vm5830 = vcmp.lt.s32.totalorder %v5829, 0
    %v5831 = vsub.s32 0, %v5829
    %v5832 = vsel %vm5830, %v5831, %v5829
    %v5833 = vclz %v5832
    %v5834 = vsub.s32 %v5833, 2
    %vm5835 = vcmp.gt.s32.totalorder 0, %v5834
    %v5836 = vsel %vm5835, 0, %v5834
    %v5837 = vsub.s32 32, %v5836
    %v5838 = vshll.u32 %v5829, %v5836
    %v5839 = vshrl.u32 %v5821, %v5837
    %v5840 = vor.u32 %v5838, %v5839
    %v5841 = vsub.s32 4294967266, %v5836
    %v5842 = vadd.s32 %v5841, 127
    %v5843 = vshll.u32 %v5842, 23
    %v5844 = vor.u32 4788187, %v5843
    %v5845 = vand.u32 2147483647, %v5844
    %v5847 = vcvt.s32.f32 %v5840
    %v5848 = vmul.f32 %v5847, %v5845
    %v5849 = vxor.u32 %v5848, 2147483648
    %v5850 = vsel %vm5767, %v5849, %v5848
    %v5851 = vsub.s32 4, %v5827
    %v5852 = vsel %vm5767, %v5851, %v5827
    %v5853 = vsel %vm5766, %v3779, %v5850
    %v5854 = vsel %vm5766, 0, %v5852
    %v5855 = vcosq.f32.pop %v5853
    %v5856 = vsinq.f32.pop %v5853
    %vm5857 = vweird.f32 %v3779
    %v5858 = vand.u32 %v5854, 3
    %vm5859 = vcmp.lt.s32.totalorder %v5858, 2
    %vm5860 = vcmp.eq.s32.totalorder %v5858, 0
    %v5861 = vxor.u32 %v5856, 2147483648
    %v5862 = vsel %vm5860, %v5855, %v5861
    %vm5863 = vcmp.eq.s32.totalorder %v5858, 2
    %v5864 = vxor.u32 %v5855, 2147483648
    %v5865 = vsel %vm5863, %v5864, %v5856
    %v5866 = vsel %vm5859, %v5862, %v5865
    %v5867 = vsel %vm5857, nan, %v5866
    %v5868 = vand.u32 2147483647, %v3780
    %vm5869 = vcmp.le.f32.partialorder %v5868, 0.7853982
    %vm5870 = vcmp.lt.s32.totalorder %v3780, 0
    %v5871 = vand.u32 %v3780, 2139095040
    %v5872 = vshrl.u32 %v5871, 23
    %v5873 = vsub.s32 %v5872, 127
    %v5874 = vand.u32 2147483647, %v3780
    %v5875 = vand.u32 %v5874, 8388607
    %v5876 = vor.u32 %v5875, 8388608
    %v5877 = vsub.s32 0, %v5876
    %v5878 = vadd.s32 %v5873, 1
    %vm5879 = vcmp.gt.s32.totalorder %v5878, 0
    %v5880 = vsel %vm5879, %v5878, 0
    %v5881 = vshrl.u32 %v5880, 5
    %v5882 = vand.u32 %v5880, 31
    %v5883 = vsub.s32 32, %v5882
    %v5884 = vshrl.u32 683565275, %v5883
    %v5885 = vshll.u32 683565275, %v5882
    %v5886 = vshrl.u32 2475754826, %v5883
    %v5887 = vor.u32 %v5885, %v5886
    %v5888 = vshll.u32 2475754826, %v5882
    %v5889 = vshrl.u32 2131351028, %v5883
    %v5890 = vor.u32 %v5888, %v5889
    %v5891 = vshll.u32 2131351028, %v5882
    %v5892 = vshrl.u32 2102212464, %v5883
    %v5893 = vor.u32 %v5891, %v5892
    %v5894 = vshll.u32 2102212464, %v5882
    %v5895 = vshrl.u32 920167782, %v5883
    %v5896 = vor.u32 %v5894, %v5895
    %v5897 = vshll.u32 920167782, %v5882
    %v5898 = vshrl.u32 1326507024, %v5883
    %v5899 = vor.u32 %v5897, %v5898
    %vm5900 = vcmp.lt.s32.totalorder %v5881, 1
    %vm5901 = vcmp.lt.s32.totalorder %v5881, 2
    %vm5902 = vcmp.lt.s32.totalorder %v5881, 3
    %vm5903 = vcmp.lt.s32.totalorder %v5881, 4
    %v5904 = vsel %vm5900, %v5884, %v5887
    %v5905 = vsel %vm5903, %v5893, 2102212464
    %v5906 = vsel %vm5902, %v5890, %v5905
    %v5907 = vsel %vm5901, %v5904, %v5906
    %v5908 = vsel %vm5900, %v5887, %v5890
    %v5909 = vsel %vm5903, %v5896, 920167782
    %v5910 = vsel %vm5902, %v5893, %v5909
    %v5911 = vsel %vm5901, %v5908, %v5910
    %v5912 = vsel %vm5900, %v5890, %v5893
    %v5913 = vsel %vm5903, %v5899, 1326507024
    %v5914 = vsel %vm5902, %v5896, %v5913
    %v5915 = vsel %vm5901, %v5912, %v5914
    %v5916 = vshll.u32 %v5876, 8
    %v5917 = vmul.u32.u64.compose %v5916, %v5915
    %v5918 = vextract.low.u32 %v5917
    %v5919 = vextract.high.u32 %v5917
    %v5920 = vmul.u32.u64.compose %v5916, %v5911
    %v5921 = vextract.low.u32 %v5920
    %v5922 = vextract.high.u32 %v5920
    %v5923 = vmul.u32 %v5916, %v5907
    %v5924 = vadd.s32 %v5919, %v5921
    %vm5925 = vc.u32 %v5919, %v5921
    %v5926 = vadd.s32 %v5922, 1
    %v5927 = vsel %vm5925, %v5926, %v5922
    %v5928 = vadd.s32 %v5923, %v5927
    %v5929 = vadd.s32 %v5928, 536870912
    %v5930 = vshrl.u32 %v5929, 30
    %v5931 = vshll.u32 %v5930, 30
    %v5932 = vsub.s32 %v5928, %v5931
    %vm5933 = vcmp.lt.s32.totalorder %v5932, 0
    %v5934 = vsub.s32 0, %v5932
    %v5935 = vsel %vm5933, %v5934, %v5932
    %v5936 = vclz %v5935
    %v5937 = vsub.s32 %v5936, 2
    %vm5938 = vcmp.gt.s32.totalorder 0, %v5937
    %v5939 = vsel %vm5938, 0, %v5937
    %v5940 = vsub.s32 32, %v5939
    %v5941 = vshll.u32 %v5932, %v5939
    %v5942 = vshrl.u32 %v5924, %v5940
    %v5943 = vor.u32 %v5941, %v5942
    %v5944 = vsub.s32 4294967266, %v5939
    %v5945 = vadd.s32 %v5944, 127
    %v5946 = vshll.u32 %v5945, 23
    %v5947 = vor.u32 4788187, %v5946
    %v5948 = vand.u32 2147483647, %v5947
    %v5950 = vcvt.s32.f32 %v5943
    %v5951 = vmul.f32 %v5950, %v5948
    %v5952 = vxor.u32 %v5951, 2147483648
    %v5953 = vsel %vm5870, %v5952, %v5951
    %v5954 = vsub.s32 4, %v5930
    %v5955 = vsel %vm5870, %v5954, %v5930
    %v5956 = vsel %vm5869, %v3780, %v5953
    %v5957 = vsel %vm5869, 0, %v5955
    %v5958 = vcosq.f32.pop %v5956
    %v5959 = vsinq.f32.pop %v5956
    %vm5960 = vweird.f32 %v3780
    %v5961 = vand.u32 %v5957, 3
    %vm5962 = vcmp.lt.s32.totalorder %v5961, 2
    %vm5963 = vcmp.eq.s32.totalorder %v5961, 0
    %v5964 = vxor.u32 %v5959, 2147483648
    %v5965 = vsel %vm5963, %v5958, %v5964
    %vm5966 = vcmp.eq.s32.totalorder %v5961, 2
    %v5967 = vxor.u32 %v5958, 2147483648
    %v5968 = vsel %vm5966, %v5967, %v5959
    %v5969 = vsel %vm5962, %v5965, %v5968
    %v5970 = vsel %vm5960, nan, %v5969
    %v5971 = vand.u32 2147483647, %v3781
    %vm5972 = vcmp.le.f32.partialorder %v5971, 0.7853982
    %vm5973 = vcmp.lt.s32.totalorder %v3781, 0
    %v5974 = vand.u32 %v3781, 2139095040
    %v5975 = vshrl.u32 %v5974, 23
    %v5976 = vsub.s32 %v5975, 127
    %v5977 = vand.u32 2147483647, %v3781
    %v5978 = vand.u32 %v5977, 8388607
    %v5979 = vor.u32 %v5978, 8388608
    %v5980 = vsub.s32 0, %v5979
    %v5981 = vadd.s32 %v5976, 1
    %vm5982 = vcmp.gt.s32.totalorder %v5981, 0
    %v5983 = vsel %vm5982, %v5981, 0
    %v5984 = vshrl.u32 %v5983, 5
    %v5985 = vand.u32 %v5983, 31
    %v5986 = vsub.s32 32, %v5985
    %v5987 = vshrl.u32 683565275, %v5986
    %v5988 = vshll.u32 683565275, %v5985
    %v5989 = vshrl.u32 2475754826, %v5986
    %v5990 = vor.u32 %v5988, %v5989
    %v5991 = vshll.u32 2475754826, %v5985
    %v5992 = vshrl.u32 2131351028, %v5986
    %v5993 = vor.u32 %v5991, %v5992
    %v5994 = vshll.u32 2131351028, %v5985
    %v5995 = vshrl.u32 2102212464, %v5986
    %v5996 = vor.u32 %v5994, %v5995
    %v5997 = vshll.u32 2102212464, %v5985
    %v5998 = vshrl.u32 920167782, %v5986
    %v5999 = vor.u32 %v5997, %v5998
    %v6000 = vshll.u32 920167782, %v5985
    %v6001 = vshrl.u32 1326507024, %v5986
    %v6002 = vor.u32 %v6000, %v6001
    %vm6003 = vcmp.lt.s32.totalorder %v5984, 1
    %vm6004 = vcmp.lt.s32.totalorder %v5984, 2
    %vm6005 = vcmp.lt.s32.totalorder %v5984, 3
    %vm6006 = vcmp.lt.s32.totalorder %v5984, 4
    %v6007 = vsel %vm6003, %v5987, %v5990
    %v6008 = vsel %vm6006, %v5996, 2102212464
    %v6009 = vsel %vm6005, %v5993, %v6008
    %v6010 = vsel %vm6004, %v6007, %v6009
    %v6011 = vsel %vm6003, %v5990, %v5993
    %v6012 = vsel %vm6006, %v5999, 920167782
    %v6013 = vsel %vm6005, %v5996, %v6012
    %v6014 = vsel %vm6004, %v6011, %v6013
    %v6015 = vsel %vm6003, %v5993, %v5996
    %v6016 = vsel %vm6006, %v6002, 1326507024
    %v6017 = vsel %vm6005, %v5999, %v6016
    %v6018 = vsel %vm6004, %v6015, %v6017
    %v6019 = vshll.u32 %v5979, 8
    %v6020 = vmul.u32.u64.compose %v6019, %v6018
    %v6021 = vextract.low.u32 %v6020
    %v6022 = vextract.high.u32 %v6020
    %v6023 = vmul.u32.u64.compose %v6019, %v6014
    %v6024 = vextract.low.u32 %v6023
    %v6025 = vextract.high.u32 %v6023
    %v6026 = vmul.u32 %v6019, %v6010
    %v6027 = vadd.s32 %v6022, %v6024
    %vm6028 = vc.u32 %v6022, %v6024
    %v6029 = vadd.s32 %v6025, 1
    %v6030 = vsel %vm6028, %v6029, %v6025
    %v6031 = vadd.s32 %v6026, %v6030
    %v6032 = vadd.s32 %v6031, 536870912
    %v6033 = vshrl.u32 %v6032, 30
    %v6034 = vshll.u32 %v6033, 30
    %v6035 = vsub.s32 %v6031, %v6034
    %vm6036 = vcmp.lt.s32.totalorder %v6035, 0
    %v6037 = vsub.s32 0, %v6035
    %v6038 = vsel %vm6036, %v6037, %v6035
    %v6039 = vclz %v6038
    %v6040 = vsub.s32 %v6039, 2
    %vm6041 = vcmp.gt.s32.totalorder 0, %v6040
    %v6042 = vsel %vm6041, 0, %v6040
    %v6043 = vsub.s32 32, %v6042
    %v6044 = vshll.u32 %v6035, %v6042
    %v6045 = vshrl.u32 %v6027, %v6043
    %v6046 = vor.u32 %v6044, %v6045
    %v6047 = vsub.s32 4294967266, %v6042
    %v6048 = vadd.s32 %v6047, 127
    %v6049 = vshll.u32 %v6048, 23
    %v6050 = vor.u32 4788187, %v6049
    %v6051 = vand.u32 2147483647, %v6050
    %v6053 = vcvt.s32.f32 %v6046
    %v6054 = vmul.f32 %v6053, %v6051
    %v6055 = vxor.u32 %v6054, 2147483648
    %v6056 = vsel %vm5973, %v6055, %v6054
    %v6057 = vsub.s32 4, %v6033
    %v6058 = vsel %vm5973, %v6057, %v6033
    %v6059 = vsel %vm5972, %v3781, %v6056
    %v6060 = vsel %vm5972, 0, %v6058
    %v6061 = vcosq.f32.pop %v6059
    %v6062 = vsinq.f32.pop %v6059
    %vm6063 = vweird.f32 %v3781
    %v6064 = vand.u32 %v6060, 3
    %vm6065 = vcmp.lt.s32.totalorder %v6064, 2
    %vm6066 = vcmp.eq.s32.totalorder %v6064, 0
    %v6067 = vxor.u32 %v6062, 2147483648
    %v6068 = vsel %vm6066, %v6061, %v6067
    %vm6069 = vcmp.eq.s32.totalorder %v6064, 2
    %v6070 = vxor.u32 %v6061, 2147483648
    %v6071 = vsel %vm6069, %v6070, %v6062
    %v6072 = vsel %vm6065, %v6068, %v6071
    %v6073 = vsel %vm6063, nan, %v6072
    %v6074 = vand.u32 2147483647, %v3782
    %vm6075 = vcmp.le.f32.partialorder %v6074, 0.7853982
    %vm6076 = vcmp.lt.s32.totalorder %v3782, 0
    %v6077 = vand.u32 %v3782, 2139095040
    %v6078 = vshrl.u32 %v6077, 23
    %v6079 = vsub.s32 %v6078, 127
    %v6080 = vand.u32 2147483647, %v3782
    %v6081 = vand.u32 %v6080, 8388607
    %v6082 = vor.u32 %v6081, 8388608
    %v6083 = vsub.s32 0, %v6082
    %v6084 = vadd.s32 %v6079, 1
    %vm6085 = vcmp.gt.s32.totalorder %v6084, 0
    %v6086 = vsel %vm6085, %v6084, 0
    %v6087 = vshrl.u32 %v6086, 5
    %v6088 = vand.u32 %v6086, 31
    %v6089 = vsub.s32 32, %v6088
    %v6090 = vshrl.u32 683565275, %v6089
    %v6091 = vshll.u32 683565275, %v6088
    %v6092 = vshrl.u32 2475754826, %v6089
    %v6093 = vor.u32 %v6091, %v6092
    %v6094 = vshll.u32 2475754826, %v6088
    %v6095 = vshrl.u32 2131351028, %v6089
    %v6096 = vor.u32 %v6094, %v6095
    %v6097 = vshll.u32 2131351028, %v6088
    %v6098 = vshrl.u32 2102212464, %v6089
    %v6099 = vor.u32 %v6097, %v6098
    %v6100 = vshll.u32 2102212464, %v6088
    %v6101 = vshrl.u32 920167782, %v6089
    %v6102 = vor.u32 %v6100, %v6101
    %v6103 = vshll.u32 920167782, %v6088
    %v6104 = vshrl.u32 1326507024, %v6089
    %v6105 = vor.u32 %v6103, %v6104
    %vm6106 = vcmp.lt.s32.totalorder %v6087, 1
    %vm6107 = vcmp.lt.s32.totalorder %v6087, 2
    %vm6108 = vcmp.lt.s32.totalorder %v6087, 3
    %vm6109 = vcmp.lt.s32.totalorder %v6087, 4
    %v6110 = vsel %vm6106, %v6090, %v6093
    %v6111 = vsel %vm6109, %v6099, 2102212464
    %v6112 = vsel %vm6108, %v6096, %v6111
    %v6113 = vsel %vm6107, %v6110, %v6112
    %v6114 = vsel %vm6106, %v6093, %v6096
    %v6115 = vsel %vm6109, %v6102, 920167782
    %v6116 = vsel %vm6108, %v6099, %v6115
    %v6117 = vsel %vm6107, %v6114, %v6116
    %v6118 = vsel %vm6106, %v6096, %v6099
    %v6119 = vsel %vm6109, %v6105, 1326507024
    %v6120 = vsel %vm6108, %v6102, %v6119
    %v6121 = vsel %vm6107, %v6118, %v6120
    %v6122 = vshll.u32 %v6082, 8
    %v6123 = vmul.u32.u64.compose %v6122, %v6121
    %v6124 = vextract.low.u32 %v6123
    %v6125 = vextract.high.u32 %v6123
    %v6126 = vmul.u32.u64.compose %v6122, %v6117
    %v6127 = vextract.low.u32 %v6126
    %v6128 = vextract.high.u32 %v6126
    %v6129 = vmul.u32 %v6122, %v6113
    %v6130 = vadd.s32 %v6125, %v6127
    %vm6131 = vc.u32 %v6125, %v6127
    %v6132 = vadd.s32 %v6128, 1
    %v6133 = vsel %vm6131, %v6132, %v6128
    %v6134 = vadd.s32 %v6129, %v6133
    %v6135 = vadd.s32 %v6134, 536870912
    %v6136 = vshrl.u32 %v6135, 30
    %v6137 = vshll.u32 %v6136, 30
    %v6138 = vsub.s32 %v6134, %v6137
    %vm6139 = vcmp.lt.s32.totalorder %v6138, 0
    %v6140 = vsub.s32 0, %v6138
    %v6141 = vsel %vm6139, %v6140, %v6138
    %v6142 = vclz %v6141
    %v6143 = vsub.s32 %v6142, 2
    %vm6144 = vcmp.gt.s32.totalorder 0, %v6143
    %v6145 = vsel %vm6144, 0, %v6143
    %v6146 = vsub.s32 32, %v6145
    %v6147 = vshll.u32 %v6138, %v6145
    %v6148 = vshrl.u32 %v6130, %v6146
    %v6149 = vor.u32 %v6147, %v6148
    %v6150 = vsub.s32 4294967266, %v6145
    %v6151 = vadd.s32 %v6150, 127
    %v6152 = vshll.u32 %v6151, 23
    %v6153 = vor.u32 4788187, %v6152
    %v6154 = vand.u32 2147483647, %v6153
    %v6156 = vcvt.s32.f32 %v6149
    %v6157 = vmul.f32 %v6156, %v6154
    %v6158 = vxor.u32 %v6157, 2147483648
    %v6159 = vsel %vm6076, %v6158, %v6157
    %v6160 = vsub.s32 4, %v6136
    %v6161 = vsel %vm6076, %v6160, %v6136
    %v6162 = vsel %vm6075, %v3782, %v6159
    %v6163 = vsel %vm6075, 0, %v6161
    %v6164 = vcosq.f32.pop %v6162
    %v6165 = vsinq.f32.pop %v6162
    %vm6166 = vweird.f32 %v3782
    %v6167 = vand.u32 %v6163, 3
    %vm6168 = vcmp.lt.s32.totalorder %v6167, 2
    %vm6169 = vcmp.eq.s32.totalorder %v6167, 0
    %v6170 = vxor.u32 %v6165, 2147483648
    %v6171 = vsel %vm6169, %v6164, %v6170
    %vm6172 = vcmp.eq.s32.totalorder %v6167, 2
    %v6173 = vxor.u32 %v6164, 2147483648
    %v6174 = vsel %vm6172, %v6173, %v6165
    %v6175 = vsel %vm6168, %v6171, %v6174
    %v6176 = vsel %vm6166, nan, %v6175
    %v6177 = vand.u32 2147483647, %v3783
    %vm6178 = vcmp.le.f32.partialorder %v6177, 0.7853982
    %vm6179 = vcmp.lt.s32.totalorder %v3783, 0
    %v6180 = vand.u32 %v3783, 2139095040
    %v6181 = vshrl.u32 %v6180, 23
    %v6182 = vsub.s32 %v6181, 127
    %v6183 = vand.u32 2147483647, %v3783
    %v6184 = vand.u32 %v6183, 8388607
    %v6185 = vor.u32 %v6184, 8388608
    %v6186 = vsub.s32 0, %v6185
    %v6187 = vadd.s32 %v6182, 1
    %vm6188 = vcmp.gt.s32.totalorder %v6187, 0
    %v6189 = vsel %vm6188, %v6187, 0
    %v6190 = vshrl.u32 %v6189, 5
    %v6191 = vand.u32 %v6189, 31
    %v6192 = vsub.s32 32, %v6191
    %v6193 = vshrl.u32 683565275, %v6192
    %v6194 = vshll.u32 683565275, %v6191
    %v6195 = vshrl.u32 2475754826, %v6192
    %v6196 = vor.u32 %v6194, %v6195
    %v6197 = vshll.u32 2475754826, %v6191
    %v6198 = vshrl.u32 2131351028, %v6192
    %v6199 = vor.u32 %v6197, %v6198
    %v6200 = vshll.u32 2131351028, %v6191
    %v6201 = vshrl.u32 2102212464, %v6192
    %v6202 = vor.u32 %v6200, %v6201
    %v6203 = vshll.u32 2102212464, %v6191
    %v6204 = vshrl.u32 920167782, %v6192
    %v6205 = vor.u32 %v6203, %v6204
    %v6206 = vshll.u32 920167782, %v6191
    %v6207 = vshrl.u32 1326507024, %v6192
    %v6208 = vor.u32 %v6206, %v6207
    %vm6209 = vcmp.lt.s32.totalorder %v6190, 1
    %vm6210 = vcmp.lt.s32.totalorder %v6190, 2
    %vm6211 = vcmp.lt.s32.totalorder %v6190, 3
    %vm6212 = vcmp.lt.s32.totalorder %v6190, 4
    %v6213 = vsel %vm6209, %v6193, %v6196
    %v6214 = vsel %vm6212, %v6202, 2102212464
    %v6215 = vsel %vm6211, %v6199, %v6214
    %v6216 = vsel %vm6210, %v6213, %v6215
    %v6217 = vsel %vm6209, %v6196, %v6199
    %v6218 = vsel %vm6212, %v6205, 920167782
    %v6219 = vsel %vm6211, %v6202, %v6218
    %v6220 = vsel %vm6210, %v6217, %v6219
    %v6221 = vsel %vm6209, %v6199, %v6202
    %v6222 = vsel %vm6212, %v6208, 1326507024
    %v6223 = vsel %vm6211, %v6205, %v6222
    %v6224 = vsel %vm6210, %v6221, %v6223
    %v6225 = vshll.u32 %v6185, 8
    %v6226 = vmul.u32.u64.compose %v6225, %v6224
    %v6227 = vextract.low.u32 %v6226
    %v6228 = vextract.high.u32 %v6226
    %v6229 = vmul.u32.u64.compose %v6225, %v6220
    %v6230 = vextract.low.u32 %v6229
    %v6231 = vextract.high.u32 %v6229
    %v6232 = vmul.u32 %v6225, %v6216
    %v6233 = vadd.s32 %v6228, %v6230
    %vm6234 = vc.u32 %v6228, %v6230
    %v6235 = vadd.s32 %v6231, 1
    %v6236 = vsel %vm6234, %v6235, %v6231
    %v6237 = vadd.s32 %v6232, %v6236
    %v6238 = vadd.s32 %v6237, 536870912
    %v6239 = vshrl.u32 %v6238, 30
    %v6240 = vshll.u32 %v6239, 30
    %v6241 = vsub.s32 %v6237, %v6240
    %vm6242 = vcmp.lt.s32.totalorder %v6241, 0
    %v6243 = vsub.s32 0, %v6241
    %v6244 = vsel %vm6242, %v6243, %v6241
    %v6245 = vclz %v6244
    %v6246 = vsub.s32 %v6245, 2
    %vm6247 = vcmp.gt.s32.totalorder 0, %v6246
    %v6248 = vsel %vm6247, 0, %v6246
    %v6249 = vsub.s32 32, %v6248
    %v6250 = vshll.u32 %v6241, %v6248
    %v6251 = vshrl.u32 %v6233, %v6249
    %v6252 = vor.u32 %v6250, %v6251
    %v6253 = vsub.s32 4294967266, %v6248
    %v6254 = vadd.s32 %v6253, 127
    %v6255 = vshll.u32 %v6254, 23
    %v6256 = vor.u32 4788187, %v6255
    %v6257 = vand.u32 2147483647, %v6256
    %v6259 = vcvt.s32.f32 %v6252
    %v6260 = vmul.f32 %v6259, %v6257
    %v6261 = vxor.u32 %v6260, 2147483648
    %v6262 = vsel %vm6179, %v6261, %v6260
    %v6263 = vsub.s32 4, %v6239
    %v6264 = vsel %vm6179, %v6263, %v6239
    %v6265 = vsel %vm6178, %v3783, %v6262
    %v6266 = vsel %vm6178, 0, %v6264
    %v6267 = vcosq.f32.pop %v6265
    %v6268 = vsinq.f32.pop %v6265
    %vm6269 = vweird.f32 %v3783
    %v6270 = vand.u32 %v6266, 3
    %vm6271 = vcmp.lt.s32.totalorder %v6270, 2
    %vm6272 = vcmp.eq.s32.totalorder %v6270, 0
    %v6273 = vxor.u32 %v6268, 2147483648
    %v6274 = vsel %vm6272, %v6267, %v6273
    %vm6275 = vcmp.eq.s32.totalorder %v6270, 2
    %v6276 = vxor.u32 %v6267, 2147483648
    %v6277 = vsel %vm6275, %v6276, %v6268
    %v6278 = vsel %vm6271, %v6274, %v6277
    %v6279 = vsel %vm6269, nan, %v6278
    %v6280 = vand.u32 2147483647, %v3784
    %vm6281 = vcmp.le.f32.partialorder %v6280, 0.7853982
    %vm6282 = vcmp.lt.s32.totalorder %v3784, 0
    %v6283 = vand.u32 %v3784, 2139095040
    %v6284 = vshrl.u32 %v6283, 23
    %v6285 = vsub.s32 %v6284, 127
    %v6286 = vand.u32 2147483647, %v3784
    %v6287 = vand.u32 %v6286, 8388607
    %v6288 = vor.u32 %v6287, 8388608
    %v6289 = vsub.s32 0, %v6288
    %v6290 = vadd.s32 %v6285, 1
    %vm6291 = vcmp.gt.s32.totalorder %v6290, 0
    %v6292 = vsel %vm6291, %v6290, 0
    %v6293 = vshrl.u32 %v6292, 5
    %v6294 = vand.u32 %v6292, 31
    %v6295 = vsub.s32 32, %v6294
    %v6296 = vshrl.u32 683565275, %v6295
    %v6297 = vshll.u32 683565275, %v6294
    %v6298 = vshrl.u32 2475754826, %v6295
    %v6299 = vor.u32 %v6297, %v6298
    %v6300 = vshll.u32 2475754826, %v6294
    %v6301 = vshrl.u32 2131351028, %v6295
    %v6302 = vor.u32 %v6300, %v6301
    %v6303 = vshll.u32 2131351028, %v6294
    %v6304 = vshrl.u32 2102212464, %v6295
    %v6305 = vor.u32 %v6303, %v6304
    %v6306 = vshll.u32 2102212464, %v6294
    %v6307 = vshrl.u32 920167782, %v6295
    %v6308 = vor.u32 %v6306, %v6307
    %v6309 = vshll.u32 920167782, %v6294
    %v6310 = vshrl.u32 1326507024, %v6295
    %v6311 = vor.u32 %v6309, %v6310
    %vm6312 = vcmp.lt.s32.totalorder %v6293, 1
    %vm6313 = vcmp.lt.s32.totalorder %v6293, 2
    %vm6314 = vcmp.lt.s32.totalorder %v6293, 3
    %vm6315 = vcmp.lt.s32.totalorder %v6293, 4
    %v6316 = vsel %vm6312, %v6296, %v6299
    %v6317 = vsel %vm6315, %v6305, 2102212464
    %v6318 = vsel %vm6314, %v6302, %v6317
    %v6319 = vsel %vm6313, %v6316, %v6318
    %v6320 = vsel %vm6312, %v6299, %v6302
    %v6321 = vsel %vm6315, %v6308, 920167782
    %v6322 = vsel %vm6314, %v6305, %v6321
    %v6323 = vsel %vm6313, %v6320, %v6322
    %v6324 = vsel %vm6312, %v6302, %v6305
    %v6325 = vsel %vm6315, %v6311, 1326507024
    %v6326 = vsel %vm6314, %v6308, %v6325
    %v6327 = vsel %vm6313, %v6324, %v6326
    %v6328 = vshll.u32 %v6288, 8
    %v6329 = vmul.u32.u64.compose %v6328, %v6327
    %v6330 = vextract.low.u32 %v6329
    %v6331 = vextract.high.u32 %v6329
    %v6332 = vmul.u32.u64.compose %v6328, %v6323
    %v6333 = vextract.low.u32 %v6332
    %v6334 = vextract.high.u32 %v6332
    %v6335 = vmul.u32 %v6328, %v6319
    %v6336 = vadd.s32 %v6331, %v6333
    %vm6337 = vc.u32 %v6331, %v6333
    %v6338 = vadd.s32 %v6334, 1
    %v6339 = vsel %vm6337, %v6338, %v6334
    %v6340 = vadd.s32 %v6335, %v6339
    %v6341 = vadd.s32 %v6340, 536870912
    %v6342 = vshrl.u32 %v6341, 30
    %v6343 = vshll.u32 %v6342, 30
    %v6344 = vsub.s32 %v6340, %v6343
    %vm6345 = vcmp.lt.s32.totalorder %v6344, 0
    %v6346 = vsub.s32 0, %v6344
    %v6347 = vsel %vm6345, %v6346, %v6344
    %v6348 = vclz %v6347
    %v6349 = vsub.s32 %v6348, 2
    %vm6350 = vcmp.gt.s32.totalorder 0, %v6349
    %v6351 = vsel %vm6350, 0, %v6349
    %v6352 = vsub.s32 32, %v6351
    %v6353 = vshll.u32 %v6344, %v6351
    %v6354 = vshrl.u32 %v6336, %v6352
    %v6355 = vor.u32 %v6353, %v6354
    %v6356 = vsub.s32 4294967266, %v6351
    %v6357 = vadd.s32 %v6356, 127
    %v6358 = vshll.u32 %v6357, 23
    %v6359 = vor.u32 4788187, %v6358
    %v6360 = vand.u32 2147483647, %v6359
    %v6362 = vcvt.s32.f32 %v6355
    %v6363 = vmul.f32 %v6362, %v6360
    %v6364 = vxor.u32 %v6363, 2147483648
    %v6365 = vsel %vm6282, %v6364, %v6363
    %v6366 = vsub.s32 4, %v6342
    %v6367 = vsel %vm6282, %v6366, %v6342
    %v6368 = vsel %vm6281, %v3784, %v6365
    %v6369 = vsel %vm6281, 0, %v6367
    %v6370 = vcosq.f32.pop %v6368
    %v6371 = vsinq.f32.pop %v6368
    %vm6372 = vweird.f32 %v3784
    %v6373 = vand.u32 %v6369, 3
    %vm6374 = vcmp.lt.s32.totalorder %v6373, 2
    %vm6375 = vcmp.eq.s32.totalorder %v6373, 0
    %v6376 = vxor.u32 %v6371, 2147483648
    %v6377 = vsel %vm6375, %v6370, %v6376
    %vm6378 = vcmp.eq.s32.totalorder %v6373, 2
    %v6379 = vxor.u32 %v6370, 2147483648
    %v6380 = vsel %vm6378, %v6379, %v6371
    %v6381 = vsel %vm6374, %v6377, %v6380
    %v6382 = vsel %vm6372, nan, %v6381
    %v6383 = vand.u32 2147483647, %v3785
    %vm6384 = vcmp.le.f32.partialorder %v6383, 0.7853982
    %vm6385 = vcmp.lt.s32.totalorder %v3785, 0
    %v6386 = vand.u32 %v3785, 2139095040
    %v6387 = vshrl.u32 %v6386, 23
    %v6388 = vsub.s32 %v6387, 127
    %v6389 = vand.u32 2147483647, %v3785
    %v6390 = vand.u32 %v6389, 8388607
    %v6391 = vor.u32 %v6390, 8388608
    %v6392 = vsub.s32 0, %v6391
    %v6393 = vadd.s32 %v6388, 1
    %vm6394 = vcmp.gt.s32.totalorder %v6393, 0
    %v6395 = vsel %vm6394, %v6393, 0
    %v6396 = vshrl.u32 %v6395, 5
    %v6397 = vand.u32 %v6395, 31
    %v6398 = vsub.s32 32, %v6397
    %v6399 = vshrl.u32 683565275, %v6398
    %v6400 = vshll.u32 683565275, %v6397
    %v6401 = vshrl.u32 2475754826, %v6398
    %v6402 = vor.u32 %v6400, %v6401
    %v6403 = vshll.u32 2475754826, %v6397
    %v6404 = vshrl.u32 2131351028, %v6398
    %v6405 = vor.u32 %v6403, %v6404
    %v6406 = vshll.u32 2131351028, %v6397
    %v6407 = vshrl.u32 2102212464, %v6398
    %v6408 = vor.u32 %v6406, %v6407
    %v6409 = vshll.u32 2102212464, %v6397
    %v6410 = vshrl.u32 920167782, %v6398
    %v6411 = vor.u32 %v6409, %v6410
    %v6412 = vshll.u32 920167782, %v6397
    %v6413 = vshrl.u32 1326507024, %v6398
    %v6414 = vor.u32 %v6412, %v6413
    %vm6415 = vcmp.lt.s32.totalorder %v6396, 1
    %vm6416 = vcmp.lt.s32.totalorder %v6396, 2
    %vm6417 = vcmp.lt.s32.totalorder %v6396, 3
    %vm6418 = vcmp.lt.s32.totalorder %v6396, 4
    %v6419 = vsel %vm6415, %v6399, %v6402
    %v6420 = vsel %vm6418, %v6408, 2102212464
    %v6421 = vsel %vm6417, %v6405, %v6420
    %v6422 = vsel %vm6416, %v6419, %v6421
    %v6423 = vsel %vm6415, %v6402, %v6405
    %v6424 = vsel %vm6418, %v6411, 920167782
    %v6425 = vsel %vm6417, %v6408, %v6424
    %v6426 = vsel %vm6416, %v6423, %v6425
    %v6427 = vsel %vm6415, %v6405, %v6408
    %v6428 = vsel %vm6418, %v6414, 1326507024
    %v6429 = vsel %vm6417, %v6411, %v6428
    %v6430 = vsel %vm6416, %v6427, %v6429
    %v6431 = vshll.u32 %v6391, 8
    %v6432 = vmul.u32.u64.compose %v6431, %v6430
    %v6433 = vextract.low.u32 %v6432
    %v6434 = vextract.high.u32 %v6432
    %v6435 = vmul.u32.u64.compose %v6431, %v6426
    %v6436 = vextract.low.u32 %v6435
    %v6437 = vextract.high.u32 %v6435
    %v6438 = vmul.u32 %v6431, %v6422
    %v6439 = vadd.s32 %v6434, %v6436
    %vm6440 = vc.u32 %v6434, %v6436
    %v6441 = vadd.s32 %v6437, 1
    %v6442 = vsel %vm6440, %v6441, %v6437
    %v6443 = vadd.s32 %v6438, %v6442
    %v6444 = vadd.s32 %v6443, 536870912
    %v6445 = vshrl.u32 %v6444, 30
    %v6446 = vshll.u32 %v6445, 30
    %v6447 = vsub.s32 %v6443, %v6446
    %vm6448 = vcmp.lt.s32.totalorder %v6447, 0
    %v6449 = vsub.s32 0, %v6447
    %v6450 = vsel %vm6448, %v6449, %v6447
    %v6451 = vclz %v6450
    %v6452 = vsub.s32 %v6451, 2
    %vm6453 = vcmp.gt.s32.totalorder 0, %v6452
    %v6454 = vsel %vm6453, 0, %v6452
    %v6455 = vsub.s32 32, %v6454
    %v6456 = vshll.u32 %v6447, %v6454
    %v6457 = vshrl.u32 %v6439, %v6455
    %v6458 = vor.u32 %v6456, %v6457
    %v6459 = vsub.s32 4294967266, %v6454
    %v6460 = vadd.s32 %v6459, 127
    %v6461 = vshll.u32 %v6460, 23
    %v6462 = vor.u32 4788187, %v6461
    %v6463 = vand.u32 2147483647, %v6462
    %v6465 = vcvt.s32.f32 %v6458
    %v6466 = vmul.f32 %v6465, %v6463
    %v6467 = vxor.u32 %v6466, 2147483648
    %v6468 = vsel %vm6385, %v6467, %v6466
    %v6469 = vsub.s32 4, %v6445
    %v6470 = vsel %vm6385, %v6469, %v6445
    %v6471 = vsel %vm6384, %v3785, %v6468
    %v6472 = vsel %vm6384, 0, %v6470
    %v6473 = vcosq.f32.pop %v6471
    %v6474 = vsinq.f32.pop %v6471
    %vm6475 = vweird.f32 %v3785
    %v6476 = vand.u32 %v6472, 3
    %vm6477 = vcmp.lt.s32.totalorder %v6476, 2
    %vm6478 = vcmp.eq.s32.totalorder %v6476, 0
    %v6479 = vxor.u32 %v6474, 2147483648
    %v6480 = vsel %vm6478, %v6473, %v6479
    %vm6481 = vcmp.eq.s32.totalorder %v6476, 2
    %v6482 = vxor.u32 %v6473, 2147483648
    %v6483 = vsel %vm6481, %v6482, %v6474
    %v6484 = vsel %vm6477, %v6480, %v6483
    %v6485 = vsel %vm6475, nan, %v6484
    %v6486 = vand.u32 2147483647, %v3786
    %vm6487 = vcmp.le.f32.partialorder %v6486, 0.7853982
    %vm6488 = vcmp.lt.s32.totalorder %v3786, 0
    %v6489 = vand.u32 %v3786, 2139095040
    %v6490 = vshrl.u32 %v6489, 23
    %v6491 = vsub.s32 %v6490, 127
    %v6492 = vand.u32 2147483647, %v3786
    %v6493 = vand.u32 %v6492, 8388607
    %v6494 = vor.u32 %v6493, 8388608
    %v6495 = vsub.s32 0, %v6494
    %v6496 = vadd.s32 %v6491, 1
    %vm6497 = vcmp.gt.s32.totalorder %v6496, 0
    %v6498 = vsel %vm6497, %v6496, 0
    %v6499 = vshrl.u32 %v6498, 5
    %v6500 = vand.u32 %v6498, 31
    %v6501 = vsub.s32 32, %v6500
    %v6502 = vshrl.u32 683565275, %v6501
    %v6503 = vshll.u32 683565275, %v6500
    %v6504 = vshrl.u32 2475754826, %v6501
    %v6505 = vor.u32 %v6503, %v6504
    %v6506 = vshll.u32 2475754826, %v6500
    %v6507 = vshrl.u32 2131351028, %v6501
    %v6508 = vor.u32 %v6506, %v6507
    %v6509 = vshll.u32 2131351028, %v6500
    %v6510 = vshrl.u32 2102212464, %v6501
    %v6511 = vor.u32 %v6509, %v6510
    %v6512 = vshll.u32 2102212464, %v6500
    %v6513 = vshrl.u32 920167782, %v6501
    %v6514 = vor.u32 %v6512, %v6513
    %v6515 = vshll.u32 920167782, %v6500
    %v6516 = vshrl.u32 1326507024, %v6501
    %v6517 = vor.u32 %v6515, %v6516
    %vm6518 = vcmp.lt.s32.totalorder %v6499, 1
    %vm6519 = vcmp.lt.s32.totalorder %v6499, 2
    %vm6520 = vcmp.lt.s32.totalorder %v6499, 3
    %vm6521 = vcmp.lt.s32.totalorder %v6499, 4
    %v6522 = vsel %vm6518, %v6502, %v6505
    %v6523 = vsel %vm6521, %v6511, 2102212464
    %v6524 = vsel %vm6520, %v6508, %v6523
    %v6525 = vsel %vm6519, %v6522, %v6524
    %v6526 = vsel %vm6518, %v6505, %v6508
    %v6527 = vsel %vm6521, %v6514, 920167782
    %v6528 = vsel %vm6520, %v6511, %v6527
    %v6529 = vsel %vm6519, %v6526, %v6528
    %v6530 = vsel %vm6518, %v6508, %v6511
    %v6531 = vsel %vm6521, %v6517, 1326507024
    %v6532 = vsel %vm6520, %v6514, %v6531
    %v6533 = vsel %vm6519, %v6530, %v6532
    %v6534 = vshll.u32 %v6494, 8
    %v6535 = vmul.u32.u64.compose %v6534, %v6533
    %v6536 = vextract.low.u32 %v6535
    %v6537 = vextract.high.u32 %v6535
    %v6538 = vmul.u32.u64.compose %v6534, %v6529
    %v6539 = vextract.low.u32 %v6538
    %v6540 = vextract.high.u32 %v6538
    %v6541 = vmul.u32 %v6534, %v6525
    %v6542 = vadd.s32 %v6537, %v6539
    %vm6543 = vc.u32 %v6537, %v6539
    %v6544 = vadd.s32 %v6540, 1
    %v6545 = vsel %vm6543, %v6544, %v6540
    %v6546 = vadd.s32 %v6541, %v6545
    %v6547 = vadd.s32 %v6546, 536870912
    %v6548 = vshrl.u32 %v6547, 30
    %v6549 = vshll.u32 %v6548, 30
    %v6550 = vsub.s32 %v6546, %v6549
    %vm6551 = vcmp.lt.s32.totalorder %v6550, 0
    %v6552 = vsub.s32 0, %v6550
    %v6553 = vsel %vm6551, %v6552, %v6550
    %v6554 = vclz %v6553
    %v6555 = vsub.s32 %v6554, 2
    %vm6556 = vcmp.gt.s32.totalorder 0, %v6555
    %v6557 = vsel %vm6556, 0, %v6555
    %v6558 = vsub.s32 32, %v6557
    %v6559 = vshll.u32 %v6550, %v6557
    %v6560 = vshrl.u32 %v6542, %v6558
    %v6561 = vor.u32 %v6559, %v6560
    %v6562 = vsub.s32 4294967266, %v6557
    %v6563 = vadd.s32 %v6562, 127
    %v6564 = vshll.u32 %v6563, 23
    %v6565 = vor.u32 4788187, %v6564
    %v6566 = vand.u32 2147483647, %v6565
    %v6568 = vcvt.s32.f32 %v6561
    %v6569 = vmul.f32 %v6568, %v6566
    %v6570 = vxor.u32 %v6569, 2147483648
    %v6571 = vsel %vm6488, %v6570, %v6569
    %v6572 = vsub.s32 4, %v6548
    %v6573 = vsel %vm6488, %v6572, %v6548
    %v6574 = vsel %vm6487, %v3786, %v6571
    %v6575 = vsel %vm6487, 0, %v6573
    %v6576 = vcosq.f32.pop %v6574
    %v6577 = vsinq.f32.pop %v6574
    %vm6578 = vweird.f32 %v3786
    %v6579 = vand.u32 %v6575, 3
    %vm6580 = vcmp.lt.s32.totalorder %v6579, 2
    %vm6581 = vcmp.eq.s32.totalorder %v6579, 0
    %v6582 = vxor.u32 %v6577, 2147483648
    %v6583 = vsel %vm6581, %v6576, %v6582
    %vm6584 = vcmp.eq.s32.totalorder %v6579, 2
    %v6585 = vxor.u32 %v6576, 2147483648
    %v6586 = vsel %vm6584, %v6585, %v6577
    %v6587 = vsel %vm6580, %v6583, %v6586
    %v6588 = vsel %vm6578, nan, %v6587
    %v6589 = vand.u32 2147483647, %v3787
    %vm6590 = vcmp.le.f32.partialorder %v6589, 0.7853982
    %vm6591 = vcmp.lt.s32.totalorder %v3787, 0
    %v6592 = vand.u32 %v3787, 2139095040
    %v6593 = vshrl.u32 %v6592, 23
    %v6594 = vsub.s32 %v6593, 127
    %v6595 = vand.u32 2147483647, %v3787
    %v6596 = vand.u32 %v6595, 8388607
    %v6597 = vor.u32 %v6596, 8388608
    %v6598 = vsub.s32 0, %v6597
    %v6599 = vadd.s32 %v6594, 1
    %vm6600 = vcmp.gt.s32.totalorder %v6599, 0
    %v6601 = vsel %vm6600, %v6599, 0
    %v6602 = vshrl.u32 %v6601, 5
    %v6603 = vand.u32 %v6601, 31
    %v6604 = vsub.s32 32, %v6603
    %v6605 = vshrl.u32 683565275, %v6604
    %v6606 = vshll.u32 683565275, %v6603
    %v6607 = vshrl.u32 2475754826, %v6604
    %v6608 = vor.u32 %v6606, %v6607
    %v6609 = vshll.u32 2475754826, %v6603
    %v6610 = vshrl.u32 2131351028, %v6604
    %v6611 = vor.u32 %v6609, %v6610
    %v6612 = vshll.u32 2131351028, %v6603
    %v6613 = vshrl.u32 2102212464, %v6604
    %v6614 = vor.u32 %v6612, %v6613
    %v6615 = vshll.u32 2102212464, %v6603
    %v6616 = vshrl.u32 920167782, %v6604
    %v6617 = vor.u32 %v6615, %v6616
    %v6618 = vshll.u32 920167782, %v6603
    %v6619 = vshrl.u32 1326507024, %v6604
    %v6620 = vor.u32 %v6618, %v6619
    %vm6621 = vcmp.lt.s32.totalorder %v6602, 1
    %vm6622 = vcmp.lt.s32.totalorder %v6602, 2
    %vm6623 = vcmp.lt.s32.totalorder %v6602, 3
    %vm6624 = vcmp.lt.s32.totalorder %v6602, 4
    %v6625 = vsel %vm6621, %v6605, %v6608
    %v6626 = vsel %vm6624, %v6614, 2102212464
    %v6627 = vsel %vm6623, %v6611, %v6626
    %v6628 = vsel %vm6622, %v6625, %v6627
    %v6629 = vsel %vm6621, %v6608, %v6611
    %v6630 = vsel %vm6624, %v6617, 920167782
    %v6631 = vsel %vm6623, %v6614, %v6630
    %v6632 = vsel %vm6622, %v6629, %v6631
    %v6633 = vsel %vm6621, %v6611, %v6614
    %v6634 = vsel %vm6624, %v6620, 1326507024
    %v6635 = vsel %vm6623, %v6617, %v6634
    %v6636 = vsel %vm6622, %v6633, %v6635
    %v6637 = vshll.u32 %v6597, 8
    %v6638 = vmul.u32.u64.compose %v6637, %v6636
    %v6639 = vextract.low.u32 %v6638
    %v6640 = vextract.high.u32 %v6638
    %v6641 = vmul.u32.u64.compose %v6637, %v6632
    %v6642 = vextract.low.u32 %v6641
    %v6643 = vextract.high.u32 %v6641
    %v6644 = vmul.u32 %v6637, %v6628
    %v6645 = vadd.s32 %v6640, %v6642
    %vm6646 = vc.u32 %v6640, %v6642
    %v6647 = vadd.s32 %v6643, 1
    %v6648 = vsel %vm6646, %v6647, %v6643
    %v6649 = vadd.s32 %v6644, %v6648
    %v6650 = vadd.s32 %v6649, 536870912
    %v6651 = vshrl.u32 %v6650, 30
    %v6652 = vshll.u32 %v6651, 30
    %v6653 = vsub.s32 %v6649, %v6652
    %vm6654 = vcmp.lt.s32.totalorder %v6653, 0
    %v6655 = vsub.s32 0, %v6653
    %v6656 = vsel %vm6654, %v6655, %v6653
    %v6657 = vclz %v6656
    %v6658 = vsub.s32 %v6657, 2
    %vm6659 = vcmp.gt.s32.totalorder 0, %v6658
    %v6660 = vsel %vm6659, 0, %v6658
    %v6661 = vsub.s32 32, %v6660
    %v6662 = vshll.u32 %v6653, %v6660
    %v6663 = vshrl.u32 %v6645, %v6661
    %v6664 = vor.u32 %v6662, %v6663
    %v6665 = vsub.s32 4294967266, %v6660
    %v6666 = vadd.s32 %v6665, 127
    %v6667 = vshll.u32 %v6666, 23
    %v6668 = vor.u32 4788187, %v6667
    %v6669 = vand.u32 2147483647, %v6668
    %v6671 = vcvt.s32.f32 %v6664
    %v6672 = vmul.f32 %v6671, %v6669
    %v6673 = vxor.u32 %v6672, 2147483648
    %v6674 = vsel %vm6591, %v6673, %v6672
    %v6675 = vsub.s32 4, %v6651
    %v6676 = vsel %vm6591, %v6675, %v6651
    %v6677 = vsel %vm6590, %v3787, %v6674
    %v6678 = vsel %vm6590, 0, %v6676
    %v6679 = vcosq.f32.pop %v6677
    %v6680 = vsinq.f32.pop %v6677
    %vm6681 = vweird.f32 %v3787
    %v6682 = vand.u32 %v6678, 3
    %vm6683 = vcmp.lt.s32.totalorder %v6682, 2
    %vm6684 = vcmp.eq.s32.totalorder %v6682, 0
    %v6685 = vxor.u32 %v6680, 2147483648
    %v6686 = vsel %vm6684, %v6679, %v6685
    %vm6687 = vcmp.eq.s32.totalorder %v6682, 2
    %v6688 = vxor.u32 %v6679, 2147483648
    %v6689 = vsel %vm6687, %v6688, %v6680
    %v6690 = vsel %vm6683, %v6686, %v6689
    %v6691 = vsel %vm6681, nan, %v6690
    %v6692 = vand.u32 2147483647, %v3788
    %vm6693 = vcmp.le.f32.partialorder %v6692, 0.7853982
    %vm6694 = vcmp.lt.s32.totalorder %v3788, 0
    %v6695 = vand.u32 %v3788, 2139095040
    %v6696 = vshrl.u32 %v6695, 23
    %v6697 = vsub.s32 %v6696, 127
    %v6698 = vand.u32 2147483647, %v3788
    %v6699 = vand.u32 %v6698, 8388607
    %v6700 = vor.u32 %v6699, 8388608
    %v6701 = vsub.s32 0, %v6700
    %v6702 = vadd.s32 %v6697, 1
    %vm6703 = vcmp.gt.s32.totalorder %v6702, 0
    %v6704 = vsel %vm6703, %v6702, 0
    %v6705 = vshrl.u32 %v6704, 5
    %v6706 = vand.u32 %v6704, 31
    %v6707 = vsub.s32 32, %v6706
    %v6708 = vshrl.u32 683565275, %v6707
    %v6709 = vshll.u32 683565275, %v6706
    %v6710 = vshrl.u32 2475754826, %v6707
    %v6711 = vor.u32 %v6709, %v6710
    %v6712 = vshll.u32 2475754826, %v6706
    %v6713 = vshrl.u32 2131351028, %v6707
    %v6714 = vor.u32 %v6712, %v6713
    %v6715 = vshll.u32 2131351028, %v6706
    %v6716 = vshrl.u32 2102212464, %v6707
    %v6717 = vor.u32 %v6715, %v6716
    %v6718 = vshll.u32 2102212464, %v6706
    %v6719 = vshrl.u32 920167782, %v6707
    %v6720 = vor.u32 %v6718, %v6719
    %v6721 = vshll.u32 920167782, %v6706
    %v6722 = vshrl.u32 1326507024, %v6707
    %v6723 = vor.u32 %v6721, %v6722
    %vm6724 = vcmp.lt.s32.totalorder %v6705, 1
    %vm6725 = vcmp.lt.s32.totalorder %v6705, 2
    %vm6726 = vcmp.lt.s32.totalorder %v6705, 3
    %vm6727 = vcmp.lt.s32.totalorder %v6705, 4
    %v6728 = vsel %vm6724, %v6708, %v6711
    %v6729 = vsel %vm6727, %v6717, 2102212464
    %v6730 = vsel %vm6726, %v6714, %v6729
    %v6731 = vsel %vm6725, %v6728, %v6730
    %v6732 = vsel %vm6724, %v6711, %v6714
    %v6733 = vsel %vm6727, %v6720, 920167782
    %v6734 = vsel %vm6726, %v6717, %v6733
    %v6735 = vsel %vm6725, %v6732, %v6734
    %v6736 = vsel %vm6724, %v6714, %v6717
    %v6737 = vsel %vm6727, %v6723, 1326507024
    %v6738 = vsel %vm6726, %v6720, %v6737
    %v6739 = vsel %vm6725, %v6736, %v6738
    %v6740 = vshll.u32 %v6700, 8
    %v6741 = vmul.u32.u64.compose %v6740, %v6739
    %v6742 = vextract.low.u32 %v6741
    %v6743 = vextract.high.u32 %v6741
    %v6744 = vmul.u32.u64.compose %v6740, %v6735
    %v6745 = vextract.low.u32 %v6744
    %v6746 = vextract.high.u32 %v6744
    %v6747 = vmul.u32 %v6740, %v6731
    %v6748 = vadd.s32 %v6743, %v6745
    %vm6749 = vc.u32 %v6743, %v6745
    %v6750 = vadd.s32 %v6746, 1
    %v6751 = vsel %vm6749, %v6750, %v6746
    %v6752 = vadd.s32 %v6747, %v6751
    %v6753 = vadd.s32 %v6752, 536870912
    %v6754 = vshrl.u32 %v6753, 30
    %v6755 = vshll.u32 %v6754, 30
    %v6756 = vsub.s32 %v6752, %v6755
    %vm6757 = vcmp.lt.s32.totalorder %v6756, 0
    %v6758 = vsub.s32 0, %v6756
    %v6759 = vsel %vm6757, %v6758, %v6756
    %v6760 = vclz %v6759
    %v6761 = vsub.s32 %v6760, 2
    %vm6762 = vcmp.gt.s32.totalorder 0, %v6761
    %v6763 = vsel %vm6762, 0, %v6761
    %v6764 = vsub.s32 32, %v6763
    %v6765 = vshll.u32 %v6756, %v6763
    %v6766 = vshrl.u32 %v6748, %v6764
    %v6767 = vor.u32 %v6765, %v6766
    %v6768 = vsub.s32 4294967266, %v6763
    %v6769 = vadd.s32 %v6768, 127
    %v6770 = vshll.u32 %v6769, 23
    %v6771 = vor.u32 4788187, %v6770
    %v6772 = vand.u32 2147483647, %v6771
    %v6774 = vcvt.s32.f32 %v6767
    %v6775 = vmul.f32 %v6774, %v6772
    %v6776 = vxor.u32 %v6775, 2147483648
    %v6777 = vsel %vm6694, %v6776, %v6775
    %v6778 = vsub.s32 4, %v6754
    %v6779 = vsel %vm6694, %v6778, %v6754
    %v6780 = vsel %vm6693, %v3788, %v6777
    %v6781 = vsel %vm6693, 0, %v6779
    %v6782 = vcosq.f32.pop %v6780
    %v6783 = vsinq.f32.pop %v6780
    %vm6784 = vweird.f32 %v3788
    %v6785 = vand.u32 %v6781, 3
    %vm6786 = vcmp.lt.s32.totalorder %v6785, 2
    %vm6787 = vcmp.eq.s32.totalorder %v6785, 0
    %v6788 = vxor.u32 %v6783, 2147483648
    %v6789 = vsel %vm6787, %v6782, %v6788
    %vm6790 = vcmp.eq.s32.totalorder %v6785, 2
    %v6791 = vxor.u32 %v6782, 2147483648
    %v6792 = vsel %vm6790, %v6791, %v6783
    %v6793 = vsel %vm6786, %v6789, %v6792
    %v6794 = vsel %vm6784, nan, %v6793
    %v6795 = vand.u32 2147483647, %v3789
    %vm6796 = vcmp.le.f32.partialorder %v6795, 0.7853982
    %vm6797 = vcmp.lt.s32.totalorder %v3789, 0
    %v6798 = vand.u32 %v3789, 2139095040
    %v6799 = vshrl.u32 %v6798, 23
    %v6800 = vsub.s32 %v6799, 127
    %v6801 = vand.u32 2147483647, %v3789
    %v6802 = vand.u32 %v6801, 8388607
    %v6803 = vor.u32 %v6802, 8388608
    %v6804 = vsub.s32 0, %v6803
    %v6805 = vadd.s32 %v6800, 1
    %vm6806 = vcmp.gt.s32.totalorder %v6805, 0
    %v6807 = vsel %vm6806, %v6805, 0
    %v6808 = vshrl.u32 %v6807, 5
    %v6809 = vand.u32 %v6807, 31
    %v6810 = vsub.s32 32, %v6809
    %v6811 = vshrl.u32 683565275, %v6810
    %v6812 = vshll.u32 683565275, %v6809
    %v6813 = vshrl.u32 2475754826, %v6810
    %v6814 = vor.u32 %v6812, %v6813
    %v6815 = vshll.u32 2475754826, %v6809
    %v6816 = vshrl.u32 2131351028, %v6810
    %v6817 = vor.u32 %v6815, %v6816
    %v6818 = vshll.u32 2131351028, %v6809
    %v6819 = vshrl.u32 2102212464, %v6810
    %v6820 = vor.u32 %v6818, %v6819
    %v6821 = vshll.u32 2102212464, %v6809
    %v6822 = vshrl.u32 920167782, %v6810
    %v6823 = vor.u32 %v6821, %v6822
    %v6824 = vshll.u32 920167782, %v6809
    %v6825 = vshrl.u32 1326507024, %v6810
    %v6826 = vor.u32 %v6824, %v6825
    %vm6827 = vcmp.lt.s32.totalorder %v6808, 1
    %vm6828 = vcmp.lt.s32.totalorder %v6808, 2
    %vm6829 = vcmp.lt.s32.totalorder %v6808, 3
    %vm6830 = vcmp.lt.s32.totalorder %v6808, 4
    %v6831 = vsel %vm6827, %v6811, %v6814
    %v6832 = vsel %vm6830, %v6820, 2102212464
    %v6833 = vsel %vm6829, %v6817, %v6832
    %v6834 = vsel %vm6828, %v6831, %v6833
    %v6835 = vsel %vm6827, %v6814, %v6817
    %v6836 = vsel %vm6830, %v6823, 920167782
    %v6837 = vsel %vm6829, %v6820, %v6836
    %v6838 = vsel %vm6828, %v6835, %v6837
    %v6839 = vsel %vm6827, %v6817, %v6820
    %v6840 = vsel %vm6830, %v6826, 1326507024
    %v6841 = vsel %vm6829, %v6823, %v6840
    %v6842 = vsel %vm6828, %v6839, %v6841
    %v6843 = vshll.u32 %v6803, 8
    %v6844 = vmul.u32.u64.compose %v6843, %v6842
    %v6845 = vextract.low.u32 %v6844
    %v6846 = vextract.high.u32 %v6844
    %v6847 = vmul.u32.u64.compose %v6843, %v6838
    %v6848 = vextract.low.u32 %v6847
    %v6849 = vextract.high.u32 %v6847
    %v6850 = vmul.u32 %v6843, %v6834
    %v6851 = vadd.s32 %v6846, %v6848
    %vm6852 = vc.u32 %v6846, %v6848
    %v6853 = vadd.s32 %v6849, 1
    %v6854 = vsel %vm6852, %v6853, %v6849
    %v6855 = vadd.s32 %v6850, %v6854
    %v6856 = vadd.s32 %v6855, 536870912
    %v6857 = vshrl.u32 %v6856, 30
    %v6858 = vshll.u32 %v6857, 30
    %v6859 = vsub.s32 %v6855, %v6858
    %vm6860 = vcmp.lt.s32.totalorder %v6859, 0
    %v6861 = vsub.s32 0, %v6859
    %v6862 = vsel %vm6860, %v6861, %v6859
    %v6863 = vclz %v6862
    %v6864 = vsub.s32 %v6863, 2
    %vm6865 = vcmp.gt.s32.totalorder 0, %v6864
    %v6866 = vsel %vm6865, 0, %v6864
    %v6867 = vsub.s32 32, %v6866
    %v6868 = vshll.u32 %v6859, %v6866
    %v6869 = vshrl.u32 %v6851, %v6867
    %v6870 = vor.u32 %v6868, %v6869
    %v6871 = vsub.s32 4294967266, %v6866
    %v6872 = vadd.s32 %v6871, 127
    %v6873 = vshll.u32 %v6872, 23
    %v6874 = vor.u32 4788187, %v6873
    %v6875 = vand.u32 2147483647, %v6874
    %v6877 = vcvt.s32.f32 %v6870
    %v6878 = vmul.f32 %v6877, %v6875
    %v6879 = vxor.u32 %v6878, 2147483648
    %v6880 = vsel %vm6797, %v6879, %v6878
    %v6881 = vsub.s32 4, %v6857
    %v6882 = vsel %vm6797, %v6881, %v6857
    %v6883 = vsel %vm6796, %v3789, %v6880
    %v6884 = vsel %vm6796, 0, %v6882
    %v6885 = vcosq.f32.pop %v6883
    %v6886 = vsinq.f32.pop %v6883
    %vm6887 = vweird.f32 %v3789
    %v6888 = vand.u32 %v6884, 3
    %vm6889 = vcmp.lt.s32.totalorder %v6888, 2
    %vm6890 = vcmp.eq.s32.totalorder %v6888, 0
    %v6891 = vxor.u32 %v6886, 2147483648
    %v6892 = vsel %vm6890, %v6885, %v6891
    %vm6893 = vcmp.eq.s32.totalorder %v6888, 2
    %v6894 = vxor.u32 %v6885, 2147483648
    %v6895 = vsel %vm6893, %v6894, %v6886
    %v6896 = vsel %vm6889, %v6892, %v6895
    %v6897 = vsel %vm6887, nan, %v6896
    %v6898 = vand.u32 2147483647, %v3790
    %vm6899 = vcmp.le.f32.partialorder %v6898, 0.7853982
    %vm6900 = vcmp.lt.s32.totalorder %v3790, 0
    %v6901 = vand.u32 %v3790, 2139095040
    %v6902 = vshrl.u32 %v6901, 23
    %v6903 = vsub.s32 %v6902, 127
    %v6904 = vand.u32 2147483647, %v3790
    %v6905 = vand.u32 %v6904, 8388607
    %v6906 = vor.u32 %v6905, 8388608
    %v6907 = vsub.s32 0, %v6906
    %v6908 = vadd.s32 %v6903, 1
    %vm6909 = vcmp.gt.s32.totalorder %v6908, 0
    %v6910 = vsel %vm6909, %v6908, 0
    %v6911 = vshrl.u32 %v6910, 5
    %v6912 = vand.u32 %v6910, 31
    %v6913 = vsub.s32 32, %v6912
    %v6914 = vshrl.u32 683565275, %v6913
    %v6915 = vshll.u32 683565275, %v6912
    %v6916 = vshrl.u32 2475754826, %v6913
    %v6917 = vor.u32 %v6915, %v6916
    %v6918 = vshll.u32 2475754826, %v6912
    %v6919 = vshrl.u32 2131351028, %v6913
    %v6920 = vor.u32 %v6918, %v6919
    %v6921 = vshll.u32 2131351028, %v6912
    %v6922 = vshrl.u32 2102212464, %v6913
    %v6923 = vor.u32 %v6921, %v6922
    %v6924 = vshll.u32 2102212464, %v6912
    %v6925 = vshrl.u32 920167782, %v6913
    %v6926 = vor.u32 %v6924, %v6925
    %v6927 = vshll.u32 920167782, %v6912
    %v6928 = vshrl.u32 1326507024, %v6913
    %v6929 = vor.u32 %v6927, %v6928
    %vm6930 = vcmp.lt.s32.totalorder %v6911, 1
    %vm6931 = vcmp.lt.s32.totalorder %v6911, 2
    %vm6932 = vcmp.lt.s32.totalorder %v6911, 3
    %vm6933 = vcmp.lt.s32.totalorder %v6911, 4
    %v6934 = vsel %vm6930, %v6914, %v6917
    %v6935 = vsel %vm6933, %v6923, 2102212464
    %v6936 = vsel %vm6932, %v6920, %v6935
    %v6937 = vsel %vm6931, %v6934, %v6936
    %v6938 = vsel %vm6930, %v6917, %v6920
    %v6939 = vsel %vm6933, %v6926, 920167782
    %v6940 = vsel %vm6932, %v6923, %v6939
    %v6941 = vsel %vm6931, %v6938, %v6940
    %v6942 = vsel %vm6930, %v6920, %v6923
    %v6943 = vsel %vm6933, %v6929, 1326507024
    %v6944 = vsel %vm6932, %v6926, %v6943
    %v6945 = vsel %vm6931, %v6942, %v6944
    %v6946 = vshll.u32 %v6906, 8
    %v6947 = vmul.u32.u64.compose %v6946, %v6945
    %v6948 = vextract.low.u32 %v6947
    %v6949 = vextract.high.u32 %v6947
    %v6950 = vmul.u32.u64.compose %v6946, %v6941
    %v6951 = vextract.low.u32 %v6950
    %v6952 = vextract.high.u32 %v6950
    %v6953 = vmul.u32 %v6946, %v6937
    %v6954 = vadd.s32 %v6949, %v6951
    %vm6955 = vc.u32 %v6949, %v6951
    %v6956 = vadd.s32 %v6952, 1
    %v6957 = vsel %vm6955, %v6956, %v6952
    %v6958 = vadd.s32 %v6953, %v6957
    %v6959 = vadd.s32 %v6958, 536870912
    %v6960 = vshrl.u32 %v6959, 30
    %v6961 = vshll.u32 %v6960, 30
    %v6962 = vsub.s32 %v6958, %v6961
    %vm6963 = vcmp.lt.s32.totalorder %v6962, 0
    %v6964 = vsub.s32 0, %v6962
    %v6965 = vsel %vm6963, %v6964, %v6962
    %v6966 = vclz %v6965
    %v6967 = vsub.s32 %v6966, 2
    %vm6968 = vcmp.gt.s32.totalorder 0, %v6967
    %v6969 = vsel %vm6968, 0, %v6967
    %v6970 = vsub.s32 32, %v6969
    %v6971 = vshll.u32 %v6962, %v6969
    %v6972 = vshrl.u32 %v6954, %v6970
    %v6973 = vor.u32 %v6971, %v6972
    %v6974 = vsub.s32 4294967266, %v6969
    %v6975 = vadd.s32 %v6974, 127
    %v6976 = vshll.u32 %v6975, 23
    %v6977 = vor.u32 4788187, %v6976
    %v6978 = vand.u32 2147483647, %v6977
    %v6980 = vcvt.s32.f32 %v6973
    %v6981 = vmul.f32 %v6980, %v6978
    %v6982 = vxor.u32 %v6981, 2147483648
    %v6983 = vsel %vm6900, %v6982, %v6981
    %v6984 = vsub.s32 4, %v6960
    %v6985 = vsel %vm6900, %v6984, %v6960
    %v6986 = vsel %vm6899, %v3790, %v6983
    %v6987 = vsel %vm6899, 0, %v6985
    %v6988 = vcosq.f32.pop %v6986
    %v6989 = vsinq.f32.pop %v6986
    %vm6990 = vweird.f32 %v3790
    %v6991 = vand.u32 %v6987, 3
    %vm6992 = vcmp.lt.s32.totalorder %v6991, 2
    %vm6993 = vcmp.eq.s32.totalorder %v6991, 0
    %v6994 = vxor.u32 %v6989, 2147483648
    %v6995 = vsel %vm6993, %v6988, %v6994
    %vm6996 = vcmp.eq.s32.totalorder %v6991, 2
    %v6997 = vxor.u32 %v6988, 2147483648
    %v6998 = vsel %vm6996, %v6997, %v6989
    %v6999 = vsel %vm6992, %v6995, %v6998
    %v7000 = vsel %vm6990, nan, %v6999
    %v7001 = vand.u32 2147483647, %v3791
    %vm7002 = vcmp.le.f32.partialorder %v7001, 0.7853982
    %vm7003 = vcmp.lt.s32.totalorder %v3791, 0
    %v7004 = vand.u32 %v3791, 2139095040
    %v7005 = vshrl.u32 %v7004, 23
    %v7006 = vsub.s32 %v7005, 127
    %v7007 = vand.u32 2147483647, %v3791
    %v7008 = vand.u32 %v7007, 8388607
    %v7009 = vor.u32 %v7008, 8388608
    %v7010 = vsub.s32 0, %v7009
    %v7011 = vadd.s32 %v7006, 1
    %vm7012 = vcmp.gt.s32.totalorder %v7011, 0
    %v7013 = vsel %vm7012, %v7011, 0
    %v7014 = vshrl.u32 %v7013, 5
    %v7015 = vand.u32 %v7013, 31
    %v7016 = vsub.s32 32, %v7015
    %v7017 = vshrl.u32 683565275, %v7016
    %v7018 = vshll.u32 683565275, %v7015
    %v7019 = vshrl.u32 2475754826, %v7016
    %v7020 = vor.u32 %v7018, %v7019
    %v7021 = vshll.u32 2475754826, %v7015
    %v7022 = vshrl.u32 2131351028, %v7016
    %v7023 = vor.u32 %v7021, %v7022
    %v7024 = vshll.u32 2131351028, %v7015
    %v7025 = vshrl.u32 2102212464, %v7016
    %v7026 = vor.u32 %v7024, %v7025
    %v7027 = vshll.u32 2102212464, %v7015
    %v7028 = vshrl.u32 920167782, %v7016
    %v7029 = vor.u32 %v7027, %v7028
    %v7030 = vshll.u32 920167782, %v7015
    %v7031 = vshrl.u32 1326507024, %v7016
    %v7032 = vor.u32 %v7030, %v7031
    %vm7033 = vcmp.lt.s32.totalorder %v7014, 1
    %vm7034 = vcmp.lt.s32.totalorder %v7014, 2
    %vm7035 = vcmp.lt.s32.totalorder %v7014, 3
    %vm7036 = vcmp.lt.s32.totalorder %v7014, 4
    %v7037 = vsel %vm7033, %v7017, %v7020
    %v7038 = vsel %vm7036, %v7026, 2102212464
    %v7039 = vsel %vm7035, %v7023, %v7038
    %v7040 = vsel %vm7034, %v7037, %v7039
    %v7041 = vsel %vm7033, %v7020, %v7023
    %v7042 = vsel %vm7036, %v7029, 920167782
    %v7043 = vsel %vm7035, %v7026, %v7042
    %v7044 = vsel %vm7034, %v7041, %v7043
    %v7045 = vsel %vm7033, %v7023, %v7026
    %v7046 = vsel %vm7036, %v7032, 1326507024
    %v7047 = vsel %vm7035, %v7029, %v7046
    %v7048 = vsel %vm7034, %v7045, %v7047
    %v7049 = vshll.u32 %v7009, 8
    %v7050 = vmul.u32.u64.compose %v7049, %v7048
    %v7051 = vextract.low.u32 %v7050
    %v7052 = vextract.high.u32 %v7050
    %v7053 = vmul.u32.u64.compose %v7049, %v7044
    %v7054 = vextract.low.u32 %v7053
    %v7055 = vextract.high.u32 %v7053
    %v7056 = vmul.u32 %v7049, %v7040
    %v7057 = vadd.s32 %v7052, %v7054
    %vm7058 = vc.u32 %v7052, %v7054
    %v7059 = vadd.s32 %v7055, 1
    %v7060 = vsel %vm7058, %v7059, %v7055
    %v7061 = vadd.s32 %v7056, %v7060
    %v7062 = vadd.s32 %v7061, 536870912
    %v7063 = vshrl.u32 %v7062, 30
    %v7064 = vshll.u32 %v7063, 30
    %v7065 = vsub.s32 %v7061, %v7064
    %vm7066 = vcmp.lt.s32.totalorder %v7065, 0
    %v7067 = vsub.s32 0, %v7065
    %v7068 = vsel %vm7066, %v7067, %v7065
    %v7069 = vclz %v7068
    %v7070 = vsub.s32 %v7069, 2
    %vm7071 = vcmp.gt.s32.totalorder 0, %v7070
    %v7072 = vsel %vm7071, 0, %v7070
    %v7073 = vsub.s32 32, %v7072
    %v7074 = vshll.u32 %v7065, %v7072
    %v7075 = vshrl.u32 %v7057, %v7073
    %v7076 = vor.u32 %v7074, %v7075
    %v7077 = vsub.s32 4294967266, %v7072
    %v7078 = vadd.s32 %v7077, 127
    %v7079 = vshll.u32 %v7078, 23
    %v7080 = vor.u32 4788187, %v7079
    %v7081 = vand.u32 2147483647, %v7080
    %v7083 = vcvt.s32.f32 %v7076
    %v7084 = vmul.f32 %v7083, %v7081
    %v7085 = vxor.u32 %v7084, 2147483648
    %v7086 = vsel %vm7003, %v7085, %v7084
    %v7087 = vsub.s32 4, %v7063
    %v7088 = vsel %vm7003, %v7087, %v7063
    %v7089 = vsel %vm7002, %v3791, %v7086
    %v7090 = vsel %vm7002, 0, %v7088
    %v7091 = vcosq.f32.pop %v7089
    %v7092 = vsinq.f32.pop %v7089
    %vm7093 = vweird.f32 %v3791
    %v7094 = vand.u32 %v7090, 3
    %vm7095 = vcmp.lt.s32.totalorder %v7094, 2
    %vm7096 = vcmp.eq.s32.totalorder %v7094, 0
    %v7097 = vxor.u32 %v7092, 2147483648
    %v7098 = vsel %vm7096, %v7091, %v7097
    %vm7099 = vcmp.eq.s32.totalorder %v7094, 2
    %v7100 = vxor.u32 %v7091, 2147483648
    %v7101 = vsel %vm7099, %v7100, %v7092
    %v7102 = vsel %vm7095, %v7098, %v7101
    %v7103 = vsel %vm7093, nan, %v7102
    %v7104 = vld [vmem:[%s4] sm:$0xff]
    %v7105 = vld [vmem:[%s4 + $0x8] sm:$0xff]
    %v7106 = vld [vmem:[%s4 + $0x10] sm:$0xff]
    %v7107 = vld [vmem:[%s4 + $0x18] sm:$0xff]
    %v7108 = vld [vmem:[%s5] sm:$0xff]
    %v7109 = vld [vmem:[%s5 + $0x8] sm:$0xff]
    %v7110 = vld [vmem:[%s5 + $0x10] sm:$0xff]
    %v7111 = vld [vmem:[%s5 + $0x18] sm:$0xff]
    %vm7112 = vcmask 261120
    %v7114 = vsel %vm7112, %v5558, 0
    %v7117 = vsel %vm7112, %v5661, 0
    %v7120 = vsel %vm7112, %v5764, 0
    %v7123 = vsel %vm7112, %v5867, 0
    %v7126 = vsel %vm7112, %v5970, 0
    %v7129 = vsel %vm7112, %v6073, 0
    %v7132 = vsel %vm7112, %v6176, 0
    %v7135 = vsel %vm7112, %v6279, 0
    %v7138 = vsel %vm7112, %v6382, 0
    %v7141 = vsel %vm7112, %v6485, 0
    %v7144 = vsel %vm7112, %v6588, 0
    %v7147 = vsel %vm7112, %v6691, 0
    %v7150 = vsel %vm7112, %v6794, 0
    %v7153 = vsel %vm7112, %v6897, 0
    %v7156 = vsel %vm7112, %v7000, 0
    %v7159 = vsel %vm7112, %v7103, 0
    %7161 = vmatprep.subr.mxu0 0.0
    %7162 = vmatpush1.msra.mxu0 0.0
    %7163 = vmatprep.subr.mxu0 0.0
    %7164 = vmatpush1.msra.mxu0 0.0
    %7165 = vmatprep.subr.mxu0 0.0
    %7166 = vmatpush1.msra.mxu0 0.0
    %7167 = vmatprep.subr.mxu0 0.0
    %7168 = vmatpush1.msra.mxu0 0.0
    %7169 = vmatprep.subr.mxu0 0.0
    %7170 = vmatpush1.msra.mxu0 0.0
    %7171 = vmatprep.subr.mxu0 0.0
    %7172 = vmatpush1.msra.mxu0 0.0
    %7173 = vmatprep.subr.mxu0 0.0
    %7174 = vmatpush1.msra.mxu0 0.0
    %7175 = vmatprep.subr.mxu0 0.0
    %7176 = vmatpush1.msra.mxu0 0.0
    %7177 = vmatprep.subr.mxu0 0.0
    %7178 = vmatpush1.msra.mxu0 0.0
    %7179 = vmatprep.subr.mxu0 0.0
    %7180 = vmatpush1.msra.mxu0 0.0
    %7181 = vmatprep.subr.mxu0 0.0
    %7182 = vmatpush1.msra.mxu0 0.0
    %7183 = vmatprep.subr.mxu0 0.0
    %7184 = vmatpush1.msra.mxu0 0.0
    %7185 = vmatprep.subr.mxu0 0.0
    %7186 = vmatpush1.msra.mxu0 %v7111
    %7187 = vmatprep.subr.mxu0 0.0
    %7188 = vmatpush1.msra.mxu0 %v7110
    %7189 = vmatprep.subr.mxu0 0.0
    %7190 = vmatpush1.msra.mxu0 %v7109
    %7191 = vmatprep.subr.mxu0 0.0
    %7192 = vmatpush1.msra.mxu0 %v7108
    %7193 = vmatprep.subr.mxu0 0.0
    %7194 = vmatpush2.msra.mxu0 0.0
    %7195 = vmatprep.subr.mxu0 0.0
    %7196 = vmatpush2.msra.mxu0 0.0
    %7197 = vmatprep.subr.mxu0 0.0
    %7198 = vmatpush2.msra.mxu0 0.0
    %7199 = vmatprep.subr.mxu0 0.0
    %7200 = vmatpush2.msra.mxu0 0.0
    %7201 = vmatprep.subr.mxu0 0.0
    %7202 = vmatpush2.msra.mxu0 0.0
    %7203 = vmatprep.subr.mxu0 0.0
    %7204 = vmatpush2.msra.mxu0 0.0
    %7205 = vmatprep.subr.mxu0 0.0
    %7206 = vmatpush2.msra.mxu0 0.0
    %7207 = vmatprep.subr.mxu0 0.0
    %7208 = vmatpush2.msra.mxu0 0.0
    %7209 = vmatprep.subr.mxu0 0.0
    %7210 = vmatpush2.msra.mxu0 0.0
    %7211 = vmatprep.subr.mxu0 0.0
    %7212 = vmatpush2.msra.mxu0 0.0
    %7213 = vmatprep.subr.mxu0 0.0
    %7214 = vmatpush2.msra.mxu0 0.0
    %7215 = vmatprep.subr.mxu0 0.0
    %7216 = vmatpush2.msra.mxu0 0.0
    %7217 = vmatprep.subr.mxu0 0.0
    %7218 = vmatpush2.msra.mxu0 0.0
    %7219 = vmatprep.subr.mxu0 0.0
    %7220 = vmatpush2.msra.mxu0 0.0
    %7221 = vmatprep.subr.mxu0 0.0
    %7222 = vmatpush2.msra.mxu0 0.0
    %7223 = vmatprep.subr.mxu0 0.0
    %7224 = vmatpush2.msra.mxu0 0.0
    %7225 = vmatprep.mubr.f32.mxu0 0.0
    %7226 = vmatmul.mubr.f32.gmra.mxu0 %v7114
    %v7227 = vpop.f32.mrf.mxu0
    %v7228 = vadd.f32 0.0, %v7227
    %v7229 = vpop.f32.mrf.mxu0
    %7230 = vmatprep.mubr.f32.mxu0 0.0
    %7231 = vmatmul.mubr.f32.gmra.mxu0 %v7117
    %v7232 = vpop.f32.mrf.mxu0
    %v7233 = vadd.f32 0.0, %v7232
    %v7234 = vpop.f32.mrf.mxu0
    %7235 = vmatprep.mubr.f32.mxu0 0.0
    %7236 = vmatmul.mubr.f32.gmra.mxu0 %v7120
    %v7237 = vpop.f32.mrf.mxu0
    %v7238 = vadd.f32 0.0, %v7237
    %v7239 = vpop.f32.mrf.mxu0
    %7240 = vmatprep.mubr.f32.mxu0 0.0
    %7241 = vmatmul.mubr.f32.gmra.mxu0 %v7123
    %v7242 = vpop.f32.mrf.mxu0
    %v7243 = vadd.f32 0.0, %v7242
    %v7244 = vpop.f32.mrf.mxu0
    %7245 = vmatprep.mubr.f32.mxu0 0.0
    %7246 = vmatmul.mubr.f32.gmra.mxu0 %v7126
    %v7247 = vpop.f32.mrf.mxu0
    %v7248 = vadd.f32 0.0, %v7247
    %v7249 = vpop.f32.mrf.mxu0
    %7250 = vmatprep.mubr.f32.mxu0 0.0
    %7251 = vmatmul.mubr.f32.gmra.mxu0 %v7129
    %v7252 = vpop.f32.mrf.mxu0
    %v7253 = vadd.f32 0.0, %v7252
    %v7254 = vpop.f32.mrf.mxu0
    %7255 = vmatprep.mubr.f32.mxu0 0.0
    %7256 = vmatmul.mubr.f32.gmra.mxu0 %v7132
    %v7257 = vpop.f32.mrf.mxu0
    %v7258 = vadd.f32 0.0, %v7257
    %v7259 = vpop.f32.mrf.mxu0
    %7260 = vmatprep.mubr.f32.mxu0 0.0
    %7261 = vmatmul.mubr.f32.gmra.mxu0 %v7135
    %v7262 = vpop.f32.mrf.mxu0
    %v7263 = vadd.f32 0.0, %v7262
    %v7264 = vpop.f32.mrf.mxu0
    %7265 = vmatprep.mubr.f32.mxu0 0.0
    %7266 = vmatmul.mubr.f32.gmra.mxu0 %v7138
    %v7267 = vpop.f32.mrf.mxu0
    %v7268 = vadd.f32 0.0, %v7267
    %v7269 = vpop.f32.mrf.mxu0
    %7270 = vmatprep.mubr.f32.mxu0 0.0
    %7271 = vmatmul.mubr.f32.gmra.mxu0 %v7141
    %v7272 = vpop.f32.mrf.mxu0
    %v7273 = vadd.f32 0.0, %v7272
    %v7274 = vpop.f32.mrf.mxu0
    %7275 = vmatprep.mubr.f32.mxu0 0.0
    %7276 = vmatmul.mubr.f32.gmra.mxu0 %v7144
    %v7277 = vpop.f32.mrf.mxu0
    %v7278 = vadd.f32 0.0, %v7277
    %v7279 = vpop.f32.mrf.mxu0
    %7280 = vmatprep.mubr.f32.mxu0 0.0
    %7281 = vmatmul.mubr.f32.gmra.mxu0 %v7147
    %v7282 = vpop.f32.mrf.mxu0
    %v7283 = vadd.f32 0.0, %v7282
    %v7284 = vpop.f32.mrf.mxu0
    %7285 = vmatprep.mubr.f32.mxu0 0.0
    %7286 = vmatmul.mubr.f32.gmra.mxu0 %v7150
    %v7287 = vpop.f32.mrf.mxu0
    %v7288 = vadd.f32 0.0, %v7287
    %v7289 = vpop.f32.mrf.mxu0
    %7290 = vmatprep.mubr.f32.mxu0 0.0
    %7291 = vmatmul.mubr.f32.gmra.mxu0 %v7153
    %v7292 = vpop.f32.mrf.mxu0
    %v7293 = vadd.f32 0.0, %v7292
    %v7294 = vpop.f32.mrf.mxu0
    %7295 = vmatprep.mubr.f32.mxu0 0.0
    %7296 = vmatmul.mubr.f32.gmra.mxu0 %v7156
    %v7297 = vpop.f32.mrf.mxu0
    %v7298 = vadd.f32 0.0, %v7297
    %v7299 = vpop.f32.mrf.mxu0
    %7300 = vmatprep.mubr.f32.mxu0 0.0
    %7301 = vmatmul.mubr.f32.gmra.mxu0 %v7159
    %v7302 = vpop.f32.mrf.mxu0
    %v7303 = vadd.f32 0.0, %v7302
    %v7304 = vpop.f32.mrf.mxu0
    %7305 = vdwg.mxu0
    %v7307 = vsel %vm7112, %v3895, 0
    %v7310 = vsel %vm7112, %v3999, 0
    %v7313 = vsel %vm7112, %v4103, 0
    %v7316 = vsel %vm7112, %v4207, 0
    %v7319 = vsel %vm7112, %v4311, 0
    %v7322 = vsel %vm7112, %v4415, 0
    %v7325 = vsel %vm7112, %v4519, 0
    %v7328 = vsel %vm7112, %v4623, 0
    %v7331 = vsel %vm7112, %v4727, 0
    %v7334 = vsel %vm7112, %v4831, 0
    %v7337 = vsel %vm7112, %v4935, 0
    %v7340 = vsel %vm7112, %v5039, 0
    %v7343 = vsel %vm7112, %v5143, 0
    %v7346 = vsel %vm7112, %v5247, 0
    %v7349 = vsel %vm7112, %v5351, 0
    %v7352 = vsel %vm7112, %v5455, 0
    %7354 = vmatprep.subr.mxu0 0.0
    %7355 = vmatpush1.msra.mxu0 0.0
    %7356 = vmatprep.subr.mxu0 0.0
    %7357 = vmatpush1.msra.mxu0 0.0
    %7358 = vmatprep.subr.mxu0 0.0
    %7359 = vmatpush1.msra.mxu0 0.0
    %7360 = vmatprep.subr.mxu0 0.0
    %7361 = vmatpush1.msra.mxu0 0.0
    %7362 = vmatprep.subr.mxu0 0.0
    %7363 = vmatpush1.msra.mxu0 0.0
    %7364 = vmatprep.subr.mxu0 0.0
    %7365 = vmatpush1.msra.mxu0 0.0
    %7366 = vmatprep.subr.mxu0 0.0
    %7367 = vmatpush1.msra.mxu0 0.0
    %7368 = vmatprep.subr.mxu0 0.0
    %7369 = vmatpush1.msra.mxu0 0.0
    %7370 = vmatprep.subr.mxu0 0.0
    %7371 = vmatpush1.msra.mxu0 0.0
    %7372 = vmatprep.subr.mxu0 0.0
    %7373 = vmatpush1.msra.mxu0 0.0
    %7374 = vmatprep.subr.mxu0 0.0
    %7375 = vmatpush1.msra.mxu0 0.0
    %7376 = vmatprep.subr.mxu0 0.0
    %7377 = vmatpush1.msra.mxu0 0.0
    %7378 = vmatprep.subr.mxu0 0.0
    %7379 = vmatpush1.msra.mxu0 %v7107
    %7380 = vmatprep.subr.mxu0 0.0
    %7381 = vmatpush1.msra.mxu0 %v7106
    %7382 = vmatprep.subr.mxu0 0.0
    %7383 = vmatpush1.msra.mxu0 %v7105
    %7384 = vmatprep.subr.mxu0 0.0
    %7385 = vmatpush1.msra.mxu0 %v7104
    %7386 = vmatprep.subr.mxu0 0.0
    %7387 = vmatpush2.msra.mxu0 0.0
    %7388 = vmatprep.subr.mxu0 0.0
    %7389 = vmatpush2.msra.mxu0 0.0
    %7390 = vmatprep.subr.mxu0 0.0
    %7391 = vmatpush2.msra.mxu0 0.0
    %7392 = vmatprep.subr.mxu0 0.0
    %7393 = vmatpush2.msra.mxu0 0.0
    %7394 = vmatprep.subr.mxu0 0.0
    %7395 = vmatpush2.msra.mxu0 0.0
    %7396 = vmatprep.subr.mxu0 0.0
    %7397 = vmatpush2.msra.mxu0 0.0
    %7398 = vmatprep.subr.mxu0 0.0
    %7399 = vmatpush2.msra.mxu0 0.0
    %7400 = vmatprep.subr.mxu0 0.0
    %7401 = vmatpush2.msra.mxu0 0.0
    %7402 = vmatprep.subr.mxu0 0.0
    %7403 = vmatpush2.msra.mxu0 0.0
    %7404 = vmatprep.subr.mxu0 0.0
    %7405 = vmatpush2.msra.mxu0 0.0
    %7406 = vmatprep.subr.mxu0 0.0
    %7407 = vmatpush2.msra.mxu0 0.0
    %7408 = vmatprep.subr.mxu0 0.0
    %7409 = vmatpush2.msra.mxu0 0.0
    %7410 = vmatprep.subr.mxu0 0.0
    %7411 = vmatpush2.msra.mxu0 0.0
    %7412 = vmatprep.subr.mxu0 0.0
    %7413 = vmatpush2.msra.mxu0 0.0
    %7414 = vmatprep.subr.mxu0 0.0
    %7415 = vmatpush2.msra.mxu0 0.0
    %7416 = vmatprep.subr.mxu0 0.0
    %7417 = vmatpush2.msra.mxu0 0.0
    %7418 = vmatprep.mubr.f32.mxu0 0.0
    %7419 = vmatmul.mubr.f32.gmra.mxu0 %v7307
    %v7420 = vpop.f32.mrf.mxu0
    %v7421 = vadd.f32 %v7228, %v7420
    %v7422 = vpop.f32.mrf.mxu0
    %7423 = vmatprep.mubr.f32.mxu0 0.0
    %7424 = vmatmul.mubr.f32.gmra.mxu0 %v7310
    %v7425 = vpop.f32.mrf.mxu0
    %v7426 = vadd.f32 %v7233, %v7425
    %v7427 = vpop.f32.mrf.mxu0
    %7428 = vmatprep.mubr.f32.mxu0 0.0
    %7429 = vmatmul.mubr.f32.gmra.mxu0 %v7313
    %v7430 = vpop.f32.mrf.mxu0
    %v7431 = vadd.f32 %v7238, %v7430
    %v7432 = vpop.f32.mrf.mxu0
    %7433 = vmatprep.mubr.f32.mxu0 0.0
    %7434 = vmatmul.mubr.f32.gmra.mxu0 %v7316
    %v7435 = vpop.f32.mrf.mxu0
    %v7436 = vadd.f32 %v7243, %v7435
    %v7437 = vpop.f32.mrf.mxu0
    %7438 = vmatprep.mubr.f32.mxu0 0.0
    %7439 = vmatmul.mubr.f32.gmra.mxu0 %v7319
    %v7440 = vpop.f32.mrf.mxu0
    %v7441 = vadd.f32 %v7248, %v7440
    %v7442 = vpop.f32.mrf.mxu0
    %7443 = vmatprep.mubr.f32.mxu0 0.0
    %7444 = vmatmul.mubr.f32.gmra.mxu0 %v7322
    %v7445 = vpop.f32.mrf.mxu0
    %v7446 = vadd.f32 %v7253, %v7445
    %v7447 = vpop.f32.mrf.mxu0
    %7448 = vmatprep.mubr.f32.mxu0 0.0
    %7449 = vmatmul.mubr.f32.gmra.mxu0 %v7325
    %v7450 = vpop.f32.mrf.mxu0
    %v7451 = vadd.f32 %v7258, %v7450
    %v7452 = vpop.f32.mrf.mxu0
    %7453 = vmatprep.mubr.f32.mxu0 0.0
    %7454 = vmatmul.mubr.f32.gmra.mxu0 %v7328
    %v7455 = vpop.f32.mrf.mxu0
    %v7456 = vadd.f32 %v7263, %v7455
    %v7457 = vpop.f32.mrf.mxu0
    %7458 = vmatprep.mubr.f32.mxu0 0.0
    %7459 = vmatmul.mubr.f32.gmra.mxu0 %v7331
    %v7460 = vpop.f32.mrf.mxu0
    %v7461 = vadd.f32 %v7268, %v7460
    %v7462 = vpop.f32.mrf.mxu0
    %7463 = vmatprep.mubr.f32.mxu0 0.0
    %7464 = vmatmul.mubr.f32.gmra.mxu0 %v7334
    %v7465 = vpop.f32.mrf.mxu0
    %v7466 = vadd.f32 %v7273, %v7465
    %v7467 = vpop.f32.mrf.mxu0
    %7468 = vmatprep.mubr.f32.mxu0 0.0
    %7469 = vmatmul.mubr.f32.gmra.mxu0 %v7337
    %v7470 = vpop.f32.mrf.mxu0
    %v7471 = vadd.f32 %v7278, %v7470
    %v7472 = vpop.f32.mrf.mxu0
    %7473 = vmatprep.mubr.f32.mxu0 0.0
    %7474 = vmatmul.mubr.f32.gmra.mxu0 %v7340
    %v7475 = vpop.f32.mrf.mxu0
    %v7476 = vadd.f32 %v7283, %v7475
    %v7477 = vpop.f32.mrf.mxu0
    %7478 = vmatprep.mubr.f32.mxu0 0.0
    %7479 = vmatmul.mubr.f32.gmra.mxu0 %v7343
    %v7480 = vpop.f32.mrf.mxu0
    %v7481 = vadd.f32 %v7288, %v7480
    %v7482 = vpop.f32.mrf.mxu0
    %7483 = vmatprep.mubr.f32.mxu0 0.0
    %7484 = vmatmul.mubr.f32.gmra.mxu0 %v7346
    %v7485 = vpop.f32.mrf.mxu0
    %v7486 = vadd.f32 %v7293, %v7485
    %v7487 = vpop.f32.mrf.mxu0
    %7488 = vmatprep.mubr.f32.mxu0 0.0
    %7489 = vmatmul.mubr.f32.gmra.mxu0 %v7349
    %v7490 = vpop.f32.mrf.mxu0
    %v7491 = vadd.f32 %v7298, %v7490
    %v7492 = vpop.f32.mrf.mxu0
    %7493 = vmatprep.mubr.f32.mxu0 0.0
    %7494 = vmatmul.mubr.f32.gmra.mxu0 %v7352
    %v7495 = vpop.f32.mrf.mxu0
    %v7496 = vadd.f32 %v7303, %v7495
    %v7497 = vpop.f32.mrf.mxu0
    %7498 = vdwg.mxu0
    %v7499 = vld [vmem:[%s6] sm:$0x1]
    %v7501 = vlaneseq
    %v7502 = vshrl.u32 %v7501, 7
    %v7503 = vsub.s32 0, %v7502
    %v7504 = vrot.slane %v7499, %v7503
    %v7506 = vadd.f32 %v7421, %v7504
    %v7507 = vadd.f32 %v7426, %v7504
    %v7508 = vadd.f32 %v7431, %v7504
    %v7509 = vadd.f32 %v7436, %v7504
    %v7510 = vadd.f32 %v7441, %v7504
    %v7511 = vadd.f32 %v7446, %v7504
    %v7512 = vadd.f32 %v7451, %v7504
    %v7513 = vadd.f32 %v7456, %v7504
    %v7514 = vadd.f32 %v7461, %v7504
    %v7515 = vadd.f32 %v7466, %v7504
    %v7516 = vadd.f32 %v7471, %v7504
    %v7517 = vadd.f32 %v7476, %v7504
    %v7518 = vadd.f32 %v7481, %v7504
    %v7519 = vadd.f32 %v7486, %v7504
    %v7520 = vadd.f32 %v7491, %v7504
    %v7521 = vadd.f32 %v7496, %v7504
    %v7522 = vand.u32 2147483647, %v7506
    %vm7523 = vcmp.le.f32.partialorder %v7522, 0.7853982
    %vm7524 = vcmp.lt.s32.totalorder %v7506, 0
    %v7525 = vand.u32 %v7506, 2139095040
    %v7526 = vshrl.u32 %v7525, 23
    %v7527 = vsub.s32 %v7526, 127
    %v7528 = vand.u32 2147483647, %v7506
    %v7529 = vand.u32 %v7528, 8388607
    %v7530 = vor.u32 %v7529, 8388608
    %v7531 = vsub.s32 0, %v7530
    %v7532 = vadd.s32 %v7527, 1
    %vm7533 = vcmp.gt.s32.totalorder %v7532, 0
    %v7534 = vsel %vm7533, %v7532, 0
    %v7535 = vshrl.u32 %v7534, 5
    %v7536 = vand.u32 %v7534, 31
    %v7537 = vsub.s32 32, %v7536
    %v7538 = vshrl.u32 683565275, %v7537
    %v7539 = vshll.u32 683565275, %v7536
    %v7540 = vshrl.u32 2475754826, %v7537
    %v7541 = vor.u32 %v7539, %v7540
    %v7542 = vshll.u32 2475754826, %v7536
    %v7543 = vshrl.u32 2131351028, %v7537
    %v7544 = vor.u32 %v7542, %v7543
    %v7545 = vshll.u32 2131351028, %v7536
    %v7546 = vshrl.u32 2102212464, %v7537
    %v7547 = vor.u32 %v7545, %v7546
    %v7548 = vshll.u32 2102212464, %v7536
    %v7549 = vshrl.u32 920167782, %v7537
    %v7550 = vor.u32 %v7548, %v7549
    %v7551 = vshll.u32 920167782, %v7536
    %v7552 = vshrl.u32 1326507024, %v7537
    %v7553 = vor.u32 %v7551, %v7552
    %vm7554 = vcmp.lt.s32.totalorder %v7535, 1
    %vm7555 = vcmp.lt.s32.totalorder %v7535, 2
    %vm7556 = vcmp.lt.s32.totalorder %v7535, 3
    %vm7557 = vcmp.lt.s32.totalorder %v7535, 4
    %v7558 = vsel %vm7554, %v7538, %v7541
    %v7559 = vsel %vm7557, %v7547, 2102212464
    %v7560 = vsel %vm7556, %v7544, %v7559
    %v7561 = vsel %vm7555, %v7558, %v7560
    %v7562 = vsel %vm7554, %v7541, %v7544
    %v7563 = vsel %vm7557, %v7550, 920167782
    %v7564 = vsel %vm7556, %v7547, %v7563
    %v7565 = vsel %vm7555, %v7562, %v7564
    %v7566 = vsel %vm7554, %v7544, %v7547
    %v7567 = vsel %vm7557, %v7553, 1326507024
    %v7568 = vsel %vm7556, %v7550, %v7567
    %v7569 = vsel %vm7555, %v7566, %v7568
    %v7570 = vshll.u32 %v7530, 8
    %v7571 = vmul.u32.u64.compose %v7570, %v7569
    %v7572 = vextract.low.u32 %v7571
    %v7573 = vextract.high.u32 %v7571
    %v7574 = vmul.u32.u64.compose %v7570, %v7565
    %v7575 = vextract.low.u32 %v7574
    %v7576 = vextract.high.u32 %v7574
    %v7577 = vmul.u32 %v7570, %v7561
    %v7578 = vadd.s32 %v7573, %v7575
    %vm7579 = vc.u32 %v7573, %v7575
    %v7580 = vadd.s32 %v7576, 1
    %v7581 = vsel %vm7579, %v7580, %v7576
    %v7582 = vadd.s32 %v7577, %v7581
    %v7583 = vadd.s32 %v7582, 536870912
    %v7584 = vshrl.u32 %v7583, 30
    %v7585 = vshll.u32 %v7584, 30
    %v7586 = vsub.s32 %v7582, %v7585
    %vm7587 = vcmp.lt.s32.totalorder %v7586, 0
    %v7588 = vsub.s32 0, %v7586
    %v7589 = vsel %vm7587, %v7588, %v7586
    %v7590 = vclz %v7589
    %v7591 = vsub.s32 %v7590, 2
    %vm7592 = vcmp.gt.s32.totalorder 0, %v7591
    %v7593 = vsel %vm7592, 0, %v7591
    %v7594 = vsub.s32 32, %v7593
    %v7595 = vshll.u32 %v7586, %v7593
    %v7596 = vshrl.u32 %v7578, %v7594
    %v7597 = vor.u32 %v7595, %v7596
    %v7598 = vsub.s32 4294967266, %v7593
    %v7599 = vadd.s32 %v7598, 127
    %v7600 = vshll.u32 %v7599, 23
    %v7601 = vor.u32 4788187, %v7600
    %v7602 = vand.u32 2147483647, %v7601
    %v7604 = vcvt.s32.f32 %v7597
    %v7605 = vmul.f32 %v7604, %v7602
    %v7606 = vxor.u32 %v7605, 2147483648
    %v7607 = vsel %vm7524, %v7606, %v7605
    %v7608 = vsub.s32 4, %v7584
    %v7609 = vsel %vm7524, %v7608, %v7584
    %v7610 = vsel %vm7523, %v7506, %v7607
    %v7611 = vsel %vm7523, 0, %v7609
    %v7612 = vcosq.f32.pop %v7610
    %v7613 = vsinq.f32.pop %v7610
    %vm7614 = vweird.f32 %v7506
    %v7615 = vadd.s32 %v7611, 3
    %v7616 = vand.u32 %v7615, 3
    %vm7617 = vcmp.lt.s32.totalorder %v7616, 2
    %vm7618 = vcmp.eq.s32.totalorder %v7616, 0
    %v7619 = vxor.u32 %v7613, 2147483648
    %v7620 = vsel %vm7618, %v7612, %v7619
    %vm7621 = vcmp.eq.s32.totalorder %v7616, 2
    %v7622 = vxor.u32 %v7612, 2147483648
    %v7623 = vsel %vm7621, %v7622, %v7613
    %v7624 = vsel %vm7617, %v7620, %v7623
    %v7625 = vsel %vm7614, nan, %v7624
    %v7626 = vand.u32 2147483647, %v7507
    %vm7627 = vcmp.le.f32.partialorder %v7626, 0.7853982
    %vm7628 = vcmp.lt.s32.totalorder %v7507, 0
    %v7629 = vand.u32 %v7507, 2139095040
    %v7630 = vshrl.u32 %v7629, 23
    %v7631 = vsub.s32 %v7630, 127
    %v7632 = vand.u32 2147483647, %v7507
    %v7633 = vand.u32 %v7632, 8388607
    %v7634 = vor.u32 %v7633, 8388608
    %v7635 = vsub.s32 0, %v7634
    %v7636 = vadd.s32 %v7631, 1
    %vm7637 = vcmp.gt.s32.totalorder %v7636, 0
    %v7638 = vsel %vm7637, %v7636, 0
    %v7639 = vshrl.u32 %v7638, 5
    %v7640 = vand.u32 %v7638, 31
    %v7641 = vsub.s32 32, %v7640
    %v7642 = vshrl.u32 683565275, %v7641
    %v7643 = vshll.u32 683565275, %v7640
    %v7644 = vshrl.u32 2475754826, %v7641
    %v7645 = vor.u32 %v7643, %v7644
    %v7646 = vshll.u32 2475754826, %v7640
    %v7647 = vshrl.u32 2131351028, %v7641
    %v7648 = vor.u32 %v7646, %v7647
    %v7649 = vshll.u32 2131351028, %v7640
    %v7650 = vshrl.u32 2102212464, %v7641
    %v7651 = vor.u32 %v7649, %v7650
    %v7652 = vshll.u32 2102212464, %v7640
    %v7653 = vshrl.u32 920167782, %v7641
    %v7654 = vor.u32 %v7652, %v7653
    %v7655 = vshll.u32 920167782, %v7640
    %v7656 = vshrl.u32 1326507024, %v7641
    %v7657 = vor.u32 %v7655, %v7656
    %vm7658 = vcmp.lt.s32.totalorder %v7639, 1
    %vm7659 = vcmp.lt.s32.totalorder %v7639, 2
    %vm7660 = vcmp.lt.s32.totalorder %v7639, 3
    %vm7661 = vcmp.lt.s32.totalorder %v7639, 4
    %v7662 = vsel %vm7658, %v7642, %v7645
    %v7663 = vsel %vm7661, %v7651, 2102212464
    %v7664 = vsel %vm7660, %v7648, %v7663
    %v7665 = vsel %vm7659, %v7662, %v7664
    %v7666 = vsel %vm7658, %v7645, %v7648
    %v7667 = vsel %vm7661, %v7654, 920167782
    %v7668 = vsel %vm7660, %v7651, %v7667
    %v7669 = vsel %vm7659, %v7666, %v7668
    %v7670 = vsel %vm7658, %v7648, %v7651
    %v7671 = vsel %vm7661, %v7657, 1326507024
    %v7672 = vsel %vm7660, %v7654, %v7671
    %v7673 = vsel %vm7659, %v7670, %v7672
    %v7674 = vshll.u32 %v7634, 8
    %v7675 = vmul.u32.u64.compose %v7674, %v7673
    %v7676 = vextract.low.u32 %v7675
    %v7677 = vextract.high.u32 %v7675
    %v7678 = vmul.u32.u64.compose %v7674, %v7669
    %v7679 = vextract.low.u32 %v7678
    %v7680 = vextract.high.u32 %v7678
    %v7681 = vmul.u32 %v7674, %v7665
    %v7682 = vadd.s32 %v7677, %v7679
    %vm7683 = vc.u32 %v7677, %v7679
    %v7684 = vadd.s32 %v7680, 1
    %v7685 = vsel %vm7683, %v7684, %v7680
    %v7686 = vadd.s32 %v7681, %v7685
    %v7687 = vadd.s32 %v7686, 536870912
    %v7688 = vshrl.u32 %v7687, 30
    %v7689 = vshll.u32 %v7688, 30
    %v7690 = vsub.s32 %v7686, %v7689
    %vm7691 = vcmp.lt.s32.totalorder %v7690, 0
    %v7692 = vsub.s32 0, %v7690
    %v7693 = vsel %vm7691, %v7692, %v7690
    %v7694 = vclz %v7693
    %v7695 = vsub.s32 %v7694, 2
    %vm7696 = vcmp.gt.s32.totalorder 0, %v7695
    %v7697 = vsel %vm7696, 0, %v7695
    %v7698 = vsub.s32 32, %v7697
    %v7699 = vshll.u32 %v7690, %v7697
    %v7700 = vshrl.u32 %v7682, %v7698
    %v7701 = vor.u32 %v7699, %v7700
    %v7702 = vsub.s32 4294967266, %v7697
    %v7703 = vadd.s32 %v7702, 127
    %v7704 = vshll.u32 %v7703, 23
    %v7705 = vor.u32 4788187, %v7704
    %v7706 = vand.u32 2147483647, %v7705
    %v7708 = vcvt.s32.f32 %v7701
    %v7709 = vmul.f32 %v7708, %v7706
    %v7710 = vxor.u32 %v7709, 2147483648
    %v7711 = vsel %vm7628, %v7710, %v7709
    %v7712 = vsub.s32 4, %v7688
    %v7713 = vsel %vm7628, %v7712, %v7688
    %v7714 = vsel %vm7627, %v7507, %v7711
    %v7715 = vsel %vm7627, 0, %v7713
    %v7716 = vcosq.f32.pop %v7714
    %v7717 = vsinq.f32.pop %v7714
    %vm7718 = vweird.f32 %v7507
    %v7719 = vadd.s32 %v7715, 3
    %v7720 = vand.u32 %v7719, 3
    %vm7721 = vcmp.lt.s32.totalorder %v7720, 2
    %vm7722 = vcmp.eq.s32.totalorder %v7720, 0
    %v7723 = vxor.u32 %v7717, 2147483648
    %v7724 = vsel %vm7722, %v7716, %v7723
    %vm7725 = vcmp.eq.s32.totalorder %v7720, 2
    %v7726 = vxor.u32 %v7716, 2147483648
    %v7727 = vsel %vm7725, %v7726, %v7717
    %v7728 = vsel %vm7721, %v7724, %v7727
    %v7729 = vsel %vm7718, nan, %v7728
    %v7730 = vand.u32 2147483647, %v7508
    %vm7731 = vcmp.le.f32.partialorder %v7730, 0.7853982
    %vm7732 = vcmp.lt.s32.totalorder %v7508, 0
    %v7733 = vand.u32 %v7508, 2139095040
    %v7734 = vshrl.u32 %v7733, 23
    %v7735 = vsub.s32 %v7734, 127
    %v7736 = vand.u32 2147483647, %v7508
    %v7737 = vand.u32 %v7736, 8388607
    %v7738 = vor.u32 %v7737, 8388608
    %v7739 = vsub.s32 0, %v7738
    %v7740 = vadd.s32 %v7735, 1
    %vm7741 = vcmp.gt.s32.totalorder %v7740, 0
    %v7742 = vsel %vm7741, %v7740, 0
    %v7743 = vshrl.u32 %v7742, 5
    %v7744 = vand.u32 %v7742, 31
    %v7745 = vsub.s32 32, %v7744
    %v7746 = vshrl.u32 683565275, %v7745
    %v7747 = vshll.u32 683565275, %v7744
    %v7748 = vshrl.u32 2475754826, %v7745
    %v7749 = vor.u32 %v7747, %v7748
    %v7750 = vshll.u32 2475754826, %v7744
    %v7751 = vshrl.u32 2131351028, %v7745
    %v7752 = vor.u32 %v7750, %v7751
    %v7753 = vshll.u32 2131351028, %v7744
    %v7754 = vshrl.u32 2102212464, %v7745
    %v7755 = vor.u32 %v7753, %v7754
    %v7756 = vshll.u32 2102212464, %v7744
    %v7757 = vshrl.u32 920167782, %v7745
    %v7758 = vor.u32 %v7756, %v7757
    %v7759 = vshll.u32 920167782, %v7744
    %v7760 = vshrl.u32 1326507024, %v7745
    %v7761 = vor.u32 %v7759, %v7760
    %vm7762 = vcmp.lt.s32.totalorder %v7743, 1
    %vm7763 = vcmp.lt.s32.totalorder %v7743, 2
    %vm7764 = vcmp.lt.s32.totalorder %v7743, 3
    %vm7765 = vcmp.lt.s32.totalorder %v7743, 4
    %v7766 = vsel %vm7762, %v7746, %v7749
    %v7767 = vsel %vm7765, %v7755, 2102212464
    %v7768 = vsel %vm7764, %v7752, %v7767
    %v7769 = vsel %vm7763, %v7766, %v7768
    %v7770 = vsel %vm7762, %v7749, %v7752
    %v7771 = vsel %vm7765, %v7758, 920167782
    %v7772 = vsel %vm7764, %v7755, %v7771
    %v7773 = vsel %vm7763, %v7770, %v7772
    %v7774 = vsel %vm7762, %v7752, %v7755
    %v7775 = vsel %vm7765, %v7761, 1326507024
    %v7776 = vsel %vm7764, %v7758, %v7775
    %v7777 = vsel %vm7763, %v7774, %v7776
    %v7778 = vshll.u32 %v7738, 8
    %v7779 = vmul.u32.u64.compose %v7778, %v7777
    %v7780 = vextract.low.u32 %v7779
    %v7781 = vextract.high.u32 %v7779
    %v7782 = vmul.u32.u64.compose %v7778, %v7773
    %v7783 = vextract.low.u32 %v7782
    %v7784 = vextract.high.u32 %v7782
    %v7785 = vmul.u32 %v7778, %v7769
    %v7786 = vadd.s32 %v7781, %v7783
    %vm7787 = vc.u32 %v7781, %v7783
    %v7788 = vadd.s32 %v7784, 1
    %v7789 = vsel %vm7787, %v7788, %v7784
    %v7790 = vadd.s32 %v7785, %v7789
    %v7791 = vadd.s32 %v7790, 536870912
    %v7792 = vshrl.u32 %v7791, 30
    %v7793 = vshll.u32 %v7792, 30
    %v7794 = vsub.s32 %v7790, %v7793
    %vm7795 = vcmp.lt.s32.totalorder %v7794, 0
    %v7796 = vsub.s32 0, %v7794
    %v7797 = vsel %vm7795, %v7796, %v7794
    %v7798 = vclz %v7797
    %v7799 = vsub.s32 %v7798, 2
    %vm7800 = vcmp.gt.s32.totalorder 0, %v7799
    %v7801 = vsel %vm7800, 0, %v7799
    %v7802 = vsub.s32 32, %v7801
    %v7803 = vshll.u32 %v7794, %v7801
    %v7804 = vshrl.u32 %v7786, %v7802
    %v7805 = vor.u32 %v7803, %v7804
    %v7806 = vsub.s32 4294967266, %v7801
    %v7807 = vadd.s32 %v7806, 127
    %v7808 = vshll.u32 %v7807, 23
    %v7809 = vor.u32 4788187, %v7808
    %v7810 = vand.u32 2147483647, %v7809
    %v7812 = vcvt.s32.f32 %v7805
    %v7813 = vmul.f32 %v7812, %v7810
    %v7814 = vxor.u32 %v7813, 2147483648
    %v7815 = vsel %vm7732, %v7814, %v7813
    %v7816 = vsub.s32 4, %v7792
    %v7817 = vsel %vm7732, %v7816, %v7792
    %v7818 = vsel %vm7731, %v7508, %v7815
    %v7819 = vsel %vm7731, 0, %v7817
    %v7820 = vcosq.f32.pop %v7818
    %v7821 = vsinq.f32.pop %v7818
    %vm7822 = vweird.f32 %v7508
    %v7823 = vadd.s32 %v7819, 3
    %v7824 = vand.u32 %v7823, 3
    %vm7825 = vcmp.lt.s32.totalorder %v7824, 2
    %vm7826 = vcmp.eq.s32.totalorder %v7824, 0
    %v7827 = vxor.u32 %v7821, 2147483648
    %v7828 = vsel %vm7826, %v7820, %v7827
    %vm7829 = vcmp.eq.s32.totalorder %v7824, 2
    %v7830 = vxor.u32 %v7820, 2147483648
    %v7831 = vsel %vm7829, %v7830, %v7821
    %v7832 = vsel %vm7825, %v7828, %v7831
    %v7833 = vsel %vm7822, nan, %v7832
    %v7834 = vand.u32 2147483647, %v7509
    %vm7835 = vcmp.le.f32.partialorder %v7834, 0.7853982
    %vm7836 = vcmp.lt.s32.totalorder %v7509, 0
    %v7837 = vand.u32 %v7509, 2139095040
    %v7838 = vshrl.u32 %v7837, 23
    %v7839 = vsub.s32 %v7838, 127
    %v7840 = vand.u32 2147483647, %v7509
    %v7841 = vand.u32 %v7840, 8388607
    %v7842 = vor.u32 %v7841, 8388608
    %v7843 = vsub.s32 0, %v7842
    %v7844 = vadd.s32 %v7839, 1
    %vm7845 = vcmp.gt.s32.totalorder %v7844, 0
    %v7846 = vsel %vm7845, %v7844, 0
    %v7847 = vshrl.u32 %v7846, 5
    %v7848 = vand.u32 %v7846, 31
    %v7849 = vsub.s32 32, %v7848
    %v7850 = vshrl.u32 683565275, %v7849
    %v7851 = vshll.u32 683565275, %v7848
    %v7852 = vshrl.u32 2475754826, %v7849
    %v7853 = vor.u32 %v7851, %v7852
    %v7854 = vshll.u32 2475754826, %v7848
    %v7855 = vshrl.u32 2131351028, %v7849
    %v7856 = vor.u32 %v7854, %v7855
    %v7857 = vshll.u32 2131351028, %v7848
    %v7858 = vshrl.u32 2102212464, %v7849
    %v7859 = vor.u32 %v7857, %v7858
    %v7860 = vshll.u32 2102212464, %v7848
    %v7861 = vshrl.u32 920167782, %v7849
    %v7862 = vor.u32 %v7860, %v7861
    %v7863 = vshll.u32 920167782, %v7848
    %v7864 = vshrl.u32 1326507024, %v7849
    %v7865 = vor.u32 %v7863, %v7864
    %vm7866 = vcmp.lt.s32.totalorder %v7847, 1
    %vm7867 = vcmp.lt.s32.totalorder %v7847, 2
    %vm7868 = vcmp.lt.s32.totalorder %v7847, 3
    %vm7869 = vcmp.lt.s32.totalorder %v7847, 4
    %v7870 = vsel %vm7866, %v7850, %v7853
    %v7871 = vsel %vm7869, %v7859, 2102212464
    %v7872 = vsel %vm7868, %v7856, %v7871
    %v7873 = vsel %vm7867, %v7870, %v7872
    %v7874 = vsel %vm7866, %v7853, %v7856
    %v7875 = vsel %vm7869, %v7862, 920167782
    %v7876 = vsel %vm7868, %v7859, %v7875
    %v7877 = vsel %vm7867, %v7874, %v7876
    %v7878 = vsel %vm7866, %v7856, %v7859
    %v7879 = vsel %vm7869, %v7865, 1326507024
    %v7880 = vsel %vm7868, %v7862, %v7879
    %v7881 = vsel %vm7867, %v7878, %v7880
    %v7882 = vshll.u32 %v7842, 8
    %v7883 = vmul.u32.u64.compose %v7882, %v7881
    %v7884 = vextract.low.u32 %v7883
    %v7885 = vextract.high.u32 %v7883
    %v7886 = vmul.u32.u64.compose %v7882, %v7877
    %v7887 = vextract.low.u32 %v7886
    %v7888 = vextract.high.u32 %v7886
    %v7889 = vmul.u32 %v7882, %v7873
    %v7890 = vadd.s32 %v7885, %v7887
    %vm7891 = vc.u32 %v7885, %v7887
    %v7892 = vadd.s32 %v7888, 1
    %v7893 = vsel %vm7891, %v7892, %v7888
    %v7894 = vadd.s32 %v7889, %v7893
    %v7895 = vadd.s32 %v7894, 536870912
    %v7896 = vshrl.u32 %v7895, 30
    %v7897 = vshll.u32 %v7896, 30
    %v7898 = vsub.s32 %v7894, %v7897
    %vm7899 = vcmp.lt.s32.totalorder %v7898, 0
    %v7900 = vsub.s32 0, %v7898
    %v7901 = vsel %vm7899, %v7900, %v7898
    %v7902 = vclz %v7901
    %v7903 = vsub.s32 %v7902, 2
    %vm7904 = vcmp.gt.s32.totalorder 0, %v7903
    %v7905 = vsel %vm7904, 0, %v7903
    %v7906 = vsub.s32 32, %v7905
    %v7907 = vshll.u32 %v7898, %v7905
    %v7908 = vshrl.u32 %v7890, %v7906
    %v7909 = vor.u32 %v7907, %v7908
    %v7910 = vsub.s32 4294967266, %v7905
    %v7911 = vadd.s32 %v7910, 127
    %v7912 = vshll.u32 %v7911, 23
    %v7913 = vor.u32 4788187, %v7912
    %v7914 = vand.u32 2147483647, %v7913
    %v7916 = vcvt.s32.f32 %v7909
    %v7917 = vmul.f32 %v7916, %v7914
    %v7918 = vxor.u32 %v7917, 2147483648
    %v7919 = vsel %vm7836, %v7918, %v7917
    %v7920 = vsub.s32 4, %v7896
    %v7921 = vsel %vm7836, %v7920, %v7896
    %v7922 = vsel %vm7835, %v7509, %v7919
    %v7923 = vsel %vm7835, 0, %v7921
    %v7924 = vcosq.f32.pop %v7922
    %v7925 = vsinq.f32.pop %v7922
    %vm7926 = vweird.f32 %v7509
    %v7927 = vadd.s32 %v7923, 3
    %v7928 = vand.u32 %v7927, 3
    %vm7929 = vcmp.lt.s32.totalorder %v7928, 2
    %vm7930 = vcmp.eq.s32.totalorder %v7928, 0
    %v7931 = vxor.u32 %v7925, 2147483648
    %v7932 = vsel %vm7930, %v7924, %v7931
    %vm7933 = vcmp.eq.s32.totalorder %v7928, 2
    %v7934 = vxor.u32 %v7924, 2147483648
    %v7935 = vsel %vm7933, %v7934, %v7925
    %v7936 = vsel %vm7929, %v7932, %v7935
    %v7937 = vsel %vm7926, nan, %v7936
    %v7938 = vand.u32 2147483647, %v7510
    %vm7939 = vcmp.le.f32.partialorder %v7938, 0.7853982
    %vm7940 = vcmp.lt.s32.totalorder %v7510, 0
    %v7941 = vand.u32 %v7510, 2139095040
    %v7942 = vshrl.u32 %v7941, 23
    %v7943 = vsub.s32 %v7942, 127
    %v7944 = vand.u32 2147483647, %v7510
    %v7945 = vand.u32 %v7944, 8388607
    %v7946 = vor.u32 %v7945, 8388608
    %v7947 = vsub.s32 0, %v7946
    %v7948 = vadd.s32 %v7943, 1
    %vm7949 = vcmp.gt.s32.totalorder %v7948, 0
    %v7950 = vsel %vm7949, %v7948, 0
    %v7951 = vshrl.u32 %v7950, 5
    %v7952 = vand.u32 %v7950, 31
    %v7953 = vsub.s32 32, %v7952
    %v7954 = vshrl.u32 683565275, %v7953
    %v7955 = vshll.u32 683565275, %v7952
    %v7956 = vshrl.u32 2475754826, %v7953
    %v7957 = vor.u32 %v7955, %v7956
    %v7958 = vshll.u32 2475754826, %v7952
    %v7959 = vshrl.u32 2131351028, %v7953
    %v7960 = vor.u32 %v7958, %v7959
    %v7961 = vshll.u32 2131351028, %v7952
    %v7962 = vshrl.u32 2102212464, %v7953
    %v7963 = vor.u32 %v7961, %v7962
    %v7964 = vshll.u32 2102212464, %v7952
    %v7965 = vshrl.u32 920167782, %v7953
    %v7966 = vor.u32 %v7964, %v7965
    %v7967 = vshll.u32 920167782, %v7952
    %v7968 = vshrl.u32 1326507024, %v7953
    %v7969 = vor.u32 %v7967, %v7968
    %vm7970 = vcmp.lt.s32.totalorder %v7951, 1
    %vm7971 = vcmp.lt.s32.totalorder %v7951, 2
    %vm7972 = vcmp.lt.s32.totalorder %v7951, 3
    %vm7973 = vcmp.lt.s32.totalorder %v7951, 4
    %v7974 = vsel %vm7970, %v7954, %v7957
    %v7975 = vsel %vm7973, %v7963, 2102212464
    %v7976 = vsel %vm7972, %v7960, %v7975
    %v7977 = vsel %vm7971, %v7974, %v7976
    %v7978 = vsel %vm7970, %v7957, %v7960
    %v7979 = vsel %vm7973, %v7966, 920167782
    %v7980 = vsel %vm7972, %v7963, %v7979
    %v7981 = vsel %vm7971, %v7978, %v7980
    %v7982 = vsel %vm7970, %v7960, %v7963
    %v7983 = vsel %vm7973, %v7969, 1326507024
    %v7984 = vsel %vm7972, %v7966, %v7983
    %v7985 = vsel %vm7971, %v7982, %v7984
    %v7986 = vshll.u32 %v7946, 8
    %v7987 = vmul.u32.u64.compose %v7986, %v7985
    %v7988 = vextract.low.u32 %v7987
    %v7989 = vextract.high.u32 %v7987
    %v7990 = vmul.u32.u64.compose %v7986, %v7981
    %v7991 = vextract.low.u32 %v7990
    %v7992 = vextract.high.u32 %v7990
    %v7993 = vmul.u32 %v7986, %v7977
    %v7994 = vadd.s32 %v7989, %v7991
    %vm7995 = vc.u32 %v7989, %v7991
    %v7996 = vadd.s32 %v7992, 1
    %v7997 = vsel %vm7995, %v7996, %v7992
    %v7998 = vadd.s32 %v7993, %v7997
    %v7999 = vadd.s32 %v7998, 536870912
    %v8000 = vshrl.u32 %v7999, 30
    %v8001 = vshll.u32 %v8000, 30
    %v8002 = vsub.s32 %v7998, %v8001
    %vm8003 = vcmp.lt.s32.totalorder %v8002, 0
    %v8004 = vsub.s32 0, %v8002
    %v8005 = vsel %vm8003, %v8004, %v8002
    %v8006 = vclz %v8005
    %v8007 = vsub.s32 %v8006, 2
    %vm8008 = vcmp.gt.s32.totalorder 0, %v8007
    %v8009 = vsel %vm8008, 0, %v8007
    %v8010 = vsub.s32 32, %v8009
    %v8011 = vshll.u32 %v8002, %v8009
    %v8012 = vshrl.u32 %v7994, %v8010
    %v8013 = vor.u32 %v8011, %v8012
    %v8014 = vsub.s32 4294967266, %v8009
    %v8015 = vadd.s32 %v8014, 127
    %v8016 = vshll.u32 %v8015, 23
    %v8017 = vor.u32 4788187, %v8016
    %v8018 = vand.u32 2147483647, %v8017
    %v8020 = vcvt.s32.f32 %v8013
    %v8021 = vmul.f32 %v8020, %v8018
    %v8022 = vxor.u32 %v8021, 2147483648
    %v8023 = vsel %vm7940, %v8022, %v8021
    %v8024 = vsub.s32 4, %v8000
    %v8025 = vsel %vm7940, %v8024, %v8000
    %v8026 = vsel %vm7939, %v7510, %v8023
    %v8027 = vsel %vm7939, 0, %v8025
    %v8028 = vcosq.f32.pop %v8026
    %v8029 = vsinq.f32.pop %v8026
    %vm8030 = vweird.f32 %v7510
    %v8031 = vadd.s32 %v8027, 3
    %v8032 = vand.u32 %v8031, 3
    %vm8033 = vcmp.lt.s32.totalorder %v8032, 2
    %vm8034 = vcmp.eq.s32.totalorder %v8032, 0
    %v8035 = vxor.u32 %v8029, 2147483648
    %v8036 = vsel %vm8034, %v8028, %v8035
    %vm8037 = vcmp.eq.s32.totalorder %v8032, 2
    %v8038 = vxor.u32 %v8028, 2147483648
    %v8039 = vsel %vm8037, %v8038, %v8029
    %v8040 = vsel %vm8033, %v8036, %v8039
    %v8041 = vsel %vm8030, nan, %v8040
    %v8042 = vand.u32 2147483647, %v7511
    %vm8043 = vcmp.le.f32.partialorder %v8042, 0.7853982
    %vm8044 = vcmp.lt.s32.totalorder %v7511, 0
    %v8045 = vand.u32 %v7511, 2139095040
    %v8046 = vshrl.u32 %v8045, 23
    %v8047 = vsub.s32 %v8046, 127
    %v8048 = vand.u32 2147483647, %v7511
    %v8049 = vand.u32 %v8048, 8388607
    %v8050 = vor.u32 %v8049, 8388608
    %v8051 = vsub.s32 0, %v8050
    %v8052 = vadd.s32 %v8047, 1
    %vm8053 = vcmp.gt.s32.totalorder %v8052, 0
    %v8054 = vsel %vm8053, %v8052, 0
    %v8055 = vshrl.u32 %v8054, 5
    %v8056 = vand.u32 %v8054, 31
    %v8057 = vsub.s32 32, %v8056
    %v8058 = vshrl.u32 683565275, %v8057
    %v8059 = vshll.u32 683565275, %v8056
    %v8060 = vshrl.u32 2475754826, %v8057
    %v8061 = vor.u32 %v8059, %v8060
    %v8062 = vshll.u32 2475754826, %v8056
    %v8063 = vshrl.u32 2131351028, %v8057
    %v8064 = vor.u32 %v8062, %v8063
    %v8065 = vshll.u32 2131351028, %v8056
    %v8066 = vshrl.u32 2102212464, %v8057
    %v8067 = vor.u32 %v8065, %v8066
    %v8068 = vshll.u32 2102212464, %v8056
    %v8069 = vshrl.u32 920167782, %v8057
    %v8070 = vor.u32 %v8068, %v8069
    %v8071 = vshll.u32 920167782, %v8056
    %v8072 = vshrl.u32 1326507024, %v8057
    %v8073 = vor.u32 %v8071, %v8072
    %vm8074 = vcmp.lt.s32.totalorder %v8055, 1
    %vm8075 = vcmp.lt.s32.totalorder %v8055, 2
    %vm8076 = vcmp.lt.s32.totalorder %v8055, 3
    %vm8077 = vcmp.lt.s32.totalorder %v8055, 4
    %v8078 = vsel %vm8074, %v8058, %v8061
    %v8079 = vsel %vm8077, %v8067, 2102212464
    %v8080 = vsel %vm8076, %v8064, %v8079
    %v8081 = vsel %vm8075, %v8078, %v8080
    %v8082 = vsel %vm8074, %v8061, %v8064
    %v8083 = vsel %vm8077, %v8070, 920167782
    %v8084 = vsel %vm8076, %v8067, %v8083
    %v8085 = vsel %vm8075, %v8082, %v8084
    %v8086 = vsel %vm8074, %v8064, %v8067
    %v8087 = vsel %vm8077, %v8073, 1326507024
    %v8088 = vsel %vm8076, %v8070, %v8087
    %v8089 = vsel %vm8075, %v8086, %v8088
    %v8090 = vshll.u32 %v8050, 8
    %v8091 = vmul.u32.u64.compose %v8090, %v8089
    %v8092 = vextract.low.u32 %v8091
    %v8093 = vextract.high.u32 %v8091
    %v8094 = vmul.u32.u64.compose %v8090, %v8085
    %v8095 = vextract.low.u32 %v8094
    %v8096 = vextract.high.u32 %v8094
    %v8097 = vmul.u32 %v8090, %v8081
    %v8098 = vadd.s32 %v8093, %v8095
    %vm8099 = vc.u32 %v8093, %v8095
    %v8100 = vadd.s32 %v8096, 1
    %v8101 = vsel %vm8099, %v8100, %v8096
    %v8102 = vadd.s32 %v8097, %v8101
    %v8103 = vadd.s32 %v8102, 536870912
    %v8104 = vshrl.u32 %v8103, 30
    %v8105 = vshll.u32 %v8104, 30
    %v8106 = vsub.s32 %v8102, %v8105
    %vm8107 = vcmp.lt.s32.totalorder %v8106, 0
    %v8108 = vsub.s32 0, %v8106
    %v8109 = vsel %vm8107, %v8108, %v8106
    %v8110 = vclz %v8109
    %v8111 = vsub.s32 %v8110, 2
    %vm8112 = vcmp.gt.s32.totalorder 0, %v8111
    %v8113 = vsel %vm8112, 0, %v8111
    %v8114 = vsub.s32 32, %v8113
    %v8115 = vshll.u32 %v8106, %v8113
    %v8116 = vshrl.u32 %v8098, %v8114
    %v8117 = vor.u32 %v8115, %v8116
    %v8118 = vsub.s32 4294967266, %v8113
    %v8119 = vadd.s32 %v8118, 127
    %v8120 = vshll.u32 %v8119, 23
    %v8121 = vor.u32 4788187, %v8120
    %v8122 = vand.u32 2147483647, %v8121
    %v8124 = vcvt.s32.f32 %v8117
    %v8125 = vmul.f32 %v8124, %v8122
    %v8126 = vxor.u32 %v8125, 2147483648
    %v8127 = vsel %vm8044, %v8126, %v8125
    %v8128 = vsub.s32 4, %v8104
    %v8129 = vsel %vm8044, %v8128, %v8104
    %v8130 = vsel %vm8043, %v7511, %v8127
    %v8131 = vsel %vm8043, 0, %v8129
    %v8132 = vcosq.f32.pop %v8130
    %v8133 = vsinq.f32.pop %v8130
    %vm8134 = vweird.f32 %v7511
    %v8135 = vadd.s32 %v8131, 3
    %v8136 = vand.u32 %v8135, 3
    %vm8137 = vcmp.lt.s32.totalorder %v8136, 2
    %vm8138 = vcmp.eq.s32.totalorder %v8136, 0
    %v8139 = vxor.u32 %v8133, 2147483648
    %v8140 = vsel %vm8138, %v8132, %v8139
    %vm8141 = vcmp.eq.s32.totalorder %v8136, 2
    %v8142 = vxor.u32 %v8132, 2147483648
    %v8143 = vsel %vm8141, %v8142, %v8133
    %v8144 = vsel %vm8137, %v8140, %v8143
    %v8145 = vsel %vm8134, nan, %v8144
    %v8146 = vand.u32 2147483647, %v7512
    %vm8147 = vcmp.le.f32.partialorder %v8146, 0.7853982
    %vm8148 = vcmp.lt.s32.totalorder %v7512, 0
    %v8149 = vand.u32 %v7512, 2139095040
    %v8150 = vshrl.u32 %v8149, 23
    %v8151 = vsub.s32 %v8150, 127
    %v8152 = vand.u32 2147483647, %v7512
    %v8153 = vand.u32 %v8152, 8388607
    %v8154 = vor.u32 %v8153, 8388608
    %v8155 = vsub.s32 0, %v8154
    %v8156 = vadd.s32 %v8151, 1
    %vm8157 = vcmp.gt.s32.totalorder %v8156, 0
    %v8158 = vsel %vm8157, %v8156, 0
    %v8159 = vshrl.u32 %v8158, 5
    %v8160 = vand.u32 %v8158, 31
    %v8161 = vsub.s32 32, %v8160
    %v8162 = vshrl.u32 683565275, %v8161
    %v8163 = vshll.u32 683565275, %v8160
    %v8164 = vshrl.u32 2475754826, %v8161
    %v8165 = vor.u32 %v8163, %v8164
    %v8166 = vshll.u32 2475754826, %v8160
    %v8167 = vshrl.u32 2131351028, %v8161
    %v8168 = vor.u32 %v8166, %v8167
    %v8169 = vshll.u32 2131351028, %v8160
    %v8170 = vshrl.u32 2102212464, %v8161
    %v8171 = vor.u32 %v8169, %v8170
    %v8172 = vshll.u32 2102212464, %v8160
    %v8173 = vshrl.u32 920167782, %v8161
    %v8174 = vor.u32 %v8172, %v8173
    %v8175 = vshll.u32 920167782, %v8160
    %v8176 = vshrl.u32 1326507024, %v8161
    %v8177 = vor.u32 %v8175, %v8176
    %vm8178 = vcmp.lt.s32.totalorder %v8159, 1
    %vm8179 = vcmp.lt.s32.totalorder %v8159, 2
    %vm8180 = vcmp.lt.s32.totalorder %v8159, 3
    %vm8181 = vcmp.lt.s32.totalorder %v8159, 4
    %v8182 = vsel %vm8178, %v8162, %v8165
    %v8183 = vsel %vm8181, %v8171, 2102212464
    %v8184 = vsel %vm8180, %v8168, %v8183
    %v8185 = vsel %vm8179, %v8182, %v8184
    %v8186 = vsel %vm8178, %v8165, %v8168
    %v8187 = vsel %vm8181, %v8174, 920167782
    %v8188 = vsel %vm8180, %v8171, %v8187
    %v8189 = vsel %vm8179, %v8186, %v8188
    %v8190 = vsel %vm8178, %v8168, %v8171
    %v8191 = vsel %vm8181, %v8177, 1326507024
    %v8192 = vsel %vm8180, %v8174, %v8191
    %v8193 = vsel %vm8179, %v8190, %v8192
    %v8194 = vshll.u32 %v8154, 8
    %v8195 = vmul.u32.u64.compose %v8194, %v8193
    %v8196 = vextract.low.u32 %v8195
    %v8197 = vextract.high.u32 %v8195
    %v8198 = vmul.u32.u64.compose %v8194, %v8189
    %v8199 = vextract.low.u32 %v8198
    %v8200 = vextract.high.u32 %v8198
    %v8201 = vmul.u32 %v8194, %v8185
    %v8202 = vadd.s32 %v8197, %v8199
    %vm8203 = vc.u32 %v8197, %v8199
    %v8204 = vadd.s32 %v8200, 1
    %v8205 = vsel %vm8203, %v8204, %v8200
    %v8206 = vadd.s32 %v8201, %v8205
    %v8207 = vadd.s32 %v8206, 536870912
    %v8208 = vshrl.u32 %v8207, 30
    %v8209 = vshll.u32 %v8208, 30
    %v8210 = vsub.s32 %v8206, %v8209
    %vm8211 = vcmp.lt.s32.totalorder %v8210, 0
    %v8212 = vsub.s32 0, %v8210
    %v8213 = vsel %vm8211, %v8212, %v8210
    %v8214 = vclz %v8213
    %v8215 = vsub.s32 %v8214, 2
    %vm8216 = vcmp.gt.s32.totalorder 0, %v8215
    %v8217 = vsel %vm8216, 0, %v8215
    %v8218 = vsub.s32 32, %v8217
    %v8219 = vshll.u32 %v8210, %v8217
    %v8220 = vshrl.u32 %v8202, %v8218
    %v8221 = vor.u32 %v8219, %v8220
    %v8222 = vsub.s32 4294967266, %v8217
    %v8223 = vadd.s32 %v8222, 127
    %v8224 = vshll.u32 %v8223, 23
    %v8225 = vor.u32 4788187, %v8224
    %v8226 = vand.u32 2147483647, %v8225
    %v8228 = vcvt.s32.f32 %v8221
    %v8229 = vmul.f32 %v8228, %v8226
    %v8230 = vxor.u32 %v8229, 2147483648
    %v8231 = vsel %vm8148, %v8230, %v8229
    %v8232 = vsub.s32 4, %v8208
    %v8233 = vsel %vm8148, %v8232, %v8208
    %v8234 = vsel %vm8147, %v7512, %v8231
    %v8235 = vsel %vm8147, 0, %v8233
    %v8236 = vcosq.f32.pop %v8234
    %v8237 = vsinq.f32.pop %v8234
    %vm8238 = vweird.f32 %v7512
    %v8239 = vadd.s32 %v8235, 3
    %v8240 = vand.u32 %v8239, 3
    %vm8241 = vcmp.lt.s32.totalorder %v8240, 2
    %vm8242 = vcmp.eq.s32.totalorder %v8240, 0
    %v8243 = vxor.u32 %v8237, 2147483648
    %v8244 = vsel %vm8242, %v8236, %v8243
    %vm8245 = vcmp.eq.s32.totalorder %v8240, 2
    %v8246 = vxor.u32 %v8236, 2147483648
    %v8247 = vsel %vm8245, %v8246, %v8237
    %v8248 = vsel %vm8241, %v8244, %v8247
    %v8249 = vsel %vm8238, nan, %v8248
    %v8250 = vand.u32 2147483647, %v7513
    %vm8251 = vcmp.le.f32.partialorder %v8250, 0.7853982
    %vm8252 = vcmp.lt.s32.totalorder %v7513, 0
    %v8253 = vand.u32 %v7513, 2139095040
    %v8254 = vshrl.u32 %v8253, 23
    %v8255 = vsub.s32 %v8254, 127
    %v8256 = vand.u32 2147483647, %v7513
    %v8257 = vand.u32 %v8256, 8388607
    %v8258 = vor.u32 %v8257, 8388608
    %v8259 = vsub.s32 0, %v8258
    %v8260 = vadd.s32 %v8255, 1
    %vm8261 = vcmp.gt.s32.totalorder %v8260, 0
    %v8262 = vsel %vm8261, %v8260, 0
    %v8263 = vshrl.u32 %v8262, 5
    %v8264 = vand.u32 %v8262, 31
    %v8265 = vsub.s32 32, %v8264
    %v8266 = vshrl.u32 683565275, %v8265
    %v8267 = vshll.u32 683565275, %v8264
    %v8268 = vshrl.u32 2475754826, %v8265
    %v8269 = vor.u32 %v8267, %v8268
    %v8270 = vshll.u32 2475754826, %v8264
    %v8271 = vshrl.u32 2131351028, %v8265
    %v8272 = vor.u32 %v8270, %v8271
    %v8273 = vshll.u32 2131351028, %v8264
    %v8274 = vshrl.u32 2102212464, %v8265
    %v8275 = vor.u32 %v8273, %v8274
    %v8276 = vshll.u32 2102212464, %v8264
    %v8277 = vshrl.u32 920167782, %v8265
    %v8278 = vor.u32 %v8276, %v8277
    %v8279 = vshll.u32 920167782, %v8264
    %v8280 = vshrl.u32 1326507024, %v8265
    %v8281 = vor.u32 %v8279, %v8280
    %vm8282 = vcmp.lt.s32.totalorder %v8263, 1
    %vm8283 = vcmp.lt.s32.totalorder %v8263, 2
    %vm8284 = vcmp.lt.s32.totalorder %v8263, 3
    %vm8285 = vcmp.lt.s32.totalorder %v8263, 4
    %v8286 = vsel %vm8282, %v8266, %v8269
    %v8287 = vsel %vm8285, %v8275, 2102212464
    %v8288 = vsel %vm8284, %v8272, %v8287
    %v8289 = vsel %vm8283, %v8286, %v8288
    %v8290 = vsel %vm8282, %v8269, %v8272
    %v8291 = vsel %vm8285, %v8278, 920167782
    %v8292 = vsel %vm8284, %v8275, %v8291
    %v8293 = vsel %vm8283, %v8290, %v8292
    %v8294 = vsel %vm8282, %v8272, %v8275
    %v8295 = vsel %vm8285, %v8281, 1326507024
    %v8296 = vsel %vm8284, %v8278, %v8295
    %v8297 = vsel %vm8283, %v8294, %v8296
    %v8298 = vshll.u32 %v8258, 8
    %v8299 = vmul.u32.u64.compose %v8298, %v8297
    %v8300 = vextract.low.u32 %v8299
    %v8301 = vextract.high.u32 %v8299
    %v8302 = vmul.u32.u64.compose %v8298, %v8293
    %v8303 = vextract.low.u32 %v8302
    %v8304 = vextract.high.u32 %v8302
    %v8305 = vmul.u32 %v8298, %v8289
    %v8306 = vadd.s32 %v8301, %v8303
    %vm8307 = vc.u32 %v8301, %v8303
    %v8308 = vadd.s32 %v8304, 1
    %v8309 = vsel %vm8307, %v8308, %v8304
    %v8310 = vadd.s32 %v8305, %v8309
    %v8311 = vadd.s32 %v8310, 536870912
    %v8312 = vshrl.u32 %v8311, 30
    %v8313 = vshll.u32 %v8312, 30
    %v8314 = vsub.s32 %v8310, %v8313
    %vm8315 = vcmp.lt.s32.totalorder %v8314, 0
    %v8316 = vsub.s32 0, %v8314
    %v8317 = vsel %vm8315, %v8316, %v8314
    %v8318 = vclz %v8317
    %v8319 = vsub.s32 %v8318, 2
    %vm8320 = vcmp.gt.s32.totalorder 0, %v8319
    %v8321 = vsel %vm8320, 0, %v8319
    %v8322 = vsub.s32 32, %v8321
    %v8323 = vshll.u32 %v8314, %v8321
    %v8324 = vshrl.u32 %v8306, %v8322
    %v8325 = vor.u32 %v8323, %v8324
    %v8326 = vsub.s32 4294967266, %v8321
    %v8327 = vadd.s32 %v8326, 127
    %v8328 = vshll.u32 %v8327, 23
    %v8329 = vor.u32 4788187, %v8328
    %v8330 = vand.u32 2147483647, %v8329
    %v8332 = vcvt.s32.f32 %v8325
    %v8333 = vmul.f32 %v8332, %v8330
    %v8334 = vxor.u32 %v8333, 2147483648
    %v8335 = vsel %vm8252, %v8334, %v8333
    %v8336 = vsub.s32 4, %v8312
    %v8337 = vsel %vm8252, %v8336, %v8312
    %v8338 = vsel %vm8251, %v7513, %v8335
    %v8339 = vsel %vm8251, 0, %v8337
    %v8340 = vcosq.f32.pop %v8338
    %v8341 = vsinq.f32.pop %v8338
    %vm8342 = vweird.f32 %v7513
    %v8343 = vadd.s32 %v8339, 3
    %v8344 = vand.u32 %v8343, 3
    %vm8345 = vcmp.lt.s32.totalorder %v8344, 2
    %vm8346 = vcmp.eq.s32.totalorder %v8344, 0
    %v8347 = vxor.u32 %v8341, 2147483648
    %v8348 = vsel %vm8346, %v8340, %v8347
    %vm8349 = vcmp.eq.s32.totalorder %v8344, 2
    %v8350 = vxor.u32 %v8340, 2147483648
    %v8351 = vsel %vm8349, %v8350, %v8341
    %v8352 = vsel %vm8345, %v8348, %v8351
    %v8353 = vsel %vm8342, nan, %v8352
    %v8354 = vand.u32 2147483647, %v7514
    %vm8355 = vcmp.le.f32.partialorder %v8354, 0.7853982
    %vm8356 = vcmp.lt.s32.totalorder %v7514, 0
    %v8357 = vand.u32 %v7514, 2139095040
    %v8358 = vshrl.u32 %v8357, 23
    %v8359 = vsub.s32 %v8358, 127
    %v8360 = vand.u32 2147483647, %v7514
    %v8361 = vand.u32 %v8360, 8388607
    %v8362 = vor.u32 %v8361, 8388608
    %v8363 = vsub.s32 0, %v8362
    %v8364 = vadd.s32 %v8359, 1
    %vm8365 = vcmp.gt.s32.totalorder %v8364, 0
    %v8366 = vsel %vm8365, %v8364, 0
    %v8367 = vshrl.u32 %v8366, 5
    %v8368 = vand.u32 %v8366, 31
    %v8369 = vsub.s32 32, %v8368
    %v8370 = vshrl.u32 683565275, %v8369
    %v8371 = vshll.u32 683565275, %v8368
    %v8372 = vshrl.u32 2475754826, %v8369
    %v8373 = vor.u32 %v8371, %v8372
    %v8374 = vshll.u32 2475754826, %v8368
    %v8375 = vshrl.u32 2131351028, %v8369
    %v8376 = vor.u32 %v8374, %v8375
    %v8377 = vshll.u32 2131351028, %v8368
    %v8378 = vshrl.u32 2102212464, %v8369
    %v8379 = vor.u32 %v8377, %v8378
    %v8380 = vshll.u32 2102212464, %v8368
    %v8381 = vshrl.u32 920167782, %v8369
    %v8382 = vor.u32 %v8380, %v8381
    %v8383 = vshll.u32 920167782, %v8368
    %v8384 = vshrl.u32 1326507024, %v8369
    %v8385 = vor.u32 %v8383, %v8384
    %vm8386 = vcmp.lt.s32.totalorder %v8367, 1
    %vm8387 = vcmp.lt.s32.totalorder %v8367, 2
    %vm8388 = vcmp.lt.s32.totalorder %v8367, 3
    %vm8389 = vcmp.lt.s32.totalorder %v8367, 4
    %v8390 = vsel %vm8386, %v8370, %v8373
    %v8391 = vsel %vm8389, %v8379, 2102212464
    %v8392 = vsel %vm8388, %v8376, %v8391
    %v8393 = vsel %vm8387, %v8390, %v8392
    %v8394 = vsel %vm8386, %v8373, %v8376
    %v8395 = vsel %vm8389, %v8382, 920167782
    %v8396 = vsel %vm8388, %v8379, %v8395
    %v8397 = vsel %vm8387, %v8394, %v8396
    %v8398 = vsel %vm8386, %v8376, %v8379
    %v8399 = vsel %vm8389, %v8385, 1326507024
    %v8400 = vsel %vm8388, %v8382, %v8399
    %v8401 = vsel %vm8387, %v8398, %v8400
    %v8402 = vshll.u32 %v8362, 8
    %v8403 = vmul.u32.u64.compose %v8402, %v8401
    %v8404 = vextract.low.u32 %v8403
    %v8405 = vextract.high.u32 %v8403
    %v8406 = vmul.u32.u64.compose %v8402, %v8397
    %v8407 = vextract.low.u32 %v8406
    %v8408 = vextract.high.u32 %v8406
    %v8409 = vmul.u32 %v8402, %v8393
    %v8410 = vadd.s32 %v8405, %v8407
    %vm8411 = vc.u32 %v8405, %v8407
    %v8412 = vadd.s32 %v8408, 1
    %v8413 = vsel %vm8411, %v8412, %v8408
    %v8414 = vadd.s32 %v8409, %v8413
    %v8415 = vadd.s32 %v8414, 536870912
    %v8416 = vshrl.u32 %v8415, 30
    %v8417 = vshll.u32 %v8416, 30
    %v8418 = vsub.s32 %v8414, %v8417
    %vm8419 = vcmp.lt.s32.totalorder %v8418, 0
    %v8420 = vsub.s32 0, %v8418
    %v8421 = vsel %vm8419, %v8420, %v8418
    %v8422 = vclz %v8421
    %v8423 = vsub.s32 %v8422, 2
    %vm8424 = vcmp.gt.s32.totalorder 0, %v8423
    %v8425 = vsel %vm8424, 0, %v8423
    %v8426 = vsub.s32 32, %v8425
    %v8427 = vshll.u32 %v8418, %v8425
    %v8428 = vshrl.u32 %v8410, %v8426
    %v8429 = vor.u32 %v8427, %v8428
    %v8430 = vsub.s32 4294967266, %v8425
    %v8431 = vadd.s32 %v8430, 127
    %v8432 = vshll.u32 %v8431, 23
    %v8433 = vor.u32 4788187, %v8432
    %v8434 = vand.u32 2147483647, %v8433
    %v8436 = vcvt.s32.f32 %v8429
    %v8437 = vmul.f32 %v8436, %v8434
    %v8438 = vxor.u32 %v8437, 2147483648
    %v8439 = vsel %vm8356, %v8438, %v8437
    %v8440 = vsub.s32 4, %v8416
    %v8441 = vsel %vm8356, %v8440, %v8416
    %v8442 = vsel %vm8355, %v7514, %v8439
    %v8443 = vsel %vm8355, 0, %v8441
    %v8444 = vcosq.f32.pop %v8442
    %v8445 = vsinq.f32.pop %v8442
    %vm8446 = vweird.f32 %v7514
    %v8447 = vadd.s32 %v8443, 3
    %v8448 = vand.u32 %v8447, 3
    %vm8449 = vcmp.lt.s32.totalorder %v8448, 2
    %vm8450 = vcmp.eq.s32.totalorder %v8448, 0
    %v8451 = vxor.u32 %v8445, 2147483648
    %v8452 = vsel %vm8450, %v8444, %v8451
    %vm8453 = vcmp.eq.s32.totalorder %v8448, 2
    %v8454 = vxor.u32 %v8444, 2147483648
    %v8455 = vsel %vm8453, %v8454, %v8445
    %v8456 = vsel %vm8449, %v8452, %v8455
    %v8457 = vsel %vm8446, nan, %v8456
    %v8458 = vand.u32 2147483647, %v7515
    %vm8459 = vcmp.le.f32.partialorder %v8458, 0.7853982
    %vm8460 = vcmp.lt.s32.totalorder %v7515, 0
    %v8461 = vand.u32 %v7515, 2139095040
    %v8462 = vshrl.u32 %v8461, 23
    %v8463 = vsub.s32 %v8462, 127
    %v8464 = vand.u32 2147483647, %v7515
    %v8465 = vand.u32 %v8464, 8388607
    %v8466 = vor.u32 %v8465, 8388608
    %v8467 = vsub.s32 0, %v8466
    %v8468 = vadd.s32 %v8463, 1
    %vm8469 = vcmp.gt.s32.totalorder %v8468, 0
    %v8470 = vsel %vm8469, %v8468, 0
    %v8471 = vshrl.u32 %v8470, 5
    %v8472 = vand.u32 %v8470, 31
    %v8473 = vsub.s32 32, %v8472
    %v8474 = vshrl.u32 683565275, %v8473
    %v8475 = vshll.u32 683565275, %v8472
    %v8476 = vshrl.u32 2475754826, %v8473
    %v8477 = vor.u32 %v8475, %v8476
    %v8478 = vshll.u32 2475754826, %v8472
    %v8479 = vshrl.u32 2131351028, %v8473
    %v8480 = vor.u32 %v8478, %v8479
    %v8481 = vshll.u32 2131351028, %v8472
    %v8482 = vshrl.u32 2102212464, %v8473
    %v8483 = vor.u32 %v8481, %v8482
    %v8484 = vshll.u32 2102212464, %v8472
    %v8485 = vshrl.u32 920167782, %v8473
    %v8486 = vor.u32 %v8484, %v8485
    %v8487 = vshll.u32 920167782, %v8472
    %v8488 = vshrl.u32 1326507024, %v8473
    %v8489 = vor.u32 %v8487, %v8488
    %vm8490 = vcmp.lt.s32.totalorder %v8471, 1
    %vm8491 = vcmp.lt.s32.totalorder %v8471, 2
    %vm8492 = vcmp.lt.s32.totalorder %v8471, 3
    %vm8493 = vcmp.lt.s32.totalorder %v8471, 4
    %v8494 = vsel %vm8490, %v8474, %v8477
    %v8495 = vsel %vm8493, %v8483, 2102212464
    %v8496 = vsel %vm8492, %v8480, %v8495
    %v8497 = vsel %vm8491, %v8494, %v8496
    %v8498 = vsel %vm8490, %v8477, %v8480
    %v8499 = vsel %vm8493, %v8486, 920167782
    %v8500 = vsel %vm8492, %v8483, %v8499
    %v8501 = vsel %vm8491, %v8498, %v8500
    %v8502 = vsel %vm8490, %v8480, %v8483
    %v8503 = vsel %vm8493, %v8489, 1326507024
    %v8504 = vsel %vm8492, %v8486, %v8503
    %v8505 = vsel %vm8491, %v8502, %v8504
    %v8506 = vshll.u32 %v8466, 8
    %v8507 = vmul.u32.u64.compose %v8506, %v8505
    %v8508 = vextract.low.u32 %v8507
    %v8509 = vextract.high.u32 %v8507
    %v8510 = vmul.u32.u64.compose %v8506, %v8501
    %v8511 = vextract.low.u32 %v8510
    %v8512 = vextract.high.u32 %v8510
    %v8513 = vmul.u32 %v8506, %v8497
    %v8514 = vadd.s32 %v8509, %v8511
    %vm8515 = vc.u32 %v8509, %v8511
    %v8516 = vadd.s32 %v8512, 1
    %v8517 = vsel %vm8515, %v8516, %v8512
    %v8518 = vadd.s32 %v8513, %v8517
    %v8519 = vadd.s32 %v8518, 536870912
    %v8520 = vshrl.u32 %v8519, 30
    %v8521 = vshll.u32 %v8520, 30
    %v8522 = vsub.s32 %v8518, %v8521
    %vm8523 = vcmp.lt.s32.totalorder %v8522, 0
    %v8524 = vsub.s32 0, %v8522
    %v8525 = vsel %vm8523, %v8524, %v8522
    %v8526 = vclz %v8525
    %v8527 = vsub.s32 %v8526, 2
    %vm8528 = vcmp.gt.s32.totalorder 0, %v8527
    %v8529 = vsel %vm8528, 0, %v8527
    %v8530 = vsub.s32 32, %v8529
    %v8531 = vshll.u32 %v8522, %v8529
    %v8532 = vshrl.u32 %v8514, %v8530
    %v8533 = vor.u32 %v8531, %v8532
    %v8534 = vsub.s32 4294967266, %v8529
    %v8535 = vadd.s32 %v8534, 127
    %v8536 = vshll.u32 %v8535, 23
    %v8537 = vor.u32 4788187, %v8536
    %v8538 = vand.u32 2147483647, %v8537
    %v8540 = vcvt.s32.f32 %v8533
    %v8541 = vmul.f32 %v8540, %v8538
    %v8542 = vxor.u32 %v8541, 2147483648
    %v8543 = vsel %vm8460, %v8542, %v8541
    %v8544 = vsub.s32 4, %v8520
    %v8545 = vsel %vm8460, %v8544, %v8520
    %v8546 = vsel %vm8459, %v7515, %v8543
    %v8547 = vsel %vm8459, 0, %v8545
    %v8548 = vcosq.f32.pop %v8546
    %v8549 = vsinq.f32.pop %v8546
    %vm8550 = vweird.f32 %v7515
    %v8551 = vadd.s32 %v8547, 3
    %v8552 = vand.u32 %v8551, 3
    %vm8553 = vcmp.lt.s32.totalorder %v8552, 2
    %vm8554 = vcmp.eq.s32.totalorder %v8552, 0
    %v8555 = vxor.u32 %v8549, 2147483648
    %v8556 = vsel %vm8554, %v8548, %v8555
    %vm8557 = vcmp.eq.s32.totalorder %v8552, 2
    %v8558 = vxor.u32 %v8548, 2147483648
    %v8559 = vsel %vm8557, %v8558, %v8549
    %v8560 = vsel %vm8553, %v8556, %v8559
    %v8561 = vsel %vm8550, nan, %v8560
    %v8562 = vand.u32 2147483647, %v7516
    %vm8563 = vcmp.le.f32.partialorder %v8562, 0.7853982
    %vm8564 = vcmp.lt.s32.totalorder %v7516, 0
    %v8565 = vand.u32 %v7516, 2139095040
    %v8566 = vshrl.u32 %v8565, 23
    %v8567 = vsub.s32 %v8566, 127
    %v8568 = vand.u32 2147483647, %v7516
    %v8569 = vand.u32 %v8568, 8388607
    %v8570 = vor.u32 %v8569, 8388608
    %v8571 = vsub.s32 0, %v8570
    %v8572 = vadd.s32 %v8567, 1
    %vm8573 = vcmp.gt.s32.totalorder %v8572, 0
    %v8574 = vsel %vm8573, %v8572, 0
    %v8575 = vshrl.u32 %v8574, 5
    %v8576 = vand.u32 %v8574, 31
    %v8577 = vsub.s32 32, %v8576
    %v8578 = vshrl.u32 683565275, %v8577
    %v8579 = vshll.u32 683565275, %v8576
    %v8580 = vshrl.u32 2475754826, %v8577
    %v8581 = vor.u32 %v8579, %v8580
    %v8582 = vshll.u32 2475754826, %v8576
    %v8583 = vshrl.u32 2131351028, %v8577
    %v8584 = vor.u32 %v8582, %v8583
    %v8585 = vshll.u32 2131351028, %v8576
    %v8586 = vshrl.u32 2102212464, %v8577
    %v8587 = vor.u32 %v8585, %v8586
    %v8588 = vshll.u32 2102212464, %v8576
    %v8589 = vshrl.u32 920167782, %v8577
    %v8590 = vor.u32 %v8588, %v8589
    %v8591 = vshll.u32 920167782, %v8576
    %v8592 = vshrl.u32 1326507024, %v8577
    %v8593 = vor.u32 %v8591, %v8592
    %vm8594 = vcmp.lt.s32.totalorder %v8575, 1
    %vm8595 = vcmp.lt.s32.totalorder %v8575, 2
    %vm8596 = vcmp.lt.s32.totalorder %v8575, 3
    %vm8597 = vcmp.lt.s32.totalorder %v8575, 4
    %v8598 = vsel %vm8594, %v8578, %v8581
    %v8599 = vsel %vm8597, %v8587, 2102212464
    %v8600 = vsel %vm8596, %v8584, %v8599
    %v8601 = vsel %vm8595, %v8598, %v8600
    %v8602 = vsel %vm8594, %v8581, %v8584
    %v8603 = vsel %vm8597, %v8590, 920167782
    %v8604 = vsel %vm8596, %v8587, %v8603
    %v8605 = vsel %vm8595, %v8602, %v8604
    %v8606 = vsel %vm8594, %v8584, %v8587
    %v8607 = vsel %vm8597, %v8593, 1326507024
    %v8608 = vsel %vm8596, %v8590, %v8607
    %v8609 = vsel %vm8595, %v8606, %v8608
    %v8610 = vshll.u32 %v8570, 8
    %v8611 = vmul.u32.u64.compose %v8610, %v8609
    %v8612 = vextract.low.u32 %v8611
    %v8613 = vextract.high.u32 %v8611
    %v8614 = vmul.u32.u64.compose %v8610, %v8605
    %v8615 = vextract.low.u32 %v8614
    %v8616 = vextract.high.u32 %v8614
    %v8617 = vmul.u32 %v8610, %v8601
    %v8618 = vadd.s32 %v8613, %v8615
    %vm8619 = vc.u32 %v8613, %v8615
    %v8620 = vadd.s32 %v8616, 1
    %v8621 = vsel %vm8619, %v8620, %v8616
    %v8622 = vadd.s32 %v8617, %v8621
    %v8623 = vadd.s32 %v8622, 536870912
    %v8624 = vshrl.u32 %v8623, 30
    %v8625 = vshll.u32 %v8624, 30
    %v8626 = vsub.s32 %v8622, %v8625
    %vm8627 = vcmp.lt.s32.totalorder %v8626, 0
    %v8628 = vsub.s32 0, %v8626
    %v8629 = vsel %vm8627, %v8628, %v8626
    %v8630 = vclz %v8629
    %v8631 = vsub.s32 %v8630, 2
    %vm8632 = vcmp.gt.s32.totalorder 0, %v8631
    %v8633 = vsel %vm8632, 0, %v8631
    %v8634 = vsub.s32 32, %v8633
    %v8635 = vshll.u32 %v8626, %v8633
    %v8636 = vshrl.u32 %v8618, %v8634
    %v8637 = vor.u32 %v8635, %v8636
    %v8638 = vsub.s32 4294967266, %v8633
    %v8639 = vadd.s32 %v8638, 127
    %v8640 = vshll.u32 %v8639, 23
    %v8641 = vor.u32 4788187, %v8640
    %v8642 = vand.u32 2147483647, %v8641
    %v8644 = vcvt.s32.f32 %v8637
    %v8645 = vmul.f32 %v8644, %v8642
    %v8646 = vxor.u32 %v8645, 2147483648
    %v8647 = vsel %vm8564, %v8646, %v8645
    %v8648 = vsub.s32 4, %v8624
    %v8649 = vsel %vm8564, %v8648, %v8624
    %v8650 = vsel %vm8563, %v7516, %v8647
    %v8651 = vsel %vm8563, 0, %v8649
    %v8652 = vcosq.f32.pop %v8650
    %v8653 = vsinq.f32.pop %v8650
    %vm8654 = vweird.f32 %v7516
    %v8655 = vadd.s32 %v8651, 3
    %v8656 = vand.u32 %v8655, 3
    %vm8657 = vcmp.lt.s32.totalorder %v8656, 2
    %vm8658 = vcmp.eq.s32.totalorder %v8656, 0
    %v8659 = vxor.u32 %v8653, 2147483648
    %v8660 = vsel %vm8658, %v8652, %v8659
    %vm8661 = vcmp.eq.s32.totalorder %v8656, 2
    %v8662 = vxor.u32 %v8652, 2147483648
    %v8663 = vsel %vm8661, %v8662, %v8653
    %v8664 = vsel %vm8657, %v8660, %v8663
    %v8665 = vsel %vm8654, nan, %v8664
    %v8666 = vand.u32 2147483647, %v7517
    %vm8667 = vcmp.le.f32.partialorder %v8666, 0.7853982
    %vm8668 = vcmp.lt.s32.totalorder %v7517, 0
    %v8669 = vand.u32 %v7517, 2139095040
    %v8670 = vshrl.u32 %v8669, 23
    %v8671 = vsub.s32 %v8670, 127
    %v8672 = vand.u32 2147483647, %v7517
    %v8673 = vand.u32 %v8672, 8388607
    %v8674 = vor.u32 %v8673, 8388608
    %v8675 = vsub.s32 0, %v8674
    %v8676 = vadd.s32 %v8671, 1
    %vm8677 = vcmp.gt.s32.totalorder %v8676, 0
    %v8678 = vsel %vm8677, %v8676, 0
    %v8679 = vshrl.u32 %v8678, 5
    %v8680 = vand.u32 %v8678, 31
    %v8681 = vsub.s32 32, %v8680
    %v8682 = vshrl.u32 683565275, %v8681
    %v8683 = vshll.u32 683565275, %v8680
    %v8684 = vshrl.u32 2475754826, %v8681
    %v8685 = vor.u32 %v8683, %v8684
    %v8686 = vshll.u32 2475754826, %v8680
    %v8687 = vshrl.u32 2131351028, %v8681
    %v8688 = vor.u32 %v8686, %v8687
    %v8689 = vshll.u32 2131351028, %v8680
    %v8690 = vshrl.u32 2102212464, %v8681
    %v8691 = vor.u32 %v8689, %v8690
    %v8692 = vshll.u32 2102212464, %v8680
    %v8693 = vshrl.u32 920167782, %v8681
    %v8694 = vor.u32 %v8692, %v8693
    %v8695 = vshll.u32 920167782, %v8680
    %v8696 = vshrl.u32 1326507024, %v8681
    %v8697 = vor.u32 %v8695, %v8696
    %vm8698 = vcmp.lt.s32.totalorder %v8679, 1
    %vm8699 = vcmp.lt.s32.totalorder %v8679, 2
    %vm8700 = vcmp.lt.s32.totalorder %v8679, 3
    %vm8701 = vcmp.lt.s32.totalorder %v8679, 4
    %v8702 = vsel %vm8698, %v8682, %v8685
    %v8703 = vsel %vm8701, %v8691, 2102212464
    %v8704 = vsel %vm8700, %v8688, %v8703
    %v8705 = vsel %vm8699, %v8702, %v8704
    %v8706 = vsel %vm8698, %v8685, %v8688
    %v8707 = vsel %vm8701, %v8694, 920167782
    %v8708 = vsel %vm8700, %v8691, %v8707
    %v8709 = vsel %vm8699, %v8706, %v8708
    %v8710 = vsel %vm8698, %v8688, %v8691
    %v8711 = vsel %vm8701, %v8697, 1326507024
    %v8712 = vsel %vm8700, %v8694, %v8711
    %v8713 = vsel %vm8699, %v8710, %v8712
    %v8714 = vshll.u32 %v8674, 8
    %v8715 = vmul.u32.u64.compose %v8714, %v8713
    %v8716 = vextract.low.u32 %v8715
    %v8717 = vextract.high.u32 %v8715
    %v8718 = vmul.u32.u64.compose %v8714, %v8709
    %v8719 = vextract.low.u32 %v8718
    %v8720 = vextract.high.u32 %v8718
    %v8721 = vmul.u32 %v8714, %v8705
    %v8722 = vadd.s32 %v8717, %v8719
    %vm8723 = vc.u32 %v8717, %v8719
    %v8724 = vadd.s32 %v8720, 1
    %v8725 = vsel %vm8723, %v8724, %v8720
    %v8726 = vadd.s32 %v8721, %v8725
    %v8727 = vadd.s32 %v8726, 536870912
    %v8728 = vshrl.u32 %v8727, 30
    %v8729 = vshll.u32 %v8728, 30
    %v8730 = vsub.s32 %v8726, %v8729
    %vm8731 = vcmp.lt.s32.totalorder %v8730, 0
    %v8732 = vsub.s32 0, %v8730
    %v8733 = vsel %vm8731, %v8732, %v8730
    %v8734 = vclz %v8733
    %v8735 = vsub.s32 %v8734, 2
    %vm8736 = vcmp.gt.s32.totalorder 0, %v8735
    %v8737 = vsel %vm8736, 0, %v8735
    %v8738 = vsub.s32 32, %v8737
    %v8739 = vshll.u32 %v8730, %v8737
    %v8740 = vshrl.u32 %v8722, %v8738
    %v8741 = vor.u32 %v8739, %v8740
    %v8742 = vsub.s32 4294967266, %v8737
    %v8743 = vadd.s32 %v8742, 127
    %v8744 = vshll.u32 %v8743, 23
    %v8745 = vor.u32 4788187, %v8744
    %v8746 = vand.u32 2147483647, %v8745
    %v8748 = vcvt.s32.f32 %v8741
    %v8749 = vmul.f32 %v8748, %v8746
    %v8750 = vxor.u32 %v8749, 2147483648
    %v8751 = vsel %vm8668, %v8750, %v8749
    %v8752 = vsub.s32 4, %v8728
    %v8753 = vsel %vm8668, %v8752, %v8728
    %v8754 = vsel %vm8667, %v7517, %v8751
    %v8755 = vsel %vm8667, 0, %v8753
    %v8756 = vcosq.f32.pop %v8754
    %v8757 = vsinq.f32.pop %v8754
    %vm8758 = vweird.f32 %v7517
    %v8759 = vadd.s32 %v8755, 3
    %v8760 = vand.u32 %v8759, 3
    %vm8761 = vcmp.lt.s32.totalorder %v8760, 2
    %vm8762 = vcmp.eq.s32.totalorder %v8760, 0
    %v8763 = vxor.u32 %v8757, 2147483648
    %v8764 = vsel %vm8762, %v8756, %v8763
    %vm8765 = vcmp.eq.s32.totalorder %v8760, 2
    %v8766 = vxor.u32 %v8756, 2147483648
    %v8767 = vsel %vm8765, %v8766, %v8757
    %v8768 = vsel %vm8761, %v8764, %v8767
    %v8769 = vsel %vm8758, nan, %v8768
    %v8770 = vand.u32 2147483647, %v7518
    %vm8771 = vcmp.le.f32.partialorder %v8770, 0.7853982
    %vm8772 = vcmp.lt.s32.totalorder %v7518, 0
    %v8773 = vand.u32 %v7518, 2139095040
    %v8774 = vshrl.u32 %v8773, 23
    %v8775 = vsub.s32 %v8774, 127
    %v8776 = vand.u32 2147483647, %v7518
    %v8777 = vand.u32 %v8776, 8388607
    %v8778 = vor.u32 %v8777, 8388608
    %v8779 = vsub.s32 0, %v8778
    %v8780 = vadd.s32 %v8775, 1
    %vm8781 = vcmp.gt.s32.totalorder %v8780, 0
    %v8782 = vsel %vm8781, %v8780, 0
    %v8783 = vshrl.u32 %v8782, 5
    %v8784 = vand.u32 %v8782, 31
    %v8785 = vsub.s32 32, %v8784
    %v8786 = vshrl.u32 683565275, %v8785
    %v8787 = vshll.u32 683565275, %v8784
    %v8788 = vshrl.u32 2475754826, %v8785
    %v8789 = vor.u32 %v8787, %v8788
    %v8790 = vshll.u32 2475754826, %v8784
    %v8791 = vshrl.u32 2131351028, %v8785
    %v8792 = vor.u32 %v8790, %v8791
    %v8793 = vshll.u32 2131351028, %v8784
    %v8794 = vshrl.u32 2102212464, %v8785
    %v8795 = vor.u32 %v8793, %v8794
    %v8796 = vshll.u32 2102212464, %v8784
    %v8797 = vshrl.u32 920167782, %v8785
    %v8798 = vor.u32 %v8796, %v8797
    %v8799 = vshll.u32 920167782, %v8784
    %v8800 = vshrl.u32 1326507024, %v8785
    %v8801 = vor.u32 %v8799, %v8800
    %vm8802 = vcmp.lt.s32.totalorder %v8783, 1
    %vm8803 = vcmp.lt.s32.totalorder %v8783, 2
    %vm8804 = vcmp.lt.s32.totalorder %v8783, 3
    %vm8805 = vcmp.lt.s32.totalorder %v8783, 4
    %v8806 = vsel %vm8802, %v8786, %v8789
    %v8807 = vsel %vm8805, %v8795, 2102212464
    %v8808 = vsel %vm8804, %v8792, %v8807
    %v8809 = vsel %vm8803, %v8806, %v8808
    %v8810 = vsel %vm8802, %v8789, %v8792
    %v8811 = vsel %vm8805, %v8798, 920167782
    %v8812 = vsel %vm8804, %v8795, %v8811
    %v8813 = vsel %vm8803, %v8810, %v8812
    %v8814 = vsel %vm8802, %v8792, %v8795
    %v8815 = vsel %vm8805, %v8801, 1326507024
    %v8816 = vsel %vm8804, %v8798, %v8815
    %v8817 = vsel %vm8803, %v8814, %v8816
    %v8818 = vshll.u32 %v8778, 8
    %v8819 = vmul.u32.u64.compose %v8818, %v8817
    %v8820 = vextract.low.u32 %v8819
    %v8821 = vextract.high.u32 %v8819
    %v8822 = vmul.u32.u64.compose %v8818, %v8813
    %v8823 = vextract.low.u32 %v8822
    %v8824 = vextract.high.u32 %v8822
    %v8825 = vmul.u32 %v8818, %v8809
    %v8826 = vadd.s32 %v8821, %v8823
    %vm8827 = vc.u32 %v8821, %v8823
    %v8828 = vadd.s32 %v8824, 1
    %v8829 = vsel %vm8827, %v8828, %v8824
    %v8830 = vadd.s32 %v8825, %v8829
    %v8831 = vadd.s32 %v8830, 536870912
    %v8832 = vshrl.u32 %v8831, 30
    %v8833 = vshll.u32 %v8832, 30
    %v8834 = vsub.s32 %v8830, %v8833
    %vm8835 = vcmp.lt.s32.totalorder %v8834, 0
    %v8836 = vsub.s32 0, %v8834
    %v8837 = vsel %vm8835, %v8836, %v8834
    %v8838 = vclz %v8837
    %v8839 = vsub.s32 %v8838, 2
    %vm8840 = vcmp.gt.s32.totalorder 0, %v8839
    %v8841 = vsel %vm8840, 0, %v8839
    %v8842 = vsub.s32 32, %v8841
    %v8843 = vshll.u32 %v8834, %v8841
    %v8844 = vshrl.u32 %v8826, %v8842
    %v8845 = vor.u32 %v8843, %v8844
    %v8846 = vsub.s32 4294967266, %v8841
    %v8847 = vadd.s32 %v8846, 127
    %v8848 = vshll.u32 %v8847, 23
    %v8849 = vor.u32 4788187, %v8848
    %v8850 = vand.u32 2147483647, %v8849
    %v8852 = vcvt.s32.f32 %v8845
    %v8853 = vmul.f32 %v8852, %v8850
    %v8854 = vxor.u32 %v8853, 2147483648
    %v8855 = vsel %vm8772, %v8854, %v8853
    %v8856 = vsub.s32 4, %v8832
    %v8857 = vsel %vm8772, %v8856, %v8832
    %v8858 = vsel %vm8771, %v7518, %v8855
    %v8859 = vsel %vm8771, 0, %v8857
    %v8860 = vcosq.f32.pop %v8858
    %v8861 = vsinq.f32.pop %v8858
    %vm8862 = vweird.f32 %v7518
    %v8863 = vadd.s32 %v8859, 3
    %v8864 = vand.u32 %v8863, 3
    %vm8865 = vcmp.lt.s32.totalorder %v8864, 2
    %vm8866 = vcmp.eq.s32.totalorder %v8864, 0
    %v8867 = vxor.u32 %v8861, 2147483648
    %v8868 = vsel %vm8866, %v8860, %v8867
    %vm8869 = vcmp.eq.s32.totalorder %v8864, 2
    %v8870 = vxor.u32 %v8860, 2147483648
    %v8871 = vsel %vm8869, %v8870, %v8861
    %v8872 = vsel %vm8865, %v8868, %v8871
    %v8873 = vsel %vm8862, nan, %v8872
    %v8874 = vand.u32 2147483647, %v7519
    %vm8875 = vcmp.le.f32.partialorder %v8874, 0.7853982
    %vm8876 = vcmp.lt.s32.totalorder %v7519, 0
    %v8877 = vand.u32 %v7519, 2139095040
    %v8878 = vshrl.u32 %v8877, 23
    %v8879 = vsub.s32 %v8878, 127
    %v8880 = vand.u32 2147483647, %v7519
    %v8881 = vand.u32 %v8880, 8388607
    %v8882 = vor.u32 %v8881, 8388608
    %v8883 = vsub.s32 0, %v8882
    %v8884 = vadd.s32 %v8879, 1
    %vm8885 = vcmp.gt.s32.totalorder %v8884, 0
    %v8886 = vsel %vm8885, %v8884, 0
    %v8887 = vshrl.u32 %v8886, 5
    %v8888 = vand.u32 %v8886, 31
    %v8889 = vsub.s32 32, %v8888
    %v8890 = vshrl.u32 683565275, %v8889
    %v8891 = vshll.u32 683565275, %v8888
    %v8892 = vshrl.u32 2475754826, %v8889
    %v8893 = vor.u32 %v8891, %v8892
    %v8894 = vshll.u32 2475754826, %v8888
    %v8895 = vshrl.u32 2131351028, %v8889
    %v8896 = vor.u32 %v8894, %v8895
    %v8897 = vshll.u32 2131351028, %v8888
    %v8898 = vshrl.u32 2102212464, %v8889
    %v8899 = vor.u32 %v8897, %v8898
    %v8900 = vshll.u32 2102212464, %v8888
    %v8901 = vshrl.u32 920167782, %v8889
    %v8902 = vor.u32 %v8900, %v8901
    %v8903 = vshll.u32 920167782, %v8888
    %v8904 = vshrl.u32 1326507024, %v8889
    %v8905 = vor.u32 %v8903, %v8904
    %vm8906 = vcmp.lt.s32.totalorder %v8887, 1
    %vm8907 = vcmp.lt.s32.totalorder %v8887, 2
    %vm8908 = vcmp.lt.s32.totalorder %v8887, 3
    %vm8909 = vcmp.lt.s32.totalorder %v8887, 4
    %v8910 = vsel %vm8906, %v8890, %v8893
    %v8911 = vsel %vm8909, %v8899, 2102212464
    %v8912 = vsel %vm8908, %v8896, %v8911
    %v8913 = vsel %vm8907, %v8910, %v8912
    %v8914 = vsel %vm8906, %v8893, %v8896
    %v8915 = vsel %vm8909, %v8902, 920167782
    %v8916 = vsel %vm8908, %v8899, %v8915
    %v8917 = vsel %vm8907, %v8914, %v8916
    %v8918 = vsel %vm8906, %v8896, %v8899
    %v8919 = vsel %vm8909, %v8905, 1326507024
    %v8920 = vsel %vm8908, %v8902, %v8919
    %v8921 = vsel %vm8907, %v8918, %v8920
    %v8922 = vshll.u32 %v8882, 8
    %v8923 = vmul.u32.u64.compose %v8922, %v8921
    %v8924 = vextract.low.u32 %v8923
    %v8925 = vextract.high.u32 %v8923
    %v8926 = vmul.u32.u64.compose %v8922, %v8917
    %v8927 = vextract.low.u32 %v8926
    %v8928 = vextract.high.u32 %v8926
    %v8929 = vmul.u32 %v8922, %v8913
    %v8930 = vadd.s32 %v8925, %v8927
    %vm8931 = vc.u32 %v8925, %v8927
    %v8932 = vadd.s32 %v8928, 1
    %v8933 = vsel %vm8931, %v8932, %v8928
    %v8934 = vadd.s32 %v8929, %v8933
    %v8935 = vadd.s32 %v8934, 536870912
    %v8936 = vshrl.u32 %v8935, 30
    %v8937 = vshll.u32 %v8936, 30
    %v8938 = vsub.s32 %v8934, %v8937
    %vm8939 = vcmp.lt.s32.totalorder %v8938, 0
    %v8940 = vsub.s32 0, %v8938
    %v8941 = vsel %vm8939, %v8940, %v8938
    %v8942 = vclz %v8941
    %v8943 = vsub.s32 %v8942, 2
    %vm8944 = vcmp.gt.s32.totalorder 0, %v8943
    %v8945 = vsel %vm8944, 0, %v8943
    %v8946 = vsub.s32 32, %v8945
    %v8947 = vshll.u32 %v8938, %v8945
    %v8948 = vshrl.u32 %v8930, %v8946
    %v8949 = vor.u32 %v8947, %v8948
    %v8950 = vsub.s32 4294967266, %v8945
    %v8951 = vadd.s32 %v8950, 127
    %v8952 = vshll.u32 %v8951, 23
    %v8953 = vor.u32 4788187, %v8952
    %v8954 = vand.u32 2147483647, %v8953
    %v8956 = vcvt.s32.f32 %v8949
    %v8957 = vmul.f32 %v8956, %v8954
    %v8958 = vxor.u32 %v8957, 2147483648
    %v8959 = vsel %vm8876, %v8958, %v8957
    %v8960 = vsub.s32 4, %v8936
    %v8961 = vsel %vm8876, %v8960, %v8936
    %v8962 = vsel %vm8875, %v7519, %v8959
    %v8963 = vsel %vm8875, 0, %v8961
    %v8964 = vcosq.f32.pop %v8962
    %v8965 = vsinq.f32.pop %v8962
    %vm8966 = vweird.f32 %v7519
    %v8967 = vadd.s32 %v8963, 3
    %v8968 = vand.u32 %v8967, 3
    %vm8969 = vcmp.lt.s32.totalorder %v8968, 2
    %vm8970 = vcmp.eq.s32.totalorder %v8968, 0
    %v8971 = vxor.u32 %v8965, 2147483648
    %v8972 = vsel %vm8970, %v8964, %v8971
    %vm8973 = vcmp.eq.s32.totalorder %v8968, 2
    %v8974 = vxor.u32 %v8964, 2147483648
    %v8975 = vsel %vm8973, %v8974, %v8965
    %v8976 = vsel %vm8969, %v8972, %v8975
    %v8977 = vsel %vm8966, nan, %v8976
    %v8978 = vand.u32 2147483647, %v7520
    %vm8979 = vcmp.le.f32.partialorder %v8978, 0.7853982
    %vm8980 = vcmp.lt.s32.totalorder %v7520, 0
    %v8981 = vand.u32 %v7520, 2139095040
    %v8982 = vshrl.u32 %v8981, 23
    %v8983 = vsub.s32 %v8982, 127
    %v8984 = vand.u32 2147483647, %v7520
    %v8985 = vand.u32 %v8984, 8388607
    %v8986 = vor.u32 %v8985, 8388608
    %v8987 = vsub.s32 0, %v8986
    %v8988 = vadd.s32 %v8983, 1
    %vm8989 = vcmp.gt.s32.totalorder %v8988, 0
    %v8990 = vsel %vm8989, %v8988, 0
    %v8991 = vshrl.u32 %v8990, 5
    %v8992 = vand.u32 %v8990, 31
    %v8993 = vsub.s32 32, %v8992
    %v8994 = vshrl.u32 683565275, %v8993
    %v8995 = vshll.u32 683565275, %v8992
    %v8996 = vshrl.u32 2475754826, %v8993
    %v8997 = vor.u32 %v8995, %v8996
    %v8998 = vshll.u32 2475754826, %v8992
    %v8999 = vshrl.u32 2131351028, %v8993
    %v9000 = vor.u32 %v8998, %v8999
    %v9001 = vshll.u32 2131351028, %v8992
    %v9002 = vshrl.u32 2102212464, %v8993
    %v9003 = vor.u32 %v9001, %v9002
    %v9004 = vshll.u32 2102212464, %v8992
    %v9005 = vshrl.u32 920167782, %v8993
    %v9006 = vor.u32 %v9004, %v9005
    %v9007 = vshll.u32 920167782, %v8992
    %v9008 = vshrl.u32 1326507024, %v8993
    %v9009 = vor.u32 %v9007, %v9008
    %vm9010 = vcmp.lt.s32.totalorder %v8991, 1
    %vm9011 = vcmp.lt.s32.totalorder %v8991, 2
    %vm9012 = vcmp.lt.s32.totalorder %v8991, 3
    %vm9013 = vcmp.lt.s32.totalorder %v8991, 4
    %v9014 = vsel %vm9010, %v8994, %v8997
    %v9015 = vsel %vm9013, %v9003, 2102212464
    %v9016 = vsel %vm9012, %v9000, %v9015
    %v9017 = vsel %vm9011, %v9014, %v9016
    %v9018 = vsel %vm9010, %v8997, %v9000
    %v9019 = vsel %vm9013, %v9006, 920167782
    %v9020 = vsel %vm9012, %v9003, %v9019
    %v9021 = vsel %vm9011, %v9018, %v9020
    %v9022 = vsel %vm9010, %v9000, %v9003
    %v9023 = vsel %vm9013, %v9009, 1326507024
    %v9024 = vsel %vm9012, %v9006, %v9023
    %v9025 = vsel %vm9011, %v9022, %v9024
    %v9026 = vshll.u32 %v8986, 8
    %v9027 = vmul.u32.u64.compose %v9026, %v9025
    %v9028 = vextract.low.u32 %v9027
    %v9029 = vextract.high.u32 %v9027
    %v9030 = vmul.u32.u64.compose %v9026, %v9021
    %v9031 = vextract.low.u32 %v9030
    %v9032 = vextract.high.u32 %v9030
    %v9033 = vmul.u32 %v9026, %v9017
    %v9034 = vadd.s32 %v9029, %v9031
    %vm9035 = vc.u32 %v9029, %v9031
    %v9036 = vadd.s32 %v9032, 1
    %v9037 = vsel %vm9035, %v9036, %v9032
    %v9038 = vadd.s32 %v9033, %v9037
    %v9039 = vadd.s32 %v9038, 536870912
    %v9040 = vshrl.u32 %v9039, 30
    %v9041 = vshll.u32 %v9040, 30
    %v9042 = vsub.s32 %v9038, %v9041
    %vm9043 = vcmp.lt.s32.totalorder %v9042, 0
    %v9044 = vsub.s32 0, %v9042
    %v9045 = vsel %vm9043, %v9044, %v9042
    %v9046 = vclz %v9045
    %v9047 = vsub.s32 %v9046, 2
    %vm9048 = vcmp.gt.s32.totalorder 0, %v9047
    %v9049 = vsel %vm9048, 0, %v9047
    %v9050 = vsub.s32 32, %v9049
    %v9051 = vshll.u32 %v9042, %v9049
    %v9052 = vshrl.u32 %v9034, %v9050
    %v9053 = vor.u32 %v9051, %v9052
    %v9054 = vsub.s32 4294967266, %v9049
    %v9055 = vadd.s32 %v9054, 127
    %v9056 = vshll.u32 %v9055, 23
    %v9057 = vor.u32 4788187, %v9056
    %v9058 = vand.u32 2147483647, %v9057
    %v9060 = vcvt.s32.f32 %v9053
    %v9061 = vmul.f32 %v9060, %v9058
    %v9062 = vxor.u32 %v9061, 2147483648
    %v9063 = vsel %vm8980, %v9062, %v9061
    %v9064 = vsub.s32 4, %v9040
    %v9065 = vsel %vm8980, %v9064, %v9040
    %v9066 = vsel %vm8979, %v7520, %v9063
    %v9067 = vsel %vm8979, 0, %v9065
    %v9068 = vcosq.f32.pop %v9066
    %v9069 = vsinq.f32.pop %v9066
    %vm9070 = vweird.f32 %v7520
    %v9071 = vadd.s32 %v9067, 3
    %v9072 = vand.u32 %v9071, 3
    %vm9073 = vcmp.lt.s32.totalorder %v9072, 2
    %vm9074 = vcmp.eq.s32.totalorder %v9072, 0
    %v9075 = vxor.u32 %v9069, 2147483648
    %v9076 = vsel %vm9074, %v9068, %v9075
    %vm9077 = vcmp.eq.s32.totalorder %v9072, 2
    %v9078 = vxor.u32 %v9068, 2147483648
    %v9079 = vsel %vm9077, %v9078, %v9069
    %v9080 = vsel %vm9073, %v9076, %v9079
    %v9081 = vsel %vm9070, nan, %v9080
    %v9082 = vand.u32 2147483647, %v7521
    %vm9083 = vcmp.le.f32.partialorder %v9082, 0.7853982
    %vm9084 = vcmp.lt.s32.totalorder %v7521, 0
    %v9085 = vand.u32 %v7521, 2139095040
    %v9086 = vshrl.u32 %v9085, 23
    %v9087 = vsub.s32 %v9086, 127
    %v9088 = vand.u32 2147483647, %v7521
    %v9089 = vand.u32 %v9088, 8388607
    %v9090 = vor.u32 %v9089, 8388608
    %v9091 = vsub.s32 0, %v9090
    %v9092 = vadd.s32 %v9087, 1
    %vm9093 = vcmp.gt.s32.totalorder %v9092, 0
    %v9094 = vsel %vm9093, %v9092, 0
    %v9095 = vshrl.u32 %v9094, 5
    %v9096 = vand.u32 %v9094, 31
    %v9097 = vsub.s32 32, %v9096
    %v9098 = vshrl.u32 683565275, %v9097
    %v9099 = vshll.u32 683565275, %v9096
    %v9100 = vshrl.u32 2475754826, %v9097
    %v9101 = vor.u32 %v9099, %v9100
    %v9102 = vshll.u32 2475754826, %v9096
    %v9103 = vshrl.u32 2131351028, %v9097
    %v9104 = vor.u32 %v9102, %v9103
    %v9105 = vshll.u32 2131351028, %v9096
    %v9106 = vshrl.u32 2102212464, %v9097
    %v9107 = vor.u32 %v9105, %v9106
    %v9108 = vshll.u32 2102212464, %v9096
    %v9109 = vshrl.u32 920167782, %v9097
    %v9110 = vor.u32 %v9108, %v9109
    %v9111 = vshll.u32 920167782, %v9096
    %v9112 = vshrl.u32 1326507024, %v9097
    %v9113 = vor.u32 %v9111, %v9112
    %vm9114 = vcmp.lt.s32.totalorder %v9095, 1
    %vm9115 = vcmp.lt.s32.totalorder %v9095, 2
    %vm9116 = vcmp.lt.s32.totalorder %v9095, 3
    %vm9117 = vcmp.lt.s32.totalorder %v9095, 4
    %v9118 = vsel %vm9114, %v9098, %v9101
    %v9119 = vsel %vm9117, %v9107, 2102212464
    %v9120 = vsel %vm9116, %v9104, %v9119
    %v9121 = vsel %vm9115, %v9118, %v9120
    %v9122 = vsel %vm9114, %v9101, %v9104
    %v9123 = vsel %vm9117, %v9110, 920167782
    %v9124 = vsel %vm9116, %v9107, %v9123
    %v9125 = vsel %vm9115, %v9122, %v9124
    %v9126 = vsel %vm9114, %v9104, %v9107
    %v9127 = vsel %vm9117, %v9113, 1326507024
    %v9128 = vsel %vm9116, %v9110, %v9127
    %v9129 = vsel %vm9115, %v9126, %v9128
    %v9130 = vshll.u32 %v9090, 8
    %v9131 = vmul.u32.u64.compose %v9130, %v9129
    %v9132 = vextract.low.u32 %v9131
    %v9133 = vextract.high.u32 %v9131
    %v9134 = vmul.u32.u64.compose %v9130, %v9125
    %v9135 = vextract.low.u32 %v9134
    %v9136 = vextract.high.u32 %v9134
    %v9137 = vmul.u32 %v9130, %v9121
    %v9138 = vadd.s32 %v9133, %v9135
    %vm9139 = vc.u32 %v9133, %v9135
    %v9140 = vadd.s32 %v9136, 1
    %v9141 = vsel %vm9139, %v9140, %v9136
    %v9142 = vadd.s32 %v9137, %v9141
    %v9143 = vadd.s32 %v9142, 536870912
    %v9144 = vshrl.u32 %v9143, 30
    %v9145 = vshll.u32 %v9144, 30
    %v9146 = vsub.s32 %v9142, %v9145
    %vm9147 = vcmp.lt.s32.totalorder %v9146, 0
    %v9148 = vsub.s32 0, %v9146
    %v9149 = vsel %vm9147, %v9148, %v9146
    %v9150 = vclz %v9149
    %v9151 = vsub.s32 %v9150, 2
    %vm9152 = vcmp.gt.s32.totalorder 0, %v9151
    %v9153 = vsel %vm9152, 0, %v9151
    %v9154 = vsub.s32 32, %v9153
    %v9155 = vshll.u32 %v9146, %v9153
    %v9156 = vshrl.u32 %v9138, %v9154
    %v9157 = vor.u32 %v9155, %v9156
    %v9158 = vsub.s32 4294967266, %v9153
    %v9159 = vadd.s32 %v9158, 127
    %v9160 = vshll.u32 %v9159, 23
    %v9161 = vor.u32 4788187, %v9160
    %v9162 = vand.u32 2147483647, %v9161
    %v9164 = vcvt.s32.f32 %v9157
    %v9165 = vmul.f32 %v9164, %v9162
    %v9166 = vxor.u32 %v9165, 2147483648
    %v9167 = vsel %vm9084, %v9166, %v9165
    %v9168 = vsub.s32 4, %v9144
    %v9169 = vsel %vm9084, %v9168, %v9144
    %v9170 = vsel %vm9083, %v7521, %v9167
    %v9171 = vsel %vm9083, 0, %v9169
    %v9172 = vcosq.f32.pop %v9170
    %v9173 = vsinq.f32.pop %v9170
    %vm9174 = vweird.f32 %v7521
    %v9175 = vadd.s32 %v9171, 3
    %v9176 = vand.u32 %v9175, 3
    %vm9177 = vcmp.lt.s32.totalorder %v9176, 2
    %vm9178 = vcmp.eq.s32.totalorder %v9176, 0
    %v9179 = vxor.u32 %v9173, 2147483648
    %v9180 = vsel %vm9178, %v9172, %v9179
    %vm9181 = vcmp.eq.s32.totalorder %v9176, 2
    %v9182 = vxor.u32 %v9172, 2147483648
    %v9183 = vsel %vm9181, %v9182, %v9173
    %v9184 = vsel %vm9177, %v9180, %v9183
    %v9185 = vsel %vm9174, nan, %v9184
    %v9186 = vand.u32 2147483647, %v7506
    %vm9187 = vcmp.le.f32.partialorder %v9186, 0.7853982
    %vm9188 = vcmp.lt.s32.totalorder %v7506, 0
    %v9189 = vand.u32 %v7506, 2139095040
    %v9190 = vshrl.u32 %v9189, 23
    %v9191 = vsub.s32 %v9190, 127
    %v9192 = vand.u32 2147483647, %v7506
    %v9193 = vand.u32 %v9192, 8388607
    %v9194 = vor.u32 %v9193, 8388608
    %v9195 = vsub.s32 0, %v9194
    %v9196 = vadd.s32 %v9191, 1
    %vm9197 = vcmp.gt.s32.totalorder %v9196, 0
    %v9198 = vsel %vm9197, %v9196, 0
    %v9199 = vshrl.u32 %v9198, 5
    %v9200 = vand.u32 %v9198, 31
    %v9201 = vsub.s32 32, %v9200
    %v9202 = vshrl.u32 683565275, %v9201
    %v9203 = vshll.u32 683565275, %v9200
    %v9204 = vshrl.u32 2475754826, %v9201
    %v9205 = vor.u32 %v9203, %v9204
    %v9206 = vshll.u32 2475754826, %v9200
    %v9207 = vshrl.u32 2131351028, %v9201
    %v9208 = vor.u32 %v9206, %v9207
    %v9209 = vshll.u32 2131351028, %v9200
    %v9210 = vshrl.u32 2102212464, %v9201
    %v9211 = vor.u32 %v9209, %v9210
    %v9212 = vshll.u32 2102212464, %v9200
    %v9213 = vshrl.u32 920167782, %v9201
    %v9214 = vor.u32 %v9212, %v9213
    %v9215 = vshll.u32 920167782, %v9200
    %v9216 = vshrl.u32 1326507024, %v9201
    %v9217 = vor.u32 %v9215, %v9216
    %vm9218 = vcmp.lt.s32.totalorder %v9199, 1
    %vm9219 = vcmp.lt.s32.totalorder %v9199, 2
    %vm9220 = vcmp.lt.s32.totalorder %v9199, 3
    %vm9221 = vcmp.lt.s32.totalorder %v9199, 4
    %v9222 = vsel %vm9218, %v9202, %v9205
    %v9223 = vsel %vm9221, %v9211, 2102212464
    %v9224 = vsel %vm9220, %v9208, %v9223
    %v9225 = vsel %vm9219, %v9222, %v9224
    %v9226 = vsel %vm9218, %v9205, %v9208
    %v9227 = vsel %vm9221, %v9214, 920167782
    %v9228 = vsel %vm9220, %v9211, %v9227
    %v9229 = vsel %vm9219, %v9226, %v9228
    %v9230 = vsel %vm9218, %v9208, %v9211
    %v9231 = vsel %vm9221, %v9217, 1326507024
    %v9232 = vsel %vm9220, %v9214, %v9231
    %v9233 = vsel %vm9219, %v9230, %v9232
    %v9234 = vshll.u32 %v9194, 8
    %v9235 = vmul.u32.u64.compose %v9234, %v9233
    %v9236 = vextract.low.u32 %v9235
    %v9237 = vextract.high.u32 %v9235
    %v9238 = vmul.u32.u64.compose %v9234, %v9229
    %v9239 = vextract.low.u32 %v9238
    %v9240 = vextract.high.u32 %v9238
    %v9241 = vmul.u32 %v9234, %v9225
    %v9242 = vadd.s32 %v9237, %v9239
    %vm9243 = vc.u32 %v9237, %v9239
    %v9244 = vadd.s32 %v9240, 1
    %v9245 = vsel %vm9243, %v9244, %v9240
    %v9246 = vadd.s32 %v9241, %v9245
    %v9247 = vadd.s32 %v9246, 536870912
    %v9248 = vshrl.u32 %v9247, 30
    %v9249 = vshll.u32 %v9248, 30
    %v9250 = vsub.s32 %v9246, %v9249
    %vm9251 = vcmp.lt.s32.totalorder %v9250, 0
    %v9252 = vsub.s32 0, %v9250
    %v9253 = vsel %vm9251, %v9252, %v9250
    %v9254 = vclz %v9253
    %v9255 = vsub.s32 %v9254, 2
    %vm9256 = vcmp.gt.s32.totalorder 0, %v9255
    %v9257 = vsel %vm9256, 0, %v9255
    %v9258 = vsub.s32 32, %v9257
    %v9259 = vshll.u32 %v9250, %v9257
    %v9260 = vshrl.u32 %v9242, %v9258
    %v9261 = vor.u32 %v9259, %v9260
    %v9262 = vsub.s32 4294967266, %v9257
    %v9263 = vadd.s32 %v9262, 127
    %v9264 = vshll.u32 %v9263, 23
    %v9265 = vor.u32 4788187, %v9264
    %v9266 = vand.u32 2147483647, %v9265
    %v9268 = vcvt.s32.f32 %v9261
    %v9269 = vmul.f32 %v9268, %v9266
    %v9270 = vxor.u32 %v9269, 2147483648
    %v9271 = vsel %vm9188, %v9270, %v9269
    %v9272 = vsub.s32 4, %v9248
    %v9273 = vsel %vm9188, %v9272, %v9248
    %v9274 = vsel %vm9187, %v7506, %v9271
    %v9275 = vsel %vm9187, 0, %v9273
    %v9276 = vcosq.f32.pop %v9274
    %v9277 = vsinq.f32.pop %v9274
    %vm9278 = vweird.f32 %v7506
    %v9279 = vand.u32 %v9275, 3
    %vm9280 = vcmp.lt.s32.totalorder %v9279, 2
    %vm9281 = vcmp.eq.s32.totalorder %v9279, 0
    %v9282 = vxor.u32 %v9277, 2147483648
    %v9283 = vsel %vm9281, %v9276, %v9282
    %vm9284 = vcmp.eq.s32.totalorder %v9279, 2
    %v9285 = vxor.u32 %v9276, 2147483648
    %v9286 = vsel %vm9284, %v9285, %v9277
    %v9287 = vsel %vm9280, %v9283, %v9286
    %v9288 = vsel %vm9278, nan, %v9287
    %v9289 = vand.u32 2147483647, %v7507
    %vm9290 = vcmp.le.f32.partialorder %v9289, 0.7853982
    %vm9291 = vcmp.lt.s32.totalorder %v7507, 0
    %v9292 = vand.u32 %v7507, 2139095040
    %v9293 = vshrl.u32 %v9292, 23
    %v9294 = vsub.s32 %v9293, 127
    %v9295 = vand.u32 2147483647, %v7507
    %v9296 = vand.u32 %v9295, 8388607
    %v9297 = vor.u32 %v9296, 8388608
    %v9298 = vsub.s32 0, %v9297
    %v9299 = vadd.s32 %v9294, 1
    %vm9300 = vcmp.gt.s32.totalorder %v9299, 0
    %v9301 = vsel %vm9300, %v9299, 0
    %v9302 = vshrl.u32 %v9301, 5
    %v9303 = vand.u32 %v9301, 31
    %v9304 = vsub.s32 32, %v9303
    %v9305 = vshrl.u32 683565275, %v9304
    %v9306 = vshll.u32 683565275, %v9303
    %v9307 = vshrl.u32 2475754826, %v9304
    %v9308 = vor.u32 %v9306, %v9307
    %v9309 = vshll.u32 2475754826, %v9303
    %v9310 = vshrl.u32 2131351028, %v9304
    %v9311 = vor.u32 %v9309, %v9310
    %v9312 = vshll.u32 2131351028, %v9303
    %v9313 = vshrl.u32 2102212464, %v9304
    %v9314 = vor.u32 %v9312, %v9313
    %v9315 = vshll.u32 2102212464, %v9303
    %v9316 = vshrl.u32 920167782, %v9304
    %v9317 = vor.u32 %v9315, %v9316
    %v9318 = vshll.u32 920167782, %v9303
    %v9319 = vshrl.u32 1326507024, %v9304
    %v9320 = vor.u32 %v9318, %v9319
    %vm9321 = vcmp.lt.s32.totalorder %v9302, 1
    %vm9322 = vcmp.lt.s32.totalorder %v9302, 2
    %vm9323 = vcmp.lt.s32.totalorder %v9302, 3
    %vm9324 = vcmp.lt.s32.totalorder %v9302, 4
    %v9325 = vsel %vm9321, %v9305, %v9308
    %v9326 = vsel %vm9324, %v9314, 2102212464
    %v9327 = vsel %vm9323, %v9311, %v9326
    %v9328 = vsel %vm9322, %v9325, %v9327
    %v9329 = vsel %vm9321, %v9308, %v9311
    %v9330 = vsel %vm9324, %v9317, 920167782
    %v9331 = vsel %vm9323, %v9314, %v9330
    %v9332 = vsel %vm9322, %v9329, %v9331
    %v9333 = vsel %vm9321, %v9311, %v9314
    %v9334 = vsel %vm9324, %v9320, 1326507024
    %v9335 = vsel %vm9323, %v9317, %v9334
    %v9336 = vsel %vm9322, %v9333, %v9335
    %v9337 = vshll.u32 %v9297, 8
    %v9338 = vmul.u32.u64.compose %v9337, %v9336
    %v9339 = vextract.low.u32 %v9338
    %v9340 = vextract.high.u32 %v9338
    %v9341 = vmul.u32.u64.compose %v9337, %v9332
    %v9342 = vextract.low.u32 %v9341
    %v9343 = vextract.high.u32 %v9341
    %v9344 = vmul.u32 %v9337, %v9328
    %v9345 = vadd.s32 %v9340, %v9342
    %vm9346 = vc.u32 %v9340, %v9342
    %v9347 = vadd.s32 %v9343, 1
    %v9348 = vsel %vm9346, %v9347, %v9343
    %v9349 = vadd.s32 %v9344, %v9348
    %v9350 = vadd.s32 %v9349, 536870912
    %v9351 = vshrl.u32 %v9350, 30
    %v9352 = vshll.u32 %v9351, 30
    %v9353 = vsub.s32 %v9349, %v9352
    %vm9354 = vcmp.lt.s32.totalorder %v9353, 0
    %v9355 = vsub.s32 0, %v9353
    %v9356 = vsel %vm9354, %v9355, %v9353
    %v9357 = vclz %v9356
    %v9358 = vsub.s32 %v9357, 2
    %vm9359 = vcmp.gt.s32.totalorder 0, %v9358
    %v9360 = vsel %vm9359, 0, %v9358
    %v9361 = vsub.s32 32, %v9360
    %v9362 = vshll.u32 %v9353, %v9360
    %v9363 = vshrl.u32 %v9345, %v9361
    %v9364 = vor.u32 %v9362, %v9363
    %v9365 = vsub.s32 4294967266, %v9360
    %v9366 = vadd.s32 %v9365, 127
    %v9367 = vshll.u32 %v9366, 23
    %v9368 = vor.u32 4788187, %v9367
    %v9369 = vand.u32 2147483647, %v9368
    %v9371 = vcvt.s32.f32 %v9364
    %v9372 = vmul.f32 %v9371, %v9369
    %v9373 = vxor.u32 %v9372, 2147483648
    %v9374 = vsel %vm9291, %v9373, %v9372
    %v9375 = vsub.s32 4, %v9351
    %v9376 = vsel %vm9291, %v9375, %v9351
    %v9377 = vsel %vm9290, %v7507, %v9374
    %v9378 = vsel %vm9290, 0, %v9376
    %v9379 = vcosq.f32.pop %v9377
    %v9380 = vsinq.f32.pop %v9377
    %vm9381 = vweird.f32 %v7507
    %v9382 = vand.u32 %v9378, 3
    %vm9383 = vcmp.lt.s32.totalorder %v9382, 2
    %vm9384 = vcmp.eq.s32.totalorder %v9382, 0
    %v9385 = vxor.u32 %v9380, 2147483648
    %v9386 = vsel %vm9384, %v9379, %v9385
    %vm9387 = vcmp.eq.s32.totalorder %v9382, 2
    %v9388 = vxor.u32 %v9379, 2147483648
    %v9389 = vsel %vm9387, %v9388, %v9380
    %v9390 = vsel %vm9383, %v9386, %v9389
    %v9391 = vsel %vm9381, nan, %v9390
    %v9392 = vand.u32 2147483647, %v7508
    %vm9393 = vcmp.le.f32.partialorder %v9392, 0.7853982
    %vm9394 = vcmp.lt.s32.totalorder %v7508, 0
    %v9395 = vand.u32 %v7508, 2139095040
    %v9396 = vshrl.u32 %v9395, 23
    %v9397 = vsub.s32 %v9396, 127
    %v9398 = vand.u32 2147483647, %v7508
    %v9399 = vand.u32 %v9398, 8388607
    %v9400 = vor.u32 %v9399, 8388608
    %v9401 = vsub.s32 0, %v9400
    %v9402 = vadd.s32 %v9397, 1
    %vm9403 = vcmp.gt.s32.totalorder %v9402, 0
    %v9404 = vsel %vm9403, %v9402, 0
    %v9405 = vshrl.u32 %v9404, 5
    %v9406 = vand.u32 %v9404, 31
    %v9407 = vsub.s32 32, %v9406
    %v9408 = vshrl.u32 683565275, %v9407
    %v9409 = vshll.u32 683565275, %v9406
    %v9410 = vshrl.u32 2475754826, %v9407
    %v9411 = vor.u32 %v9409, %v9410
    %v9412 = vshll.u32 2475754826, %v9406
    %v9413 = vshrl.u32 2131351028, %v9407
    %v9414 = vor.u32 %v9412, %v9413
    %v9415 = vshll.u32 2131351028, %v9406
    %v9416 = vshrl.u32 2102212464, %v9407
    %v9417 = vor.u32 %v9415, %v9416
    %v9418 = vshll.u32 2102212464, %v9406
    %v9419 = vshrl.u32 920167782, %v9407
    %v9420 = vor.u32 %v9418, %v9419
    %v9421 = vshll.u32 920167782, %v9406
    %v9422 = vshrl.u32 1326507024, %v9407
    %v9423 = vor.u32 %v9421, %v9422
    %vm9424 = vcmp.lt.s32.totalorder %v9405, 1
    %vm9425 = vcmp.lt.s32.totalorder %v9405, 2
    %vm9426 = vcmp.lt.s32.totalorder %v9405, 3
    %vm9427 = vcmp.lt.s32.totalorder %v9405, 4
    %v9428 = vsel %vm9424, %v9408, %v9411
    %v9429 = vsel %vm9427, %v9417, 2102212464
    %v9430 = vsel %vm9426, %v9414, %v9429
    %v9431 = vsel %vm9425, %v9428, %v9430
    %v9432 = vsel %vm9424, %v9411, %v9414
    %v9433 = vsel %vm9427, %v9420, 920167782
    %v9434 = vsel %vm9426, %v9417, %v9433
    %v9435 = vsel %vm9425, %v9432, %v9434
    %v9436 = vsel %vm9424, %v9414, %v9417
    %v9437 = vsel %vm9427, %v9423, 1326507024
    %v9438 = vsel %vm9426, %v9420, %v9437
    %v9439 = vsel %vm9425, %v9436, %v9438
    %v9440 = vshll.u32 %v9400, 8
    %v9441 = vmul.u32.u64.compose %v9440, %v9439
    %v9442 = vextract.low.u32 %v9441
    %v9443 = vextract.high.u32 %v9441
    %v9444 = vmul.u32.u64.compose %v9440, %v9435
    %v9445 = vextract.low.u32 %v9444
    %v9446 = vextract.high.u32 %v9444
    %v9447 = vmul.u32 %v9440, %v9431
    %v9448 = vadd.s32 %v9443, %v9445
    %vm9449 = vc.u32 %v9443, %v9445
    %v9450 = vadd.s32 %v9446, 1
    %v9451 = vsel %vm9449, %v9450, %v9446
    %v9452 = vadd.s32 %v9447, %v9451
    %v9453 = vadd.s32 %v9452, 536870912
    %v9454 = vshrl.u32 %v9453, 30
    %v9455 = vshll.u32 %v9454, 30
    %v9456 = vsub.s32 %v9452, %v9455
    %vm9457 = vcmp.lt.s32.totalorder %v9456, 0
    %v9458 = vsub.s32 0, %v9456
    %v9459 = vsel %vm9457, %v9458, %v9456
    %v9460 = vclz %v9459
    %v9461 = vsub.s32 %v9460, 2
    %vm9462 = vcmp.gt.s32.totalorder 0, %v9461
    %v9463 = vsel %vm9462, 0, %v9461
    %v9464 = vsub.s32 32, %v9463
    %v9465 = vshll.u32 %v9456, %v9463
    %v9466 = vshrl.u32 %v9448, %v9464
    %v9467 = vor.u32 %v9465, %v9466
    %v9468 = vsub.s32 4294967266, %v9463
    %v9469 = vadd.s32 %v9468, 127
    %v9470 = vshll.u32 %v9469, 23
    %v9471 = vor.u32 4788187, %v9470
    %v9472 = vand.u32 2147483647, %v9471
    %v9474 = vcvt.s32.f32 %v9467
    %v9475 = vmul.f32 %v9474, %v9472
    %v9476 = vxor.u32 %v9475, 2147483648
    %v9477 = vsel %vm9394, %v9476, %v9475
    %v9478 = vsub.s32 4, %v9454
    %v9479 = vsel %vm9394, %v9478, %v9454
    %v9480 = vsel %vm9393, %v7508, %v9477
    %v9481 = vsel %vm9393, 0, %v9479
    %v9482 = vcosq.f32.pop %v9480
    %v9483 = vsinq.f32.pop %v9480
    %vm9484 = vweird.f32 %v7508
    %v9485 = vand.u32 %v9481, 3
    %vm9486 = vcmp.lt.s32.totalorder %v9485, 2
    %vm9487 = vcmp.eq.s32.totalorder %v9485, 0
    %v9488 = vxor.u32 %v9483, 2147483648
    %v9489 = vsel %vm9487, %v9482, %v9488
    %vm9490 = vcmp.eq.s32.totalorder %v9485, 2
    %v9491 = vxor.u32 %v9482, 2147483648
    %v9492 = vsel %vm9490, %v9491, %v9483
    %v9493 = vsel %vm9486, %v9489, %v9492
    %v9494 = vsel %vm9484, nan, %v9493
    %v9495 = vand.u32 2147483647, %v7509
    %vm9496 = vcmp.le.f32.partialorder %v9495, 0.7853982
    %vm9497 = vcmp.lt.s32.totalorder %v7509, 0
    %v9498 = vand.u32 %v7509, 2139095040
    %v9499 = vshrl.u32 %v9498, 23
    %v9500 = vsub.s32 %v9499, 127
    %v9501 = vand.u32 2147483647, %v7509
    %v9502 = vand.u32 %v9501, 8388607
    %v9503 = vor.u32 %v9502, 8388608
    %v9504 = vsub.s32 0, %v9503
    %v9505 = vadd.s32 %v9500, 1
    %vm9506 = vcmp.gt.s32.totalorder %v9505, 0
    %v9507 = vsel %vm9506, %v9505, 0
    %v9508 = vshrl.u32 %v9507, 5
    %v9509 = vand.u32 %v9507, 31
    %v9510 = vsub.s32 32, %v9509
    %v9511 = vshrl.u32 683565275, %v9510
    %v9512 = vshll.u32 683565275, %v9509
    %v9513 = vshrl.u32 2475754826, %v9510
    %v9514 = vor.u32 %v9512, %v9513
    %v9515 = vshll.u32 2475754826, %v9509
    %v9516 = vshrl.u32 2131351028, %v9510
    %v9517 = vor.u32 %v9515, %v9516
    %v9518 = vshll.u32 2131351028, %v9509
    %v9519 = vshrl.u32 2102212464, %v9510
    %v9520 = vor.u32 %v9518, %v9519
    %v9521 = vshll.u32 2102212464, %v9509
    %v9522 = vshrl.u32 920167782, %v9510
    %v9523 = vor.u32 %v9521, %v9522
    %v9524 = vshll.u32 920167782, %v9509
    %v9525 = vshrl.u32 1326507024, %v9510
    %v9526 = vor.u32 %v9524, %v9525
    %vm9527 = vcmp.lt.s32.totalorder %v9508, 1
    %vm9528 = vcmp.lt.s32.totalorder %v9508, 2
    %vm9529 = vcmp.lt.s32.totalorder %v9508, 3
    %vm9530 = vcmp.lt.s32.totalorder %v9508, 4
    %v9531 = vsel %vm9527, %v9511, %v9514
    %v9532 = vsel %vm9530, %v9520, 2102212464
    %v9533 = vsel %vm9529, %v9517, %v9532
    %v9534 = vsel %vm9528, %v9531, %v9533
    %v9535 = vsel %vm9527, %v9514, %v9517
    %v9536 = vsel %vm9530, %v9523, 920167782
    %v9537 = vsel %vm9529, %v9520, %v9536
    %v9538 = vsel %vm9528, %v9535, %v9537
    %v9539 = vsel %vm9527, %v9517, %v9520
    %v9540 = vsel %vm9530, %v9526, 1326507024
    %v9541 = vsel %vm9529, %v9523, %v9540
    %v9542 = vsel %vm9528, %v9539, %v9541
    %v9543 = vshll.u32 %v9503, 8
    %v9544 = vmul.u32.u64.compose %v9543, %v9542
    %v9545 = vextract.low.u32 %v9544
    %v9546 = vextract.high.u32 %v9544
    %v9547 = vmul.u32.u64.compose %v9543, %v9538
    %v9548 = vextract.low.u32 %v9547
    %v9549 = vextract.high.u32 %v9547
    %v9550 = vmul.u32 %v9543, %v9534
    %v9551 = vadd.s32 %v9546, %v9548
    %vm9552 = vc.u32 %v9546, %v9548
    %v9553 = vadd.s32 %v9549, 1
    %v9554 = vsel %vm9552, %v9553, %v9549
    %v9555 = vadd.s32 %v9550, %v9554
    %v9556 = vadd.s32 %v9555, 536870912
    %v9557 = vshrl.u32 %v9556, 30
    %v9558 = vshll.u32 %v9557, 30
    %v9559 = vsub.s32 %v9555, %v9558
    %vm9560 = vcmp.lt.s32.totalorder %v9559, 0
    %v9561 = vsub.s32 0, %v9559
    %v9562 = vsel %vm9560, %v9561, %v9559
    %v9563 = vclz %v9562
    %v9564 = vsub.s32 %v9563, 2
    %vm9565 = vcmp.gt.s32.totalorder 0, %v9564
    %v9566 = vsel %vm9565, 0, %v9564
    %v9567 = vsub.s32 32, %v9566
    %v9568 = vshll.u32 %v9559, %v9566
    %v9569 = vshrl.u32 %v9551, %v9567
    %v9570 = vor.u32 %v9568, %v9569
    %v9571 = vsub.s32 4294967266, %v9566
    %v9572 = vadd.s32 %v9571, 127
    %v9573 = vshll.u32 %v9572, 23
    %v9574 = vor.u32 4788187, %v9573
    %v9575 = vand.u32 2147483647, %v9574
    %v9577 = vcvt.s32.f32 %v9570
    %v9578 = vmul.f32 %v9577, %v9575
    %v9579 = vxor.u32 %v9578, 2147483648
    %v9580 = vsel %vm9497, %v9579, %v9578
    %v9581 = vsub.s32 4, %v9557
    %v9582 = vsel %vm9497, %v9581, %v9557
    %v9583 = vsel %vm9496, %v7509, %v9580
    %v9584 = vsel %vm9496, 0, %v9582
    %v9585 = vcosq.f32.pop %v9583
    %v9586 = vsinq.f32.pop %v9583
    %vm9587 = vweird.f32 %v7509
    %v9588 = vand.u32 %v9584, 3
    %vm9589 = vcmp.lt.s32.totalorder %v9588, 2
    %vm9590 = vcmp.eq.s32.totalorder %v9588, 0
    %v9591 = vxor.u32 %v9586, 2147483648
    %v9592 = vsel %vm9590, %v9585, %v9591
    %vm9593 = vcmp.eq.s32.totalorder %v9588, 2
    %v9594 = vxor.u32 %v9585, 2147483648
    %v9595 = vsel %vm9593, %v9594, %v9586
    %v9596 = vsel %vm9589, %v9592, %v9595
    %v9597 = vsel %vm9587, nan, %v9596
    %v9598 = vand.u32 2147483647, %v7510
    %vm9599 = vcmp.le.f32.partialorder %v9598, 0.7853982
    %vm9600 = vcmp.lt.s32.totalorder %v7510, 0
    %v9601 = vand.u32 %v7510, 2139095040
    %v9602 = vshrl.u32 %v9601, 23
    %v9603 = vsub.s32 %v9602, 127
    %v9604 = vand.u32 2147483647, %v7510
    %v9605 = vand.u32 %v9604, 8388607
    %v9606 = vor.u32 %v9605, 8388608
    %v9607 = vsub.s32 0, %v9606
    %v9608 = vadd.s32 %v9603, 1
    %vm9609 = vcmp.gt.s32.totalorder %v9608, 0
    %v9610 = vsel %vm9609, %v9608, 0
    %v9611 = vshrl.u32 %v9610, 5
    %v9612 = vand.u32 %v9610, 31
    %v9613 = vsub.s32 32, %v9612
    %v9614 = vshrl.u32 683565275, %v9613
    %v9615 = vshll.u32 683565275, %v9612
    %v9616 = vshrl.u32 2475754826, %v9613
    %v9617 = vor.u32 %v9615, %v9616
    %v9618 = vshll.u32 2475754826, %v9612
    %v9619 = vshrl.u32 2131351028, %v9613
    %v9620 = vor.u32 %v9618, %v9619
    %v9621 = vshll.u32 2131351028, %v9612
    %v9622 = vshrl.u32 2102212464, %v9613
    %v9623 = vor.u32 %v9621, %v9622
    %v9624 = vshll.u32 2102212464, %v9612
    %v9625 = vshrl.u32 920167782, %v9613
    %v9626 = vor.u32 %v9624, %v9625
    %v9627 = vshll.u32 920167782, %v9612
    %v9628 = vshrl.u32 1326507024, %v9613
    %v9629 = vor.u32 %v9627, %v9628
    %vm9630 = vcmp.lt.s32.totalorder %v9611, 1
    %vm9631 = vcmp.lt.s32.totalorder %v9611, 2
    %vm9632 = vcmp.lt.s32.totalorder %v9611, 3
    %vm9633 = vcmp.lt.s32.totalorder %v9611, 4
    %v9634 = vsel %vm9630, %v9614, %v9617
    %v9635 = vsel %vm9633, %v9623, 2102212464
    %v9636 = vsel %vm9632, %v9620, %v9635
    %v9637 = vsel %vm9631, %v9634, %v9636
    %v9638 = vsel %vm9630, %v9617, %v9620
    %v9639 = vsel %vm9633, %v9626, 920167782
    %v9640 = vsel %vm9632, %v9623, %v9639
    %v9641 = vsel %vm9631, %v9638, %v9640
    %v9642 = vsel %vm9630, %v9620, %v9623
    %v9643 = vsel %vm9633, %v9629, 1326507024
    %v9644 = vsel %vm9632, %v9626, %v9643
    %v9645 = vsel %vm9631, %v9642, %v9644
    %v9646 = vshll.u32 %v9606, 8
    %v9647 = vmul.u32.u64.compose %v9646, %v9645
    %v9648 = vextract.low.u32 %v9647
    %v9649 = vextract.high.u32 %v9647
    %v9650 = vmul.u32.u64.compose %v9646, %v9641
    %v9651 = vextract.low.u32 %v9650
    %v9652 = vextract.high.u32 %v9650
    %v9653 = vmul.u32 %v9646, %v9637
    %v9654 = vadd.s32 %v9649, %v9651
    %vm9655 = vc.u32 %v9649, %v9651
    %v9656 = vadd.s32 %v9652, 1
    %v9657 = vsel %vm9655, %v9656, %v9652
    %v9658 = vadd.s32 %v9653, %v9657
    %v9659 = vadd.s32 %v9658, 536870912
    %v9660 = vshrl.u32 %v9659, 30
    %v9661 = vshll.u32 %v9660, 30
    %v9662 = vsub.s32 %v9658, %v9661
    %vm9663 = vcmp.lt.s32.totalorder %v9662, 0
    %v9664 = vsub.s32 0, %v9662
    %v9665 = vsel %vm9663, %v9664, %v9662
    %v9666 = vclz %v9665
    %v9667 = vsub.s32 %v9666, 2
    %vm9668 = vcmp.gt.s32.totalorder 0, %v9667
    %v9669 = vsel %vm9668, 0, %v9667
    %v9670 = vsub.s32 32, %v9669
    %v9671 = vshll.u32 %v9662, %v9669
    %v9672 = vshrl.u32 %v9654, %v9670
    %v9673 = vor.u32 %v9671, %v9672
    %v9674 = vsub.s32 4294967266, %v9669
    %v9675 = vadd.s32 %v9674, 127
    %v9676 = vshll.u32 %v9675, 23
    %v9677 = vor.u32 4788187, %v9676
    %v9678 = vand.u32 2147483647, %v9677
    %v9680 = vcvt.s32.f32 %v9673
    %v9681 = vmul.f32 %v9680, %v9678
    %v9682 = vxor.u32 %v9681, 2147483648
    %v9683 = vsel %vm9600, %v9682, %v9681
    %v9684 = vsub.s32 4, %v9660
    %v9685 = vsel %vm9600, %v9684, %v9660
    %v9686 = vsel %vm9599, %v7510, %v9683
    %v9687 = vsel %vm9599, 0, %v9685
    %v9688 = vcosq.f32.pop %v9686
    %v9689 = vsinq.f32.pop %v9686
    %vm9690 = vweird.f32 %v7510
    %v9691 = vand.u32 %v9687, 3
    %vm9692 = vcmp.lt.s32.totalorder %v9691, 2
    %vm9693 = vcmp.eq.s32.totalorder %v9691, 0
    %v9694 = vxor.u32 %v9689, 2147483648
    %v9695 = vsel %vm9693, %v9688, %v9694
    %vm9696 = vcmp.eq.s32.totalorder %v9691, 2
    %v9697 = vxor.u32 %v9688, 2147483648
    %v9698 = vsel %vm9696, %v9697, %v9689
    %v9699 = vsel %vm9692, %v9695, %v9698
    %v9700 = vsel %vm9690, nan, %v9699
    %v9701 = vand.u32 2147483647, %v7511
    %vm9702 = vcmp.le.f32.partialorder %v9701, 0.7853982
    %vm9703 = vcmp.lt.s32.totalorder %v7511, 0
    %v9704 = vand.u32 %v7511, 2139095040
    %v9705 = vshrl.u32 %v9704, 23
    %v9706 = vsub.s32 %v9705, 127
    %v9707 = vand.u32 2147483647, %v7511
    %v9708 = vand.u32 %v9707, 8388607
    %v9709 = vor.u32 %v9708, 8388608
    %v9710 = vsub.s32 0, %v9709
    %v9711 = vadd.s32 %v9706, 1
    %vm9712 = vcmp.gt.s32.totalorder %v9711, 0
    %v9713 = vsel %vm9712, %v9711, 0
    %v9714 = vshrl.u32 %v9713, 5
    %v9715 = vand.u32 %v9713, 31
    %v9716 = vsub.s32 32, %v9715
    %v9717 = vshrl.u32 683565275, %v9716
    %v9718 = vshll.u32 683565275, %v9715
    %v9719 = vshrl.u32 2475754826, %v9716
    %v9720 = vor.u32 %v9718, %v9719
    %v9721 = vshll.u32 2475754826, %v9715
    %v9722 = vshrl.u32 2131351028, %v9716
    %v9723 = vor.u32 %v9721, %v9722
    %v9724 = vshll.u32 2131351028, %v9715
    %v9725 = vshrl.u32 2102212464, %v9716
    %v9726 = vor.u32 %v9724, %v9725
    %v9727 = vshll.u32 2102212464, %v9715
    %v9728 = vshrl.u32 920167782, %v9716
    %v9729 = vor.u32 %v9727, %v9728
    %v9730 = vshll.u32 920167782, %v9715
    %v9731 = vshrl.u32 1326507024, %v9716
    %v9732 = vor.u32 %v9730, %v9731
    %vm9733 = vcmp.lt.s32.totalorder %v9714, 1
    %vm9734 = vcmp.lt.s32.totalorder %v9714, 2
    %vm9735 = vcmp.lt.s32.totalorder %v9714, 3
    %vm9736 = vcmp.lt.s32.totalorder %v9714, 4
    %v9737 = vsel %vm9733, %v9717, %v9720
    %v9738 = vsel %vm9736, %v9726, 2102212464
    %v9739 = vsel %vm9735, %v9723, %v9738
    %v9740 = vsel %vm9734, %v9737, %v9739
    %v9741 = vsel %vm9733, %v9720, %v9723
    %v9742 = vsel %vm9736, %v9729, 920167782
    %v9743 = vsel %vm9735, %v9726, %v9742
    %v9744 = vsel %vm9734, %v9741, %v9743
    %v9745 = vsel %vm9733, %v9723, %v9726
    %v9746 = vsel %vm9736, %v9732, 1326507024
    %v9747 = vsel %vm9735, %v9729, %v9746
    %v9748 = vsel %vm9734, %v9745, %v9747
    %v9749 = vshll.u32 %v9709, 8
    %v9750 = vmul.u32.u64.compose %v9749, %v9748
    %v9751 = vextract.low.u32 %v9750
    %v9752 = vextract.high.u32 %v9750
    %v9753 = vmul.u32.u64.compose %v9749, %v9744
    %v9754 = vextract.low.u32 %v9753
    %v9755 = vextract.high.u32 %v9753
    %v9756 = vmul.u32 %v9749, %v9740
    %v9757 = vadd.s32 %v9752, %v9754
    %vm9758 = vc.u32 %v9752, %v9754
    %v9759 = vadd.s32 %v9755, 1
    %v9760 = vsel %vm9758, %v9759, %v9755
    %v9761 = vadd.s32 %v9756, %v9760
    %v9762 = vadd.s32 %v9761, 536870912
    %v9763 = vshrl.u32 %v9762, 30
    %v9764 = vshll.u32 %v9763, 30
    %v9765 = vsub.s32 %v9761, %v9764
    %vm9766 = vcmp.lt.s32.totalorder %v9765, 0
    %v9767 = vsub.s32 0, %v9765
    %v9768 = vsel %vm9766, %v9767, %v9765
    %v9769 = vclz %v9768
    %v9770 = vsub.s32 %v9769, 2
    %vm9771 = vcmp.gt.s32.totalorder 0, %v9770
    %v9772 = vsel %vm9771, 0, %v9770
    %v9773 = vsub.s32 32, %v9772
    %v9774 = vshll.u32 %v9765, %v9772
    %v9775 = vshrl.u32 %v9757, %v9773
    %v9776 = vor.u32 %v9774, %v9775
    %v9777 = vsub.s32 4294967266, %v9772
    %v9778 = vadd.s32 %v9777, 127
    %v9779 = vshll.u32 %v9778, 23
    %v9780 = vor.u32 4788187, %v9779
    %v9781 = vand.u32 2147483647, %v9780
    %v9783 = vcvt.s32.f32 %v9776
    %v9784 = vmul.f32 %v9783, %v9781
    %v9785 = vxor.u32 %v9784, 2147483648
    %v9786 = vsel %vm9703, %v9785, %v9784
    %v9787 = vsub.s32 4, %v9763
    %v9788 = vsel %vm9703, %v9787, %v9763
    %v9789 = vsel %vm9702, %v7511, %v9786
    %v9790 = vsel %vm9702, 0, %v9788
    %v9791 = vcosq.f32.pop %v9789
    %v9792 = vsinq.f32.pop %v9789
    %vm9793 = vweird.f32 %v7511
    %v9794 = vand.u32 %v9790, 3
    %vm9795 = vcmp.lt.s32.totalorder %v9794, 2
    %vm9796 = vcmp.eq.s32.totalorder %v9794, 0
    %v9797 = vxor.u32 %v9792, 2147483648
    %v9798 = vsel %vm9796, %v9791, %v9797
    %vm9799 = vcmp.eq.s32.totalorder %v9794, 2
    %v9800 = vxor.u32 %v9791, 2147483648
    %v9801 = vsel %vm9799, %v9800, %v9792
    %v9802 = vsel %vm9795, %v9798, %v9801
    %v9803 = vsel %vm9793, nan, %v9802
    %v9804 = vand.u32 2147483647, %v7512
    %vm9805 = vcmp.le.f32.partialorder %v9804, 0.7853982
    %vm9806 = vcmp.lt.s32.totalorder %v7512, 0
    %v9807 = vand.u32 %v7512, 2139095040
    %v9808 = vshrl.u32 %v9807, 23
    %v9809 = vsub.s32 %v9808, 127
    %v9810 = vand.u32 2147483647, %v7512
    %v9811 = vand.u32 %v9810, 8388607
    %v9812 = vor.u32 %v9811, 8388608
    %v9813 = vsub.s32 0, %v9812
    %v9814 = vadd.s32 %v9809, 1
    %vm9815 = vcmp.gt.s32.totalorder %v9814, 0
    %v9816 = vsel %vm9815, %v9814, 0
    %v9817 = vshrl.u32 %v9816, 5
    %v9818 = vand.u32 %v9816, 31
    %v9819 = vsub.s32 32, %v9818
    %v9820 = vshrl.u32 683565275, %v9819
    %v9821 = vshll.u32 683565275, %v9818
    %v9822 = vshrl.u32 2475754826, %v9819
    %v9823 = vor.u32 %v9821, %v9822
    %v9824 = vshll.u32 2475754826, %v9818
    %v9825 = vshrl.u32 2131351028, %v9819
    %v9826 = vor.u32 %v9824, %v9825
    %v9827 = vshll.u32 2131351028, %v9818
    %v9828 = vshrl.u32 2102212464, %v9819
    %v9829 = vor.u32 %v9827, %v9828
    %v9830 = vshll.u32 2102212464, %v9818
    %v9831 = vshrl.u32 920167782, %v9819
    %v9832 = vor.u32 %v9830, %v9831
    %v9833 = vshll.u32 920167782, %v9818
    %v9834 = vshrl.u32 1326507024, %v9819
    %v9835 = vor.u32 %v9833, %v9834
    %vm9836 = vcmp.lt.s32.totalorder %v9817, 1
    %vm9837 = vcmp.lt.s32.totalorder %v9817, 2
    %vm9838 = vcmp.lt.s32.totalorder %v9817, 3
    %vm9839 = vcmp.lt.s32.totalorder %v9817, 4
    %v9840 = vsel %vm9836, %v9820, %v9823
    %v9841 = vsel %vm9839, %v9829, 2102212464
    %v9842 = vsel %vm9838, %v9826, %v9841
    %v9843 = vsel %vm9837, %v9840, %v9842
    %v9844 = vsel %vm9836, %v9823, %v9826
    %v9845 = vsel %vm9839, %v9832, 920167782
    %v9846 = vsel %vm9838, %v9829, %v9845
    %v9847 = vsel %vm9837, %v9844, %v9846
    %v9848 = vsel %vm9836, %v9826, %v9829
    %v9849 = vsel %vm9839, %v9835, 1326507024
    %v9850 = vsel %vm9838, %v9832, %v9849
    %v9851 = vsel %vm9837, %v9848, %v9850
    %v9852 = vshll.u32 %v9812, 8
    %v9853 = vmul.u32.u64.compose %v9852, %v9851
    %v9854 = vextract.low.u32 %v9853
    %v9855 = vextract.high.u32 %v9853
    %v9856 = vmul.u32.u64.compose %v9852, %v9847
    %v9857 = vextract.low.u32 %v9856
    %v9858 = vextract.high.u32 %v9856
    %v9859 = vmul.u32 %v9852, %v9843
    %v9860 = vadd.s32 %v9855, %v9857
    %vm9861 = vc.u32 %v9855, %v9857
    %v9862 = vadd.s32 %v9858, 1
    %v9863 = vsel %vm9861, %v9862, %v9858
    %v9864 = vadd.s32 %v9859, %v9863
    %v9865 = vadd.s32 %v9864, 536870912
    %v9866 = vshrl.u32 %v9865, 30
    %v9867 = vshll.u32 %v9866, 30
    %v9868 = vsub.s32 %v9864, %v9867
    %vm9869 = vcmp.lt.s32.totalorder %v9868, 0
    %v9870 = vsub.s32 0, %v9868
    %v9871 = vsel %vm9869, %v9870, %v9868
    %v9872 = vclz %v9871
    %v9873 = vsub.s32 %v9872, 2
    %vm9874 = vcmp.gt.s32.totalorder 0, %v9873
    %v9875 = vsel %vm9874, 0, %v9873
    %v9876 = vsub.s32 32, %v9875
    %v9877 = vshll.u32 %v9868, %v9875
    %v9878 = vshrl.u32 %v9860, %v9876
    %v9879 = vor.u32 %v9877, %v9878
    %v9880 = vsub.s32 4294967266, %v9875
    %v9881 = vadd.s32 %v9880, 127
    %v9882 = vshll.u32 %v9881, 23
    %v9883 = vor.u32 4788187, %v9882
    %v9884 = vand.u32 2147483647, %v9883
    %v9886 = vcvt.s32.f32 %v9879
    %v9887 = vmul.f32 %v9886, %v9884
    %v9888 = vxor.u32 %v9887, 2147483648
    %v9889 = vsel %vm9806, %v9888, %v9887
    %v9890 = vsub.s32 4, %v9866
    %v9891 = vsel %vm9806, %v9890, %v9866
    %v9892 = vsel %vm9805, %v7512, %v9889
    %v9893 = vsel %vm9805, 0, %v9891
    %v9894 = vcosq.f32.pop %v9892
    %v9895 = vsinq.f32.pop %v9892
    %vm9896 = vweird.f32 %v7512
    %v9897 = vand.u32 %v9893, 3
    %vm9898 = vcmp.lt.s32.totalorder %v9897, 2
    %vm9899 = vcmp.eq.s32.totalorder %v9897, 0
    %v9900 = vxor.u32 %v9895, 2147483648
    %v9901 = vsel %vm9899, %v9894, %v9900
    %vm9902 = vcmp.eq.s32.totalorder %v9897, 2
    %v9903 = vxor.u32 %v9894, 2147483648
    %v9904 = vsel %vm9902, %v9903, %v9895
    %v9905 = vsel %vm9898, %v9901, %v9904
    %v9906 = vsel %vm9896, nan, %v9905
    %v9907 = vand.u32 2147483647, %v7513
    %vm9908 = vcmp.le.f32.partialorder %v9907, 0.7853982
    %vm9909 = vcmp.lt.s32.totalorder %v7513, 0
    %v9910 = vand.u32 %v7513, 2139095040
    %v9911 = vshrl.u32 %v9910, 23
    %v9912 = vsub.s32 %v9911, 127
    %v9913 = vand.u32 2147483647, %v7513
    %v9914 = vand.u32 %v9913, 8388607
    %v9915 = vor.u32 %v9914, 8388608
    %v9916 = vsub.s32 0, %v9915
    %v9917 = vadd.s32 %v9912, 1
    %vm9918 = vcmp.gt.s32.totalorder %v9917, 0
    %v9919 = vsel %vm9918, %v9917, 0
    %v9920 = vshrl.u32 %v9919, 5
    %v9921 = vand.u32 %v9919, 31
    %v9922 = vsub.s32 32, %v9921
    %v9923 = vshrl.u32 683565275, %v9922
    %v9924 = vshll.u32 683565275, %v9921
    %v9925 = vshrl.u32 2475754826, %v9922
    %v9926 = vor.u32 %v9924, %v9925
    %v9927 = vshll.u32 2475754826, %v9921
    %v9928 = vshrl.u32 2131351028, %v9922
    %v9929 = vor.u32 %v9927, %v9928
    %v9930 = vshll.u32 2131351028, %v9921
    %v9931 = vshrl.u32 2102212464, %v9922
    %v9932 = vor.u32 %v9930, %v9931
    %v9933 = vshll.u32 2102212464, %v9921
    %v9934 = vshrl.u32 920167782, %v9922
    %v9935 = vor.u32 %v9933, %v9934
    %v9936 = vshll.u32 920167782, %v9921
    %v9937 = vshrl.u32 1326507024, %v9922
    %v9938 = vor.u32 %v9936, %v9937
    %vm9939 = vcmp.lt.s32.totalorder %v9920, 1
    %vm9940 = vcmp.lt.s32.totalorder %v9920, 2
    %vm9941 = vcmp.lt.s32.totalorder %v9920, 3
    %vm9942 = vcmp.lt.s32.totalorder %v9920, 4
    %v9943 = vsel %vm9939, %v9923, %v9926
    %v9944 = vsel %vm9942, %v9932, 2102212464
    %v9945 = vsel %vm9941, %v9929, %v9944
    %v9946 = vsel %vm9940, %v9943, %v9945
    %v9947 = vsel %vm9939, %v9926, %v9929
    %v9948 = vsel %vm9942, %v9935, 920167782
    %v9949 = vsel %vm9941, %v9932, %v9948
    %v9950 = vsel %vm9940, %v9947, %v9949
    %v9951 = vsel %vm9939, %v9929, %v9932
    %v9952 = vsel %vm9942, %v9938, 1326507024
    %v9953 = vsel %vm9941, %v9935, %v9952
    %v9954 = vsel %vm9940, %v9951, %v9953
    %v9955 = vshll.u32 %v9915, 8
    %v9956 = vmul.u32.u64.compose %v9955, %v9954
    %v9957 = vextract.low.u32 %v9956
    %v9958 = vextract.high.u32 %v9956
    %v9959 = vmul.u32.u64.compose %v9955, %v9950
    %v9960 = vextract.low.u32 %v9959
    %v9961 = vextract.high.u32 %v9959
    %v9962 = vmul.u32 %v9955, %v9946
    %v9963 = vadd.s32 %v9958, %v9960
    %vm9964 = vc.u32 %v9958, %v9960
    %v9965 = vadd.s32 %v9961, 1
    %v9966 = vsel %vm9964, %v9965, %v9961
    %v9967 = vadd.s32 %v9962, %v9966
    %v9968 = vadd.s32 %v9967, 536870912
    %v9969 = vshrl.u32 %v9968, 30
    %v9970 = vshll.u32 %v9969, 30
    %v9971 = vsub.s32 %v9967, %v9970
    %vm9972 = vcmp.lt.s32.totalorder %v9971, 0
    %v9973 = vsub.s32 0, %v9971
    %v9974 = vsel %vm9972, %v9973, %v9971
    %v9975 = vclz %v9974
    %v9976 = vsub.s32 %v9975, 2
    %vm9977 = vcmp.gt.s32.totalorder 0, %v9976
    %v9978 = vsel %vm9977, 0, %v9976
    %v9979 = vsub.s32 32, %v9978
    %v9980 = vshll.u32 %v9971, %v9978
    %v9981 = vshrl.u32 %v9963, %v9979
    %v9982 = vor.u32 %v9980, %v9981
    %v9983 = vsub.s32 4294967266, %v9978
    %v9984 = vadd.s32 %v9983, 127
    %v9985 = vshll.u32 %v9984, 23
    %v9986 = vor.u32 4788187, %v9985
    %v9987 = vand.u32 2147483647, %v9986
    %v9989 = vcvt.s32.f32 %v9982
    %v9990 = vmul.f32 %v9989, %v9987
    %v9991 = vxor.u32 %v9990, 2147483648
    %v9992 = vsel %vm9909, %v9991, %v9990
    %v9993 = vsub.s32 4, %v9969
    %v9994 = vsel %vm9909, %v9993, %v9969
    %v9995 = vsel %vm9908, %v7513, %v9992
    %v9996 = vsel %vm9908, 0, %v9994
    %v9997 = vcosq.f32.pop %v9995
    %v9998 = vsinq.f32.pop %v9995
    %vm9999 = vweird.f32 %v7513
    %v10000 = vand.u32 %v9996, 3
    %vm10001 = vcmp.lt.s32.totalorder %v10000, 2
    %vm10002 = vcmp.eq.s32.totalorder %v10000, 0
    %v10003 = vxor.u32 %v9998, 2147483648
    %v10004 = vsel %vm10002, %v9997, %v10003
    %vm10005 = vcmp.eq.s32.totalorder %v10000, 2
    %v10006 = vxor.u32 %v9997, 2147483648
    %v10007 = vsel %vm10005, %v10006, %v9998
    %v10008 = vsel %vm10001, %v10004, %v10007
    %v10009 = vsel %vm9999, nan, %v10008
    %v10010 = vand.u32 2147483647, %v7514
    %vm10011 = vcmp.le.f32.partialorder %v10010, 0.7853982
    %vm10012 = vcmp.lt.s32.totalorder %v7514, 0
    %v10013 = vand.u32 %v7514, 2139095040
    %v10014 = vshrl.u32 %v10013, 23
    %v10015 = vsub.s32 %v10014, 127
    %v10016 = vand.u32 2147483647, %v7514
    %v10017 = vand.u32 %v10016, 8388607
    %v10018 = vor.u32 %v10017, 8388608
    %v10019 = vsub.s32 0, %v10018
    %v10020 = vadd.s32 %v10015, 1
    %vm10021 = vcmp.gt.s32.totalorder %v10020, 0
    %v10022 = vsel %vm10021, %v10020, 0
    %v10023 = vshrl.u32 %v10022, 5
    %v10024 = vand.u32 %v10022, 31
    %v10025 = vsub.s32 32, %v10024
    %v10026 = vshrl.u32 683565275, %v10025
    %v10027 = vshll.u32 683565275, %v10024
    %v10028 = vshrl.u32 2475754826, %v10025
    %v10029 = vor.u32 %v10027, %v10028
    %v10030 = vshll.u32 2475754826, %v10024
    %v10031 = vshrl.u32 2131351028, %v10025
    %v10032 = vor.u32 %v10030, %v10031
    %v10033 = vshll.u32 2131351028, %v10024
    %v10034 = vshrl.u32 2102212464, %v10025
    %v10035 = vor.u32 %v10033, %v10034
    %v10036 = vshll.u32 2102212464, %v10024
    %v10037 = vshrl.u32 920167782, %v10025
    %v10038 = vor.u32 %v10036, %v10037
    %v10039 = vshll.u32 920167782, %v10024
    %v10040 = vshrl.u32 1326507024, %v10025
    %v10041 = vor.u32 %v10039, %v10040
    %vm10042 = vcmp.lt.s32.totalorder %v10023, 1
    %vm10043 = vcmp.lt.s32.totalorder %v10023, 2
    %vm10044 = vcmp.lt.s32.totalorder %v10023, 3
    %vm10045 = vcmp.lt.s32.totalorder %v10023, 4
    %v10046 = vsel %vm10042, %v10026, %v10029
    %v10047 = vsel %vm10045, %v10035, 2102212464
    %v10048 = vsel %vm10044, %v10032, %v10047
    %v10049 = vsel %vm10043, %v10046, %v10048
    %v10050 = vsel %vm10042, %v10029, %v10032
    %v10051 = vsel %vm10045, %v10038, 920167782
    %v10052 = vsel %vm10044, %v10035, %v10051
    %v10053 = vsel %vm10043, %v10050, %v10052
    %v10054 = vsel %vm10042, %v10032, %v10035
    %v10055 = vsel %vm10045, %v10041, 1326507024
    %v10056 = vsel %vm10044, %v10038, %v10055
    %v10057 = vsel %vm10043, %v10054, %v10056
    %v10058 = vshll.u32 %v10018, 8
    %v10059 = vmul.u32.u64.compose %v10058, %v10057
    %v10060 = vextract.low.u32 %v10059
    %v10061 = vextract.high.u32 %v10059
    %v10062 = vmul.u32.u64.compose %v10058, %v10053
    %v10063 = vextract.low.u32 %v10062
    %v10064 = vextract.high.u32 %v10062
    %v10065 = vmul.u32 %v10058, %v10049
    %v10066 = vadd.s32 %v10061, %v10063
    %vm10067 = vc.u32 %v10061, %v10063
    %v10068 = vadd.s32 %v10064, 1
    %v10069 = vsel %vm10067, %v10068, %v10064
    %v10070 = vadd.s32 %v10065, %v10069
    %v10071 = vadd.s32 %v10070, 536870912
    %v10072 = vshrl.u32 %v10071, 30
    %v10073 = vshll.u32 %v10072, 30
    %v10074 = vsub.s32 %v10070, %v10073
    %vm10075 = vcmp.lt.s32.totalorder %v10074, 0
    %v10076 = vsub.s32 0, %v10074
    %v10077 = vsel %vm10075, %v10076, %v10074
    %v10078 = vclz %v10077
    %v10079 = vsub.s32 %v10078, 2
    %vm10080 = vcmp.gt.s32.totalorder 0, %v10079
    %v10081 = vsel %vm10080, 0, %v10079
    %v10082 = vsub.s32 32, %v10081
    %v10083 = vshll.u32 %v10074, %v10081
    %v10084 = vshrl.u32 %v10066, %v10082
    %v10085 = vor.u32 %v10083, %v10084
    %v10086 = vsub.s32 4294967266, %v10081
    %v10087 = vadd.s32 %v10086, 127
    %v10088 = vshll.u32 %v10087, 23
    %v10089 = vor.u32 4788187, %v10088
    %v10090 = vand.u32 2147483647, %v10089
    %v10092 = vcvt.s32.f32 %v10085
    %v10093 = vmul.f32 %v10092, %v10090
    %v10094 = vxor.u32 %v10093, 2147483648
    %v10095 = vsel %vm10012, %v10094, %v10093
    %v10096 = vsub.s32 4, %v10072
    %v10097 = vsel %vm10012, %v10096, %v10072
    %v10098 = vsel %vm10011, %v7514, %v10095
    %v10099 = vsel %vm10011, 0, %v10097
    %v10100 = vcosq.f32.pop %v10098
    %v10101 = vsinq.f32.pop %v10098
    %vm10102 = vweird.f32 %v7514
    %v10103 = vand.u32 %v10099, 3
    %vm10104 = vcmp.lt.s32.totalorder %v10103, 2
    %vm10105 = vcmp.eq.s32.totalorder %v10103, 0
    %v10106 = vxor.u32 %v10101, 2147483648
    %v10107 = vsel %vm10105, %v10100, %v10106
    %vm10108 = vcmp.eq.s32.totalorder %v10103, 2
    %v10109 = vxor.u32 %v10100, 2147483648
    %v10110 = vsel %vm10108, %v10109, %v10101
    %v10111 = vsel %vm10104, %v10107, %v10110
    %v10112 = vsel %vm10102, nan, %v10111
    %v10113 = vand.u32 2147483647, %v7515
    %vm10114 = vcmp.le.f32.partialorder %v10113, 0.7853982
    %vm10115 = vcmp.lt.s32.totalorder %v7515, 0
    %v10116 = vand.u32 %v7515, 2139095040
    %v10117 = vshrl.u32 %v10116, 23
    %v10118 = vsub.s32 %v10117, 127
    %v10119 = vand.u32 2147483647, %v7515
    %v10120 = vand.u32 %v10119, 8388607
    %v10121 = vor.u32 %v10120, 8388608
    %v10122 = vsub.s32 0, %v10121
    %v10123 = vadd.s32 %v10118, 1
    %vm10124 = vcmp.gt.s32.totalorder %v10123, 0
    %v10125 = vsel %vm10124, %v10123, 0
    %v10126 = vshrl.u32 %v10125, 5
    %v10127 = vand.u32 %v10125, 31
    %v10128 = vsub.s32 32, %v10127
    %v10129 = vshrl.u32 683565275, %v10128
    %v10130 = vshll.u32 683565275, %v10127
    %v10131 = vshrl.u32 2475754826, %v10128
    %v10132 = vor.u32 %v10130, %v10131
    %v10133 = vshll.u32 2475754826, %v10127
    %v10134 = vshrl.u32 2131351028, %v10128
    %v10135 = vor.u32 %v10133, %v10134
    %v10136 = vshll.u32 2131351028, %v10127
    %v10137 = vshrl.u32 2102212464, %v10128
    %v10138 = vor.u32 %v10136, %v10137
    %v10139 = vshll.u32 2102212464, %v10127
    %v10140 = vshrl.u32 920167782, %v10128
    %v10141 = vor.u32 %v10139, %v10140
    %v10142 = vshll.u32 920167782, %v10127
    %v10143 = vshrl.u32 1326507024, %v10128
    %v10144 = vor.u32 %v10142, %v10143
    %vm10145 = vcmp.lt.s32.totalorder %v10126, 1
    %vm10146 = vcmp.lt.s32.totalorder %v10126, 2
    %vm10147 = vcmp.lt.s32.totalorder %v10126, 3
    %vm10148 = vcmp.lt.s32.totalorder %v10126, 4
    %v10149 = vsel %vm10145, %v10129, %v10132
    %v10150 = vsel %vm10148, %v10138, 2102212464
    %v10151 = vsel %vm10147, %v10135, %v10150
    %v10152 = vsel %vm10146, %v10149, %v10151
    %v10153 = vsel %vm10145, %v10132, %v10135
    %v10154 = vsel %vm10148, %v10141, 920167782
    %v10155 = vsel %vm10147, %v10138, %v10154
    %v10156 = vsel %vm10146, %v10153, %v10155
    %v10157 = vsel %vm10145, %v10135, %v10138
    %v10158 = vsel %vm10148, %v10144, 1326507024
    %v10159 = vsel %vm10147, %v10141, %v10158
    %v10160 = vsel %vm10146, %v10157, %v10159
    %v10161 = vshll.u32 %v10121, 8
    %v10162 = vmul.u32.u64.compose %v10161, %v10160
    %v10163 = vextract.low.u32 %v10162
    %v10164 = vextract.high.u32 %v10162
    %v10165 = vmul.u32.u64.compose %v10161, %v10156
    %v10166 = vextract.low.u32 %v10165
    %v10167 = vextract.high.u32 %v10165
    %v10168 = vmul.u32 %v10161, %v10152
    %v10169 = vadd.s32 %v10164, %v10166
    %vm10170 = vc.u32 %v10164, %v10166
    %v10171 = vadd.s32 %v10167, 1
    %v10172 = vsel %vm10170, %v10171, %v10167
    %v10173 = vadd.s32 %v10168, %v10172
    %v10174 = vadd.s32 %v10173, 536870912
    %v10175 = vshrl.u32 %v10174, 30
    %v10176 = vshll.u32 %v10175, 30
    %v10177 = vsub.s32 %v10173, %v10176
    %vm10178 = vcmp.lt.s32.totalorder %v10177, 0
    %v10179 = vsub.s32 0, %v10177
    %v10180 = vsel %vm10178, %v10179, %v10177
    %v10181 = vclz %v10180
    %v10182 = vsub.s32 %v10181, 2
    %vm10183 = vcmp.gt.s32.totalorder 0, %v10182
    %v10184 = vsel %vm10183, 0, %v10182
    %v10185 = vsub.s32 32, %v10184
    %v10186 = vshll.u32 %v10177, %v10184
    %v10187 = vshrl.u32 %v10169, %v10185
    %v10188 = vor.u32 %v10186, %v10187
    %v10189 = vsub.s32 4294967266, %v10184
    %v10190 = vadd.s32 %v10189, 127
    %v10191 = vshll.u32 %v10190, 23
    %v10192 = vor.u32 4788187, %v10191
    %v10193 = vand.u32 2147483647, %v10192
    %v10195 = vcvt.s32.f32 %v10188
    %v10196 = vmul.f32 %v10195, %v10193
    %v10197 = vxor.u32 %v10196, 2147483648
    %v10198 = vsel %vm10115, %v10197, %v10196
    %v10199 = vsub.s32 4, %v10175
    %v10200 = vsel %vm10115, %v10199, %v10175
    %v10201 = vsel %vm10114, %v7515, %v10198
    %v10202 = vsel %vm10114, 0, %v10200
    %v10203 = vcosq.f32.pop %v10201
    %v10204 = vsinq.f32.pop %v10201
    %vm10205 = vweird.f32 %v7515
    %v10206 = vand.u32 %v10202, 3
    %vm10207 = vcmp.lt.s32.totalorder %v10206, 2
    %vm10208 = vcmp.eq.s32.totalorder %v10206, 0
    %v10209 = vxor.u32 %v10204, 2147483648
    %v10210 = vsel %vm10208, %v10203, %v10209
    %vm10211 = vcmp.eq.s32.totalorder %v10206, 2
    %v10212 = vxor.u32 %v10203, 2147483648
    %v10213 = vsel %vm10211, %v10212, %v10204
    %v10214 = vsel %vm10207, %v10210, %v10213
    %v10215 = vsel %vm10205, nan, %v10214
    %v10216 = vand.u32 2147483647, %v7516
    %vm10217 = vcmp.le.f32.partialorder %v10216, 0.7853982
    %vm10218 = vcmp.lt.s32.totalorder %v7516, 0
    %v10219 = vand.u32 %v7516, 2139095040
    %v10220 = vshrl.u32 %v10219, 23
    %v10221 = vsub.s32 %v10220, 127
    %v10222 = vand.u32 2147483647, %v7516
    %v10223 = vand.u32 %v10222, 8388607
    %v10224 = vor.u32 %v10223, 8388608
    %v10225 = vsub.s32 0, %v10224
    %v10226 = vadd.s32 %v10221, 1
    %vm10227 = vcmp.gt.s32.totalorder %v10226, 0
    %v10228 = vsel %vm10227, %v10226, 0
    %v10229 = vshrl.u32 %v10228, 5
    %v10230 = vand.u32 %v10228, 31
    %v10231 = vsub.s32 32, %v10230
    %v10232 = vshrl.u32 683565275, %v10231
    %v10233 = vshll.u32 683565275, %v10230
    %v10234 = vshrl.u32 2475754826, %v10231
    %v10235 = vor.u32 %v10233, %v10234
    %v10236 = vshll.u32 2475754826, %v10230
    %v10237 = vshrl.u32 2131351028, %v10231
    %v10238 = vor.u32 %v10236, %v10237
    %v10239 = vshll.u32 2131351028, %v10230
    %v10240 = vshrl.u32 2102212464, %v10231
    %v10241 = vor.u32 %v10239, %v10240
    %v10242 = vshll.u32 2102212464, %v10230
    %v10243 = vshrl.u32 920167782, %v10231
    %v10244 = vor.u32 %v10242, %v10243
    %v10245 = vshll.u32 920167782, %v10230
    %v10246 = vshrl.u32 1326507024, %v10231
    %v10247 = vor.u32 %v10245, %v10246
    %vm10248 = vcmp.lt.s32.totalorder %v10229, 1
    %vm10249 = vcmp.lt.s32.totalorder %v10229, 2
    %vm10250 = vcmp.lt.s32.totalorder %v10229, 3
    %vm10251 = vcmp.lt.s32.totalorder %v10229, 4
    %v10252 = vsel %vm10248, %v10232, %v10235
    %v10253 = vsel %vm10251, %v10241, 2102212464
    %v10254 = vsel %vm10250, %v10238, %v10253
    %v10255 = vsel %vm10249, %v10252, %v10254
    %v10256 = vsel %vm10248, %v10235, %v10238
    %v10257 = vsel %vm10251, %v10244, 920167782
    %v10258 = vsel %vm10250, %v10241, %v10257
    %v10259 = vsel %vm10249, %v10256, %v10258
    %v10260 = vsel %vm10248, %v10238, %v10241
    %v10261 = vsel %vm10251, %v10247, 1326507024
    %v10262 = vsel %vm10250, %v10244, %v10261
    %v10263 = vsel %vm10249, %v10260, %v10262
    %v10264 = vshll.u32 %v10224, 8
    %v10265 = vmul.u32.u64.compose %v10264, %v10263
    %v10266 = vextract.low.u32 %v10265
    %v10267 = vextract.high.u32 %v10265
    %v10268 = vmul.u32.u64.compose %v10264, %v10259
    %v10269 = vextract.low.u32 %v10268
    %v10270 = vextract.high.u32 %v10268
    %v10271 = vmul.u32 %v10264, %v10255
    %v10272 = vadd.s32 %v10267, %v10269
    %vm10273 = vc.u32 %v10267, %v10269
    %v10274 = vadd.s32 %v10270, 1
    %v10275 = vsel %vm10273, %v10274, %v10270
    %v10276 = vadd.s32 %v10271, %v10275
    %v10277 = vadd.s32 %v10276, 536870912
    %v10278 = vshrl.u32 %v10277, 30
    %v10279 = vshll.u32 %v10278, 30
    %v10280 = vsub.s32 %v10276, %v10279
    %vm10281 = vcmp.lt.s32.totalorder %v10280, 0
    %v10282 = vsub.s32 0, %v10280
    %v10283 = vsel %vm10281, %v10282, %v10280
    %v10284 = vclz %v10283
    %v10285 = vsub.s32 %v10284, 2
    %vm10286 = vcmp.gt.s32.totalorder 0, %v10285
    %v10287 = vsel %vm10286, 0, %v10285
    %v10288 = vsub.s32 32, %v10287
    %v10289 = vshll.u32 %v10280, %v10287
    %v10290 = vshrl.u32 %v10272, %v10288
    %v10291 = vor.u32 %v10289, %v10290
    %v10292 = vsub.s32 4294967266, %v10287
    %v10293 = vadd.s32 %v10292, 127
    %v10294 = vshll.u32 %v10293, 23
    %v10295 = vor.u32 4788187, %v10294
    %v10296 = vand.u32 2147483647, %v10295
    %v10298 = vcvt.s32.f32 %v10291
    %v10299 = vmul.f32 %v10298, %v10296
    %v10300 = vxor.u32 %v10299, 2147483648
    %v10301 = vsel %vm10218, %v10300, %v10299
    %v10302 = vsub.s32 4, %v10278
    %v10303 = vsel %vm10218, %v10302, %v10278
    %v10304 = vsel %vm10217, %v7516, %v10301
    %v10305 = vsel %vm10217, 0, %v10303
    %v10306 = vcosq.f32.pop %v10304
    %v10307 = vsinq.f32.pop %v10304
    %vm10308 = vweird.f32 %v7516
    %v10309 = vand.u32 %v10305, 3
    %vm10310 = vcmp.lt.s32.totalorder %v10309, 2
    %vm10311 = vcmp.eq.s32.totalorder %v10309, 0
    %v10312 = vxor.u32 %v10307, 2147483648
    %v10313 = vsel %vm10311, %v10306, %v10312
    %vm10314 = vcmp.eq.s32.totalorder %v10309, 2
    %v10315 = vxor.u32 %v10306, 2147483648
    %v10316 = vsel %vm10314, %v10315, %v10307
    %v10317 = vsel %vm10310, %v10313, %v10316
    %v10318 = vsel %vm10308, nan, %v10317
    %v10319 = vand.u32 2147483647, %v7517
    %vm10320 = vcmp.le.f32.partialorder %v10319, 0.7853982
    %vm10321 = vcmp.lt.s32.totalorder %v7517, 0
    %v10322 = vand.u32 %v7517, 2139095040
    %v10323 = vshrl.u32 %v10322, 23
    %v10324 = vsub.s32 %v10323, 127
    %v10325 = vand.u32 2147483647, %v7517
    %v10326 = vand.u32 %v10325, 8388607
    %v10327 = vor.u32 %v10326, 8388608
    %v10328 = vsub.s32 0, %v10327
    %v10329 = vadd.s32 %v10324, 1
    %vm10330 = vcmp.gt.s32.totalorder %v10329, 0
    %v10331 = vsel %vm10330, %v10329, 0
    %v10332 = vshrl.u32 %v10331, 5
    %v10333 = vand.u32 %v10331, 31
    %v10334 = vsub.s32 32, %v10333
    %v10335 = vshrl.u32 683565275, %v10334
    %v10336 = vshll.u32 683565275, %v10333
    %v10337 = vshrl.u32 2475754826, %v10334
    %v10338 = vor.u32 %v10336, %v10337
    %v10339 = vshll.u32 2475754826, %v10333
    %v10340 = vshrl.u32 2131351028, %v10334
    %v10341 = vor.u32 %v10339, %v10340
    %v10342 = vshll.u32 2131351028, %v10333
    %v10343 = vshrl.u32 2102212464, %v10334
    %v10344 = vor.u32 %v10342, %v10343
    %v10345 = vshll.u32 2102212464, %v10333
    %v10346 = vshrl.u32 920167782, %v10334
    %v10347 = vor.u32 %v10345, %v10346
    %v10348 = vshll.u32 920167782, %v10333
    %v10349 = vshrl.u32 1326507024, %v10334
    %v10350 = vor.u32 %v10348, %v10349
    %vm10351 = vcmp.lt.s32.totalorder %v10332, 1
    %vm10352 = vcmp.lt.s32.totalorder %v10332, 2
    %vm10353 = vcmp.lt.s32.totalorder %v10332, 3
    %vm10354 = vcmp.lt.s32.totalorder %v10332, 4
    %v10355 = vsel %vm10351, %v10335, %v10338
    %v10356 = vsel %vm10354, %v10344, 2102212464
    %v10357 = vsel %vm10353, %v10341, %v10356
    %v10358 = vsel %vm10352, %v10355, %v10357
    %v10359 = vsel %vm10351, %v10338, %v10341
    %v10360 = vsel %vm10354, %v10347, 920167782
    %v10361 = vsel %vm10353, %v10344, %v10360
    %v10362 = vsel %vm10352, %v10359, %v10361
    %v10363 = vsel %vm10351, %v10341, %v10344
    %v10364 = vsel %vm10354, %v10350, 1326507024
    %v10365 = vsel %vm10353, %v10347, %v10364
    %v10366 = vsel %vm10352, %v10363, %v10365
    %v10367 = vshll.u32 %v10327, 8
    %v10368 = vmul.u32.u64.compose %v10367, %v10366
    %v10369 = vextract.low.u32 %v10368
    %v10370 = vextract.high.u32 %v10368
    %v10371 = vmul.u32.u64.compose %v10367, %v10362
    %v10372 = vextract.low.u32 %v10371
    %v10373 = vextract.high.u32 %v10371
    %v10374 = vmul.u32 %v10367, %v10358
    %v10375 = vadd.s32 %v10370, %v10372
    %vm10376 = vc.u32 %v10370, %v10372
    %v10377 = vadd.s32 %v10373, 1
    %v10378 = vsel %vm10376, %v10377, %v10373
    %v10379 = vadd.s32 %v10374, %v10378
    %v10380 = vadd.s32 %v10379, 536870912
    %v10381 = vshrl.u32 %v10380, 30
    %v10382 = vshll.u32 %v10381, 30
    %v10383 = vsub.s32 %v10379, %v10382
    %vm10384 = vcmp.lt.s32.totalorder %v10383, 0
    %v10385 = vsub.s32 0, %v10383
    %v10386 = vsel %vm10384, %v10385, %v10383
    %v10387 = vclz %v10386
    %v10388 = vsub.s32 %v10387, 2
    %vm10389 = vcmp.gt.s32.totalorder 0, %v10388
    %v10390 = vsel %vm10389, 0, %v10388
    %v10391 = vsub.s32 32, %v10390
    %v10392 = vshll.u32 %v10383, %v10390
    %v10393 = vshrl.u32 %v10375, %v10391
    %v10394 = vor.u32 %v10392, %v10393
    %v10395 = vsub.s32 4294967266, %v10390
    %v10396 = vadd.s32 %v10395, 127
    %v10397 = vshll.u32 %v10396, 23
    %v10398 = vor.u32 4788187, %v10397
    %v10399 = vand.u32 2147483647, %v10398
    %v10401 = vcvt.s32.f32 %v10394
    %v10402 = vmul.f32 %v10401, %v10399
    %v10403 = vxor.u32 %v10402, 2147483648
    %v10404 = vsel %vm10321, %v10403, %v10402
    %v10405 = vsub.s32 4, %v10381
    %v10406 = vsel %vm10321, %v10405, %v10381
    %v10407 = vsel %vm10320, %v7517, %v10404
    %v10408 = vsel %vm10320, 0, %v10406
    %v10409 = vcosq.f32.pop %v10407
    %v10410 = vsinq.f32.pop %v10407
    %vm10411 = vweird.f32 %v7517
    %v10412 = vand.u32 %v10408, 3
    %vm10413 = vcmp.lt.s32.totalorder %v10412, 2
    %vm10414 = vcmp.eq.s32.totalorder %v10412, 0
    %v10415 = vxor.u32 %v10410, 2147483648
    %v10416 = vsel %vm10414, %v10409, %v10415
    %vm10417 = vcmp.eq.s32.totalorder %v10412, 2
    %v10418 = vxor.u32 %v10409, 2147483648
    %v10419 = vsel %vm10417, %v10418, %v10410
    %v10420 = vsel %vm10413, %v10416, %v10419
    %v10421 = vsel %vm10411, nan, %v10420
    %v10422 = vand.u32 2147483647, %v7518
    %vm10423 = vcmp.le.f32.partialorder %v10422, 0.7853982
    %vm10424 = vcmp.lt.s32.totalorder %v7518, 0
    %v10425 = vand.u32 %v7518, 2139095040
    %v10426 = vshrl.u32 %v10425, 23
    %v10427 = vsub.s32 %v10426, 127
    %v10428 = vand.u32 2147483647, %v7518
    %v10429 = vand.u32 %v10428, 8388607
    %v10430 = vor.u32 %v10429, 8388608
    %v10431 = vsub.s32 0, %v10430
    %v10432 = vadd.s32 %v10427, 1
    %vm10433 = vcmp.gt.s32.totalorder %v10432, 0
    %v10434 = vsel %vm10433, %v10432, 0
    %v10435 = vshrl.u32 %v10434, 5
    %v10436 = vand.u32 %v10434, 31
    %v10437 = vsub.s32 32, %v10436
    %v10438 = vshrl.u32 683565275, %v10437
    %v10439 = vshll.u32 683565275, %v10436
    %v10440 = vshrl.u32 2475754826, %v10437
    %v10441 = vor.u32 %v10439, %v10440
    %v10442 = vshll.u32 2475754826, %v10436
    %v10443 = vshrl.u32 2131351028, %v10437
    %v10444 = vor.u32 %v10442, %v10443
    %v10445 = vshll.u32 2131351028, %v10436
    %v10446 = vshrl.u32 2102212464, %v10437
    %v10447 = vor.u32 %v10445, %v10446
    %v10448 = vshll.u32 2102212464, %v10436
    %v10449 = vshrl.u32 920167782, %v10437
    %v10450 = vor.u32 %v10448, %v10449
    %v10451 = vshll.u32 920167782, %v10436
    %v10452 = vshrl.u32 1326507024, %v10437
    %v10453 = vor.u32 %v10451, %v10452
    %vm10454 = vcmp.lt.s32.totalorder %v10435, 1
    %vm10455 = vcmp.lt.s32.totalorder %v10435, 2
    %vm10456 = vcmp.lt.s32.totalorder %v10435, 3
    %vm10457 = vcmp.lt.s32.totalorder %v10435, 4
    %v10458 = vsel %vm10454, %v10438, %v10441
    %v10459 = vsel %vm10457, %v10447, 2102212464
    %v10460 = vsel %vm10456, %v10444, %v10459
    %v10461 = vsel %vm10455, %v10458, %v10460
    %v10462 = vsel %vm10454, %v10441, %v10444
    %v10463 = vsel %vm10457, %v10450, 920167782
    %v10464 = vsel %vm10456, %v10447, %v10463
    %v10465 = vsel %vm10455, %v10462, %v10464
    %v10466 = vsel %vm10454, %v10444, %v10447
    %v10467 = vsel %vm10457, %v10453, 1326507024
    %v10468 = vsel %vm10456, %v10450, %v10467
    %v10469 = vsel %vm10455, %v10466, %v10468
    %v10470 = vshll.u32 %v10430, 8
    %v10471 = vmul.u32.u64.compose %v10470, %v10469
    %v10472 = vextract.low.u32 %v10471
    %v10473 = vextract.high.u32 %v10471
    %v10474 = vmul.u32.u64.compose %v10470, %v10465
    %v10475 = vextract.low.u32 %v10474
    %v10476 = vextract.high.u32 %v10474
    %v10477 = vmul.u32 %v10470, %v10461
    %v10478 = vadd.s32 %v10473, %v10475
    %vm10479 = vc.u32 %v10473, %v10475
    %v10480 = vadd.s32 %v10476, 1
    %v10481 = vsel %vm10479, %v10480, %v10476
    %v10482 = vadd.s32 %v10477, %v10481
    %v10483 = vadd.s32 %v10482, 536870912
    %v10484 = vshrl.u32 %v10483, 30
    %v10485 = vshll.u32 %v10484, 30
    %v10486 = vsub.s32 %v10482, %v10485
    %vm10487 = vcmp.lt.s32.totalorder %v10486, 0
    %v10488 = vsub.s32 0, %v10486
    %v10489 = vsel %vm10487, %v10488, %v10486
    %v10490 = vclz %v10489
    %v10491 = vsub.s32 %v10490, 2
    %vm10492 = vcmp.gt.s32.totalorder 0, %v10491
    %v10493 = vsel %vm10492, 0, %v10491
    %v10494 = vsub.s32 32, %v10493
    %v10495 = vshll.u32 %v10486, %v10493
    %v10496 = vshrl.u32 %v10478, %v10494
    %v10497 = vor.u32 %v10495, %v10496
    %v10498 = vsub.s32 4294967266, %v10493
    %v10499 = vadd.s32 %v10498, 127
    %v10500 = vshll.u32 %v10499, 23
    %v10501 = vor.u32 4788187, %v10500
    %v10502 = vand.u32 2147483647, %v10501
    %v10504 = vcvt.s32.f32 %v10497
    %v10505 = vmul.f32 %v10504, %v10502
    %v10506 = vxor.u32 %v10505, 2147483648
    %v10507 = vsel %vm10424, %v10506, %v10505
    %v10508 = vsub.s32 4, %v10484
    %v10509 = vsel %vm10424, %v10508, %v10484
    %v10510 = vsel %vm10423, %v7518, %v10507
    %v10511 = vsel %vm10423, 0, %v10509
    %v10512 = vcosq.f32.pop %v10510
    %v10513 = vsinq.f32.pop %v10510
    %vm10514 = vweird.f32 %v7518
    %v10515 = vand.u32 %v10511, 3
    %vm10516 = vcmp.lt.s32.totalorder %v10515, 2
    %vm10517 = vcmp.eq.s32.totalorder %v10515, 0
    %v10518 = vxor.u32 %v10513, 2147483648
    %v10519 = vsel %vm10517, %v10512, %v10518
    %vm10520 = vcmp.eq.s32.totalorder %v10515, 2
    %v10521 = vxor.u32 %v10512, 2147483648
    %v10522 = vsel %vm10520, %v10521, %v10513
    %v10523 = vsel %vm10516, %v10519, %v10522
    %v10524 = vsel %vm10514, nan, %v10523
    %v10525 = vand.u32 2147483647, %v7519
    %vm10526 = vcmp.le.f32.partialorder %v10525, 0.7853982
    %vm10527 = vcmp.lt.s32.totalorder %v7519, 0
    %v10528 = vand.u32 %v7519, 2139095040
    %v10529 = vshrl.u32 %v10528, 23
    %v10530 = vsub.s32 %v10529, 127
    %v10531 = vand.u32 2147483647, %v7519
    %v10532 = vand.u32 %v10531, 8388607
    %v10533 = vor.u32 %v10532, 8388608
    %v10534 = vsub.s32 0, %v10533
    %v10535 = vadd.s32 %v10530, 1
    %vm10536 = vcmp.gt.s32.totalorder %v10535, 0
    %v10537 = vsel %vm10536, %v10535, 0
    %v10538 = vshrl.u32 %v10537, 5
    %v10539 = vand.u32 %v10537, 31
    %v10540 = vsub.s32 32, %v10539
    %v10541 = vshrl.u32 683565275, %v10540
    %v10542 = vshll.u32 683565275, %v10539
    %v10543 = vshrl.u32 2475754826, %v10540
    %v10544 = vor.u32 %v10542, %v10543
    %v10545 = vshll.u32 2475754826, %v10539
    %v10546 = vshrl.u32 2131351028, %v10540
    %v10547 = vor.u32 %v10545, %v10546
    %v10548 = vshll.u32 2131351028, %v10539
    %v10549 = vshrl.u32 2102212464, %v10540
    %v10550 = vor.u32 %v10548, %v10549
    %v10551 = vshll.u32 2102212464, %v10539
    %v10552 = vshrl.u32 920167782, %v10540
    %v10553 = vor.u32 %v10551, %v10552
    %v10554 = vshll.u32 920167782, %v10539
    %v10555 = vshrl.u32 1326507024, %v10540
    %v10556 = vor.u32 %v10554, %v10555
    %vm10557 = vcmp.lt.s32.totalorder %v10538, 1
    %vm10558 = vcmp.lt.s32.totalorder %v10538, 2
    %vm10559 = vcmp.lt.s32.totalorder %v10538, 3
    %vm10560 = vcmp.lt.s32.totalorder %v10538, 4
    %v10561 = vsel %vm10557, %v10541, %v10544
    %v10562 = vsel %vm10560, %v10550, 2102212464
    %v10563 = vsel %vm10559, %v10547, %v10562
    %v10564 = vsel %vm10558, %v10561, %v10563
    %v10565 = vsel %vm10557, %v10544, %v10547
    %v10566 = vsel %vm10560, %v10553, 920167782
    %v10567 = vsel %vm10559, %v10550, %v10566
    %v10568 = vsel %vm10558, %v10565, %v10567
    %v10569 = vsel %vm10557, %v10547, %v10550
    %v10570 = vsel %vm10560, %v10556, 1326507024
    %v10571 = vsel %vm10559, %v10553, %v10570
    %v10572 = vsel %vm10558, %v10569, %v10571
    %v10573 = vshll.u32 %v10533, 8
    %v10574 = vmul.u32.u64.compose %v10573, %v10572
    %v10575 = vextract.low.u32 %v10574
    %v10576 = vextract.high.u32 %v10574
    %v10577 = vmul.u32.u64.compose %v10573, %v10568
    %v10578 = vextract.low.u32 %v10577
    %v10579 = vextract.high.u32 %v10577
    %v10580 = vmul.u32 %v10573, %v10564
    %v10581 = vadd.s32 %v10576, %v10578
    %vm10582 = vc.u32 %v10576, %v10578
    %v10583 = vadd.s32 %v10579, 1
    %v10584 = vsel %vm10582, %v10583, %v10579
    %v10585 = vadd.s32 %v10580, %v10584
    %v10586 = vadd.s32 %v10585, 536870912
    %v10587 = vshrl.u32 %v10586, 30
    %v10588 = vshll.u32 %v10587, 30
    %v10589 = vsub.s32 %v10585, %v10588
    %vm10590 = vcmp.lt.s32.totalorder %v10589, 0
    %v10591 = vsub.s32 0, %v10589
    %v10592 = vsel %vm10590, %v10591, %v10589
    %v10593 = vclz %v10592
    %v10594 = vsub.s32 %v10593, 2
    %vm10595 = vcmp.gt.s32.totalorder 0, %v10594
    %v10596 = vsel %vm10595, 0, %v10594
    %v10597 = vsub.s32 32, %v10596
    %v10598 = vshll.u32 %v10589, %v10596
    %v10599 = vshrl.u32 %v10581, %v10597
    %v10600 = vor.u32 %v10598, %v10599
    %v10601 = vsub.s32 4294967266, %v10596
    %v10602 = vadd.s32 %v10601, 127
    %v10603 = vshll.u32 %v10602, 23
    %v10604 = vor.u32 4788187, %v10603
    %v10605 = vand.u32 2147483647, %v10604
    %v10607 = vcvt.s32.f32 %v10600
    %v10608 = vmul.f32 %v10607, %v10605
    %v10609 = vxor.u32 %v10608, 2147483648
    %v10610 = vsel %vm10527, %v10609, %v10608
    %v10611 = vsub.s32 4, %v10587
    %v10612 = vsel %vm10527, %v10611, %v10587
    %v10613 = vsel %vm10526, %v7519, %v10610
    %v10614 = vsel %vm10526, 0, %v10612
    %v10615 = vcosq.f32.pop %v10613
    %v10616 = vsinq.f32.pop %v10613
    %vm10617 = vweird.f32 %v7519
    %v10618 = vand.u32 %v10614, 3
    %vm10619 = vcmp.lt.s32.totalorder %v10618, 2
    %vm10620 = vcmp.eq.s32.totalorder %v10618, 0
    %v10621 = vxor.u32 %v10616, 2147483648
    %v10622 = vsel %vm10620, %v10615, %v10621
    %vm10623 = vcmp.eq.s32.totalorder %v10618, 2
    %v10624 = vxor.u32 %v10615, 2147483648
    %v10625 = vsel %vm10623, %v10624, %v10616
    %v10626 = vsel %vm10619, %v10622, %v10625
    %v10627 = vsel %vm10617, nan, %v10626
    %v10628 = vand.u32 2147483647, %v7520
    %vm10629 = vcmp.le.f32.partialorder %v10628, 0.7853982
    %vm10630 = vcmp.lt.s32.totalorder %v7520, 0
    %v10631 = vand.u32 %v7520, 2139095040
    %v10632 = vshrl.u32 %v10631, 23
    %v10633 = vsub.s32 %v10632, 127
    %v10634 = vand.u32 2147483647, %v7520
    %v10635 = vand.u32 %v10634, 8388607
    %v10636 = vor.u32 %v10635, 8388608
    %v10637 = vsub.s32 0, %v10636
    %v10638 = vadd.s32 %v10633, 1
    %vm10639 = vcmp.gt.s32.totalorder %v10638, 0
    %v10640 = vsel %vm10639, %v10638, 0
    %v10641 = vshrl.u32 %v10640, 5
    %v10642 = vand.u32 %v10640, 31
    %v10643 = vsub.s32 32, %v10642
    %v10644 = vshrl.u32 683565275, %v10643
    %v10645 = vshll.u32 683565275, %v10642
    %v10646 = vshrl.u32 2475754826, %v10643
    %v10647 = vor.u32 %v10645, %v10646
    %v10648 = vshll.u32 2475754826, %v10642
    %v10649 = vshrl.u32 2131351028, %v10643
    %v10650 = vor.u32 %v10648, %v10649
    %v10651 = vshll.u32 2131351028, %v10642
    %v10652 = vshrl.u32 2102212464, %v10643
    %v10653 = vor.u32 %v10651, %v10652
    %v10654 = vshll.u32 2102212464, %v10642
    %v10655 = vshrl.u32 920167782, %v10643
    %v10656 = vor.u32 %v10654, %v10655
    %v10657 = vshll.u32 920167782, %v10642
    %v10658 = vshrl.u32 1326507024, %v10643
    %v10659 = vor.u32 %v10657, %v10658
    %vm10660 = vcmp.lt.s32.totalorder %v10641, 1
    %vm10661 = vcmp.lt.s32.totalorder %v10641, 2
    %vm10662 = vcmp.lt.s32.totalorder %v10641, 3
    %vm10663 = vcmp.lt.s32.totalorder %v10641, 4
    %v10664 = vsel %vm10660, %v10644, %v10647
    %v10665 = vsel %vm10663, %v10653, 2102212464
    %v10666 = vsel %vm10662, %v10650, %v10665
    %v10667 = vsel %vm10661, %v10664, %v10666
    %v10668 = vsel %vm10660, %v10647, %v10650
    %v10669 = vsel %vm10663, %v10656, 920167782
    %v10670 = vsel %vm10662, %v10653, %v10669
    %v10671 = vsel %vm10661, %v10668, %v10670
    %v10672 = vsel %vm10660, %v10650, %v10653
    %v10673 = vsel %vm10663, %v10659, 1326507024
    %v10674 = vsel %vm10662, %v10656, %v10673
    %v10675 = vsel %vm10661, %v10672, %v10674
    %v10676 = vshll.u32 %v10636, 8
    %v10677 = vmul.u32.u64.compose %v10676, %v10675
    %v10678 = vextract.low.u32 %v10677
    %v10679 = vextract.high.u32 %v10677
    %v10680 = vmul.u32.u64.compose %v10676, %v10671
    %v10681 = vextract.low.u32 %v10680
    %v10682 = vextract.high.u32 %v10680
    %v10683 = vmul.u32 %v10676, %v10667
    %v10684 = vadd.s32 %v10679, %v10681
    %vm10685 = vc.u32 %v10679, %v10681
    %v10686 = vadd.s32 %v10682, 1
    %v10687 = vsel %vm10685, %v10686, %v10682
    %v10688 = vadd.s32 %v10683, %v10687
    %v10689 = vadd.s32 %v10688, 536870912
    %v10690 = vshrl.u32 %v10689, 30
    %v10691 = vshll.u32 %v10690, 30
    %v10692 = vsub.s32 %v10688, %v10691
    %vm10693 = vcmp.lt.s32.totalorder %v10692, 0
    %v10694 = vsub.s32 0, %v10692
    %v10695 = vsel %vm10693, %v10694, %v10692
    %v10696 = vclz %v10695
    %v10697 = vsub.s32 %v10696, 2
    %vm10698 = vcmp.gt.s32.totalorder 0, %v10697
    %v10699 = vsel %vm10698, 0, %v10697
    %v10700 = vsub.s32 32, %v10699
    %v10701 = vshll.u32 %v10692, %v10699
    %v10702 = vshrl.u32 %v10684, %v10700
    %v10703 = vor.u32 %v10701, %v10702
    %v10704 = vsub.s32 4294967266, %v10699
    %v10705 = vadd.s32 %v10704, 127
    %v10706 = vshll.u32 %v10705, 23
    %v10707 = vor.u32 4788187, %v10706
    %v10708 = vand.u32 2147483647, %v10707
    %v10710 = vcvt.s32.f32 %v10703
    %v10711 = vmul.f32 %v10710, %v10708
    %v10712 = vxor.u32 %v10711, 2147483648
    %v10713 = vsel %vm10630, %v10712, %v10711
    %v10714 = vsub.s32 4, %v10690
    %v10715 = vsel %vm10630, %v10714, %v10690
    %v10716 = vsel %vm10629, %v7520, %v10713
    %v10717 = vsel %vm10629, 0, %v10715
    %v10718 = vcosq.f32.pop %v10716
    %v10719 = vsinq.f32.pop %v10716
    %vm10720 = vweird.f32 %v7520
    %v10721 = vand.u32 %v10717, 3
    %vm10722 = vcmp.lt.s32.totalorder %v10721, 2
    %vm10723 = vcmp.eq.s32.totalorder %v10721, 0
    %v10724 = vxor.u32 %v10719, 2147483648
    %v10725 = vsel %vm10723, %v10718, %v10724
    %vm10726 = vcmp.eq.s32.totalorder %v10721, 2
    %v10727 = vxor.u32 %v10718, 2147483648
    %v10728 = vsel %vm10726, %v10727, %v10719
    %v10729 = vsel %vm10722, %v10725, %v10728
    %v10730 = vsel %vm10720, nan, %v10729
    %v10731 = vand.u32 2147483647, %v7521
    %vm10732 = vcmp.le.f32.partialorder %v10731, 0.7853982
    %vm10733 = vcmp.lt.s32.totalorder %v7521, 0
    %v10734 = vand.u32 %v7521, 2139095040
    %v10735 = vshrl.u32 %v10734, 23
    %v10736 = vsub.s32 %v10735, 127
    %v10737 = vand.u32 2147483647, %v7521
    %v10738 = vand.u32 %v10737, 8388607
    %v10739 = vor.u32 %v10738, 8388608
    %v10740 = vsub.s32 0, %v10739
    %v10741 = vadd.s32 %v10736, 1
    %vm10742 = vcmp.gt.s32.totalorder %v10741, 0
    %v10743 = vsel %vm10742, %v10741, 0
    %v10744 = vshrl.u32 %v10743, 5
    %v10745 = vand.u32 %v10743, 31
    %v10746 = vsub.s32 32, %v10745
    %v10747 = vshrl.u32 683565275, %v10746
    %v10748 = vshll.u32 683565275, %v10745
    %v10749 = vshrl.u32 2475754826, %v10746
    %v10750 = vor.u32 %v10748, %v10749
    %v10751 = vshll.u32 2475754826, %v10745
    %v10752 = vshrl.u32 2131351028, %v10746
    %v10753 = vor.u32 %v10751, %v10752
    %v10754 = vshll.u32 2131351028, %v10745
    %v10755 = vshrl.u32 2102212464, %v10746
    %v10756 = vor.u32 %v10754, %v10755
    %v10757 = vshll.u32 2102212464, %v10745
    %v10758 = vshrl.u32 920167782, %v10746
    %v10759 = vor.u32 %v10757, %v10758
    %v10760 = vshll.u32 920167782, %v10745
    %v10761 = vshrl.u32 1326507024, %v10746
    %v10762 = vor.u32 %v10760, %v10761
    %vm10763 = vcmp.lt.s32.totalorder %v10744, 1
    %vm10764 = vcmp.lt.s32.totalorder %v10744, 2
    %vm10765 = vcmp.lt.s32.totalorder %v10744, 3
    %vm10766 = vcmp.lt.s32.totalorder %v10744, 4
    %v10767 = vsel %vm10763, %v10747, %v10750
    %v10768 = vsel %vm10766, %v10756, 2102212464
    %v10769 = vsel %vm10765, %v10753, %v10768
    %v10770 = vsel %vm10764, %v10767, %v10769
    %v10771 = vsel %vm10763, %v10750, %v10753
    %v10772 = vsel %vm10766, %v10759, 920167782
    %v10773 = vsel %vm10765, %v10756, %v10772
    %v10774 = vsel %vm10764, %v10771, %v10773
    %v10775 = vsel %vm10763, %v10753, %v10756
    %v10776 = vsel %vm10766, %v10762, 1326507024
    %v10777 = vsel %vm10765, %v10759, %v10776
    %v10778 = vsel %vm10764, %v10775, %v10777
    %v10779 = vshll.u32 %v10739, 8
    %v10780 = vmul.u32.u64.compose %v10779, %v10778
    %v10781 = vextract.low.u32 %v10780
    %v10782 = vextract.high.u32 %v10780
    %v10783 = vmul.u32.u64.compose %v10779, %v10774
    %v10784 = vextract.low.u32 %v10783
    %v10785 = vextract.high.u32 %v10783
    %v10786 = vmul.u32 %v10779, %v10770
    %v10787 = vadd.s32 %v10782, %v10784
    %vm10788 = vc.u32 %v10782, %v10784
    %v10789 = vadd.s32 %v10785, 1
    %v10790 = vsel %vm10788, %v10789, %v10785
    %v10791 = vadd.s32 %v10786, %v10790
    %v10792 = vadd.s32 %v10791, 536870912
    %v10793 = vshrl.u32 %v10792, 30
    %v10794 = vshll.u32 %v10793, 30
    %v10795 = vsub.s32 %v10791, %v10794
    %vm10796 = vcmp.lt.s32.totalorder %v10795, 0
    %v10797 = vsub.s32 0, %v10795
    %v10798 = vsel %vm10796, %v10797, %v10795
    %v10799 = vclz %v10798
    %v10800 = vsub.s32 %v10799, 2
    %vm10801 = vcmp.gt.s32.totalorder 0, %v10800
    %v10802 = vsel %vm10801, 0, %v10800
    %v10803 = vsub.s32 32, %v10802
    %v10804 = vshll.u32 %v10795, %v10802
    %v10805 = vshrl.u32 %v10787, %v10803
    %v10806 = vor.u32 %v10804, %v10805
    %v10807 = vsub.s32 4294967266, %v10802
    %v10808 = vadd.s32 %v10807, 127
    %v10809 = vshll.u32 %v10808, 23
    %v10810 = vor.u32 4788187, %v10809
    %v10811 = vand.u32 2147483647, %v10810
    %v10813 = vcvt.s32.f32 %v10806
    %v10814 = vmul.f32 %v10813, %v10811
    %v10815 = vxor.u32 %v10814, 2147483648
    %v10816 = vsel %vm10733, %v10815, %v10814
    %v10817 = vsub.s32 4, %v10793
    %v10818 = vsel %vm10733, %v10817, %v10793
    %v10819 = vsel %vm10732, %v7521, %v10816
    %v10820 = vsel %vm10732, 0, %v10818
    %v10821 = vcosq.f32.pop %v10819
    %v10822 = vsinq.f32.pop %v10819
    %vm10823 = vweird.f32 %v7521
    %v10824 = vand.u32 %v10820, 3
    %vm10825 = vcmp.lt.s32.totalorder %v10824, 2
    %vm10826 = vcmp.eq.s32.totalorder %v10824, 0
    %v10827 = vxor.u32 %v10822, 2147483648
    %v10828 = vsel %vm10826, %v10821, %v10827
    %vm10829 = vcmp.eq.s32.totalorder %v10824, 2
    %v10830 = vxor.u32 %v10821, 2147483648
    %v10831 = vsel %vm10829, %v10830, %v10822
    %v10832 = vsel %vm10825, %v10828, %v10831
    %v10833 = vsel %vm10823, nan, %v10832
    %v10834 = vld [vmem:[%s7] sm:$0xff]
    %v10835 = vld [vmem:[%s7 + $0x8] sm:$0xff]
    %v10836 = vld [vmem:[%s7 + $0x10] sm:$0xff]
    %v10837 = vld [vmem:[%s7 + $0x18] sm:$0xff]
    %v10838 = vld [vmem:[%s8] sm:$0xff]
    %v10839 = vld [vmem:[%s8 + $0x8] sm:$0xff]
    %v10840 = vld [vmem:[%s8 + $0x10] sm:$0xff]
    %v10841 = vld [vmem:[%s8 + $0x18] sm:$0xff]
    %v10843 = vsel %vm7112, %v9288, 0
    %v10846 = vsel %vm7112, %v9391, 0
    %v10849 = vsel %vm7112, %v9494, 0
    %v10852 = vsel %vm7112, %v9597, 0
    %v10855 = vsel %vm7112, %v9700, 0
    %v10858 = vsel %vm7112, %v9803, 0
    %v10861 = vsel %vm7112, %v9906, 0
    %v10864 = vsel %vm7112, %v10009, 0
    %v10867 = vsel %vm7112, %v10112, 0
    %v10870 = vsel %vm7112, %v10215, 0
    %v10873 = vsel %vm7112, %v10318, 0
    %v10876 = vsel %vm7112, %v10421, 0
    %v10879 = vsel %vm7112, %v10524, 0
    %v10882 = vsel %vm7112, %v10627, 0
    %v10885 = vsel %vm7112, %v10730, 0
    %v10888 = vsel %vm7112, %v10833, 0
    %10890 = vmatprep.subr.mxu0 0.0
    %10891 = vmatpush1.msra.mxu0 0.0
    %10892 = vmatprep.subr.mxu0 0.0
    %10893 = vmatpush1.msra.mxu0 0.0
    %10894 = vmatprep.subr.mxu0 0.0
    %10895 = vmatpush1.msra.mxu0 0.0
    %10896 = vmatprep.subr.mxu0 0.0
    %10897 = vmatpush1.msra.mxu0 0.0
    %10898 = vmatprep.subr.mxu0 0.0
    %10899 = vmatpush1.msra.mxu0 0.0
    %10900 = vmatprep.subr.mxu0 0.0
    %10901 = vmatpush1.msra.mxu0 0.0
    %10902 = vmatprep.subr.mxu0 0.0
    %10903 = vmatpush1.msra.mxu0 0.0
    %10904 = vmatprep.subr.mxu0 0.0
    %10905 = vmatpush1.msra.mxu0 0.0
    %10906 = vmatprep.subr.mxu0 0.0
    %10907 = vmatpush1.msra.mxu0 0.0
    %10908 = vmatprep.subr.mxu0 0.0
    %10909 = vmatpush1.msra.mxu0 0.0
    %10910 = vmatprep.subr.mxu0 0.0
    %10911 = vmatpush1.msra.mxu0 0.0
    %10912 = vmatprep.subr.mxu0 0.0
    %10913 = vmatpush1.msra.mxu0 0.0
    %10914 = vmatprep.subr.mxu0 0.0
    %10915 = vmatpush1.msra.mxu0 %v10841
    %10916 = vmatprep.subr.mxu0 0.0
    %10917 = vmatpush1.msra.mxu0 %v10840
    %10918 = vmatprep.subr.mxu0 0.0
    %10919 = vmatpush1.msra.mxu0 %v10839
    %10920 = vmatprep.subr.mxu0 0.0
    %10921 = vmatpush1.msra.mxu0 %v10838
    %10922 = vmatprep.subr.mxu0 0.0
    %10923 = vmatpush2.msra.mxu0 0.0
    %10924 = vmatprep.subr.mxu0 0.0
    %10925 = vmatpush2.msra.mxu0 0.0
    %10926 = vmatprep.subr.mxu0 0.0
    %10927 = vmatpush2.msra.mxu0 0.0
    %10928 = vmatprep.subr.mxu0 0.0
    %10929 = vmatpush2.msra.mxu0 0.0
    %10930 = vmatprep.subr.mxu0 0.0
    %10931 = vmatpush2.msra.mxu0 0.0
    %10932 = vmatprep.subr.mxu0 0.0
    %10933 = vmatpush2.msra.mxu0 0.0
    %10934 = vmatprep.subr.mxu0 0.0
    %10935 = vmatpush2.msra.mxu0 0.0
    %10936 = vmatprep.subr.mxu0 0.0
    %10937 = vmatpush2.msra.mxu0 0.0
    %10938 = vmatprep.subr.mxu0 0.0
    %10939 = vmatpush2.msra.mxu0 0.0
    %10940 = vmatprep.subr.mxu0 0.0
    %10941 = vmatpush2.msra.mxu0 0.0
    %10942 = vmatprep.subr.mxu0 0.0
    %10943 = vmatpush2.msra.mxu0 0.0
    %10944 = vmatprep.subr.mxu0 0.0
    %10945 = vmatpush2.msra.mxu0 0.0
    %10946 = vmatprep.subr.mxu0 0.0
    %10947 = vmatpush2.msra.mxu0 0.0
    %10948 = vmatprep.subr.mxu0 0.0
    %10949 = vmatpush2.msra.mxu0 0.0
    %10950 = vmatprep.subr.mxu0 0.0
    %10951 = vmatpush2.msra.mxu0 0.0
    %10952 = vmatprep.subr.mxu0 0.0
    %10953 = vmatpush2.msra.mxu0 0.0
    %10954 = vmatprep.mubr.f32.mxu0 0.0
    %10955 = vmatmul.mubr.f32.gmra.mxu0 %v10843
    %v10956 = vpop.f32.mrf.mxu0
    %v10957 = vadd.f32 0.0, %v10956
    %v10958 = vpop.f32.mrf.mxu0
    %10959 = vmatprep.mubr.f32.mxu0 0.0
    %10960 = vmatmul.mubr.f32.gmra.mxu0 %v10846
    %v10961 = vpop.f32.mrf.mxu0
    %v10962 = vadd.f32 0.0, %v10961
    %v10963 = vpop.f32.mrf.mxu0
    %10964 = vmatprep.mubr.f32.mxu0 0.0
    %10965 = vmatmul.mubr.f32.gmra.mxu0 %v10849
    %v10966 = vpop.f32.mrf.mxu0
    %v10967 = vadd.f32 0.0, %v10966
    %v10968 = vpop.f32.mrf.mxu0
    %10969 = vmatprep.mubr.f32.mxu0 0.0
    %10970 = vmatmul.mubr.f32.gmra.mxu0 %v10852
    %v10971 = vpop.f32.mrf.mxu0
    %v10972 = vadd.f32 0.0, %v10971
    %v10973 = vpop.f32.mrf.mxu0
    %10974 = vmatprep.mubr.f32.mxu0 0.0
    %10975 = vmatmul.mubr.f32.gmra.mxu0 %v10855
    %v10976 = vpop.f32.mrf.mxu0
    %v10977 = vadd.f32 0.0, %v10976
    %v10978 = vpop.f32.mrf.mxu0
    %10979 = vmatprep.mubr.f32.mxu0 0.0
    %10980 = vmatmul.mubr.f32.gmra.mxu0 %v10858
    %v10981 = vpop.f32.mrf.mxu0
    %v10982 = vadd.f32 0.0, %v10981
    %v10983 = vpop.f32.mrf.mxu0
    %10984 = vmatprep.mubr.f32.mxu0 0.0
    %10985 = vmatmul.mubr.f32.gmra.mxu0 %v10861
    %v10986 = vpop.f32.mrf.mxu0
    %v10987 = vadd.f32 0.0, %v10986
    %v10988 = vpop.f32.mrf.mxu0
    %10989 = vmatprep.mubr.f32.mxu0 0.0
    %10990 = vmatmul.mubr.f32.gmra.mxu0 %v10864
    %v10991 = vpop.f32.mrf.mxu0
    %v10992 = vadd.f32 0.0, %v10991
    %v10993 = vpop.f32.mrf.mxu0
    %10994 = vmatprep.mubr.f32.mxu0 0.0
    %10995 = vmatmul.mubr.f32.gmra.mxu0 %v10867
    %v10996 = vpop.f32.mrf.mxu0
    %v10997 = vadd.f32 0.0, %v10996
    %v10998 = vpop.f32.mrf.mxu0
    %10999 = vmatprep.mubr.f32.mxu0 0.0
    %11000 = vmatmul.mubr.f32.gmra.mxu0 %v10870
    %v11001 = vpop.f32.mrf.mxu0
    %v11002 = vadd.f32 0.0, %v11001
    %v11003 = vpop.f32.mrf.mxu0
    %11004 = vmatprep.mubr.f32.mxu0 0.0
    %11005 = vmatmul.mubr.f32.gmra.mxu0 %v10873
    %v11006 = vpop.f32.mrf.mxu0
    %v11007 = vadd.f32 0.0, %v11006
    %v11008 = vpop.f32.mrf.mxu0
    %11009 = vmatprep.mubr.f32.mxu0 0.0
    %11010 = vmatmul.mubr.f32.gmra.mxu0 %v10876
    %v11011 = vpop.f32.mrf.mxu0
    %v11012 = vadd.f32 0.0, %v11011
    %v11013 = vpop.f32.mrf.mxu0
    %11014 = vmatprep.mubr.f32.mxu0 0.0
    %11015 = vmatmul.mubr.f32.gmra.mxu0 %v10879
    %v11016 = vpop.f32.mrf.mxu0
    %v11017 = vadd.f32 0.0, %v11016
    %v11018 = vpop.f32.mrf.mxu0
    %11019 = vmatprep.mubr.f32.mxu0 0.0
    %11020 = vmatmul.mubr.f32.gmra.mxu0 %v10882
    %v11021 = vpop.f32.mrf.mxu0
    %v11022 = vadd.f32 0.0, %v11021
    %v11023 = vpop.f32.mrf.mxu0
    %11024 = vmatprep.mubr.f32.mxu0 0.0
    %11025 = vmatmul.mubr.f32.gmra.mxu0 %v10885
    %v11026 = vpop.f32.mrf.mxu0
    %v11027 = vadd.f32 0.0, %v11026
    %v11028 = vpop.f32.mrf.mxu0
    %11029 = vmatprep.mubr.f32.mxu0 0.0
    %11030 = vmatmul.mubr.f32.gmra.mxu0 %v10888
    %v11031 = vpop.f32.mrf.mxu0
    %v11032 = vadd.f32 0.0, %v11031
    %v11033 = vpop.f32.mrf.mxu0
    %11034 = vdwg.mxu0
    %v11036 = vsel %vm7112, %v7625, 0
    %v11039 = vsel %vm7112, %v7729, 0
    %v11042 = vsel %vm7112, %v7833, 0
    %v11045 = vsel %vm7112, %v7937, 0
    %v11048 = vsel %vm7112, %v8041, 0
    %v11051 = vsel %vm7112, %v8145, 0
    %v11054 = vsel %vm7112, %v8249, 0
    %v11057 = vsel %vm7112, %v8353, 0
    %v11060 = vsel %vm7112, %v8457, 0
    %v11063 = vsel %vm7112, %v8561, 0
    %v11066 = vsel %vm7112, %v8665, 0
    %v11069 = vsel %vm7112, %v8769, 0
    %v11072 = vsel %vm7112, %v8873, 0
    %v11075 = vsel %vm7112, %v8977, 0
    %v11078 = vsel %vm7112, %v9081, 0
    %v11081 = vsel %vm7112, %v9185, 0
    %11083 = vmatprep.subr.mxu0 0.0
    %11084 = vmatpush1.msra.mxu0 0.0
    %11085 = vmatprep.subr.mxu0 0.0
    %11086 = vmatpush1.msra.mxu0 0.0
    %11087 = vmatprep.subr.mxu0 0.0
    %11088 = vmatpush1.msra.mxu0 0.0
    %11089 = vmatprep.subr.mxu0 0.0
    %11090 = vmatpush1.msra.mxu0 0.0
    %11091 = vmatprep.subr.mxu0 0.0
    %11092 = vmatpush1.msra.mxu0 0.0
    %11093 = vmatprep.subr.mxu0 0.0
    %11094 = vmatpush1.msra.mxu0 0.0
    %11095 = vmatprep.subr.mxu0 0.0
    %11096 = vmatpush1.msra.mxu0 0.0
    %11097 = vmatprep.subr.mxu0 0.0
    %11098 = vmatpush1.msra.mxu0 0.0
    %11099 = vmatprep.subr.mxu0 0.0
    %11100 = vmatpush1.msra.mxu0 0.0
    %11101 = vmatprep.subr.mxu0 0.0
    %11102 = vmatpush1.msra.mxu0 0.0
    %11103 = vmatprep.subr.mxu0 0.0
    %11104 = vmatpush1.msra.mxu0 0.0
    %11105 = vmatprep.subr.mxu0 0.0
    %11106 = vmatpush1.msra.mxu0 0.0
    %11107 = vmatprep.subr.mxu0 0.0
    %11108 = vmatpush1.msra.mxu0 %v10837
    %11109 = vmatprep.subr.mxu0 0.0
    %11110 = vmatpush1.msra.mxu0 %v10836
    %11111 = vmatprep.subr.mxu0 0.0
    %11112 = vmatpush1.msra.mxu0 %v10835
    %11113 = vmatprep.subr.mxu0 0.0
    %11114 = vmatpush1.msra.mxu0 %v10834
    %11115 = vmatprep.subr.mxu0 0.0
    %11116 = vmatpush2.msra.mxu0 0.0
    %11117 = vmatprep.subr.mxu0 0.0
    %11118 = vmatpush2.msra.mxu0 0.0
    %11119 = vmatprep.subr.mxu0 0.0
    %11120 = vmatpush2.msra.mxu0 0.0
    %11121 = vmatprep.subr.mxu0 0.0
    %11122 = vmatpush2.msra.mxu0 0.0
    %11123 = vmatprep.subr.mxu0 0.0
    %11124 = vmatpush2.msra.mxu0 0.0
    %11125 = vmatprep.subr.mxu0 0.0
    %11126 = vmatpush2.msra.mxu0 0.0
    %11127 = vmatprep.subr.mxu0 0.0
    %11128 = vmatpush2.msra.mxu0 0.0
    %11129 = vmatprep.subr.mxu0 0.0
    %11130 = vmatpush2.msra.mxu0 0.0
    %11131 = vmatprep.subr.mxu0 0.0
    %11132 = vmatpush2.msra.mxu0 0.0
    %11133 = vmatprep.subr.mxu0 0.0
    %11134 = vmatpush2.msra.mxu0 0.0
    %11135 = vmatprep.subr.mxu0 0.0
    %11136 = vmatpush2.msra.mxu0 0.0
    %11137 = vmatprep.subr.mxu0 0.0
    %11138 = vmatpush2.msra.mxu0 0.0
    %11139 = vmatprep.subr.mxu0 0.0
    %11140 = vmatpush2.msra.mxu0 0.0
    %11141 = vmatprep.subr.mxu0 0.0
    %11142 = vmatpush2.msra.mxu0 0.0
    %11143 = vmatprep.subr.mxu0 0.0
    %11144 = vmatpush2.msra.mxu0 0.0
    %11145 = vmatprep.subr.mxu0 0.0
    %11146 = vmatpush2.msra.mxu0 0.0
    %11147 = vmatprep.mubr.f32.mxu0 0.0
    %11148 = vmatmul.mubr.f32.gmra.mxu0 %v11036
    %v11149 = vpop.f32.mrf.mxu0
    %v11150 = vadd.f32 %v10957, %v11149
    %v11151 = vpop.f32.mrf.mxu0
    %11152 = vmatprep.mubr.f32.mxu0 0.0
    %11153 = vmatmul.mubr.f32.gmra.mxu0 %v11039
    %v11154 = vpop.f32.mrf.mxu0
    %v11155 = vadd.f32 %v10962, %v11154
    %v11156 = vpop.f32.mrf.mxu0
    %11157 = vmatprep.mubr.f32.mxu0 0.0
    %11158 = vmatmul.mubr.f32.gmra.mxu0 %v11042
    %v11159 = vpop.f32.mrf.mxu0
    %v11160 = vadd.f32 %v10967, %v11159
    %v11161 = vpop.f32.mrf.mxu0
    %11162 = vmatprep.mubr.f32.mxu0 0.0
    %11163 = vmatmul.mubr.f32.gmra.mxu0 %v11045
    %v11164 = vpop.f32.mrf.mxu0
    %v11165 = vadd.f32 %v10972, %v11164
    %v11166 = vpop.f32.mrf.mxu0
    %11167 = vmatprep.mubr.f32.mxu0 0.0
    %11168 = vmatmul.mubr.f32.gmra.mxu0 %v11048
    %v11169 = vpop.f32.mrf.mxu0
    %v11170 = vadd.f32 %v10977, %v11169
    %v11171 = vpop.f32.mrf.mxu0
    %11172 = vmatprep.mubr.f32.mxu0 0.0
    %11173 = vmatmul.mubr.f32.gmra.mxu0 %v11051
    %v11174 = vpop.f32.mrf.mxu0
    %v11175 = vadd.f32 %v10982, %v11174
    %v11176 = vpop.f32.mrf.mxu0
    %11177 = vmatprep.mubr.f32.mxu0 0.0
    %11178 = vmatmul.mubr.f32.gmra.mxu0 %v11054
    %v11179 = vpop.f32.mrf.mxu0
    %v11180 = vadd.f32 %v10987, %v11179
    %v11181 = vpop.f32.mrf.mxu0
    %11182 = vmatprep.mubr.f32.mxu0 0.0
    %11183 = vmatmul.mubr.f32.gmra.mxu0 %v11057
    %v11184 = vpop.f32.mrf.mxu0
    %v11185 = vadd.f32 %v10992, %v11184
    %v11186 = vpop.f32.mrf.mxu0
    %11187 = vmatprep.mubr.f32.mxu0 0.0
    %11188 = vmatmul.mubr.f32.gmra.mxu0 %v11060
    %v11189 = vpop.f32.mrf.mxu0
    %v11190 = vadd.f32 %v10997, %v11189
    %v11191 = vpop.f32.mrf.mxu0
    %11192 = vmatprep.mubr.f32.mxu0 0.0
    %11193 = vmatmul.mubr.f32.gmra.mxu0 %v11063
    %v11194 = vpop.f32.mrf.mxu0
    %v11195 = vadd.f32 %v11002, %v11194
    %v11196 = vpop.f32.mrf.mxu0
    %11197 = vmatprep.mubr.f32.mxu0 0.0
    %11198 = vmatmul.mubr.f32.gmra.mxu0 %v11066
    %v11199 = vpop.f32.mrf.mxu0
    %v11200 = vadd.f32 %v11007, %v11199
    %v11201 = vpop.f32.mrf.mxu0
    %11202 = vmatprep.mubr.f32.mxu0 0.0
    %11203 = vmatmul.mubr.f32.gmra.mxu0 %v11069
    %v11204 = vpop.f32.mrf.mxu0
    %v11205 = vadd.f32 %v11012, %v11204
    %v11206 = vpop.f32.mrf.mxu0
    %11207 = vmatprep.mubr.f32.mxu0 0.0
    %11208 = vmatmul.mubr.f32.gmra.mxu0 %v11072
    %v11209 = vpop.f32.mrf.mxu0
    %v11210 = vadd.f32 %v11017, %v11209
    %v11211 = vpop.f32.mrf.mxu0
    %11212 = vmatprep.mubr.f32.mxu0 0.0
    %11213 = vmatmul.mubr.f32.gmra.mxu0 %v11075
    %v11214 = vpop.f32.mrf.mxu0
    %v11215 = vadd.f32 %v11022, %v11214
    %v11216 = vpop.f32.mrf.mxu0
    %11217 = vmatprep.mubr.f32.mxu0 0.0
    %11218 = vmatmul.mubr.f32.gmra.mxu0 %v11078
    %v11219 = vpop.f32.mrf.mxu0
    %v11220 = vadd.f32 %v11027, %v11219
    %v11221 = vpop.f32.mrf.mxu0
    %11222 = vmatprep.mubr.f32.mxu0 0.0
    %11223 = vmatmul.mubr.f32.gmra.mxu0 %v11081
    %v11224 = vpop.f32.mrf.mxu0
    %v11225 = vadd.f32 %v11032, %v11224
    %v11226 = vpop.f32.mrf.mxu0
    %11227 = vdwg.mxu0
    %v11228 = vld [vmem:[%s9] sm:$0x1]
    %v11230 = vlaneseq
    %v11231 = vshrl.u32 %v11230, 7
    %v11232 = vsub.s32 0, %v11231
    %v11233 = vrot.slane %v11228, %v11232
    %v11235 = vadd.f32 %v11150, %v11233
    %v11236 = vadd.f32 %v11155, %v11233
    %v11237 = vadd.f32 %v11160, %v11233
    %v11238 = vadd.f32 %v11165, %v11233
    %v11239 = vadd.f32 %v11170, %v11233
    %v11240 = vadd.f32 %v11175, %v11233
    %v11241 = vadd.f32 %v11180, %v11233
    %v11242 = vadd.f32 %v11185, %v11233
    %v11243 = vadd.f32 %v11190, %v11233
    %v11244 = vadd.f32 %v11195, %v11233
    %v11245 = vadd.f32 %v11200, %v11233
    %v11246 = vadd.f32 %v11205, %v11233
    %v11247 = vadd.f32 %v11210, %v11233
    %v11248 = vadd.f32 %v11215, %v11233
    %v11249 = vadd.f32 %v11220, %v11233
    %v11250 = vadd.f32 %v11225, %v11233
    %11251 = vst [vmem:[#allocation5] sm:$0xff] %v11235
    %11252 = vst [vmem:[#allocation5 + $0x8] sm:$0xff] %v11236
    %11253 = vst [vmem:[#allocation5 + $0x10] sm:$0xff] %v11237
    %11254 = vst [vmem:[#allocation5 + $0x18] sm:$0xff] %v11238
    %11255 = vst [vmem:[#allocation5 + $0x20] sm:$0xff] %v11239
    %11256 = vst [vmem:[#allocation5 + $0x28] sm:$0xff] %v11240
    %11257 = vst [vmem:[#allocation5 + $0x30] sm:$0xff] %v11241
    %11258 = vst [vmem:[#allocation5 + $0x38] sm:$0xff] %v11242
    %11259 = vst [vmem:[#allocation5 + $0x40] sm:$0xff] %v11243
    %11260 = vst [vmem:[#allocation5 + $0x48] sm:$0xff] %v11244
    %11261 = vst [vmem:[#allocation5 + $0x50] sm:$0xff] %v11245
    %11262 = vst [vmem:[#allocation5 + $0x58] sm:$0xff] %v11246
    %11263 = vst [vmem:[#allocation5 + $0x60] sm:$0xff] %v11247
    %11264 = vst [vmem:[#allocation5 + $0x68] sm:$0xff] %v11248
    %11265 = vst [vmem:[#allocation5 + $0x70] sm:$0xff] %v11249
    %11266 = vst [vmem:[#allocation5 + $0x78] sm:$0xff] %v11250
    // Predicated region
    $region46: #{tpu_custom_call.1} parent=1 // pred_check
      _
    $region47: #{tpu_custom_call.1} parent=1 // pred_check_branch
      %11268 = sbr.rel (0) target = $region49
    $region48: #{tpu_custom_call.1} parent=1 // pred_region
      %s11270 = ssub.s32 2048, 2048
      %11271 = vsyncadd [#allocation4], %s11270
      %s11272 = sshll.u32 [#allocation5], 4
      %s11273 = int_to_ptr.vmem [resolvable:$true] %s11272
      %11278 = dma.vmem_to_hbm [thread:$0]  %s11273, 2048, %s10, [#allocation4], 128, 128, 8
    $region49: #{tpu_custom_call.1} parent=1 // pred_fallthru
      _
    // Predicated region
    $region50: #{tpu_custom_call.1} parent=1 // pred_check
      _
    $region51: #{tpu_custom_call.1} parent=1 // pred_check_branch
      %11280 = sbr.rel (0) target = $region53
    $region52: #{tpu_custom_call.1} parent=1 // pred_region
      %11281 = dma.done [#allocation4], 2048
    $region53: #{tpu_custom_call.1} parent=1 // pred_fallthru
      _
    %11282 = vsyncpa [#allocation3], 1
    %11283 = vsyncpa [#allocation4], 1

</llo_original>
